<compile_context>
chip_gen: v7x
topology: tpu7x:2x2x1
jax: 0.10.0
libtpu: 0.0.40
codegen_flags: <defaults>
</compile_context>

<pallas_src>
import math
import jax
import jax.numpy as jnp
from jax.experimental import pallas as pl
from jax.experimental.pallas import tpu as pltpu

# ---------------- layout constants (shared by host packing and kernel slicing) ----------
FW = 64          # uniform in-kernel feature width (all fin/fout <= 64, zero-padded)
EDGE_PAD = 8     # edge features (2) zero-padded to 8 so the edge matmul K is 8-aligned
# packed weight slab: per-layer row offsets (all multiples of 8 -> aligned ref slices)
OFF_WM_SRC = 0           # M weight, h_src rows        [FW, FW]
OFF_WM_DST = 64          # M weight, h_dst rows        [FW, FW]
OFF_WM_E = 128           # M weight, edge rows         [EDGE_PAD, FW]
OFF_WU = 136             # U weight, 5 blocks (h, mean, max, sum, std), each [FW, FW]
OFF_WMIX = 456           # mixing layer weight         [FW, FW]
PL_ROWS = 520            # rows per layer
N_LAYERS = 5
WC_OFF = N_LAYERS * PL_ROWS   # final Conv1d(64->1) weight as [FW, FW] (only col 0 real)
W_ROWS = WC_OFF + FW
B_ROWS = 3 * N_LAYERS + 1     # bm/bu/bmix per layer + conv bias


def _full_spec(shape):
    nd = len(shape)
    return pl.BlockSpec(shape, lambda i, nd=nd: (0,) * nd)


# ----------------------------------------------------------------------------
# One fused kernel: 5 x PNAConv (+ReLU) -> graph max-pool -> Conv1d(64->1,k=1) -> ReLU
# ----------------------------------------------------------------------------
def build_fused_critic(N, E, B, layer_cfgs):
    """E must be a multiple of 8 (host pads). layer_cfgs: list of (fin, fout, residual)."""
    assert len(layer_cfgs) == N_LAYERS
    f32, bf16 = jnp.float32, jnp.bfloat16

    def kernel(h0_ref, nss_ref, ef_ref, sg_ref, sdt_ref, deg_ref, snorm_ref,
               gneg_ref, w_ref, b_ref, out_ref):
        # structural arrays stay bf16 (exact for 0/1) -> bf16 MXU path, f32 accumulate
        sg = sg_ref[...]                             # [2E, N] stacked src/dst one-hots
        sdt = sdt_ref[...]                           # [N, E]  dst one-hot, transposed (host)
        # additive segment-max mask: 0 where edge e targets node n, ~-1e30 elsewhere (bf16)
        negdst = (sdt - 1.0) * 1e30                  # [N, E] bf16
        ef = ef_ref[...]                             # [E, EDGE_PAD] f32
        deg = deg_ref[...]                           # [N, 1] in-degree
        snorm = snorm_ref[...]                       # [N, 1] sqrt(1 / n_nodes_in_graph)
        safe_deg = jnp.maximum(deg, 1.0)
        has_nb = (deg > 0.0).astype(f32)             # DGL zero-in-degree -> 0 aggregations
        biases = b_ref[...]                          # [B_ROWS, FW]

        def w(off, rows=FW):
            return w_ref[off:off + rows, :]          # static, 8-aligned row slice

        def pna_layer(h, li, residual):
            base = li * PL_ROWS
            bm = biases[3 * li:3 * li + 1, :]
            bu = biases[3 * li + 1:3 * li + 2, :]
            bmix = biases[3 * li + 2:3 * li + 3, :]
            # endpoint gather: ONE stacked bf16 MXU matmul; rows [:E]=src, [E:]=dst
            g = jnp.dot(sg, h.astype(bf16), preferred_element_type=f32)      # [2E, FW]
            hs, hd = g[:E], g[E:]
            # message linear M([h_src, h_dst, e]) as 3 accumulated partial matmuls
            msg = (jnp.dot(hs, w(base + OFF_WM_SRC), preferred_element_type=f32)
                   + jnp.dot(hd, w(base + OFF_WM_DST), preferred_element_type=f32)
                   + jnp.dot(ef, w(base + OFF_WM_E, EDGE_PAD), preferred_element_type=f32)
                   + bm)                                                     # [E, FW]
            # segment sum / sum-of-squares by destination (bf16 MXU, f32 accumulate)
            msg_b = msg.astype(bf16)
            ssum = jnp.dot(sdt, msg_b, preferred_element_type=f32)           # [N, FW]
            ssq = jnp.dot(sdt, msg_b * msg_b, preferred_element_type=f32)    # [N, FW]
            mean = ssum / safe_deg
            var = jnp.maximum(ssq / safe_deg - mean * mean, 0.0)
            std = jnp.sqrt(var + 1e-30)              # DGL aggregate_std epsilon
            # segment max: additive mask broadcast-add + sublane reduce (finite sentinel)
            maxv = jnp.max(msg[None, :, :] + negdst[:, :, None], axis=1)     # [N, FW]
            mean = mean * has_nb
            maxv = maxv * has_nb
            ssum = ssum * has_nb
            std = std * has_nb
            # U([h, mean, max, sum, std]) as 5 accumulated partial matmuls, then snorm
            hlin = (jnp.dot(h, w(base + OFF_WU + 0 * FW), preferred_element_type=f32)
                    + jnp.dot(mean, w(base + OFF_WU + 1 * FW), preferred_element_type=f32)
                    + jnp.dot(maxv, w(base + OFF_WU + 2 * FW), preferred_element_type=f32)
                    + jnp.dot(ssum, w(base + OFF_WU + 3 * FW), preferred_element_type=f32)
                    + jnp.dot(std, w(base + OFF_WU + 4 * FW), preferred_element_type=f32)
                    + bu) * snorm
            # mixing layer Linear + LeakyReLU(0.01); residual only when fin == fout
            hmix = jnp.dot(hlin, w(base + OFF_WMIX), preferred_element_type=f32) + bmix
            hout = jnp.where(hmix > 0, hmix, 0.01 * hmix)
            if residual:
                hout = hout + h
            return jnp.maximum(hout, 0.0)            # module last=0 -> ReLU

        h = h0_ref[...]                              # [N, FW], real features in cols [:f0]
        col = jax.lax.broadcasted_iota(jnp.int32, (1, FW), 1)
        sel_8_12 = ((col >= 8) & (col < 12)).astype(f32)     # lanes 8..11 selector
        for li, (_fin, _fout, residual) in enumerate(layer_cfgs):
            if li == 3:
                # t_feat = cat([n_feat_3 (8 cols), tile(ns_s, 4)]) written into lanes 8..11
                h = h + nss_ref[...] * sel_8_12
            h = pna_layer(h, li, residual)

        # graph max-pool (additive mask) + Conv1d(64->1, k=1) + ReLU, fused
        gneg = gneg_ref[...]                                          # [B, N]
        gmax = jnp.max(h[None, :, :] + gneg[:, :, None], axis=1)      # [B, FW]
        logits = (jnp.dot(gmax, w(WC_OFF), preferred_element_type=f32)
                  + biases[B_ROWS - 1:B_ROWS, :])                     # [B, FW], col 0 real
        out_ref[...] = jnp.maximum(logits[:, :1], 0.0)

    in_shapes = [(N, FW), (N, 1), (E, EDGE_PAD), (2 * E, N), (N, E), (N, 1), (N, 1),
                 (B, N), (W_ROWS, FW), (B_ROWS, FW)]
    return pl.pallas_call(
        kernel,
        out_shape=jax.ShapeDtypeStruct((B, 1), jnp.float32),
        grid=(1,),
        in_specs=[_full_spec(s) for s in in_shapes],
        out_specs=_full_spec((B, 1)),
        compiler_params=pltpu.CompilerParams(
            dimension_semantics=("arbitrary",),
            vmem_limit_bytes=48 * 1024 * 1024),      # explicit budget (fits v7x's 64 MiB)
    )


# ----------------------------------------------------------------------------
# Deterministic parameter init (shapes from the module's __init__) + slab packing
# ----------------------------------------------------------------------------
def _linear_init(key, fan_in, fan_out):
    kw, kb = jax.random.split(key)
    bound = 1.0 / math.sqrt(fan_in)
    w = jax.random.uniform(kw, (fan_in, fan_out), jnp.float32, -bound, bound)
    b = jax.random.uniform(kb, (1, fan_out), jnp.float32, -bound, bound)
    return w, b


def init_pna_params(key, fin, fout, edge_feats=2):
    k1, k2, k3 = jax.random.split(key, 3)
    wm, bm = _linear_init(k1, 2 * fin + edge_feats, fin)   # M: Linear(2*fin + 2 -> fin)
    wu, bu = _linear_init(k2, 5 * fin, fout)               # U: Linear((4 agg + 1)*fin -> fout)
    wmix, bmix = _linear_init(k3, fout, fout)              # mixing: Linear(fout -> fout)
    return dict(wm=wm, bm=bm, wu=wu, bu=bu, wmix=wmix, bmix=bmix)


def pack_params(layer_params, layer_cfgs, wc, bc, edge_feats=2):
    """Pack the ~32 small weight/bias tensors into 2 zero-padded slabs (2 DMAs total)."""
    wslab = jnp.zeros((W_ROWS, FW), jnp.float32)
    bslab = jnp.zeros((B_ROWS, FW), jnp.float32)
    for li, (p, (fin, fout, _res)) in enumerate(zip(layer_params, layer_cfgs)):
        base = li * PL_ROWS
        wm, wu = p['wm'], p['wu']
        wslab = wslab.at[base + OFF_WM_SRC:base + OFF_WM_SRC + fin, :fin].set(wm[:fin])
        wslab = wslab.at[base + OFF_WM_DST:base + OFF_WM_DST + fin, :fin].set(wm[fin:2 * fin])
        wslab = wslab.at[base + OFF_WM_E:base + OFF_WM_E + edge_feats, :fin].set(wm[2 * fin:])
        for bi in range(5):   # U row blocks: h, mean, max, sum, std
            wslab = wslab.at[base + OFF_WU + bi * FW:base + OFF_WU + bi * FW + fin,
                             :fout].set(wu[bi * fin:(bi + 1) * fin])
        wslab = wslab.at[base + OFF_WMIX:base + OFF_WMIX + fout, :fout].set(p['wmix'])
        bslab = bslab.at[3 * li, :fin].set(p['bm'][0])
        bslab = bslab.at[3 * li + 1, :fout].set(p['bu'][0])
        bslab = bslab.at[3 * li + 2, :fout].set(p['bmix'][0])
    wslab = wslab.at[WC_OFF:WC_OFF + wc.shape[0], :wc.shape[1]].set(wc)
    bslab = bslab.at[B_ROWS - 1, :bc.shape[1]].set(bc[0])
    return wslab, bslab


# ----------------------------------------------------------------------------
# Critic forward (host-side structural prep + single fused kernel call)
# ----------------------------------------------------------------------------
def critic_forward(node_attr, edge_attr, src, dst, graph_ids, n_per_graph,
                   wslab, bslab, layer_cfgs):
    N = int(node_attr.shape[0])
    B = int(n_per_graph.shape[0])
    E = int(src.shape[0])
    E_pad = ((E + 7) // 8) * 8           # keep the src/dst split of the stacked gather aligned

    ns = node_attr[:, :-1]                                           # [N, in_node_feats-1]
    h0 = jnp.pad(ns, ((0, 0), (0, FW - ns.shape[1])))                # [N, FW]
    ns_s = node_attr[:, -1:]                                         # [N, 1]
    ef = jnp.pad(edge_attr, ((0, E_pad - E), (0, EDGE_PAD - edge_attr.shape[1])))

    # structural one-hots stored as bf16 (exact for 0/1); fed to the MXU without upcast
    ssrc = jnp.pad(jax.nn.one_hot(src, N, dtype=jnp.bfloat16), ((0, E_pad - E), (0, 0)))
    sdst = jnp.pad(jax.nn.one_hot(dst, N, dtype=jnp.bfloat16), ((0, E_pad - E), (0, 0)))
    sg = jnp.concatenate([ssrc, sdst], axis=0)                       # [2*E_pad, N]
    sdt = sdst.T                                                     # [N, E_pad] (host, once)

    deg = jnp.sum(jax.nn.one_hot(dst, N, dtype=jnp.float32), axis=0)[:, None]        # [N, 1]
    snorm = jnp.sqrt(1.0 / n_per_graph.astype(jnp.float32))[graph_ids][:, None]      # [N, 1]
    gm = jax.nn.one_hot(graph_ids, B, dtype=jnp.float32).T           # [B, N]
    gneg = (gm - 1.0) * 1e30                                         # additive pooling mask

    fused = build_fused_critic(N, E_pad, B, layer_cfgs)
    logits = fused(h0, ns_s, ef, sg, sdt, deg, snorm, gneg, wslab, bslab)   # [B, 1]
    return logits.reshape(B, 1, 1)                                   # Conv1d NCW output


if __name__ == "__main__":
    # TODO(synk): GraphDataset / GraphDataLoader (obs -> DGL batched graph) is dataset
    # specific; a deterministic synthetic batched graph (2 graphs x 8 nodes, bidirectional
    # ring) is built in-script instead.
    key = jax.random.PRNGKey(0)
    in_node_feats = 9
    B, n_per = 2, 8
    N = B * n_per

    src_list, dst_list, gid_list = [], [], []
    for gidx in range(B):
        base = gidx * n_per
        for i in range(n_per):
            j = (i + 1) % n_per
            src_list += [base + i, base + j]
            dst_list += [base + j, base + i]
        gid_list += [gidx] * n_per
    src = jnp.array(src_list, dtype=jnp.int32)
    dst = jnp.array(dst_list, dtype=jnp.int32)
    graph_ids = jnp.array(gid_list, dtype=jnp.int32)
    n_per_graph = jnp.array([n_per] * B, dtype=jnp.int32)
    E = int(src.shape[0])

    k_n, k_e, k_p = jax.random.split(key, 3)
    node_attr = jax.random.normal(k_n, (N, in_node_feats), jnp.float32)
    edge_attr = jax.random.normal(k_e, (E, 2), jnp.float32)

    # (fin, fout, residual) — all used modules have last=0 -> ReLU; residual iff fin == fout
    layer_cfgs = [
        (in_node_feats - 1, 64, False),   # PNAConvModule_1
        (64, 64, True),                   # PNAConvModule_2
        (64, 8, False),                   # PNAConvModule_3
        (12, 64, False),                  # PNAConvModule_01
        (64, 64, True),                   # PNAConvModule_02
    ]
    pkeys = jax.random.split(k_p, len(layer_cfgs) + 1)
    layer_params = [init_pna_params(pk, fin, fout)
                    for (fin, fout, _r), pk in zip(layer_cfgs, pkeys[:-1])]
    wc, bc = _linear_init(pkeys[-1], 64, 1)          # Conv1d(64, 1, k=1) == Linear(64 -> 1)
    wslab, bslab = pack_params(layer_params, layer_cfgs, wc, bc)

    logits = critic_forward(node_attr, edge_attr, src, dst, graph_ids, n_per_graph,
                            wslab, bslab, layer_cfgs)
    logits = jax.block_until_ready(logits)
    assert logits.shape == (B, 1, 1) and logits.dtype == jnp.float32
    print("KERNEL_OK")
</pallas_src>

<mosaic_0001>
module attributes {stable_mosaic.version = 11 : i64} {
  func.func @kernel(%arg0: i32, %arg1: memref<16x64xf32, #tpu.memory_space<vmem>>, %arg2: memref<16x1xf32, #tpu.memory_space<vmem>>, %arg3: memref<32x8xf32, #tpu.memory_space<vmem>>, %arg4: memref<64x16xbf16, #tpu.memory_space<vmem>>, %arg5: memref<16x32xbf16, #tpu.memory_space<vmem>>, %arg6: memref<16x1xf32, #tpu.memory_space<vmem>>, %arg7: memref<16x1xf32, #tpu.memory_space<vmem>>, %arg8: memref<2x16xf32, #tpu.memory_space<vmem>>, %arg9: memref<2664x64xf32, #tpu.memory_space<vmem>>, %arg10: memref<16x64xf32, #tpu.memory_space<vmem>>, %arg11: memref<2x1xf32, #tpu.memory_space<vmem>>) attributes {dimension_semantics = [#tpu.dimension_semantics<arbitrary>], iteration_bounds = array<i64: 1>, scalar_prefetch = 0 : i64, scratch_operands = 0 : i64, tpu.core_type = #tpu.core_type<tc>, window_params = [{pipeline_mode = #tpu.pipeline_mode<synchronous>, transform_indices = @transform_0, window_bounds = array<i64: 16, 64>}, {pipeline_mode = #tpu.pipeline_mode<synchronous>, transform_indices = @transform_1, window_bounds = array<i64: 16, 1>}, {pipeline_mode = #tpu.pipeline_mode<synchronous>, transform_indices = @transform_2, window_bounds = array<i64: 32, 8>}, {pipeline_mode = #tpu.pipeline_mode<synchronous>, transform_indices = @transform_3, window_bounds = array<i64: 64, 16>}, {pipeline_mode = #tpu.pipeline_mode<synchronous>, transform_indices = @transform_4, window_bounds = array<i64: 16, 32>}, {pipeline_mode = #tpu.pipeline_mode<synchronous>, transform_indices = @transform_5, window_bounds = array<i64: 16, 1>}, {pipeline_mode = #tpu.pipeline_mode<synchronous>, transform_indices = @transform_6, window_bounds = array<i64: 16, 1>}, {pipeline_mode = #tpu.pipeline_mode<synchronous>, transform_indices = @transform_7, window_bounds = array<i64: 2, 16>}, {pipeline_mode = #tpu.pipeline_mode<synchronous>, transform_indices = @transform_8, window_bounds = array<i64: 2664, 64>}, {pipeline_mode = #tpu.pipeline_mode<synchronous>, transform_indices = @transform_9, window_bounds = array<i64: 16, 64>}, {pipeline_mode = #tpu.pipeline_mode<synchronous>, transform_indices = @transform_10, window_bounds = array<i64: 2, 1>}]} {
    %c0 = arith.constant 0 : index
    %c0_0 = arith.constant 0 : index
    %0 = vector.load %arg4[%c0, %c0_0] : memref<64x16xbf16, #tpu.memory_space<vmem>>, vector<64x16xbf16>
    %c0_1 = arith.constant 0 : index
    %c0_2 = arith.constant 0 : index
    %1 = vector.load %arg5[%c0_1, %c0_2] : memref<16x32xbf16, #tpu.memory_space<vmem>>, vector<16x32xbf16>
    %cst = arith.constant 1.000000e+00 : bf16
    %2 = vector.broadcast %cst : bf16 to vector<16x32xbf16>
    %3 = arith.subf %1, %2 : vector<16x32xbf16>
    %cst_3 = arith.constant 1.000260e+30 : bf16
    %4 = vector.broadcast %cst_3 : bf16 to vector<16x32xbf16>
    %5 = arith.mulf %3, %4 : vector<16x32xbf16>
    %c0_4 = arith.constant 0 : index
    %c0_5 = arith.constant 0 : index
    %6 = vector.load %arg3[%c0_4, %c0_5] : memref<32x8xf32, #tpu.memory_space<vmem>>, vector<32x8xf32>
    %c0_6 = arith.constant 0 : index
    %c0_7 = arith.constant 0 : index
    %7 = vector.load %arg6[%c0_6, %c0_7] : memref<16x1xf32, #tpu.memory_space<vmem>>, vector<16x1xf32>
    %c0_8 = arith.constant 0 : index
    %c0_9 = arith.constant 0 : index
    %8 = vector.load %arg7[%c0_8, %c0_9] : memref<16x1xf32, #tpu.memory_space<vmem>>, vector<16x1xf32>
    %cst_10 = arith.constant 1.000000e+00 : f32
    %9 = vector.broadcast %cst_10 : f32 to vector<16x1xf32>
    %10 = arith.maximumf %7, %9 : vector<16x1xf32>
    %cst_11 = arith.constant 0.000000e+00 : f32
    %11 = vector.broadcast %cst_11 : f32 to vector<16x1xf32>
    %12 = arith.cmpf ogt, %7, %11 : vector<16x1xf32>
    %13 = arith.extui %12 : vector<16x1xi1> to vector<16x1xi32>
    %14 = arith.sitofp %13 : vector<16x1xi32> to vector<16x1xf32>
    %c0_12 = arith.constant 0 : index
    %c0_13 = arith.constant 0 : index
    %15 = vector.load %arg10[%c0_12, %c0_13] : memref<16x64xf32, #tpu.memory_space<vmem>>, vector<16x64xf32>
    %c0_14 = arith.constant 0 : index
    %c0_15 = arith.constant 0 : index
    %16 = vector.load %arg1[%c0_14, %c0_15] : memref<16x64xf32, #tpu.memory_space<vmem>>, vector<16x64xf32>
    %17 = tpu.iota {dimensions = array<i32: 1>} : vector<1x64xi32>
    %c8_i32 = arith.constant 8 : i32
    %18 = vector.broadcast %c8_i32 : i32 to vector<1x64xi32>
    %19 = arith.cmpi sge, %17, %18 : vector<1x64xi32>
    %c12_i32 = arith.constant 12 : i32
    %20 = vector.broadcast %c12_i32 : i32 to vector<1x64xi32>
    %21 = arith.cmpi slt, %17, %20 : vector<1x64xi32>
    %22 = arith.andi %19, %21 : vector<1x64xi1>
    %23 = arith.extui %22 : vector<1x64xi1> to vector<1x64xi32>
    %24 = arith.sitofp %23 : vector<1x64xi32> to vector<1x64xf32>
    %25 = vector.extract_strided_slice %15 {offsets = [0, 0], sizes = [1, 64], strides = [1, 1]} : vector<16x64xf32> to vector<1x64xf32>
    %26 = vector.extract_strided_slice %15 {offsets = [1, 0], sizes = [1, 64], strides = [1, 1]} : vector<16x64xf32> to vector<1x64xf32>
    %27 = vector.extract_strided_slice %15 {offsets = [2, 0], sizes = [1, 64], strides = [1, 1]} : vector<16x64xf32> to vector<1x64xf32>
    %28 = arith.truncf %16 : vector<16x64xf32> to vector<16x64xbf16>
    %cst_16 = arith.constant dense<0.000000e+00> : vector<64x64xf32>
    %29 = tpu.matmul %0, %28, %cst_16 {dimension_numbers = #tpu.dot_dimension_numbers<[1], [0], [0], [1], [0, 0, 1, 1], [], []>} : vector<64x16xbf16>, vector<16x64xbf16>, vector<64x64xf32> -> vector<64x64xf32>
    %30 = vector.extract_strided_slice %29 {offsets = [0, 0], sizes = [32, 64], strides = [1, 1]} : vector<64x64xf32> to vector<32x64xf32>
    %31 = vector.extract_strided_slice %29 {offsets = [32, 0], sizes = [32, 64], strides = [1, 1]} : vector<64x64xf32> to vector<32x64xf32>
    %c0_17 = arith.constant 0 : index
    %c0_18 = arith.constant 0 : index
    %32 = vector.load %arg9[%c0_17, %c0_18] : memref<2664x64xf32, #tpu.memory_space<vmem>>, vector<64x64xf32>
    %cst_19 = arith.constant dense<0.000000e+00> : vector<32x64xf32>
    %33 = tpu.matmul %30, %32, %cst_19 {dimension_numbers = #tpu.dot_dimension_numbers<[1], [0], [0], [1], [0, 0, 1, 1], [], []>} : vector<32x64xf32>, vector<64x64xf32>, vector<32x64xf32> -> vector<32x64xf32>
    %c64 = arith.constant 64 : index
    %c0_20 = arith.constant 0 : index
    %34 = vector.load %arg9[%c64, %c0_20] : memref<2664x64xf32, #tpu.memory_space<vmem>>, vector<64x64xf32>
    %cst_21 = arith.constant dense<0.000000e+00> : vector<32x64xf32>
    %35 = tpu.matmul %31, %34, %cst_21 {dimension_numbers = #tpu.dot_dimension_numbers<[1], [0], [0], [1], [0, 0, 1, 1], [], []>} : vector<32x64xf32>, vector<64x64xf32>, vector<32x64xf32> -> vector<32x64xf32>
    %36 = arith.addf %33, %35 : vector<32x64xf32>
    %c128 = arith.constant 128 : index
    %c0_22 = arith.constant 0 : index
    %37 = vector.load %arg9[%c128, %c0_22] : memref<2664x64xf32, #tpu.memory_space<vmem>>, vector<8x64xf32>
    %cst_23 = arith.constant dense<0.000000e+00> : vector<32x64xf32>
    %38 = tpu.matmul %6, %37, %cst_23 {dimension_numbers = #tpu.dot_dimension_numbers<[1], [0], [0], [1], [0, 0, 1, 1], [], []>} : vector<32x8xf32>, vector<8x64xf32>, vector<32x64xf32> -> vector<32x64xf32>
    %39 = arith.addf %36, %38 : vector<32x64xf32>
    %40 = vector.broadcast %25 : vector<1x64xf32> to vector<32x64xf32>
    %41 = arith.addf %39, %40 : vector<32x64xf32>
    %42 = arith.truncf %41 : vector<32x64xf32> to vector<32x64xbf16>
    %cst_24 = arith.constant dense<0.000000e+00> : vector<16x64xf32>
    %43 = tpu.matmul %1, %42, %cst_24 {dimension_numbers = #tpu.dot_dimension_numbers<[1], [0], [0], [1], [0, 0, 1, 1], [], []>} : vector<16x32xbf16>, vector<32x64xbf16>, vector<16x64xf32> -> vector<16x64xf32>
    %44 = arith.mulf %42, %42 : vector<32x64xbf16>
    %cst_25 = arith.constant dense<0.000000e+00> : vector<16x64xf32>
    %45 = tpu.matmul %1, %44, %cst_25 {dimension_numbers = #tpu.dot_dimension_numbers<[1], [0], [0], [1], [0, 0, 1, 1], [], []>} : vector<16x32xbf16>, vector<32x64xbf16>, vector<16x64xf32> -> vector<16x64xf32>
    %46 = vector.broadcast %10 : vector<16x1xf32> to vector<16x64xf32>
    %47 = arith.divf %43, %46 : vector<16x64xf32>
    %48 = vector.broadcast %10 : vector<16x1xf32> to vector<16x64xf32>
    %49 = arith.divf %45, %48 : vector<16x64xf32>
    %50 = arith.mulf %47, %47 : vector<16x64xf32>
    %51 = arith.subf %49, %50 : vector<16x64xf32>
    %cst_26 = arith.constant 0.000000e+00 : f32
    %52 = vector.broadcast %cst_26 : f32 to vector<16x64xf32>
    %53 = arith.maximumf %51, %52 : vector<16x64xf32>
    %cst_27 = arith.constant 1.000000e-30 : f32
    %54 = vector.broadcast %cst_27 : f32 to vector<16x64xf32>
    %55 = arith.addf %53, %54 : vector<16x64xf32>
    %56 = math.sqrt %55 : vector<16x64xf32>
    %57 = vector.shape_cast %41 : vector<32x64xf32> to vector<1x32x64xf32>
    %58 = vector.shape_cast %5 : vector<16x32xbf16> to vector<16x32x1xbf16>
    %59 = arith.extf %58 : vector<16x32x1xbf16> to vector<16x32x1xf32>
    %60 = vector.broadcast %57 : vector<1x32x64xf32> to vector<16x32x64xf32>
    %61 = vector.broadcast %59 : vector<16x32x1xf32> to vector<16x32x64xf32>
    %62 = arith.addf %60, %61 : vector<16x32x64xf32>
    %cst_28 = arith.constant dense<0xFF800000> : vector<16x64xf32>
    %63 = vector.multi_reduction <maximumf>, %62, %cst_28 [1] : vector<16x32x64xf32> to vector<16x64xf32>
    %64 = vector.broadcast %14 : vector<16x1xf32> to vector<16x64xf32>
    %65 = arith.mulf %47, %64 : vector<16x64xf32>
    %66 = vector.broadcast %14 : vector<16x1xf32> to vector<16x64xf32>
    %67 = arith.mulf %63, %66 : vector<16x64xf32>
    %68 = vector.broadcast %14 : vector<16x1xf32> to vector<16x64xf32>
    %69 = arith.mulf %43, %68 : vector<16x64xf32>
    %70 = vector.broadcast %14 : vector<16x1xf32> to vector<16x64xf32>
    %71 = arith.mulf %56, %70 : vector<16x64xf32>
    %c136 = arith.constant 136 : index
    %c0_29 = arith.constant 0 : index
    %72 = vector.load %arg9[%c136, %c0_29] : memref<2664x64xf32, #tpu.memory_space<vmem>>, vector<64x64xf32>
    %cst_30 = arith.constant dense<0.000000e+00> : vector<16x64xf32>
    %73 = tpu.matmul %16, %72, %cst_30 {dimension_numbers = #tpu.dot_dimension_numbers<[1], [0], [0], [1], [0, 0, 1, 1], [], []>} : vector<16x64xf32>, vector<64x64xf32>, vector<16x64xf32> -> vector<16x64xf32>
    %c200 = arith.constant 200 : index
    %c0_31 = arith.constant 0 : index
    %74 = vector.load %arg9[%c200, %c0_31] : memref<2664x64xf32, #tpu.memory_space<vmem>>, vector<64x64xf32>
    %cst_32 = arith.constant dense<0.000000e+00> : vector<16x64xf32>
    %75 = tpu.matmul %65, %74, %cst_32 {dimension_numbers = #tpu.dot_dimension_numbers<[1], [0], [0], [1], [0, 0, 1, 1], [], []>} : vector<16x64xf32>, vector<64x64xf32>, vector<16x64xf32> -> vector<16x64xf32>
    %76 = arith.addf %73, %75 : vector<16x64xf32>
    %c264 = arith.constant 264 : index
    %c0_33 = arith.constant 0 : index
    %77 = vector.load %arg9[%c264, %c0_33] : memref<2664x64xf32, #tpu.memory_space<vmem>>, vector<64x64xf32>
    %cst_34 = arith.constant dense<0.000000e+00> : vector<16x64xf32>
    %78 = tpu.matmul %67, %77, %cst_34 {dimension_numbers = #tpu.dot_dimension_numbers<[1], [0], [0], [1], [0, 0, 1, 1], [], []>} : vector<16x64xf32>, vector<64x64xf32>, vector<16x64xf32> -> vector<16x64xf32>
    %79 = arith.addf %76, %78 : vector<16x64xf32>
    %c328 = arith.constant 328 : index
    %c0_35 = arith.constant 0 : index
    %80 = vector.load %arg9[%c328, %c0_35] : memref<2664x64xf32, #tpu.memory_space<vmem>>, vector<64x64xf32>
    %cst_36 = arith.constant dense<0.000000e+00> : vector<16x64xf32>
    %81 = tpu.matmul %69, %80, %cst_36 {dimension_numbers = #tpu.dot_dimension_numbers<[1], [0], [0], [1], [0, 0, 1, 1], [], []>} : vector<16x64xf32>, vector<64x64xf32>, vector<16x64xf32> -> vector<16x64xf32>
    %82 = arith.addf %79, %81 : vector<16x64xf32>
    %c392 = arith.constant 392 : index
    %c0_37 = arith.constant 0 : index
    %83 = vector.load %arg9[%c392, %c0_37] : memref<2664x64xf32, #tpu.memory_space<vmem>>, vector<64x64xf32>
    %cst_38 = arith.constant dense<0.000000e+00> : vector<16x64xf32>
    %84 = tpu.matmul %71, %83, %cst_38 {dimension_numbers = #tpu.dot_dimension_numbers<[1], [0], [0], [1], [0, 0, 1, 1], [], []>} : vector<16x64xf32>, vector<64x64xf32>, vector<16x64xf32> -> vector<16x64xf32>
    %85 = arith.addf %82, %84 : vector<16x64xf32>
    %86 = vector.broadcast %26 : vector<1x64xf32> to vector<16x64xf32>
    %87 = arith.addf %85, %86 : vector<16x64xf32>
    %88 = vector.broadcast %8 : vector<16x1xf32> to vector<16x64xf32>
    %89 = arith.mulf %87, %88 : vector<16x64xf32>
    %c456 = arith.constant 456 : index
    %c0_39 = arith.constant 0 : index
    %90 = vector.load %arg9[%c456, %c0_39] : memref<2664x64xf32, #tpu.memory_space<vmem>>, vector<64x64xf32>
    %cst_40 = arith.constant dense<0.000000e+00> : vector<16x64xf32>
    %91 = tpu.matmul %89, %90, %cst_40 {dimension_numbers = #tpu.dot_dimension_numbers<[1], [0], [0], [1], [0, 0, 1, 1], [], []>} : vector<16x64xf32>, vector<64x64xf32>, vector<16x64xf32> -> vector<16x64xf32>
    %92 = vector.broadcast %27 : vector<1x64xf32> to vector<16x64xf32>
    %93 = arith.addf %91, %92 : vector<16x64xf32>
    %cst_41 = arith.constant 0.000000e+00 : f32
    %94 = vector.broadcast %cst_41 : f32 to vector<16x64xf32>
    %95 = arith.cmpf ogt, %93, %94 : vector<16x64xf32>
    %cst_42 = arith.constant 0.00999999977 : f32
    %96 = vector.broadcast %cst_42 : f32 to vector<16x64xf32>
    %97 = arith.mulf %96, %93 : vector<16x64xf32>
    %98 = arith.select %95, %93, %97 : vector<16x64xi1>, vector<16x64xf32>
    %cst_43 = arith.constant 0.000000e+00 : f32
    %99 = vector.broadcast %cst_43 : f32 to vector<16x64xf32>
    %100 = arith.maximumf %98, %99 : vector<16x64xf32>
    %101 = vector.extract_strided_slice %15 {offsets = [3, 0], sizes = [1, 64], strides = [1, 1]} : vector<16x64xf32> to vector<1x64xf32>
    %102 = vector.extract_strided_slice %15 {offsets = [4, 0], sizes = [1, 64], strides = [1, 1]} : vector<16x64xf32> to vector<1x64xf32>
    %103 = vector.extract_strided_slice %15 {offsets = [5, 0], sizes = [1, 64], strides = [1, 1]} : vector<16x64xf32> to vector<1x64xf32>
    %104 = arith.truncf %100 : vector<16x64xf32> to vector<16x64xbf16>
    %cst_44 = arith.constant dense<0.000000e+00> : vector<64x64xf32>
    %105 = tpu.matmul %0, %104, %cst_44 {dimension_numbers = #tpu.dot_dimension_numbers<[1], [0], [0], [1], [0, 0, 1, 1], [], []>} : vector<64x16xbf16>, vector<16x64xbf16>, vector<64x64xf32> -> vector<64x64xf32>
    %106 = vector.extract_strided_slice %105 {offsets = [0, 0], sizes = [32, 64], strides = [1, 1]} : vector<64x64xf32> to vector<32x64xf32>
    %107 = vector.extract_strided_slice %105 {offsets = [32, 0], sizes = [32, 64], strides = [1, 1]} : vector<64x64xf32> to vector<32x64xf32>
    %c520 = arith.constant 520 : index
    %c0_45 = arith.constant 0 : index
    %108 = vector.load %arg9[%c520, %c0_45] : memref<2664x64xf32, #tpu.memory_space<vmem>>, vector<64x64xf32>
    %cst_46 = arith.constant dense<0.000000e+00> : vector<32x64xf32>
    %109 = tpu.matmul %106, %108, %cst_46 {dimension_numbers = #tpu.dot_dimension_numbers<[1], [0], [0], [1], [0, 0, 1, 1], [], []>} : vector<32x64xf32>, vector<64x64xf32>, vector<32x64xf32> -> vector<32x64xf32>
    %c584 = arith.constant 584 : index
    %c0_47 = arith.constant 0 : index
    %110 = vector.load %arg9[%c584, %c0_47] : memref<2664x64xf32, #tpu.memory_space<vmem>>, vector<64x64xf32>
    %cst_48 = arith.constant dense<0.000000e+00> : vector<32x64xf32>
    %111 = tpu.matmul %107, %110, %cst_48 {dimension_numbers = #tpu.dot_dimension_numbers<[1], [0], [0], [1], [0, 0, 1, 1], [], []>} : vector<32x64xf32>, vector<64x64xf32>, vector<32x64xf32> -> vector<32x64xf32>
    %112 = arith.addf %109, %111 : vector<32x64xf32>
    %c648 = arith.constant 648 : index
    %c0_49 = arith.constant 0 : index
    %113 = vector.load %arg9[%c648, %c0_49] : memref<2664x64xf32, #tpu.memory_space<vmem>>, vector<8x64xf32>
    %cst_50 = arith.constant dense<0.000000e+00> : vector<32x64xf32>
    %114 = tpu.matmul %6, %113, %cst_50 {dimension_numbers = #tpu.dot_dimension_numbers<[1], [0], [0], [1], [0, 0, 1, 1], [], []>} : vector<32x8xf32>, vector<8x64xf32>, vector<32x64xf32> -> vector<32x64xf32>
    %115 = arith.addf %112, %114 : vector<32x64xf32>
    %116 = vector.broadcast %101 : vector<1x64xf32> to vector<32x64xf32>
    %117 = arith.addf %115, %116 : vector<32x64xf32>
    %118 = arith.truncf %117 : vector<32x64xf32> to vector<32x64xbf16>
    %cst_51 = arith.constant dense<0.000000e+00> : vector<16x64xf32>
    %119 = tpu.matmul %1, %118, %cst_51 {dimension_numbers = #tpu.dot_dimension_numbers<[1], [0], [0], [1], [0, 0, 1, 1], [], []>} : vector<16x32xbf16>, vector<32x64xbf16>, vector<16x64xf32> -> vector<16x64xf32>
    %120 = arith.mulf %118, %118 : vector<32x64xbf16>
    %cst_52 = arith.constant dense<0.000000e+00> : vector<16x64xf32>
    %121 = tpu.matmul %1, %120, %cst_52 {dimension_numbers = #tpu.dot_dimension_numbers<[1], [0], [0], [1], [0, 0, 1, 1], [], []>} : vector<16x32xbf16>, vector<32x64xbf16>, vector<16x64xf32> -> vector<16x64xf32>
    %122 = vector.broadcast %10 : vector<16x1xf32> to vector<16x64xf32>
    %123 = arith.divf %119, %122 : vector<16x64xf32>
    %124 = vector.broadcast %10 : vector<16x1xf32> to vector<16x64xf32>
    %125 = arith.divf %121, %124 : vector<16x64xf32>
    %126 = arith.mulf %123, %123 : vector<16x64xf32>
    %127 = arith.subf %125, %126 : vector<16x64xf32>
    %cst_53 = arith.constant 0.000000e+00 : f32
    %128 = vector.broadcast %cst_53 : f32 to vector<16x64xf32>
    %129 = arith.maximumf %127, %128 : vector<16x64xf32>
    %cst_54 = arith.constant 1.000000e-30 : f32
    %130 = vector.broadcast %cst_54 : f32 to vector<16x64xf32>
    %131 = arith.addf %129, %130 : vector<16x64xf32>
    %132 = math.sqrt %131 : vector<16x64xf32>
    %133 = vector.shape_cast %117 : vector<32x64xf32> to vector<1x32x64xf32>
    %134 = vector.shape_cast %5 : vector<16x32xbf16> to vector<16x32x1xbf16>
    %135 = arith.extf %134 : vector<16x32x1xbf16> to vector<16x32x1xf32>
    %136 = vector.broadcast %133 : vector<1x32x64xf32> to vector<16x32x64xf32>
    %137 = vector.broadcast %135 : vector<16x32x1xf32> to vector<16x32x64xf32>
    %138 = arith.addf %136, %137 : vector<16x32x64xf32>
    %cst_55 = arith.constant dense<0xFF800000> : vector<16x64xf32>
    %139 = vector.multi_reduction <maximumf>, %138, %cst_55 [1] : vector<16x32x64xf32> to vector<16x64xf32>
    %140 = vector.broadcast %14 : vector<16x1xf32> to vector<16x64xf32>
    %141 = arith.mulf %123, %140 : vector<16x64xf32>
    %142 = vector.broadcast %14 : vector<16x1xf32> to vector<16x64xf32>
    %143 = arith.mulf %139, %142 : vector<16x64xf32>
    %144 = vector.broadcast %14 : vector<16x1xf32> to vector<16x64xf32>
    %145 = arith.mulf %119, %144 : vector<16x64xf32>
    %146 = vector.broadcast %14 : vector<16x1xf32> to vector<16x64xf32>
    %147 = arith.mulf %132, %146 : vector<16x64xf32>
    %c656 = arith.constant 656 : index
    %c0_56 = arith.constant 0 : index
    %148 = vector.load %arg9[%c656, %c0_56] : memref<2664x64xf32, #tpu.memory_space<vmem>>, vector<64x64xf32>
    %cst_57 = arith.constant dense<0.000000e+00> : vector<16x64xf32>
    %149 = tpu.matmul %100, %148, %cst_57 {dimension_numbers = #tpu.dot_dimension_numbers<[1], [0], [0], [1], [0, 0, 1, 1], [], []>} : vector<16x64xf32>, vector<64x64xf32>, vector<16x64xf32> -> vector<16x64xf32>
    %c720 = arith.constant 720 : index
    %c0_58 = arith.constant 0 : index
    %150 = vector.load %arg9[%c720, %c0_58] : memref<2664x64xf32, #tpu.memory_space<vmem>>, vector<64x64xf32>
    %cst_59 = arith.constant dense<0.000000e+00> : vector<16x64xf32>
    %151 = tpu.matmul %141, %150, %cst_59 {dimension_numbers = #tpu.dot_dimension_numbers<[1], [0], [0], [1], [0, 0, 1, 1], [], []>} : vector<16x64xf32>, vector<64x64xf32>, vector<16x64xf32> -> vector<16x64xf32>
    %152 = arith.addf %149, %151 : vector<16x64xf32>
    %c784 = arith.constant 784 : index
    %c0_60 = arith.constant 0 : index
    %153 = vector.load %arg9[%c784, %c0_60] : memref<2664x64xf32, #tpu.memory_space<vmem>>, vector<64x64xf32>
    %cst_61 = arith.constant dense<0.000000e+00> : vector<16x64xf32>
    %154 = tpu.matmul %143, %153, %cst_61 {dimension_numbers = #tpu.dot_dimension_numbers<[1], [0], [0], [1], [0, 0, 1, 1], [], []>} : vector<16x64xf32>, vector<64x64xf32>, vector<16x64xf32> -> vector<16x64xf32>
    %155 = arith.addf %152, %154 : vector<16x64xf32>
    %c848 = arith.constant 848 : index
    %c0_62 = arith.constant 0 : index
    %156 = vector.load %arg9[%c848, %c0_62] : memref<2664x64xf32, #tpu.memory_space<vmem>>, vector<64x64xf32>
    %cst_63 = arith.constant dense<0.000000e+00> : vector<16x64xf32>
    %157 = tpu.matmul %145, %156, %cst_63 {dimension_numbers = #tpu.dot_dimension_numbers<[1], [0], [0], [1], [0, 0, 1, 1], [], []>} : vector<16x64xf32>, vector<64x64xf32>, vector<16x64xf32> -> vector<16x64xf32>
    %158 = arith.addf %155, %157 : vector<16x64xf32>
    %c912 = arith.constant 912 : index
    %c0_64 = arith.constant 0 : index
    %159 = vector.load %arg9[%c912, %c0_64] : memref<2664x64xf32, #tpu.memory_space<vmem>>, vector<64x64xf32>
    %cst_65 = arith.constant dense<0.000000e+00> : vector<16x64xf32>
    %160 = tpu.matmul %147, %159, %cst_65 {dimension_numbers = #tpu.dot_dimension_numbers<[1], [0], [0], [1], [0, 0, 1, 1], [], []>} : vector<16x64xf32>, vector<64x64xf32>, vector<16x64xf32> -> vector<16x64xf32>
    %161 = arith.addf %158, %160 : vector<16x64xf32>
    %162 = vector.broadcast %102 : vector<1x64xf32> to vector<16x64xf32>
    %163 = arith.addf %161, %162 : vector<16x64xf32>
    %164 = vector.broadcast %8 : vector<16x1xf32> to vector<16x64xf32>
    %165 = arith.mulf %163, %164 : vector<16x64xf32>
    %c976 = arith.constant 976 : index
    %c0_66 = arith.constant 0 : index
    %166 = vector.load %arg9[%c976, %c0_66] : memref<2664x64xf32, #tpu.memory_space<vmem>>, vector<64x64xf32>
    %cst_67 = arith.constant dense<0.000000e+00> : vector<16x64xf32>
    %167 = tpu.matmul %165, %166, %cst_67 {dimension_numbers = #tpu.dot_dimension_numbers<[1], [0], [0], [1], [0, 0, 1, 1], [], []>} : vector<16x64xf32>, vector<64x64xf32>, vector<16x64xf32> -> vector<16x64xf32>
    %168 = vector.broadcast %103 : vector<1x64xf32> to vector<16x64xf32>
    %169 = arith.addf %167, %168 : vector<16x64xf32>
    %cst_68 = arith.constant 0.000000e+00 : f32
    %170 = vector.broadcast %cst_68 : f32 to vector<16x64xf32>
    %171 = arith.cmpf ogt, %169, %170 : vector<16x64xf32>
    %cst_69 = arith.constant 0.00999999977 : f32
    %172 = vector.broadcast %cst_69 : f32 to vector<16x64xf32>
    %173 = arith.mulf %172, %169 : vector<16x64xf32>
    %174 = arith.select %171, %169, %173 : vector<16x64xi1>, vector<16x64xf32>
    %175 = arith.addf %174, %100 : vector<16x64xf32>
    %cst_70 = arith.constant 0.000000e+00 : f32
    %176 = vector.broadcast %cst_70 : f32 to vector<16x64xf32>
    %177 = arith.maximumf %175, %176 : vector<16x64xf32>
    %178 = vector.extract_strided_slice %15 {offsets = [6, 0], sizes = [1, 64], strides = [1, 1]} : vector<16x64xf32> to vector<1x64xf32>
    %179 = vector.extract_strided_slice %15 {offsets = [7, 0], sizes = [1, 64], strides = [1, 1]} : vector<16x64xf32> to vector<1x64xf32>
    %180 = vector.extract_strided_slice %15 {offsets = [8, 0], sizes = [1, 64], strides = [1, 1]} : vector<16x64xf32> to vector<1x64xf32>
    %181 = arith.truncf %177 : vector<16x64xf32> to vector<16x64xbf16>
    %cst_71 = arith.constant dense<0.000000e+00> : vector<64x64xf32>
    %182 = tpu.matmul %0, %181, %cst_71 {dimension_numbers = #tpu.dot_dimension_numbers<[1], [0], [0], [1], [0, 0, 1, 1], [], []>} : vector<64x16xbf16>, vector<16x64xbf16>, vector<64x64xf32> -> vector<64x64xf32>
    %183 = vector.extract_strided_slice %182 {offsets = [0, 0], sizes = [32, 64], strides = [1, 1]} : vector<64x64xf32> to vector<32x64xf32>
    %184 = vector.extract_strided_slice %182 {offsets = [32, 0], sizes = [32, 64], strides = [1, 1]} : vector<64x64xf32> to vector<32x64xf32>
    %c1040 = arith.constant 1040 : index
    %c0_72 = arith.constant 0 : index
    %185 = vector.load %arg9[%c1040, %c0_72] : memref<2664x64xf32, #tpu.memory_space<vmem>>, vector<64x64xf32>
    %cst_73 = arith.constant dense<0.000000e+00> : vector<32x64xf32>
    %186 = tpu.matmul %183, %185, %cst_73 {dimension_numbers = #tpu.dot_dimension_numbers<[1], [0], [0], [1], [0, 0, 1, 1], [], []>} : vector<32x64xf32>, vector<64x64xf32>, vector<32x64xf32> -> vector<32x64xf32>
    %c1104 = arith.constant 1104 : index
    %c0_74 = arith.constant 0 : index
    %187 = vector.load %arg9[%c1104, %c0_74] : memref<2664x64xf32, #tpu.memory_space<vmem>>, vector<64x64xf32>
    %cst_75 = arith.constant dense<0.000000e+00> : vector<32x64xf32>
    %188 = tpu.matmul %184, %187, %cst_75 {dimension_numbers = #tpu.dot_dimension_numbers<[1], [0], [0], [1], [0, 0, 1, 1], [], []>} : vector<32x64xf32>, vector<64x64xf32>, vector<32x64xf32> -> vector<32x64xf32>
    %189 = arith.addf %186, %188 : vector<32x64xf32>
    %c1168 = arith.constant 1168 : index
    %c0_76 = arith.constant 0 : index
    %190 = vector.load %arg9[%c1168, %c0_76] : memref<2664x64xf32, #tpu.memory_space<vmem>>, vector<8x64xf32>
    %cst_77 = arith.constant dense<0.000000e+00> : vector<32x64xf32>
    %191 = tpu.matmul %6, %190, %cst_77 {dimension_numbers = #tpu.dot_dimension_numbers<[1], [0], [0], [1], [0, 0, 1, 1], [], []>} : vector<32x8xf32>, vector<8x64xf32>, vector<32x64xf32> -> vector<32x64xf32>
    %192 = arith.addf %189, %191 : vector<32x64xf32>
    %193 = vector.broadcast %178 : vector<1x64xf32> to vector<32x64xf32>
    %194 = arith.addf %192, %193 : vector<32x64xf32>
    %195 = arith.truncf %194 : vector<32x64xf32> to vector<32x64xbf16>
    %cst_78 = arith.constant dense<0.000000e+00> : vector<16x64xf32>
    %196 = tpu.matmul %1, %195, %cst_78 {dimension_numbers = #tpu.dot_dimension_numbers<[1], [0], [0], [1], [0, 0, 1, 1], [], []>} : vector<16x32xbf16>, vector<32x64xbf16>, vector<16x64xf32> -> vector<16x64xf32>
    %197 = arith.mulf %195, %195 : vector<32x64xbf16>
    %cst_79 = arith.constant dense<0.000000e+00> : vector<16x64xf32>
    %198 = tpu.matmul %1, %197, %cst_79 {dimension_numbers = #tpu.dot_dimension_numbers<[1], [0], [0], [1], [0, 0, 1, 1], [], []>} : vector<16x32xbf16>, vector<32x64xbf16>, vector<16x64xf32> -> vector<16x64xf32>
    %199 = vector.broadcast %10 : vector<16x1xf32> to vector<16x64xf32>
    %200 = arith.divf %196, %199 : vector<16x64xf32>
    %201 = vector.broadcast %10 : vector<16x1xf32> to vector<16x64xf32>
    %202 = arith.divf %198, %201 : vector<16x64xf32>
    %203 = arith.mulf %200, %200 : vector<16x64xf32>
    %204 = arith.subf %202, %203 : vector<16x64xf32>
    %cst_80 = arith.constant 0.000000e+00 : f32
    %205 = vector.broadcast %cst_80 : f32 to vector<16x64xf32>
    %206 = arith.maximumf %204, %205 : vector<16x64xf32>
    %cst_81 = arith.constant 1.000000e-30 : f32
    %207 = vector.broadcast %cst_81 : f32 to vector<16x64xf32>
    %208 = arith.addf %206, %207 : vector<16x64xf32>
    %209 = math.sqrt %208 : vector<16x64xf32>
    %210 = vector.shape_cast %194 : vector<32x64xf32> to vector<1x32x64xf32>
    %211 = vector.shape_cast %5 : vector<16x32xbf16> to vector<16x32x1xbf16>
    %212 = arith.extf %211 : vector<16x32x1xbf16> to vector<16x32x1xf32>
    %213 = vector.broadcast %210 : vector<1x32x64xf32> to vector<16x32x64xf32>
    %214 = vector.broadcast %212 : vector<16x32x1xf32> to vector<16x32x64xf32>
    %215 = arith.addf %213, %214 : vector<16x32x64xf32>
    %cst_82 = arith.constant dense<0xFF800000> : vector<16x64xf32>
    %216 = vector.multi_reduction <maximumf>, %215, %cst_82 [1] : vector<16x32x64xf32> to vector<16x64xf32>
    %217 = vector.broadcast %14 : vector<16x1xf32> to vector<16x64xf32>
    %218 = arith.mulf %200, %217 : vector<16x64xf32>
    %219 = vector.broadcast %14 : vector<16x1xf32> to vector<16x64xf32>
    %220 = arith.mulf %216, %219 : vector<16x64xf32>
    %221 = vector.broadcast %14 : vector<16x1xf32> to vector<16x64xf32>
    %222 = arith.mulf %196, %221 : vector<16x64xf32>
    %223 = vector.broadcast %14 : vector<16x1xf32> to vector<16x64xf32>
    %224 = arith.mulf %209, %223 : vector<16x64xf32>
    %c1176 = arith.constant 1176 : index
    %c0_83 = arith.constant 0 : index
    %225 = vector.load %arg9[%c1176, %c0_83] : memref<2664x64xf32, #tpu.memory_space<vmem>>, vector<64x64xf32>
    %cst_84 = arith.constant dense<0.000000e+00> : vector<16x64xf32>
    %226 = tpu.matmul %177, %225, %cst_84 {dimension_numbers = #tpu.dot_dimension_numbers<[1], [0], [0], [1], [0, 0, 1, 1], [], []>} : vector<16x64xf32>, vector<64x64xf32>, vector<16x64xf32> -> vector<16x64xf32>
    %c1240 = arith.constant 1240 : index
    %c0_85 = arith.constant 0 : index
    %227 = vector.load %arg9[%c1240, %c0_85] : memref<2664x64xf32, #tpu.memory_space<vmem>>, vector<64x64xf32>
    %cst_86 = arith.constant dense<0.000000e+00> : vector<16x64xf32>
    %228 = tpu.matmul %218, %227, %cst_86 {dimension_numbers = #tpu.dot_dimension_numbers<[1], [0], [0], [1], [0, 0, 1, 1], [], []>} : vector<16x64xf32>, vector<64x64xf32>, vector<16x64xf32> -> vector<16x64xf32>
    %229 = arith.addf %226, %228 : vector<16x64xf32>
    %c1304 = arith.constant 1304 : index
    %c0_87 = arith.constant 0 : index
    %230 = vector.load %arg9[%c1304, %c0_87] : memref<2664x64xf32, #tpu.memory_space<vmem>>, vector<64x64xf32>
    %cst_88 = arith.constant dense<0.000000e+00> : vector<16x64xf32>
    %231 = tpu.matmul %220, %230, %cst_88 {dimension_numbers = #tpu.dot_dimension_numbers<[1], [0], [0], [1], [0, 0, 1, 1], [], []>} : vector<16x64xf32>, vector<64x64xf32>, vector<16x64xf32> -> vector<16x64xf32>
    %232 = arith.addf %229, %231 : vector<16x64xf32>
    %c1368 = arith.constant 1368 : index
    %c0_89 = arith.constant 0 : index
    %233 = vector.load %arg9[%c1368, %c0_89] : memref<2664x64xf32, #tpu.memory_space<vmem>>, vector<64x64xf32>
    %cst_90 = arith.constant dense<0.000000e+00> : vector<16x64xf32>
    %234 = tpu.matmul %222, %233, %cst_90 {dimension_numbers = #tpu.dot_dimension_numbers<[1], [0], [0], [1], [0, 0, 1, 1], [], []>} : vector<16x64xf32>, vector<64x64xf32>, vector<16x64xf32> -> vector<16x64xf32>
    %235 = arith.addf %232, %234 : vector<16x64xf32>
    %c1432 = arith.constant 1432 : index
    %c0_91 = arith.constant 0 : index
    %236 = vector.load %arg9[%c1432, %c0_91] : memref<2664x64xf32, #tpu.memory_space<vmem>>, vector<64x64xf32>
    %cst_92 = arith.constant dense<0.000000e+00> : vector<16x64xf32>
    %237 = tpu.matmul %224, %236, %cst_92 {dimension_numbers = #tpu.dot_dimension_numbers<[1], [0], [0], [1], [0, 0, 1, 1], [], []>} : vector<16x64xf32>, vector<64x64xf32>, vector<16x64xf32> -> vector<16x64xf32>
    %238 = arith.addf %235, %237 : vector<16x64xf32>
    %239 = vector.broadcast %179 : vector<1x64xf32> to vector<16x64xf32>
    %240 = arith.addf %238, %239 : vector<16x64xf32>
    %241 = vector.broadcast %8 : vector<16x1xf32> to vector<16x64xf32>
    %242 = arith.mulf %240, %241 : vector<16x64xf32>
    %c1496 = arith.constant 1496 : index
    %c0_93 = arith.constant 0 : index
    %243 = vector.load %arg9[%c1496, %c0_93] : memref<2664x64xf32, #tpu.memory_space<vmem>>, vector<64x64xf32>
    %cst_94 = arith.constant dense<0.000000e+00> : vector<16x64xf32>
    %244 = tpu.matmul %242, %243, %cst_94 {dimension_numbers = #tpu.dot_dimension_numbers<[1], [0], [0], [1], [0, 0, 1, 1], [], []>} : vector<16x64xf32>, vector<64x64xf32>, vector<16x64xf32> -> vector<16x64xf32>
    %245 = vector.broadcast %180 : vector<1x64xf32> to vector<16x64xf32>
    %246 = arith.addf %244, %245 : vector<16x64xf32>
    %cst_95 = arith.constant 0.000000e+00 : f32
    %247 = vector.broadcast %cst_95 : f32 to vector<16x64xf32>
    %248 = arith.cmpf ogt, %246, %247 : vector<16x64xf32>
    %cst_96 = arith.constant 0.00999999977 : f32
    %249 = vector.broadcast %cst_96 : f32 to vector<16x64xf32>
    %250 = arith.mulf %249, %246 : vector<16x64xf32>
    %251 = arith.select %248, %246, %250 : vector<16x64xi1>, vector<16x64xf32>
    %cst_97 = arith.constant 0.000000e+00 : f32
    %252 = vector.broadcast %cst_97 : f32 to vector<16x64xf32>
    %253 = arith.maximumf %251, %252 : vector<16x64xf32>
    %c0_98 = arith.constant 0 : index
    %c0_99 = arith.constant 0 : index
    %254 = vector.load %arg2[%c0_98, %c0_99] : memref<16x1xf32, #tpu.memory_space<vmem>>, vector<16x1xf32>
    %255 = vector.broadcast %254 : vector<16x1xf32> to vector<16x64xf32>
    %256 = vector.broadcast %24 : vector<1x64xf32> to vector<16x64xf32>
    %257 = arith.mulf %255, %256 : vector<16x64xf32>
    %258 = arith.addf %253, %257 : vector<16x64xf32>
    %259 = vector.extract_strided_slice %15 {offsets = [9, 0], sizes = [1, 64], strides = [1, 1]} : vector<16x64xf32> to vector<1x64xf32>
    %260 = vector.extract_strided_slice %15 {offsets = [10, 0], sizes = [1, 64], strides = [1, 1]} : vector<16x64xf32> to vector<1x64xf32>
    %261 = vector.extract_strided_slice %15 {offsets = [11, 0], sizes = [1, 64], strides = [1, 1]} : vector<16x64xf32> to vector<1x64xf32>
    %262 = arith.truncf %258 : vector<16x64xf32> to vector<16x64xbf16>
    %cst_100 = arith.constant dense<0.000000e+00> : vector<64x64xf32>
    %263 = tpu.matmul %0, %262, %cst_100 {dimension_numbers = #tpu.dot_dimension_numbers<[1], [0], [0], [1], [0, 0, 1, 1], [], []>} : vector<64x16xbf16>, vector<16x64xbf16>, vector<64x64xf32> -> vector<64x64xf32>
    %264 = vector.extract_strided_slice %263 {offsets = [0, 0], sizes = [32, 64], strides = [1, 1]} : vector<64x64xf32> to vector<32x64xf32>
    %265 = vector.extract_strided_slice %263 {offsets = [32, 0], sizes = [32, 64], strides = [1, 1]} : vector<64x64xf32> to vector<32x64xf32>
    %c1560 = arith.constant 1560 : index
    %c0_101 = arith.constant 0 : index
    %266 = vector.load %arg9[%c1560, %c0_101] : memref<2664x64xf32, #tpu.memory_space<vmem>>, vector<64x64xf32>
    %cst_102 = arith.constant dense<0.000000e+00> : vector<32x64xf32>
    %267 = tpu.matmul %264, %266, %cst_102 {dimension_numbers = #tpu.dot_dimension_numbers<[1], [0], [0], [1], [0, 0, 1, 1], [], []>} : vector<32x64xf32>, vector<64x64xf32>, vector<32x64xf32> -> vector<32x64xf32>
    %c1624 = arith.constant 1624 : index
    %c0_103 = arith.constant 0 : index
    %268 = vector.load %arg9[%c1624, %c0_103] : memref<2664x64xf32, #tpu.memory_space<vmem>>, vector<64x64xf32>
    %cst_104 = arith.constant dense<0.000000e+00> : vector<32x64xf32>
    %269 = tpu.matmul %265, %268, %cst_104 {dimension_numbers = #tpu.dot_dimension_numbers<[1], [0], [0], [1], [0, 0, 1, 1], [], []>} : vector<32x64xf32>, vector<64x64xf32>, vector<32x64xf32> -> vector<32x64xf32>
    %270 = arith.addf %267, %269 : vector<32x64xf32>
    %c1688 = arith.constant 1688 : index
    %c0_105 = arith.constant 0 : index
    %271 = vector.load %arg9[%c1688, %c0_105] : memref<2664x64xf32, #tpu.memory_space<vmem>>, vector<8x64xf32>
    %cst_106 = arith.constant dense<0.000000e+00> : vector<32x64xf32>
    %272 = tpu.matmul %6, %271, %cst_106 {dimension_numbers = #tpu.dot_dimension_numbers<[1], [0], [0], [1], [0, 0, 1, 1], [], []>} : vector<32x8xf32>, vector<8x64xf32>, vector<32x64xf32> -> vector<32x64xf32>
    %273 = arith.addf %270, %272 : vector<32x64xf32>
    %274 = vector.broadcast %259 : vector<1x64xf32> to vector<32x64xf32>
    %275 = arith.addf %273, %274 : vector<32x64xf32>
    %276 = arith.truncf %275 : vector<32x64xf32> to vector<32x64xbf16>
    %cst_107 = arith.constant dense<0.000000e+00> : vector<16x64xf32>
    %277 = tpu.matmul %1, %276, %cst_107 {dimension_numbers = #tpu.dot_dimension_numbers<[1], [0], [0], [1], [0, 0, 1, 1], [], []>} : vector<16x32xbf16>, vector<32x64xbf16>, vector<16x64xf32> -> vector<16x64xf32>
    %278 = arith.mulf %276, %276 : vector<32x64xbf16>
    %cst_108 = arith.constant dense<0.000000e+00> : vector<16x64xf32>
    %279 = tpu.matmul %1, %278, %cst_108 {dimension_numbers = #tpu.dot_dimension_numbers<[1], [0], [0], [1], [0, 0, 1, 1], [], []>} : vector<16x32xbf16>, vector<32x64xbf16>, vector<16x64xf32> -> vector<16x64xf32>
    %280 = vector.broadcast %10 : vector<16x1xf32> to vector<16x64xf32>
    %281 = arith.divf %277, %280 : vector<16x64xf32>
    %282 = vector.broadcast %10 : vector<16x1xf32> to vector<16x64xf32>
    %283 = arith.divf %279, %282 : vector<16x64xf32>
    %284 = arith.mulf %281, %281 : vector<16x64xf32>
    %285 = arith.subf %283, %284 : vector<16x64xf32>
    %cst_109 = arith.constant 0.000000e+00 : f32
    %286 = vector.broadcast %cst_109 : f32 to vector<16x64xf32>
    %287 = arith.maximumf %285, %286 : vector<16x64xf32>
    %cst_110 = arith.constant 1.000000e-30 : f32
    %288 = vector.broadcast %cst_110 : f32 to vector<16x64xf32>
    %289 = arith.addf %287, %288 : vector<16x64xf32>
    %290 = math.sqrt %289 : vector<16x64xf32>
    %291 = vector.shape_cast %275 : vector<32x64xf32> to vector<1x32x64xf32>
    %292 = vector.shape_cast %5 : vector<16x32xbf16> to vector<16x32x1xbf16>
    %293 = arith.extf %292 : vector<16x32x1xbf16> to vector<16x32x1xf32>
    %294 = vector.broadcast %291 : vector<1x32x64xf32> to vector<16x32x64xf32>
    %295 = vector.broadcast %293 : vector<16x32x1xf32> to vector<16x32x64xf32>
    %296 = arith.addf %294, %295 : vector<16x32x64xf32>
    %cst_111 = arith.constant dense<0xFF800000> : vector<16x64xf32>
    %297 = vector.multi_reduction <maximumf>, %296, %cst_111 [1] : vector<16x32x64xf32> to vector<16x64xf32>
    %298 = vector.broadcast %14 : vector<16x1xf32> to vector<16x64xf32>
    %299 = arith.mulf %281, %298 : vector<16x64xf32>
    %300 = vector.broadcast %14 : vector<16x1xf32> to vector<16x64xf32>
    %301 = arith.mulf %297, %300 : vector<16x64xf32>
    %302 = vector.broadcast %14 : vector<16x1xf32> to vector<16x64xf32>
    %303 = arith.mulf %277, %302 : vector<16x64xf32>
    %304 = vector.broadcast %14 : vector<16x1xf32> to vector<16x64xf32>
    %305 = arith.mulf %290, %304 : vector<16x64xf32>
    %c1696 = arith.constant 1696 : index
    %c0_112 = arith.constant 0 : index
    %306 = vector.load %arg9[%c1696, %c0_112] : memref<2664x64xf32, #tpu.memory_space<vmem>>, vector<64x64xf32>
    %cst_113 = arith.constant dense<0.000000e+00> : vector<16x64xf32>
    %307 = tpu.matmul %258, %306, %cst_113 {dimension_numbers = #tpu.dot_dimension_numbers<[1], [0], [0], [1], [0, 0, 1, 1], [], []>} : vector<16x64xf32>, vector<64x64xf32>, vector<16x64xf32> -> vector<16x64xf32>
    %c1760 = arith.constant 1760 : index
    %c0_114 = arith.constant 0 : index
    %308 = vector.load %arg9[%c1760, %c0_114] : memref<2664x64xf32, #tpu.memory_space<vmem>>, vector<64x64xf32>
    %cst_115 = arith.constant dense<0.000000e+00> : vector<16x64xf32>
    %309 = tpu.matmul %299, %308, %cst_115 {dimension_numbers = #tpu.dot_dimension_numbers<[1], [0], [0], [1], [0, 0, 1, 1], [], []>} : vector<16x64xf32>, vector<64x64xf32>, vector<16x64xf32> -> vector<16x64xf32>
    %310 = arith.addf %307, %309 : vector<16x64xf32>
    %c1824 = arith.constant 1824 : index
    %c0_116 = arith.constant 0 : index
    %311 = vector.load %arg9[%c1824, %c0_116] : memref<2664x64xf32, #tpu.memory_space<vmem>>, vector<64x64xf32>
    %cst_117 = arith.constant dense<0.000000e+00> : vector<16x64xf32>
    %312 = tpu.matmul %301, %311, %cst_117 {dimension_numbers = #tpu.dot_dimension_numbers<[1], [0], [0], [1], [0, 0, 1, 1], [], []>} : vector<16x64xf32>, vector<64x64xf32>, vector<16x64xf32> -> vector<16x64xf32>
    %313 = arith.addf %310, %312 : vector<16x64xf32>
    %c1888 = arith.constant 1888 : index
    %c0_118 = arith.constant 0 : index
    %314 = vector.load %arg9[%c1888, %c0_118] : memref<2664x64xf32, #tpu.memory_space<vmem>>, vector<64x64xf32>
    %cst_119 = arith.constant dense<0.000000e+00> : vector<16x64xf32>
    %315 = tpu.matmul %303, %314, %cst_119 {dimension_numbers = #tpu.dot_dimension_numbers<[1], [0], [0], [1], [0, 0, 1, 1], [], []>} : vector<16x64xf32>, vector<64x64xf32>, vector<16x64xf32> -> vector<16x64xf32>
    %316 = arith.addf %313, %315 : vector<16x64xf32>
    %c1952 = arith.constant 1952 : index
    %c0_120 = arith.constant 0 : index
    %317 = vector.load %arg9[%c1952, %c0_120] : memref<2664x64xf32, #tpu.memory_space<vmem>>, vector<64x64xf32>
    %cst_121 = arith.constant dense<0.000000e+00> : vector<16x64xf32>
    %318 = tpu.matmul %305, %317, %cst_121 {dimension_numbers = #tpu.dot_dimension_numbers<[1], [0], [0], [1], [0, 0, 1, 1], [], []>} : vector<16x64xf32>, vector<64x64xf32>, vector<16x64xf32> -> vector<16x64xf32>
    %319 = arith.addf %316, %318 : vector<16x64xf32>
    %320 = vector.broadcast %260 : vector<1x64xf32> to vector<16x64xf32>
    %321 = arith.addf %319, %320 : vector<16x64xf32>
    %322 = vector.broadcast %8 : vector<16x1xf32> to vector<16x64xf32>
    %323 = arith.mulf %321, %322 : vector<16x64xf32>
    %c2016 = arith.constant 2016 : index
    %c0_122 = arith.constant 0 : index
    %324 = vector.load %arg9[%c2016, %c0_122] : memref<2664x64xf32, #tpu.memory_space<vmem>>, vector<64x64xf32>
    %cst_123 = arith.constant dense<0.000000e+00> : vector<16x64xf32>
    %325 = tpu.matmul %323, %324, %cst_123 {dimension_numbers = #tpu.dot_dimension_numbers<[1], [0], [0], [1], [0, 0, 1, 1], [], []>} : vector<16x64xf32>, vector<64x64xf32>, vector<16x64xf32> -> vector<16x64xf32>
    %326 = vector.broadcast %261 : vector<1x64xf32> to vector<16x64xf32>
    %327 = arith.addf %325, %326 : vector<16x64xf32>
    %cst_124 = arith.constant 0.000000e+00 : f32
    %328 = vector.broadcast %cst_124 : f32 to vector<16x64xf32>
    %329 = arith.cmpf ogt, %327, %328 : vector<16x64xf32>
    %cst_125 = arith.constant 0.00999999977 : f32
    %330 = vector.broadcast %cst_125 : f32 to vector<16x64xf32>
    %331 = arith.mulf %330, %327 : vector<16x64xf32>
    %332 = arith.select %329, %327, %331 : vector<16x64xi1>, vector<16x64xf32>
    %cst_126 = arith.constant 0.000000e+00 : f32
    %333 = vector.broadcast %cst_126 : f32 to vector<16x64xf32>
    %334 = arith.maximumf %332, %333 : vector<16x64xf32>
    %335 = vector.extract_strided_slice %15 {offsets = [12, 0], sizes = [1, 64], strides = [1, 1]} : vector<16x64xf32> to vector<1x64xf32>
    %336 = vector.extract_strided_slice %15 {offsets = [13, 0], sizes = [1, 64], strides = [1, 1]} : vector<16x64xf32> to vector<1x64xf32>
    %337 = vector.extract_strided_slice %15 {offsets = [14, 0], sizes = [1, 64], strides = [1, 1]} : vector<16x64xf32> to vector<1x64xf32>
    %338 = arith.truncf %334 : vector<16x64xf32> to vector<16x64xbf16>
    %cst_127 = arith.constant dense<0.000000e+00> : vector<64x64xf32>
    %339 = tpu.matmul %0, %338, %cst_127 {dimension_numbers = #tpu.dot_dimension_numbers<[1], [0], [0], [1], [0, 0, 1, 1], [], []>} : vector<64x16xbf16>, vector<16x64xbf16>, vector<64x64xf32> -> vector<64x64xf32>
    %340 = vector.extract_strided_slice %339 {offsets = [0, 0], sizes = [32, 64], strides = [1, 1]} : vector<64x64xf32> to vector<32x64xf32>
    %341 = vector.extract_strided_slice %339 {offsets = [32, 0], sizes = [32, 64], strides = [1, 1]} : vector<64x64xf32> to vector<32x64xf32>
    %c2080 = arith.constant 2080 : index
    %c0_128 = arith.constant 0 : index
    %342 = vector.load %arg9[%c2080, %c0_128] : memref<2664x64xf32, #tpu.memory_space<vmem>>, vector<64x64xf32>
    %cst_129 = arith.constant dense<0.000000e+00> : vector<32x64xf32>
    %343 = tpu.matmul %340, %342, %cst_129 {dimension_numbers = #tpu.dot_dimension_numbers<[1], [0], [0], [1], [0, 0, 1, 1], [], []>} : vector<32x64xf32>, vector<64x64xf32>, vector<32x64xf32> -> vector<32x64xf32>
    %c2144 = arith.constant 2144 : index
    %c0_130 = arith.constant 0 : index
    %344 = vector.load %arg9[%c2144, %c0_130] : memref<2664x64xf32, #tpu.memory_space<vmem>>, vector<64x64xf32>
    %cst_131 = arith.constant dense<0.000000e+00> : vector<32x64xf32>
    %345 = tpu.matmul %341, %344, %cst_131 {dimension_numbers = #tpu.dot_dimension_numbers<[1], [0], [0], [1], [0, 0, 1, 1], [], []>} : vector<32x64xf32>, vector<64x64xf32>, vector<32x64xf32> -> vector<32x64xf32>
    %346 = arith.addf %343, %345 : vector<32x64xf32>
    %c2208 = arith.constant 2208 : index
    %c0_132 = arith.constant 0 : index
    %347 = vector.load %arg9[%c2208, %c0_132] : memref<2664x64xf32, #tpu.memory_space<vmem>>, vector<8x64xf32>
    %cst_133 = arith.constant dense<0.000000e+00> : vector<32x64xf32>
    %348 = tpu.matmul %6, %347, %cst_133 {dimension_numbers = #tpu.dot_dimension_numbers<[1], [0], [0], [1], [0, 0, 1, 1], [], []>} : vector<32x8xf32>, vector<8x64xf32>, vector<32x64xf32> -> vector<32x64xf32>
    %349 = arith.addf %346, %348 : vector<32x64xf32>
    %350 = vector.broadcast %335 : vector<1x64xf32> to vector<32x64xf32>
    %351 = arith.addf %349, %350 : vector<32x64xf32>
    %352 = arith.truncf %351 : vector<32x64xf32> to vector<32x64xbf16>
    %cst_134 = arith.constant dense<0.000000e+00> : vector<16x64xf32>
    %353 = tpu.matmul %1, %352, %cst_134 {dimension_numbers = #tpu.dot_dimension_numbers<[1], [0], [0], [1], [0, 0, 1, 1], [], []>} : vector<16x32xbf16>, vector<32x64xbf16>, vector<16x64xf32> -> vector<16x64xf32>
    %354 = arith.mulf %352, %352 : vector<32x64xbf16>
    %cst_135 = arith.constant dense<0.000000e+00> : vector<16x64xf32>
    %355 = tpu.matmul %1, %354, %cst_135 {dimension_numbers = #tpu.dot_dimension_numbers<[1], [0], [0], [1], [0, 0, 1, 1], [], []>} : vector<16x32xbf16>, vector<32x64xbf16>, vector<16x64xf32> -> vector<16x64xf32>
    %356 = vector.broadcast %10 : vector<16x1xf32> to vector<16x64xf32>
    %357 = arith.divf %353, %356 : vector<16x64xf32>
    %358 = vector.broadcast %10 : vector<16x1xf32> to vector<16x64xf32>
    %359 = arith.divf %355, %358 : vector<16x64xf32>
    %360 = arith.mulf %357, %357 : vector<16x64xf32>
    %361 = arith.subf %359, %360 : vector<16x64xf32>
    %cst_136 = arith.constant 0.000000e+00 : f32
    %362 = vector.broadcast %cst_136 : f32 to vector<16x64xf32>
    %363 = arith.maximumf %361, %362 : vector<16x64xf32>
    %cst_137 = arith.constant 1.000000e-30 : f32
    %364 = vector.broadcast %cst_137 : f32 to vector<16x64xf32>
    %365 = arith.addf %363, %364 : vector<16x64xf32>
    %366 = math.sqrt %365 : vector<16x64xf32>
    %367 = vector.shape_cast %351 : vector<32x64xf32> to vector<1x32x64xf32>
    %368 = vector.shape_cast %5 : vector<16x32xbf16> to vector<16x32x1xbf16>
    %369 = arith.extf %368 : vector<16x32x1xbf16> to vector<16x32x1xf32>
    %370 = vector.broadcast %367 : vector<1x32x64xf32> to vector<16x32x64xf32>
    %371 = vector.broadcast %369 : vector<16x32x1xf32> to vector<16x32x64xf32>
    %372 = arith.addf %370, %371 : vector<16x32x64xf32>
    %cst_138 = arith.constant dense<0xFF800000> : vector<16x64xf32>
    %373 = vector.multi_reduction <maximumf>, %372, %cst_138 [1] : vector<16x32x64xf32> to vector<16x64xf32>
    %374 = vector.broadcast %14 : vector<16x1xf32> to vector<16x64xf32>
    %375 = arith.mulf %357, %374 : vector<16x64xf32>
    %376 = vector.broadcast %14 : vector<16x1xf32> to vector<16x64xf32>
    %377 = arith.mulf %373, %376 : vector<16x64xf32>
    %378 = vector.broadcast %14 : vector<16x1xf32> to vector<16x64xf32>
    %379 = arith.mulf %353, %378 : vector<16x64xf32>
    %380 = vector.broadcast %14 : vector<16x1xf32> to vector<16x64xf32>
    %381 = arith.mulf %366, %380 : vector<16x64xf32>
    %c2216 = arith.constant 2216 : index
    %c0_139 = arith.constant 0 : index
    %382 = vector.load %arg9[%c2216, %c0_139] : memref<2664x64xf32, #tpu.memory_space<vmem>>, vector<64x64xf32>
    %cst_140 = arith.constant dense<0.000000e+00> : vector<16x64xf32>
    %383 = tpu.matmul %334, %382, %cst_140 {dimension_numbers = #tpu.dot_dimension_numbers<[1], [0], [0], [1], [0, 0, 1, 1], [], []>} : vector<16x64xf32>, vector<64x64xf32>, vector<16x64xf32> -> vector<16x64xf32>
    %c2280 = arith.constant 2280 : index
    %c0_141 = arith.constant 0 : index
    %384 = vector.load %arg9[%c2280, %c0_141] : memref<2664x64xf32, #tpu.memory_space<vmem>>, vector<64x64xf32>
    %cst_142 = arith.constant dense<0.000000e+00> : vector<16x64xf32>
    %385 = tpu.matmul %375, %384, %cst_142 {dimension_numbers = #tpu.dot_dimension_numbers<[1], [0], [0], [1], [0, 0, 1, 1], [], []>} : vector<16x64xf32>, vector<64x64xf32>, vector<16x64xf32> -> vector<16x64xf32>
    %386 = arith.addf %383, %385 : vector<16x64xf32>
    %c2344 = arith.constant 2344 : index
    %c0_143 = arith.constant 0 : index
    %387 = vector.load %arg9[%c2344, %c0_143] : memref<2664x64xf32, #tpu.memory_space<vmem>>, vector<64x64xf32>
    %cst_144 = arith.constant dense<0.000000e+00> : vector<16x64xf32>
    %388 = tpu.matmul %377, %387, %cst_144 {dimension_numbers = #tpu.dot_dimension_numbers<[1], [0], [0], [1], [0, 0, 1, 1], [], []>} : vector<16x64xf32>, vector<64x64xf32>, vector<16x64xf32> -> vector<16x64xf32>
    %389 = arith.addf %386, %388 : vector<16x64xf32>
    %c2408 = arith.constant 2408 : index
    %c0_145 = arith.constant 0 : index
    %390 = vector.load %arg9[%c2408, %c0_145] : memref<2664x64xf32, #tpu.memory_space<vmem>>, vector<64x64xf32>
    %cst_146 = arith.constant dense<0.000000e+00> : vector<16x64xf32>
    %391 = tpu.matmul %379, %390, %cst_146 {dimension_numbers = #tpu.dot_dimension_numbers<[1], [0], [0], [1], [0, 0, 1, 1], [], []>} : vector<16x64xf32>, vector<64x64xf32>, vector<16x64xf32> -> vector<16x64xf32>
    %392 = arith.addf %389, %391 : vector<16x64xf32>
    %c2472 = arith.constant 2472 : index
    %c0_147 = arith.constant 0 : index
    %393 = vector.load %arg9[%c2472, %c0_147] : memref<2664x64xf32, #tpu.memory_space<vmem>>, vector<64x64xf32>
    %cst_148 = arith.constant dense<0.000000e+00> : vector<16x64xf32>
    %394 = tpu.matmul %381, %393, %cst_148 {dimension_numbers = #tpu.dot_dimension_numbers<[1], [0], [0], [1], [0, 0, 1, 1], [], []>} : vector<16x64xf32>, vector<64x64xf32>, vector<16x64xf32> -> vector<16x64xf32>
    %395 = arith.addf %392, %394 : vector<16x64xf32>
    %396 = vector.broadcast %336 : vector<1x64xf32> to vector<16x64xf32>
    %397 = arith.addf %395, %396 : vector<16x64xf32>
    %398 = vector.broadcast %8 : vector<16x1xf32> to vector<16x64xf32>
    %399 = arith.mulf %397, %398 : vector<16x64xf32>
    %c2536 = arith.constant 2536 : index
    %c0_149 = arith.constant 0 : index
    %400 = vector.load %arg9[%c2536, %c0_149] : memref<2664x64xf32, #tpu.memory_space<vmem>>, vector<64x64xf32>
    %cst_150 = arith.constant dense<0.000000e+00> : vector<16x64xf32>
    %401 = tpu.matmul %399, %400, %cst_150 {dimension_numbers = #tpu.dot_dimension_numbers<[1], [0], [0], [1], [0, 0, 1, 1], [], []>} : vector<16x64xf32>, vector<64x64xf32>, vector<16x64xf32> -> vector<16x64xf32>
    %402 = vector.broadcast %337 : vector<1x64xf32> to vector<16x64xf32>
    %403 = arith.addf %401, %402 : vector<16x64xf32>
    %cst_151 = arith.constant 0.000000e+00 : f32
    %404 = vector.broadcast %cst_151 : f32 to vector<16x64xf32>
    %405 = arith.cmpf ogt, %403, %404 : vector<16x64xf32>
    %cst_152 = arith.constant 0.00999999977 : f32
    %406 = vector.broadcast %cst_152 : f32 to vector<16x64xf32>
    %407 = arith.mulf %406, %403 : vector<16x64xf32>
    %408 = arith.select %405, %403, %407 : vector<16x64xi1>, vector<16x64xf32>
    %409 = arith.addf %408, %334 : vector<16x64xf32>
    %cst_153 = arith.constant 0.000000e+00 : f32
    %410 = vector.broadcast %cst_153 : f32 to vector<16x64xf32>
    %411 = arith.maximumf %409, %410 : vector<16x64xf32>
    %c0_154 = arith.constant 0 : index
    %c0_155 = arith.constant 0 : index
    %412 = vector.load %arg8[%c0_154, %c0_155] : memref<2x16xf32, #tpu.memory_space<vmem>>, vector<2x16xf32>
    %413 = vector.shape_cast %411 : vector<16x64xf32> to vector<1x16x64xf32>
    %414 = vector.shape_cast %412 : vector<2x16xf32> to vector<2x16x1xf32>
    %415 = vector.broadcast %413 : vector<1x16x64xf32> to vector<2x16x64xf32>
    %416 = vector.broadcast %414 : vector<2x16x1xf32> to vector<2x16x64xf32>
    %417 = arith.addf %415, %416 : vector<2x16x64xf32>
    %cst_156 = arith.constant dense<0xFF800000> : vector<2x64xf32>
    %418 = vector.multi_reduction <maximumf>, %417, %cst_156 [1] : vector<2x16x64xf32> to vector<2x64xf32>
    %c2600 = arith.constant 2600 : index
    %c0_157 = arith.constant 0 : index
    %419 = vector.load %arg9[%c2600, %c0_157] : memref<2664x64xf32, #tpu.memory_space<vmem>>, vector<64x64xf32>
    %cst_158 = arith.constant dense<0.000000e+00> : vector<2x64xf32>
    %420 = tpu.matmul %418, %419, %cst_158 {dimension_numbers = #tpu.dot_dimension_numbers<[1], [0], [0], [1], [0, 0, 1, 1], [], []>} : vector<2x64xf32>, vector<64x64xf32>, vector<2x64xf32> -> vector<2x64xf32>
    %421 = vector.extract_strided_slice %15 {offsets = [15, 0], sizes = [1, 64], strides = [1, 1]} : vector<16x64xf32> to vector<1x64xf32>
    %422 = vector.broadcast %421 : vector<1x64xf32> to vector<2x64xf32>
    %423 = arith.addf %420, %422 : vector<2x64xf32>
    %424 = vector.extract_strided_slice %423 {offsets = [0, 0], sizes = [2, 1], strides = [1, 1]} : vector<2x64xf32> to vector<2x1xf32>
    %cst_159 = arith.constant 0.000000e+00 : f32
    %425 = vector.broadcast %cst_159 : f32 to vector<2x1xf32>
    %426 = arith.maximumf %424, %425 : vector<2x1xf32>
    %c0_160 = arith.constant 0 : index
    %c0_161 = arith.constant 0 : index
    %427 = vector.load %arg11[%c0_160, %c0_161] : memref<2x1xf32, #tpu.memory_space<vmem>>, vector<2x1xf32>
    tpu.vector_store %arg11[%c0_160, %c0_161], %426 {strides = array<i32>} : memref<2x1xf32, #tpu.memory_space<vmem>>, vector<2x1xf32>,
    return
  }
  func.func @transform_0(%arg0: i32) -> (i32, i32) {
    %c0_i32 = arith.constant 0 : i32
    %c0_i32_0 = arith.constant 0 : i32
    %c0_i32_1 = arith.constant 0 : i32
    return %c0_i32, %c0_i32_0 : i32, i32
  }
  func.func @transform_1(%arg0: i32) -> (i32, i32) {
    %c0_i32 = arith.constant 0 : i32
    %c0_i32_0 = arith.constant 0 : i32
    %c0_i32_1 = arith.constant 0 : i32
    return %c0_i32, %c0_i32_0 : i32, i32
  }
  func.func @transform_2(%arg0: i32) -> (i32, i32) {
    %c0_i32 = arith.constant 0 : i32
    %c0_i32_0 = arith.constant 0 : i32
    %c0_i32_1 = arith.constant 0 : i32
    return %c0_i32, %c0_i32_0 : i32, i32
  }
  func.func @transform_3(%arg0: i32) -> (i32, i32) {
    %c0_i32 = arith.constant 0 : i32
    %c0_i32_0 = arith.constant 0 : i32
    %c0_i32_1 = arith.constant 0 : i32
    return %c0_i32, %c0_i32_0 : i32, i32
  }
  func.func @transform_4(%arg0: i32) -> (i32, i32) {
    %c0_i32 = arith.constant 0 : i32
    %c0_i32_0 = arith.constant 0 : i32
    %c0_i32_1 = arith.constant 0 : i32
    return %c0_i32, %c0_i32_0 : i32, i32
  }
  func.func @transform_5(%arg0: i32) -> (i32, i32) {
    %c0_i32 = arith.constant 0 : i32
    %c0_i32_0 = arith.constant 0 : i32
    %c0_i32_1 = arith.constant 0 : i32
    return %c0_i32, %c0_i32_0 : i32, i32
  }
  func.func @transform_6(%arg0: i32) -> (i32, i32) {
    %c0_i32 = arith.constant 0 : i32
    %c0_i32_0 = arith.constant 0 : i32
    %c0_i32_1 = arith.constant 0 : i32
    return %c0_i32, %c0_i32_0 : i32, i32
  }
  func.func @transform_7(%arg0: i32) -> (i32, i32) {
    %c0_i32 = arith.constant 0 : i32
    %c0_i32_0 = arith.constant 0 : i32
    %c0_i32_1 = arith.constant 0 : i32
    return %c0_i32, %c0_i32_0 : i32, i32
  }
  func.func @transform_8(%arg0: i32) -> (i32, i32) {
    %c0_i32 = arith.constant 0 : i32
    %c0_i32_0 = arith.constant 0 : i32
    %c0_i32_1 = arith.constant 0 : i32
    return %c0_i32, %c0_i32_0 : i32, i32
  }
  func.func @transform_9(%arg0: i32) -> (i32, i32) {
    %c0_i32 = arith.constant 0 : i32
    %c0_i32_0 = arith.constant 0 : i32
    %c0_i32_1 = arith.constant 0 : i32
    return %c0_i32, %c0_i32_0 : i32, i32
  }
  func.func @transform_10(%arg0: i32) -> (i32, i32) {
    %c0_i32 = arith.constant 0 : i32
    %c0_i32_0 = arith.constant 0 : i32
    %c0_i32_1 = arith.constant 0 : i32
    return %c0_i32, %c0_i32_0 : i32, i32
  }
}

</mosaic_0001>

<llo_original>
// kernel: tpu_custom_call.1
$region0: #{tpu_custom_call.1}
  #allocation0 [shape = 'u32[]', space=smem, size = 0x4, offset = 0x4, fixed_abs, tag = 'smem constant byte address 0x4 - core index']
  #allocation1 [shape = 'u32[144,128]{1,0:T(1,128)}', space=vmem, size = 0x12000, scoped, tag = 'internal scratch']
  %s0 = inlined_call_operand.vmem [shape: f32[16,64], index: 0, kind: input, shape index: {}]
  %s1 = inlined_call_operand.vmem [shape: f32[16,1], index: 1, kind: input, shape index: {}]
  %s2 = inlined_call_operand.vmem [shape: f32[32,8], index: 2, kind: input, shape index: {}]
  %s3 = inlined_call_operand.vmem [shape: bf16[64,16], index: 3, kind: input, shape index: {}]
  %s4 = inlined_call_operand.vmem [shape: bf16[16,32], index: 4, kind: input, shape index: {}]
  %s5 = inlined_call_operand.vmem [shape: f32[16,1], index: 5, kind: input, shape index: {}]
  %s6 = inlined_call_operand.vmem [shape: f32[16,1], index: 6, kind: input, shape index: {}]
  %s7 = inlined_call_operand.vmem [shape: f32[2,16], index: 7, kind: input, shape index: {}]
  %s8 = inlined_call_operand.vmem [shape: f32[2664,64], index: 8, kind: input, shape index: {}]
  %s9 = inlined_call_operand.vmem [shape: f32[16,64], index: 9, kind: input, shape index: {}]
  %s10 = inlined_call_operand.vmem [shape: f32[2,1], index: 10, kind: output, shape index: {}]
  %s11 = sld [smem:[#allocation0]]
  $region50: #{tpu_custom_call.1} parent=0
    _
  %s13 = ssub.s32 1, %s11
  %s14 = scalar_select 0, %s13, %s11
  // Predicated region
  $region2: #{tpu_custom_call.1} parent=0 // pred_check
    _
  $region3: #{tpu_custom_call.1} parent=0 // pred_check_branch
    %16 = sbr.rel (0) target = $region5
  $region4: #{tpu_custom_call.1} parent=0 // pred_region
    _
  $region5: #{tpu_custom_call.1} parent=0 // pred_fallthru
    _
  // Predicated region
  $region6: #{tpu_custom_call.1} parent=0 // pred_check
    _
  $region7: #{tpu_custom_call.1} parent=0 // pred_check_branch
    %18 = sbr.rel (0) target = $region9
  $region8: #{tpu_custom_call.1} parent=0 // pred_region
    _
  $region9: #{tpu_custom_call.1} parent=0 // pred_fallthru
    _
  // Predicated region
  $region10: #{tpu_custom_call.1} parent=0 // pred_check
    _
  $region11: #{tpu_custom_call.1} parent=0 // pred_check_branch
    %20 = sbr.rel (0) target = $region13
  $region12: #{tpu_custom_call.1} parent=0 // pred_region
    _
  $region13: #{tpu_custom_call.1} parent=0 // pred_fallthru
    _
  // Predicated region
  $region14: #{tpu_custom_call.1} parent=0 // pred_check
    _
  $region15: #{tpu_custom_call.1} parent=0 // pred_check_branch
    %22 = sbr.rel (0) target = $region17
  $region16: #{tpu_custom_call.1} parent=0 // pred_region
    _
  $region17: #{tpu_custom_call.1} parent=0 // pred_fallthru
    _
  // Predicated region
  $region18: #{tpu_custom_call.1} parent=0 // pred_check
    _
  $region19: #{tpu_custom_call.1} parent=0 // pred_check_branch
    %24 = sbr.rel (0) target = $region21
  $region20: #{tpu_custom_call.1} parent=0 // pred_region
    _
  $region21: #{tpu_custom_call.1} parent=0 // pred_fallthru
    _
  // Predicated region
  $region22: #{tpu_custom_call.1} parent=0 // pred_check
    _
  $region23: #{tpu_custom_call.1} parent=0 // pred_check_branch
    %26 = sbr.rel (0) target = $region25
  $region24: #{tpu_custom_call.1} parent=0 // pred_region
    _
  $region25: #{tpu_custom_call.1} parent=0 // pred_fallthru
    _
  // Predicated region
  $region26: #{tpu_custom_call.1} parent=0 // pred_check
    _
  $region27: #{tpu_custom_call.1} parent=0 // pred_check_branch
    %28 = sbr.rel (0) target = $region29
  $region28: #{tpu_custom_call.1} parent=0 // pred_region
    _
  $region29: #{tpu_custom_call.1} parent=0 // pred_fallthru
    _
  // Predicated region
  $region30: #{tpu_custom_call.1} parent=0 // pred_check
    _
  $region31: #{tpu_custom_call.1} parent=0 // pred_check_branch
    %30 = sbr.rel (0) target = $region33
  $region32: #{tpu_custom_call.1} parent=0 // pred_region
    _
  $region33: #{tpu_custom_call.1} parent=0 // pred_fallthru
    _
  // Predicated region
  $region34: #{tpu_custom_call.1} parent=0 // pred_check
    _
  $region35: #{tpu_custom_call.1} parent=0 // pred_check_branch
    %32 = sbr.rel (0) target = $region37
  $region36: #{tpu_custom_call.1} parent=0 // pred_region
    _
  $region37: #{tpu_custom_call.1} parent=0 // pred_fallthru
    _
  // Predicated region
  $region38: #{tpu_custom_call.1} parent=0 // pred_check
    _
  $region39: #{tpu_custom_call.1} parent=0 // pred_check_branch
    %34 = sbr.rel (0) target = $region41
  $region40: #{tpu_custom_call.1} parent=0 // pred_region
    _
  $region41: #{tpu_custom_call.1} parent=0 // pred_fallthru
    _
  %v38 = vld [vmem:[%s3] sm:$0xf]
  %v39 = vld [vmem:[%s3 + $0x4] sm:$0xf]
  %v40 = vld [vmem:[%s3 + $0x8] sm:$0xf]
  %v41 = vld [vmem:[%s3 + $0xc] sm:$0xf]
  %v42 = vld [vmem:[%s3 + $0x10] sm:$0xf]
  %v43 = vld [vmem:[%s3 + $0x14] sm:$0xf]
  %v44 = vld [vmem:[%s3 + $0x18] sm:$0xf]
  %v45 = vld [vmem:[%s3 + $0x1c] sm:$0xf]
  %v46 = vld [vmem:[%s4] sm:$0xf]
  %v47 = vld [vmem:[%s4 + $0x4] sm:$0xf]
  %v48 = vsub.bf16 %v46, 1065369472
  %v49 = vsub.bf16 %v47, 1065369472
  %v50 = vmul.bf16 %v48, 1900704074
  %v51 = vmul.bf16 %v49, 1900704074
  %v52 = vld [vmem:[%s2] sm:$0xff]
  %v53 = vld [vmem:[%s2 + $0x8] sm:$0xff]
  %v54 = vld [vmem:[%s2 + $0x10] sm:$0xff]
  %v55 = vld [vmem:[%s2 + $0x18] sm:$0xff]
  %v56 = vld [vmem:[%s5] sm:$0xff]
  %v57 = vld [vmem:[%s5 + $0x8] sm:$0xff]
  %v58 = vld [vmem:[%s6] sm:$0xff]
  %v59 = vld [vmem:[%s6 + $0x8] sm:$0xff]
  %v60 = vmax.f32 %v56, 1.0
  %v61 = vmax.f32 %v57, 1.0
  %vm62 = vcmp.gt.f32.partialorder %v56, 0.0
  %vm63 = vcmp.gt.f32.partialorder %v57, 0.0
  %v64 = vsel %vm62, 1, 0
  %v65 = vsel %vm63, 1, 0
  %v66 = vcvt.s32.f32 %v64
  %v67 = vcvt.s32.f32 %v65
  %v68 = vld [vmem:[%s9] sm:$0xff]
  %v69 = vld [vmem:[%s9 + $0x8] sm:$0xff]
  %v70 = vld [vmem:[%s0] sm:$0xff]
  %v71 = vld [vmem:[%s0 + $0x8] sm:$0xff]
  %v72 = vlaneseq
  %v73 = vand.u32 %v72, 127
  %vm74 = vcmp.ge.s32.totalorder %v73, 8
  %vm75 = vcmp.lt.s32.totalorder %v73, 12
  %vm76 = vmand %vm74, %vm75
  %v77 = vsel %vm76, 1, 0
  %v78 = vcvt.s32.f32 %v77
  %v79 = vpack.c.bf16 %v71, %v70
  %v88 = vunpack.c.l.b16 %v38
  %v89 = vunpack.c.l.b16 %v39
  %v90 = vunpack.c.l.b16 %v40
  %v91 = vunpack.c.l.b16 %v41
  %v92 = vunpack.c.l.b16 %v42
  %v93 = vunpack.c.l.b16 %v43
  %v94 = vunpack.c.l.b16 %v44
  %v95 = vunpack.c.l.b16 %v45
  %v96 = vpack.c.b16 %v89, %v88
  %v97 = vpack.c.b16 %v91, %v90
  %v98 = vpack.c.b16 %v93, %v92
  %v99 = vpack.c.b16 %v95, %v94
  %vm100 = vcmask 130048
  %v102 = vsel %vm100, %v96, 0
  %v105 = vsel %vm100, %v97, 0
  %v108 = vsel %vm100, %v98, 0
  %v111 = vsel %vm100, %v99, 0
  %113 = vmatprep.subr.bf16.mxu0 0
  %114 = vmatpush1.bf16.msra.mxu0 %v79
  %115 = vmatprep.subr.bf16.mxu0 0
  %116 = vmatpush1.bf16.msra.mxu0 0
  %117 = vmatprep.subr.bf16.mxu0 0
  %118 = vmatpush1.bf16.msra.mxu0 0
  %119 = vmatprep.subr.bf16.mxu0 0
  %120 = vmatpush1.bf16.msra.mxu0 0
  %121 = vmatprep.subr.bf16.mxu0 0
  %122 = vmatpush1.bf16.msra.mxu0 0
  %123 = vmatprep.subr.bf16.mxu0 0
  %124 = vmatpush1.bf16.msra.mxu0 0
  %125 = vmatprep.subr.bf16.mxu0 0
  %126 = vmatpush1.bf16.msra.mxu0 0
  %127 = vmatprep.subr.bf16.mxu0 0
  %128 = vmatpush1.bf16.msra.mxu0 0
  %129 = vmatprep.subr.bf16.mxu0 0
  %130 = vmatpush1.bf16.msra.mxu0 0
  %131 = vmatprep.subr.bf16.mxu0 0
  %132 = vmatpush1.bf16.msra.mxu0 0
  %133 = vmatprep.subr.bf16.mxu0 0
  %134 = vmatpush1.bf16.msra.mxu0 0
  %135 = vmatprep.subr.bf16.mxu0 0
  %136 = vmatpush1.bf16.msra.mxu0 0
  %137 = vmatprep.subr.bf16.mxu0 0
  %138 = vmatpush1.bf16.msra.mxu0 0
  %139 = vmatprep.subr.bf16.mxu0 0
  %140 = vmatpush1.bf16.msra.mxu0 0
  %141 = vmatprep.subr.bf16.mxu0 0
  %142 = vmatpush1.bf16.msra.mxu0 0
  %143 = vmatprep.subr.bf16.mxu0 0
  %144 = vmatpush1.bf16.msra.mxu0 0
  %145 = vmatprep.mubr.bf16.mxu0 0
  %146 = vmatmul.mubr.bf16.gmra.mrb[0].mxu0 %v102
  %v147 = vpop.f32.mrb[0].mxu0
  %v148 = vadd.f32 0.0, %v147
  %v149 = vpop.f32.mrb[0].mxu0
  %v150 = vpop.f32.mrb[0].mxu0
  %v151 = vadd.f32 0.0, %v150
  %v152 = vpop.f32.mrb[0].mxu0
  %153 = vmatprep.mubr.bf16.mxu0 0
  %154 = vmatmul.mubr.bf16.gmra.mrb[0].mxu0 %v105
  %v155 = vpop.f32.mrb[0].mxu0
  %v156 = vadd.f32 0.0, %v155
  %v157 = vpop.f32.mrb[0].mxu0
  %v158 = vpop.f32.mrb[0].mxu0
  %v159 = vadd.f32 0.0, %v158
  %v160 = vpop.f32.mrb[0].mxu0
  %161 = vmatprep.mubr.bf16.mxu0 0
  %162 = vmatmul.mubr.bf16.gmra.mrb[0].mxu0 %v108
  %v163 = vpop.f32.mrb[0].mxu0
  %v164 = vadd.f32 0.0, %v163
  %v165 = vpop.f32.mrb[0].mxu0
  %v166 = vpop.f32.mrb[0].mxu0
  %v167 = vadd.f32 0.0, %v166
  %v168 = vpop.f32.mrb[0].mxu0
  %169 = vmatprep.mubr.bf16.mxu0 0
  %170 = vmatmul.mubr.bf16.gmra.mrb[0].mxu0 %v111
  %v171 = vpop.f32.mrb[0].mxu0
  %v172 = vadd.f32 0.0, %v171
  %v173 = vpop.f32.mrb[0].mxu0
  %v174 = vpop.f32.mrb[0].mxu0
  %v175 = vadd.f32 0.0, %v174
  %v176 = vpop.f32.mrb[0].mxu0
  %177 = vdwg.mxu0
  %v178 = vld [vmem:[%s8] sm:$0xff]
  %v179 = vld [vmem:[%s8 + $0x8] sm:$0xff]
  %v180 = vld [vmem:[%s8 + $0x10] sm:$0xff]
  %v181 = vld [vmem:[%s8 + $0x18] sm:$0xff]
  %v182 = vld [vmem:[%s8 + $0x20] sm:$0xff]
  %v183 = vld [vmem:[%s8 + $0x28] sm:$0xff]
  %v184 = vld [vmem:[%s8 + $0x30] sm:$0xff]
  %v185 = vld [vmem:[%s8 + $0x38] sm:$0xff]
  %v186 = vld [vmem:[%s8 + $0x40] sm:$0xff]
  %v187 = vld [vmem:[%s8 + $0x48] sm:$0xff]
  %v188 = vld [vmem:[%s8 + $0x50] sm:$0xff]
  %v189 = vld [vmem:[%s8 + $0x58] sm:$0xff]
  %v190 = vld [vmem:[%s8 + $0x60] sm:$0xff]
  %v191 = vld [vmem:[%s8 + $0x68] sm:$0xff]
  %v192 = vld [vmem:[%s8 + $0x70] sm:$0xff]
  %v193 = vld [vmem:[%s8 + $0x78] sm:$0xff]
  %vm194 = vcmask 523264
  %v196 = vsel %vm194, %v164, 0
  %v199 = vsel %vm194, %v167, 0
  %v202 = vsel %vm194, %v172, 0
  %v205 = vsel %vm194, %v175, 0
  %207 = vmatprep.subr.mxu0 0.0
  %208 = vmatpush1.msra.mxu0 %v186
  %209 = vmatprep.subr.mxu0 0.0
  %210 = vmatpush1.msra.mxu0 %v187
  %211 = vmatprep.subr.mxu0 0.0
  %212 = vmatpush1.msra.mxu0 %v188
  %213 = vmatprep.subr.mxu0 0.0
  %214 = vmatpush1.msra.mxu0 %v189
  %215 = vmatprep.subr.mxu0 0.0
  %216 = vmatpush1.msra.mxu0 %v190
  %217 = vmatprep.subr.mxu0 0.0
  %218 = vmatpush1.msra.mxu0 %v191
  %219 = vmatprep.subr.mxu0 0.0
  %220 = vmatpush1.msra.mxu0 %v192
  %221 = vmatprep.subr.mxu0 0.0
  %222 = vmatpush1.msra.mxu0 %v193
  %223 = vmatprep.subr.mxu0 0.0
  %224 = vmatpush1.msra.mxu0 0.0
  %225 = vmatprep.subr.mxu0 0.0
  %226 = vmatpush1.msra.mxu0 0.0
  %227 = vmatprep.subr.mxu0 0.0
  %228 = vmatpush1.msra.mxu0 0.0
  %229 = vmatprep.subr.mxu0 0.0
  %230 = vmatpush1.msra.mxu0 0.0
  %231 = vmatprep.subr.mxu0 0.0
  %232 = vmatpush1.msra.mxu0 0.0
  %233 = vmatprep.subr.mxu0 0.0
  %234 = vmatpush1.msra.mxu0 0.0
  %235 = vmatprep.subr.mxu0 0.0
  %236 = vmatpush1.msra.mxu0 0.0
  %237 = vmatprep.subr.mxu0 0.0
  %238 = vmatpush1.msra.mxu0 0.0
  %239 = vmatprep.subr.mxu0 0.0
  %240 = vmatpush1.msra.mxu0 0.0
  %241 = vmatprep.subr.mxu0 0.0
  %242 = vmatpush1.msra.mxu0 0.0
  %243 = vmatprep.subr.mxu0 0.0
  %244 = vmatpush1.msra.mxu0 0.0
  %245 = vmatprep.subr.mxu0 0.0
  %246 = vmatpush1.msra.mxu0 0.0
  %247 = vmatprep.subr.mxu0 0.0
  %248 = vmatpush1.msra.mxu0 0.0
  %249 = vmatprep.subr.mxu0 0.0
  %250 = vmatpush1.msra.mxu0 0.0
  %251 = vmatprep.subr.mxu0 0.0
  %252 = vmatpush1.msra.mxu0 0.0
  %253 = vmatprep.subr.mxu0 0.0
  %254 = vmatpush1.msra.mxu0 0.0
  %255 = vmatprep.subr.mxu0 0.0
  %256 = vmatpush1.msra.mxu0 0.0
  %257 = vmatprep.subr.mxu0 0.0
  %258 = vmatpush1.msra.mxu0 0.0
  %259 = vmatprep.subr.mxu0 0.0
  %260 = vmatpush1.msra.mxu0 0.0
  %261 = vmatprep.subr.mxu0 0.0
  %262 = vmatpush1.msra.mxu0 0.0
  %263 = vmatprep.subr.mxu0 0.0
  %264 = vmatpush1.msra.mxu0 0.0
  %265 = vmatprep.subr.mxu0 0.0
  %266 = vmatpush1.msra.mxu0 0.0
  %267 = vmatprep.subr.mxu0 0.0
  %268 = vmatpush1.msra.mxu0 0.0
  %269 = vmatprep.subr.mxu0 0.0
  %270 = vmatpush1.msra.mxu0 0.0
  %271 = vmatprep.mubr.f32.mxu0 0.0
  %272 = vmatmul.mubr.f32.gmra.mrb[0].mxu0 %v196
  %v273 = vpop.f32.mrb[0].mxu0
  %v274 = vadd.f32 0.0, %v273
  %v275 = vpop.f32.mrb[0].mxu0
  %276 = vmatprep.mubr.f32.mxu0 0.0
  %277 = vmatmul.mubr.f32.gmra.mrb[0].mxu0 %v199
  %v278 = vpop.f32.mrb[0].mxu0
  %v279 = vadd.f32 0.0, %v278
  %v280 = vpop.f32.mrb[0].mxu0
  %281 = vmatprep.mubr.f32.mxu0 0.0
  %282 = vmatmul.mubr.f32.gmra.mrb[0].mxu0 %v202
  %v283 = vpop.f32.mrb[0].mxu0
  %v284 = vadd.f32 0.0, %v283
  %v285 = vpop.f32.mrb[0].mxu0
  %286 = vmatprep.mubr.f32.mxu0 0.0
  %287 = vmatmul.mubr.f32.gmra.mrb[0].mxu0 %v205
  %v288 = vpop.f32.mrb[0].mxu0
  %v289 = vadd.f32 0.0, %v288
  %v290 = vpop.f32.mrb[0].mxu0
  %291 = vdwg.mxu0
  %v293 = vsel %vm194, %v148, 0
  %v296 = vsel %vm194, %v151, 0
  %v299 = vsel %vm194, %v156, 0
  %v302 = vsel %vm194, %v159, 0
  %304 = vmatprep.subr.mxu0 0.0
  %305 = vmatpush1.msra.mxu0 %v178
  %306 = vmatprep.subr.mxu0 0.0
  %307 = vmatpush1.msra.mxu0 %v179
  %308 = vmatprep.subr.mxu0 0.0
  %309 = vmatpush1.msra.mxu0 %v180
  %310 = vmatprep.subr.mxu0 0.0
  %311 = vmatpush1.msra.mxu0 %v181
  %312 = vmatprep.subr.mxu0 0.0
  %313 = vmatpush1.msra.mxu0 %v182
  %314 = vmatprep.subr.mxu0 0.0
  %315 = vmatpush1.msra.mxu0 %v183
  %316 = vmatprep.subr.mxu0 0.0
  %317 = vmatpush1.msra.mxu0 %v184
  %318 = vmatprep.subr.mxu0 0.0
  %319 = vmatpush1.msra.mxu0 %v185
  %320 = vmatprep.subr.mxu0 0.0
  %321 = vmatpush1.msra.mxu0 0.0
  %322 = vmatprep.subr.mxu0 0.0
  %323 = vmatpush1.msra.mxu0 0.0
  %324 = vmatprep.subr.mxu0 0.0
  %325 = vmatpush1.msra.mxu0 0.0
  %326 = vmatprep.subr.mxu0 0.0
  %327 = vmatpush1.msra.mxu0 0.0
  %328 = vmatprep.subr.mxu0 0.0
  %329 = vmatpush1.msra.mxu0 0.0
  %330 = vmatprep.subr.mxu0 0.0
  %331 = vmatpush1.msra.mxu0 0.0
  %332 = vmatprep.subr.mxu0 0.0
  %333 = vmatpush1.msra.mxu0 0.0
  %334 = vmatprep.subr.mxu0 0.0
  %335 = vmatpush1.msra.mxu0 0.0
  %336 = vmatprep.subr.mxu0 0.0
  %337 = vmatpush1.msra.mxu0 0.0
  %338 = vmatprep.subr.mxu0 0.0
  %339 = vmatpush1.msra.mxu0 0.0
  %340 = vmatprep.subr.mxu0 0.0
  %341 = vmatpush1.msra.mxu0 0.0
  %342 = vmatprep.subr.mxu0 0.0
  %343 = vmatpush1.msra.mxu0 0.0
  %344 = vmatprep.subr.mxu0 0.0
  %345 = vmatpush1.msra.mxu0 0.0
  %346 = vmatprep.subr.mxu0 0.0
  %347 = vmatpush1.msra.mxu0 0.0
  %348 = vmatprep.subr.mxu0 0.0
  %349 = vmatpush1.msra.mxu0 0.0
  %350 = vmatprep.subr.mxu0 0.0
  %351 = vmatpush1.msra.mxu0 0.0
  %352 = vmatprep.subr.mxu0 0.0
  %353 = vmatpush1.msra.mxu0 0.0
  %354 = vmatprep.subr.mxu0 0.0
  %355 = vmatpush1.msra.mxu0 0.0
  %356 = vmatprep.subr.mxu0 0.0
  %357 = vmatpush1.msra.mxu0 0.0
  %358 = vmatprep.subr.mxu0 0.0
  %359 = vmatpush1.msra.mxu0 0.0
  %360 = vmatprep.subr.mxu0 0.0
  %361 = vmatpush1.msra.mxu0 0.0
  %362 = vmatprep.subr.mxu0 0.0
  %363 = vmatpush1.msra.mxu0 0.0
  %364 = vmatprep.subr.mxu0 0.0
  %365 = vmatpush1.msra.mxu0 0.0
  %366 = vmatprep.subr.mxu0 0.0
  %367 = vmatpush1.msra.mxu0 0.0
  %368 = vmatprep.mubr.f32.mxu0 0.0
  %369 = vmatmul.mubr.f32.gmra.mrb[0].mxu0 %v293
  %v370 = vpop.f32.mrb[0].mxu0
  %v371 = vadd.f32 %v274, %v370
  %v372 = vpop.f32.mrb[0].mxu0
  %373 = vmatprep.mubr.f32.mxu0 0.0
  %374 = vmatmul.mubr.f32.gmra.mrb[0].mxu0 %v296
  %v375 = vpop.f32.mrb[0].mxu0
  %v376 = vadd.f32 %v279, %v375
  %v377 = vpop.f32.mrb[0].mxu0
  %378 = vmatprep.mubr.f32.mxu0 0.0
  %379 = vmatmul.mubr.f32.gmra.mrb[0].mxu0 %v299
  %v380 = vpop.f32.mrb[0].mxu0
  %v381 = vadd.f32 %v284, %v380
  %v382 = vpop.f32.mrb[0].mxu0
  %383 = vmatprep.mubr.f32.mxu0 0.0
  %384 = vmatmul.mubr.f32.gmra.mrb[0].mxu0 %v302
  %v385 = vpop.f32.mrb[0].mxu0
  %v386 = vadd.f32 %v289, %v385
  %v387 = vpop.f32.mrb[0].mxu0
  %388 = vdwg.mxu0
  %v389 = vld [vmem:[%s8 + $0x80] sm:$0xff]
  %vm390 = vcmask 64512
  %v392 = vsel %vm390, %v52, 0
  %v395 = vsel %vm390, %v53, 0
  %v398 = vsel %vm390, %v54, 0
  %v401 = vsel %vm390, %v55, 0
  %403 = vmatprep.subr.mxu0 0.0
  %404 = vmatpush1.msra.mxu0 %v389
  %405 = vmatprep.subr.mxu0 0.0
  %406 = vmatpush1.msra.mxu0 0.0
  %407 = vmatprep.subr.mxu0 0.0
  %408 = vmatpush1.msra.mxu0 0.0
  %409 = vmatprep.subr.mxu0 0.0
  %410 = vmatpush1.msra.mxu0 0.0
  %411 = vmatprep.subr.mxu0 0.0
  %412 = vmatpush1.msra.mxu0 0.0
  %413 = vmatprep.subr.mxu0 0.0
  %414 = vmatpush1.msra.mxu0 0.0
  %415 = vmatprep.subr.mxu0 0.0
  %416 = vmatpush1.msra.mxu0 0.0
  %417 = vmatprep.subr.mxu0 0.0
  %418 = vmatpush1.msra.mxu0 0.0
  %419 = vmatprep.subr.mxu0 0.0
  %420 = vmatpush1.msra.mxu0 0.0
  %421 = vmatprep.subr.mxu0 0.0
  %422 = vmatpush1.msra.mxu0 0.0
  %423 = vmatprep.subr.mxu0 0.0
  %424 = vmatpush1.msra.mxu0 0.0
  %425 = vmatprep.subr.mxu0 0.0
  %426 = vmatpush1.msra.mxu0 0.0
  %427 = vmatprep.subr.mxu0 0.0
  %428 = vmatpush1.msra.mxu0 0.0
  %429 = vmatprep.subr.mxu0 0.0
  %430 = vmatpush1.msra.mxu0 0.0
  %431 = vmatprep.subr.mxu0 0.0
  %432 = vmatpush1.msra.mxu0 0.0
  %433 = vmatprep.subr.mxu0 0.0
  %434 = vmatpush1.msra.mxu0 0.0
  %435 = vmatprep.subr.mxu0 0.0
  %436 = vmatpush1.msra.mxu0 0.0
  %437 = vmatprep.subr.mxu0 0.0
  %438 = vmatpush1.msra.mxu0 0.0
  %439 = vmatprep.subr.mxu0 0.0
  %440 = vmatpush1.msra.mxu0 0.0
  %441 = vmatprep.subr.mxu0 0.0
  %442 = vmatpush1.msra.mxu0 0.0
  %443 = vmatprep.subr.mxu0 0.0
  %444 = vmatpush1.msra.mxu0 0.0
  %445 = vmatprep.subr.mxu0 0.0
  %446 = vmatpush1.msra.mxu0 0.0
  %447 = vmatprep.subr.mxu0 0.0
  %448 = vmatpush1.msra.mxu0 0.0
  %449 = vmatprep.subr.mxu0 0.0
  %450 = vmatpush1.msra.mxu0 0.0
  %451 = vmatprep.subr.mxu0 0.0
  %452 = vmatpush1.msra.mxu0 0.0
  %453 = vmatprep.subr.mxu0 0.0
  %454 = vmatpush1.msra.mxu0 0.0
  %455 = vmatprep.subr.mxu0 0.0
  %456 = vmatpush1.msra.mxu0 0.0
  %457 = vmatprep.subr.mxu0 0.0
  %458 = vmatpush1.msra.mxu0 0.0
  %459 = vmatprep.subr.mxu0 0.0
  %460 = vmatpush1.msra.mxu0 0.0
  %461 = vmatprep.subr.mxu0 0.0
  %462 = vmatpush1.msra.mxu0 0.0
  %463 = vmatprep.subr.mxu0 0.0
  %464 = vmatpush1.msra.mxu0 0.0
  %465 = vmatprep.subr.mxu0 0.0
  %466 = vmatpush1.msra.mxu0 0.0
  %467 = vmatprep.mubr.f32.mxu0 0.0
  %468 = vmatmul.mubr.f32.gmra.mrb[0].mxu0 %v392
  %v469 = vpop.f32.mrb[0].mxu0
  %v470 = vadd.f32 0.0, %v469
  %v471 = vpop.f32.mrb[0].mxu0
  %472 = vmatprep.mubr.f32.mxu0 0.0
  %473 = vmatmul.mubr.f32.gmra.mrb[0].mxu0 %v395
  %v474 = vpop.f32.mrb[0].mxu0
  %v475 = vadd.f32 0.0, %v474
  %v476 = vpop.f32.mrb[0].mxu0
  %477 = vmatprep.mubr.f32.mxu0 0.0
  %478 = vmatmul.mubr.f32.gmra.mrb[0].mxu0 %v398
  %v479 = vpop.f32.mrb[0].mxu0
  %v480 = vadd.f32 0.0, %v479
  %v481 = vpop.f32.mrb[0].mxu0
  %482 = vmatprep.mubr.f32.mxu0 0.0
  %483 = vmatmul.mubr.f32.gmra.mrb[0].mxu0 %v401
  %v484 = vpop.f32.mrb[0].mxu0
  %v485 = vadd.f32 0.0, %v484
  %v486 = vpop.f32.mrb[0].mxu0
  %487 = vdwg.mxu0
  %v488 = vadd.f32 %v371, %v470
  %v489 = vadd.f32 %v376, %v475
  %v490 = vadd.f32 %v381, %v480
  %v491 = vadd.f32 %v386, %v485
  %v492 = vlaneseq
  %v493 = vshrl.u32 %v492, 7
  %v494 = vsub.s32 0, %v493
  %v495 = vrot.slane %v68, %v494
  %v496 = vadd.f32 %v488, %v495
  %v497 = vadd.f32 %v489, %v495
  %v498 = vadd.f32 %v490, %v495
  %v499 = vadd.f32 %v491, %v495
  %v500 = vpack.c.bf16 %v497, %v496
  %v501 = vpack.c.bf16 %v499, %v498
  %v504 = vunpack.c.l.b16 %v46
  %v505 = vunpack.c.l.b16 %v47
  %v506 = vpack.c.b16 %v505, %v504
  %vm507 = vcmask 261120
  %v509 = vsel %vm507, %v506, 0
  %511 = vmatprep.subr.bf16.mxu0 0
  %512 = vmatpush1.bf16.msra.mxu0 %v500
  %513 = vmatprep.subr.bf16.mxu0 0
  %514 = vmatpush1.bf16.msra.mxu0 %v501
  %515 = vmatprep.subr.bf16.mxu0 0
  %516 = vmatpush1.bf16.msra.mxu0 0
  %517 = vmatprep.subr.bf16.mxu0 0
  %518 = vmatpush1.bf16.msra.mxu0 0
  %519 = vmatprep.subr.bf16.mxu0 0
  %520 = vmatpush1.bf16.msra.mxu0 0
  %521 = vmatprep.subr.bf16.mxu0 0
  %522 = vmatpush1.bf16.msra.mxu0 0
  %523 = vmatprep.subr.bf16.mxu0 0
  %524 = vmatpush1.bf16.msra.mxu0 0
  %525 = vmatprep.subr.bf16.mxu0 0
  %526 = vmatpush1.bf16.msra.mxu0 0
  %527 = vmatprep.subr.bf16.mxu0 0
  %528 = vmatpush1.bf16.msra.mxu0 0
  %529 = vmatprep.subr.bf16.mxu0 0
  %530 = vmatpush1.bf16.msra.mxu0 0
  %531 = vmatprep.subr.bf16.mxu0 0
  %532 = vmatpush1.bf16.msra.mxu0 0
  %533 = vmatprep.subr.bf16.mxu0 0
  %534 = vmatpush1.bf16.msra.mxu0 0
  %535 = vmatprep.subr.bf16.mxu0 0
  %536 = vmatpush1.bf16.msra.mxu0 0
  %537 = vmatprep.subr.bf16.mxu0 0
  %538 = vmatpush1.bf16.msra.mxu0 0
  %539 = vmatprep.subr.bf16.mxu0 0
  %540 = vmatpush1.bf16.msra.mxu0 0
  %541 = vmatprep.subr.bf16.mxu0 0
  %542 = vmatpush1.bf16.msra.mxu0 0
  %543 = vmatprep.mubr.bf16.mxu0 0
  %544 = vmatmul.mubr.bf16.gmra.mrb[0].mxu0 %v509
  %v545 = vpop.f32.mrb[0].mxu0
  %v546 = vadd.f32 0.0, %v545
  %v547 = vpop.f32.mrb[0].mxu0
  %v548 = vpop.f32.mrb[0].mxu0
  %v549 = vadd.f32 0.0, %v548
  %v550 = vpop.f32.mrb[0].mxu0
  %551 = vdwg.mxu0
  %v552 = vmul.bf16 %v500, %v500
  %v553 = vmul.bf16 %v501, %v501
  %554 = vmatprep.subr.bf16.mxu0 0
  %555 = vmatpush1.bf16.msra.mxu0 %v552
  %556 = vmatprep.subr.bf16.mxu0 0
  %557 = vmatpush1.bf16.msra.mxu0 %v553
  %558 = vmatprep.subr.bf16.mxu0 0
  %559 = vmatpush1.bf16.msra.mxu0 0
  %560 = vmatprep.subr.bf16.mxu0 0
  %561 = vmatpush1.bf16.msra.mxu0 0
  %562 = vmatprep.subr.bf16.mxu0 0
  %563 = vmatpush1.bf16.msra.mxu0 0
  %564 = vmatprep.subr.bf16.mxu0 0
  %565 = vmatpush1.bf16.msra.mxu0 0
  %566 = vmatprep.subr.bf16.mxu0 0
  %567 = vmatpush1.bf16.msra.mxu0 0
  %568 = vmatprep.subr.bf16.mxu0 0
  %569 = vmatpush1.bf16.msra.mxu0 0
  %570 = vmatprep.subr.bf16.mxu0 0
  %571 = vmatpush1.bf16.msra.mxu0 0
  %572 = vmatprep.subr.bf16.mxu0 0
  %573 = vmatpush1.bf16.msra.mxu0 0
  %574 = vmatprep.subr.bf16.mxu0 0
  %575 = vmatpush1.bf16.msra.mxu0 0
  %576 = vmatprep.subr.bf16.mxu0 0
  %577 = vmatpush1.bf16.msra.mxu0 0
  %578 = vmatprep.subr.bf16.mxu0 0
  %579 = vmatpush1.bf16.msra.mxu0 0
  %580 = vmatprep.subr.bf16.mxu0 0
  %581 = vmatpush1.bf16.msra.mxu0 0
  %582 = vmatprep.subr.bf16.mxu0 0
  %583 = vmatpush1.bf16.msra.mxu0 0
  %584 = vmatprep.subr.bf16.mxu0 0
  %585 = vmatpush1.bf16.msra.mxu0 0
  %586 = vmatprep.mubr.bf16.mxu0 0
  %587 = vmatmul.mubr.bf16.gmra.mrb[0].mxu0 %v509
  %v588 = vpop.f32.mrb[0].mxu0
  %v589 = vadd.f32 0.0, %v588
  %v590 = vpop.f32.mrb[0].mxu0
  %v591 = vpop.f32.mrb[0].mxu0
  %v592 = vadd.f32 0.0, %v591
  %v593 = vpop.f32.mrb[0].mxu0
  %594 = vdwg.mxu0
  %596 = vset.pattern.permute.xlu0 0
  %597 = vperm.xlu0 %596, %v60
  %v598 = vpop.permute.xlu0 %597
  %601 = vset.pattern.permute.xlu0 0
  %602 = vperm.xlu0 %601, %v61
  %v603 = vpop.permute.xlu0 %602
  %v605 = vrcp.pop %v598
  %v606 = vmul.f32 %v546, %v605
  %v607 = vrcp.pop %v603
  %v608 = vmul.f32 %v549, %v607
  %v609 = vmul.f32 %v589, %v605
  %v610 = vmul.f32 %v592, %v607
  %v611 = vmul.f32 %v606, %v606
  %v612 = vmul.f32 %v608, %v608
  %v613 = vsub.f32 %v609, %v611
  %v614 = vsub.f32 %v610, %v612
  %v615 = vmax.f32 %v613, 0.0
  %v616 = vmax.f32 %v614, 0.0
  %v617 = vadd.f32 %v615, 1e-30
  %v618 = vadd.f32 %v616, 1e-30
  %v619 = vrsqrt.pop %v617
  %v620 = vmul.f32 %v617, %v619
  %vm621 = vcmp.eq.f32.partialorder %v617, inf
  %v622 = vsel %vm621, %v617, %v620
  %vm623 = vcmp.eq.f32.partialorder %v617, 0.0
  %v624 = vand.u32 %v617, 2147483648
  %v625 = vsel %vm623, %v624, %v622
  %v626 = vrsqrt.pop %v618
  %v627 = vmul.f32 %v618, %v626
  %vm628 = vcmp.eq.f32.partialorder %v618, inf
  %v629 = vsel %vm628, %v618, %v627
  %vm630 = vcmp.eq.f32.partialorder %v618, 0.0
  %v631 = vand.u32 %v618, 2147483648
  %v632 = vsel %vm630, %v631, %v629
  %v635 = vunpack.c.l.b16 %v50
  %v636 = vunpack.c.l.b16 %v51
  %v637 = vpack.c.b16 %v636, %v635
  %v639 = vpack.i.b16 %v637, %v637
  %v641 = vlaneseq
  %v642 = vshrl.u32 %v641, 7
  %v643 = vsub.s32 0, %v642
  %v644 = vrot.slane %v639, %v643
  %646 = vbcast.lane.c.b16.xlu0 %v644, 256
  %v647 = vpop.permute.xlu0 %646
  %s649 = sor.u32 256, 16
  %650 = vbcast.lane.c.b16.xlu0 %v644, %s649
  %v651 = vpop.permute.xlu0 %650
  %v652 = vshrl.u32 %v637, 16
  %v653 = vpack.i.b16 %v652, %v652
  %v655 = vlaneseq
  %v656 = vshrl.u32 %v655, 7
  %v657 = vsub.s32 0, %v656
  %v658 = vrot.slane %v653, %v657
  %660 = vbcast.lane.c.b16.xlu0 %v658, 256
  %v661 = vpop.permute.xlu0 %660
  %s663 = sor.u32 256, 16
  %664 = vbcast.lane.c.b16.xlu0 %v658, %s663
  %v665 = vpop.permute.xlu0 %664
  %v666 = vlaneseq
  %v667 = vshrl.u32 %v666, 7
  %v668 = vsub.s32 1, %v667
  %v669 = vrot.slane %v639, %v668
  %671 = vbcast.lane.c.b16.xlu0 %v669, 256
  %v672 = vpop.permute.xlu0 %671
  %s674 = sor.u32 256, 16
  %675 = vbcast.lane.c.b16.xlu0 %v669, %s674
  %v676 = vpop.permute.xlu0 %675
  %v677 = vlaneseq
  %v678 = vshrl.u32 %v677, 7
  %v679 = vsub.s32 1, %v678
  %v680 = vrot.slane %v653, %v679
  %682 = vbcast.lane.c.b16.xlu0 %v680, 256
  %v683 = vpop.permute.xlu0 %682
  %s685 = sor.u32 256, 16
  %686 = vbcast.lane.c.b16.xlu0 %v680, %s685
  %v687 = vpop.permute.xlu0 %686
  %v688 = vlaneseq
  %v689 = vshrl.u32 %v688, 7
  %v690 = vsub.s32 2, %v689
  %v691 = vrot.slane %v639, %v690
  %693 = vbcast.lane.c.b16.xlu0 %v691, 256
  %v694 = vpop.permute.xlu0 %693
  %s696 = sor.u32 256, 16
  %697 = vbcast.lane.c.b16.xlu0 %v691, %s696
  %v698 = vpop.permute.xlu0 %697
  %v699 = vlaneseq
  %v700 = vshrl.u32 %v699, 7
  %v701 = vsub.s32 2, %v700
  %v702 = vrot.slane %v653, %v701
  %704 = vbcast.lane.c.b16.xlu0 %v702, 256
  %v705 = vpop.permute.xlu0 %704
  %s707 = sor.u32 256, 16
  %708 = vbcast.lane.c.b16.xlu0 %v702, %s707
  %v709 = vpop.permute.xlu0 %708
  %v710 = vlaneseq
  %v711 = vshrl.u32 %v710, 7
  %v712 = vsub.s32 3, %v711
  %v713 = vrot.slane %v639, %v712
  %715 = vbcast.lane.c.b16.xlu0 %v713, 256
  %v716 = vpop.permute.xlu0 %715
  %s718 = sor.u32 256, 16
  %719 = vbcast.lane.c.b16.xlu0 %v713, %s718
  %v720 = vpop.permute.xlu0 %719
  %v721 = vlaneseq
  %v722 = vshrl.u32 %v721, 7
  %v723 = vsub.s32 3, %v722
  %v724 = vrot.slane %v653, %v723
  %726 = vbcast.lane.c.b16.xlu0 %v724, 256
  %v727 = vpop.permute.xlu0 %726
  %s729 = sor.u32 256, 16
  %730 = vbcast.lane.c.b16.xlu0 %v724, %s729
  %v731 = vpop.permute.xlu0 %730
  %v732 = vlaneseq
  %v733 = vshrl.u32 %v732, 7
  %v734 = vsub.s32 4, %v733
  %v735 = vrot.slane %v639, %v734
  %737 = vbcast.lane.c.b16.xlu0 %v735, 256
  %v738 = vpop.permute.xlu0 %737
  %s740 = sor.u32 256, 16
  %741 = vbcast.lane.c.b16.xlu0 %v735, %s740
  %v742 = vpop.permute.xlu0 %741
  %v743 = vlaneseq
  %v744 = vshrl.u32 %v743, 7
  %v745 = vsub.s32 4, %v744
  %v746 = vrot.slane %v653, %v745
  %748 = vbcast.lane.c.b16.xlu0 %v746, 256
  %v749 = vpop.permute.xlu0 %748
  %s751 = sor.u32 256, 16
  %752 = vbcast.lane.c.b16.xlu0 %v746, %s751
  %v753 = vpop.permute.xlu0 %752
  %v754 = vlaneseq
  %v755 = vshrl.u32 %v754, 7
  %v756 = vsub.s32 5, %v755
  %v757 = vrot.slane %v639, %v756
  %759 = vbcast.lane.c.b16.xlu0 %v757, 256
  %v760 = vpop.permute.xlu0 %759
  %s762 = sor.u32 256, 16
  %763 = vbcast.lane.c.b16.xlu0 %v757, %s762
  %v764 = vpop.permute.xlu0 %763
  %v765 = vlaneseq
  %v766 = vshrl.u32 %v765, 7
  %v767 = vsub.s32 5, %v766
  %v768 = vrot.slane %v653, %v767
  %770 = vbcast.lane.c.b16.xlu0 %v768, 256
  %v771 = vpop.permute.xlu0 %770
  %s773 = sor.u32 256, 16
  %774 = vbcast.lane.c.b16.xlu0 %v768, %s773
  %v775 = vpop.permute.xlu0 %774
  %v776 = vlaneseq
  %v777 = vshrl.u32 %v776, 7
  %v778 = vsub.s32 6, %v777
  %v779 = vrot.slane %v639, %v778
  %781 = vbcast.lane.c.b16.xlu0 %v779, 256
  %v782 = vpop.permute.xlu0 %781
  %s784 = sor.u32 256, 16
  %785 = vbcast.lane.c.b16.xlu0 %v779, %s784
  %v786 = vpop.permute.xlu0 %785
  %v787 = vlaneseq
  %v788 = vshrl.u32 %v787, 7
  %v789 = vsub.s32 6, %v788
  %v790 = vrot.slane %v653, %v789
  %792 = vbcast.lane.c.b16.xlu0 %v790, 256
  %v793 = vpop.permute.xlu0 %792
  %s795 = sor.u32 256, 16
  %796 = vbcast.lane.c.b16.xlu0 %v790, %s795
  %v797 = vpop.permute.xlu0 %796
  %v798 = vlaneseq
  %v799 = vshrl.u32 %v798, 7
  %v800 = vsub.s32 7, %v799
  %v801 = vrot.slane %v639, %v800
  %803 = vbcast.lane.c.b16.xlu0 %v801, 256
  %v804 = vpop.permute.xlu0 %803
  %s806 = sor.u32 256, 16
  %807 = vbcast.lane.c.b16.xlu0 %v801, %s806
  %v808 = vpop.permute.xlu0 %807
  %v809 = vlaneseq
  %v810 = vshrl.u32 %v809, 7
  %v811 = vsub.s32 7, %v810
  %v812 = vrot.slane %v653, %v811
  %814 = vbcast.lane.c.b16.xlu0 %v812, 256
  %v815 = vpop.permute.xlu0 %814
  %s817 = sor.u32 256, 16
  %818 = vbcast.lane.c.b16.xlu0 %v812, %s817
  %v819 = vpop.permute.xlu0 %818
  %v820 = vunpack.c.l.bf16 %v647
  %v821 = vunpack.c.h.bf16 %v647
  %v822 = vunpack.c.l.bf16 %v651
  %v823 = vunpack.c.h.bf16 %v651
  %v824 = vunpack.c.l.bf16 %v661
  %v825 = vunpack.c.h.bf16 %v661
  %v826 = vunpack.c.l.bf16 %v665
  %v827 = vunpack.c.h.bf16 %v665
  %v828 = vunpack.c.l.bf16 %v672
  %v829 = vunpack.c.h.bf16 %v672
  %v830 = vunpack.c.l.bf16 %v676
  %v831 = vunpack.c.h.bf16 %v676
  %v832 = vunpack.c.l.bf16 %v683
  %v833 = vunpack.c.h.bf16 %v683
  %v834 = vunpack.c.l.bf16 %v687
  %v835 = vunpack.c.h.bf16 %v687
  %v836 = vunpack.c.l.bf16 %v694
  %v837 = vunpack.c.h.bf16 %v694
  %v838 = vunpack.c.l.bf16 %v698
  %v839 = vunpack.c.h.bf16 %v698
  %v840 = vunpack.c.l.bf16 %v705
  %v841 = vunpack.c.h.bf16 %v705
  %v842 = vunpack.c.l.bf16 %v709
  %v843 = vunpack.c.h.bf16 %v709
  %v844 = vunpack.c.l.bf16 %v716
  %v845 = vunpack.c.h.bf16 %v716
  %v846 = vunpack.c.l.bf16 %v720
  %v847 = vunpack.c.h.bf16 %v720
  %v848 = vunpack.c.l.bf16 %v727
  %v849 = vunpack.c.h.bf16 %v727
  %v850 = vunpack.c.l.bf16 %v731
  %v851 = vunpack.c.h.bf16 %v731
  %v852 = vunpack.c.l.bf16 %v738
  %v853 = vunpack.c.h.bf16 %v738
  %v854 = vunpack.c.l.bf16 %v742
  %v855 = vunpack.c.h.bf16 %v742
  %v856 = vunpack.c.l.bf16 %v749
  %v857 = vunpack.c.h.bf16 %v749
  %v858 = vunpack.c.l.bf16 %v753
  %v859 = vunpack.c.h.bf16 %v753
  %v860 = vunpack.c.l.bf16 %v760
  %v861 = vunpack.c.h.bf16 %v760
  %v862 = vunpack.c.l.bf16 %v764
  %v863 = vunpack.c.h.bf16 %v764
  %v864 = vunpack.c.l.bf16 %v771
  %v865 = vunpack.c.h.bf16 %v771
  %v866 = vunpack.c.l.bf16 %v775
  %v867 = vunpack.c.h.bf16 %v775
  %v868 = vunpack.c.l.bf16 %v782
  %v869 = vunpack.c.h.bf16 %v782
  %v870 = vunpack.c.l.bf16 %v786
  %v871 = vunpack.c.h.bf16 %v786
  %v872 = vunpack.c.l.bf16 %v793
  %v873 = vunpack.c.h.bf16 %v793
  %v874 = vunpack.c.l.bf16 %v797
  %v875 = vunpack.c.h.bf16 %v797
  %v876 = vunpack.c.l.bf16 %v804
  %v877 = vunpack.c.h.bf16 %v804
  %v878 = vunpack.c.l.bf16 %v808
  %v879 = vunpack.c.h.bf16 %v808
  %v880 = vunpack.c.l.bf16 %v815
  %v881 = vunpack.c.h.bf16 %v815
  %v882 = vunpack.c.l.bf16 %v819
  %v883 = vunpack.c.h.bf16 %v819
  %v884 = vadd.f32 %v496, %v820
  %v885 = vadd.f32 %v497, %v821
  %v886 = vadd.f32 %v498, %v822
  %v887 = vadd.f32 %v499, %v823
  %v888 = vadd.f32 %v496, %v824
  %v889 = vadd.f32 %v497, %v825
  %v890 = vadd.f32 %v498, %v826
  %v891 = vadd.f32 %v499, %v827
  %v892 = vadd.f32 %v496, %v828
  %v893 = vadd.f32 %v497, %v829
  %v894 = vadd.f32 %v498, %v830
  %v895 = vadd.f32 %v499, %v831
  %v896 = vadd.f32 %v496, %v832
  %v897 = vadd.f32 %v497, %v833
  %v898 = vadd.f32 %v498, %v834
  %v899 = vadd.f32 %v499, %v835
  %v900 = vadd.f32 %v496, %v836
  %v901 = vadd.f32 %v497, %v837
  %v902 = vadd.f32 %v498, %v838
  %v903 = vadd.f32 %v499, %v839
  %v904 = vadd.f32 %v496, %v840
  %v905 = vadd.f32 %v497, %v841
  %v906 = vadd.f32 %v498, %v842
  %v907 = vadd.f32 %v499, %v843
  %v908 = vadd.f32 %v496, %v844
  %v909 = vadd.f32 %v497, %v845
  %v910 = vadd.f32 %v498, %v846
  %v911 = vadd.f32 %v499, %v847
  %v912 = vadd.f32 %v496, %v848
  %v913 = vadd.f32 %v497, %v849
  %v914 = vadd.f32 %v498, %v850
  %v915 = vadd.f32 %v499, %v851
  %v916 = vadd.f32 %v496, %v852
  %v917 = vadd.f32 %v497, %v853
  %v918 = vadd.f32 %v498, %v854
  %v919 = vadd.f32 %v499, %v855
  %v920 = vadd.f32 %v496, %v856
  %v921 = vadd.f32 %v497, %v857
  %v922 = vadd.f32 %v498, %v858
  %v923 = vadd.f32 %v499, %v859
  %v924 = vadd.f32 %v496, %v860
  %v925 = vadd.f32 %v497, %v861
  %v926 = vadd.f32 %v498, %v862
  %v927 = vadd.f32 %v499, %v863
  %v928 = vadd.f32 %v496, %v864
  %v929 = vadd.f32 %v497, %v865
  %v930 = vadd.f32 %v498, %v866
  %v931 = vadd.f32 %v499, %v867
  %v932 = vadd.f32 %v496, %v868
  %v933 = vadd.f32 %v497, %v869
  %v934 = vadd.f32 %v498, %v870
  %v935 = vadd.f32 %v499, %v871
  %v936 = vadd.f32 %v496, %v872
  %v937 = vadd.f32 %v497, %v873
  %v938 = vadd.f32 %v498, %v874
  %v939 = vadd.f32 %v499, %v875
  %v940 = vadd.f32 %v496, %v876
  %v941 = vadd.f32 %v497, %v877
  %v942 = vadd.f32 %v498, %v878
  %v943 = vadd.f32 %v499, %v879
  %v944 = vadd.f32 %v496, %v880
  %v945 = vadd.f32 %v497, %v881
  %v946 = vadd.f32 %v498, %v882
  %v947 = vadd.f32 %v499, %v883
  %v948 = vsel %vm194, %v884, -inf
  %v949 = vsel %vm194, %v885, -inf
  %v950 = vmax.f32 %v948, %v949
  %v951 = vsel %vm194, %v886, -inf
  %v952 = vmax.f32 %v950, %v951
  %v953 = vsel %vm194, %v887, -inf
  %v954 = vmax.f32 %v952, %v953
  %v955 = vrot.slane %v954, 4
  %v956 = vmax.f32 %v954, %v955
  %v957 = vrot.slane %v956, 2
  %v958 = vmax.f32 %v956, %v957
  %v959 = vrot.slane %v958, 1
  %v960 = vmax.f32 %v958, %v959
  %v961 = vsel %vm194, %v888, -inf
  %v962 = vsel %vm194, %v889, -inf
  %v963 = vmax.f32 %v961, %v962
  %v964 = vsel %vm194, %v890, -inf
  %v965 = vmax.f32 %v963, %v964
  %v966 = vsel %vm194, %v891, -inf
  %v967 = vmax.f32 %v965, %v966
  %v968 = vrot.slane %v967, 4
  %v969 = vmax.f32 %v967, %v968
  %v970 = vrot.slane %v969, 2
  %v971 = vmax.f32 %v969, %v970
  %v972 = vrot.slane %v971, 1
  %v973 = vmax.f32 %v971, %v972
  %v974 = vsel %vm194, %v892, -inf
  %v975 = vsel %vm194, %v893, -inf
  %v976 = vmax.f32 %v974, %v975
  %v977 = vsel %vm194, %v894, -inf
  %v978 = vmax.f32 %v976, %v977
  %v979 = vsel %vm194, %v895, -inf
  %v980 = vmax.f32 %v978, %v979
  %v981 = vrot.slane %v980, 4
  %v982 = vmax.f32 %v980, %v981
  %v983 = vrot.slane %v982, 2
  %v984 = vmax.f32 %v982, %v983
  %v985 = vrot.slane %v984, 1
  %v986 = vmax.f32 %v984, %v985
  %v987 = vsel %vm194, %v896, -inf
  %v988 = vsel %vm194, %v897, -inf
  %v989 = vmax.f32 %v987, %v988
  %v990 = vsel %vm194, %v898, -inf
  %v991 = vmax.f32 %v989, %v990
  %v992 = vsel %vm194, %v899, -inf
  %v993 = vmax.f32 %v991, %v992
  %v994 = vrot.slane %v993, 4
  %v995 = vmax.f32 %v993, %v994
  %v996 = vrot.slane %v995, 2
  %v997 = vmax.f32 %v995, %v996
  %v998 = vrot.slane %v997, 1
  %v999 = vmax.f32 %v997, %v998
  %v1000 = vsel %vm194, %v900, -inf
  %v1001 = vsel %vm194, %v901, -inf
  %v1002 = vmax.f32 %v1000, %v1001
  %v1003 = vsel %vm194, %v902, -inf
  %v1004 = vmax.f32 %v1002, %v1003
  %v1005 = vsel %vm194, %v903, -inf
  %v1006 = vmax.f32 %v1004, %v1005
  %v1007 = vrot.slane %v1006, 4
  %v1008 = vmax.f32 %v1006, %v1007
  %v1009 = vrot.slane %v1008, 2
  %v1010 = vmax.f32 %v1008, %v1009
  %v1011 = vrot.slane %v1010, 1
  %v1012 = vmax.f32 %v1010, %v1011
  %v1013 = vsel %vm194, %v904, -inf
  %v1014 = vsel %vm194, %v905, -inf
  %v1015 = vmax.f32 %v1013, %v1014
  %v1016 = vsel %vm194, %v906, -inf
  %v1017 = vmax.f32 %v1015, %v1016
  %v1018 = vsel %vm194, %v907, -inf
  %v1019 = vmax.f32 %v1017, %v1018
  %v1020 = vrot.slane %v1019, 4
  %v1021 = vmax.f32 %v1019, %v1020
  %v1022 = vrot.slane %v1021, 2
  %v1023 = vmax.f32 %v1021, %v1022
  %v1024 = vrot.slane %v1023, 1
  %v1025 = vmax.f32 %v1023, %v1024
  %v1026 = vsel %vm194, %v908, -inf
  %v1027 = vsel %vm194, %v909, -inf
  %v1028 = vmax.f32 %v1026, %v1027
  %v1029 = vsel %vm194, %v910, -inf
  %v1030 = vmax.f32 %v1028, %v1029
  %v1031 = vsel %vm194, %v911, -inf
  %v1032 = vmax.f32 %v1030, %v1031
  %v1033 = vrot.slane %v1032, 4
  %v1034 = vmax.f32 %v1032, %v1033
  %v1035 = vrot.slane %v1034, 2
  %v1036 = vmax.f32 %v1034, %v1035
  %v1037 = vrot.slane %v1036, 1
  %v1038 = vmax.f32 %v1036, %v1037
  %v1039 = vsel %vm194, %v912, -inf
  %v1040 = vsel %vm194, %v913, -inf
  %v1041 = vmax.f32 %v1039, %v1040
  %v1042 = vsel %vm194, %v914, -inf
  %v1043 = vmax.f32 %v1041, %v1042
  %v1044 = vsel %vm194, %v915, -inf
  %v1045 = vmax.f32 %v1043, %v1044
  %v1046 = vrot.slane %v1045, 4
  %v1047 = vmax.f32 %v1045, %v1046
  %v1048 = vrot.slane %v1047, 2
  %v1049 = vmax.f32 %v1047, %v1048
  %v1050 = vrot.slane %v1049, 1
  %v1051 = vmax.f32 %v1049, %v1050
  %v1052 = vsel %vm194, %v916, -inf
  %v1053 = vsel %vm194, %v917, -inf
  %v1054 = vmax.f32 %v1052, %v1053
  %v1055 = vsel %vm194, %v918, -inf
  %v1056 = vmax.f32 %v1054, %v1055
  %v1057 = vsel %vm194, %v919, -inf
  %v1058 = vmax.f32 %v1056, %v1057
  %v1059 = vrot.slane %v1058, 4
  %v1060 = vmax.f32 %v1058, %v1059
  %v1061 = vrot.slane %v1060, 2
  %v1062 = vmax.f32 %v1060, %v1061
  %v1063 = vrot.slane %v1062, 1
  %v1064 = vmax.f32 %v1062, %v1063
  %v1065 = vsel %vm194, %v920, -inf
  %v1066 = vsel %vm194, %v921, -inf
  %v1067 = vmax.f32 %v1065, %v1066
  %v1068 = vsel %vm194, %v922, -inf
  %v1069 = vmax.f32 %v1067, %v1068
  %v1070 = vsel %vm194, %v923, -inf
  %v1071 = vmax.f32 %v1069, %v1070
  %v1072 = vrot.slane %v1071, 4
  %v1073 = vmax.f32 %v1071, %v1072
  %v1074 = vrot.slane %v1073, 2
  %v1075 = vmax.f32 %v1073, %v1074
  %v1076 = vrot.slane %v1075, 1
  %v1077 = vmax.f32 %v1075, %v1076
  %v1078 = vsel %vm194, %v924, -inf
  %v1079 = vsel %vm194, %v925, -inf
  %v1080 = vmax.f32 %v1078, %v1079
  %v1081 = vsel %vm194, %v926, -inf
  %v1082 = vmax.f32 %v1080, %v1081
  %v1083 = vsel %vm194, %v927, -inf
  %v1084 = vmax.f32 %v1082, %v1083
  %v1085 = vrot.slane %v1084, 4
  %v1086 = vmax.f32 %v1084, %v1085
  %v1087 = vrot.slane %v1086, 2
  %v1088 = vmax.f32 %v1086, %v1087
  %v1089 = vrot.slane %v1088, 1
  %v1090 = vmax.f32 %v1088, %v1089
  %v1091 = vsel %vm194, %v928, -inf
  %v1092 = vsel %vm194, %v929, -inf
  %v1093 = vmax.f32 %v1091, %v1092
  %v1094 = vsel %vm194, %v930, -inf
  %v1095 = vmax.f32 %v1093, %v1094
  %v1096 = vsel %vm194, %v931, -inf
  %v1097 = vmax.f32 %v1095, %v1096
  %v1098 = vrot.slane %v1097, 4
  %v1099 = vmax.f32 %v1097, %v1098
  %v1100 = vrot.slane %v1099, 2
  %v1101 = vmax.f32 %v1099, %v1100
  %v1102 = vrot.slane %v1101, 1
  %v1103 = vmax.f32 %v1101, %v1102
  %v1104 = vsel %vm194, %v932, -inf
  %v1105 = vsel %vm194, %v933, -inf
  %v1106 = vmax.f32 %v1104, %v1105
  %v1107 = vsel %vm194, %v934, -inf
  %v1108 = vmax.f32 %v1106, %v1107
  %v1109 = vsel %vm194, %v935, -inf
  %v1110 = vmax.f32 %v1108, %v1109
  %v1111 = vrot.slane %v1110, 4
  %v1112 = vmax.f32 %v1110, %v1111
  %v1113 = vrot.slane %v1112, 2
  %v1114 = vmax.f32 %v1112, %v1113
  %v1115 = vrot.slane %v1114, 1
  %v1116 = vmax.f32 %v1114, %v1115
  %v1117 = vsel %vm194, %v936, -inf
  %v1118 = vsel %vm194, %v937, -inf
  %v1119 = vmax.f32 %v1117, %v1118
  %v1120 = vsel %vm194, %v938, -inf
  %v1121 = vmax.f32 %v1119, %v1120
  %v1122 = vsel %vm194, %v939, -inf
  %v1123 = vmax.f32 %v1121, %v1122
  %v1124 = vrot.slane %v1123, 4
  %v1125 = vmax.f32 %v1123, %v1124
  %v1126 = vrot.slane %v1125, 2
  %v1127 = vmax.f32 %v1125, %v1126
  %v1128 = vrot.slane %v1127, 1
  %v1129 = vmax.f32 %v1127, %v1128
  %v1130 = vsel %vm194, %v940, -inf
  %v1131 = vsel %vm194, %v941, -inf
  %v1132 = vmax.f32 %v1130, %v1131
  %v1133 = vsel %vm194, %v942, -inf
  %v1134 = vmax.f32 %v1132, %v1133
  %v1135 = vsel %vm194, %v943, -inf
  %v1136 = vmax.f32 %v1134, %v1135
  %v1137 = vrot.slane %v1136, 4
  %v1138 = vmax.f32 %v1136, %v1137
  %v1139 = vrot.slane %v1138, 2
  %v1140 = vmax.f32 %v1138, %v1139
  %v1141 = vrot.slane %v1140, 1
  %v1142 = vmax.f32 %v1140, %v1141
  %v1143 = vsel %vm194, %v944, -inf
  %v1144 = vsel %vm194, %v945, -inf
  %v1145 = vmax.f32 %v1143, %v1144
  %v1146 = vsel %vm194, %v946, -inf
  %v1147 = vmax.f32 %v1145, %v1146
  %v1148 = vsel %vm194, %v947, -inf
  %v1149 = vmax.f32 %v1147, %v1148
  %v1150 = vrot.slane %v1149, 4
  %v1151 = vmax.f32 %v1149, %v1150
  %v1152 = vrot.slane %v1151, 2
  %v1153 = vmax.f32 %v1151, %v1152
  %v1154 = vrot.slane %v1153, 1
  %v1155 = vmax.f32 %v1153, %v1154
  %1157 = vset.pattern.permute.xlu0 0
  %1158 = vperm.xlu0 %1157, %v66
  %v1159 = vpop.permute.xlu0 %1158
  %1162 = vset.pattern.permute.xlu0 0
  %1163 = vperm.xlu0 %1162, %v67
  %v1164 = vpop.permute.xlu0 %1163
  %v1166 = vmul.f32 %v606, %v1159
  %v1167 = vmul.f32 %v608, %v1164
  %v1168 = vrot.slane %v1159, 1
  %v1169 = vrot.slane %v1159, 2
  %v1170 = vrot.slane %v1159, 3
  %v1171 = vrot.slane %v1159, 4
  %v1172 = vrot.slane %v1159, 5
  %v1173 = vrot.slane %v1159, 6
  %v1174 = vrot.slane %v1159, 7
  %v1175 = vrot.slane %v1164, 1
  %v1176 = vrot.slane %v1164, 2
  %v1177 = vrot.slane %v1164, 3
  %v1178 = vrot.slane %v1164, 4
  %v1179 = vrot.slane %v1164, 5
  %v1180 = vrot.slane %v1164, 6
  %v1181 = vrot.slane %v1164, 7
  %v1196 = vmul.f32 %v960, %v1159
  %v1197 = vmul.f32 %v973, %v1168
  %v1198 = vmul.f32 %v986, %v1169
  %v1199 = vmul.f32 %v999, %v1170
  %v1200 = vmul.f32 %v1012, %v1171
  %v1201 = vmul.f32 %v1025, %v1172
  %v1202 = vmul.f32 %v1038, %v1173
  %v1203 = vmul.f32 %v1051, %v1174
  %v1204 = vmul.f32 %v1064, %v1164
  %v1205 = vmul.f32 %v1077, %v1175
  %v1206 = vmul.f32 %v1090, %v1176
  %v1207 = vmul.f32 %v1103, %v1177
  %v1208 = vmul.f32 %v1116, %v1178
  %v1209 = vmul.f32 %v1129, %v1179
  %v1210 = vmul.f32 %v1142, %v1180
  %v1211 = vmul.f32 %v1155, %v1181
  %v1212 = vmul.f32 %v546, %v1159
  %v1213 = vmul.f32 %v549, %v1164
  %v1214 = vmul.f32 %v625, %v1159
  %v1215 = vmul.f32 %v632, %v1164
  %v1216 = vld [vmem:[%s8 + $0x88] sm:$0xff]
  %v1217 = vld [vmem:[%s8 + $0x90] sm:$0xff]
  %v1218 = vld [vmem:[%s8 + $0x98] sm:$0xff]
  %v1219 = vld [vmem:[%s8 + $0xa0] sm:$0xff]
  %v1220 = vld [vmem:[%s8 + $0xa8] sm:$0xff]
  %v1221 = vld [vmem:[%s8 + $0xb0] sm:$0xff]
  %v1222 = vld [vmem:[%s8 + $0xb8] sm:$0xff]
  %v1223 = vld [vmem:[%s8 + $0xc0] sm:$0xff]
  %v1224 = vld [vmem:[%s8 + $0xc8] sm:$0xff]
  %v1225 = vld [vmem:[%s8 + $0xd0] sm:$0xff]
  %v1226 = vld [vmem:[%s8 + $0xd8] sm:$0xff]
  %v1227 = vld [vmem:[%s8 + $0xe0] sm:$0xff]
  %v1228 = vld [vmem:[%s8 + $0xe8] sm:$0xff]
  %v1229 = vld [vmem:[%s8 + $0xf0] sm:$0xff]
  %v1230 = vld [vmem:[%s8 + $0xf8] sm:$0xff]
  %v1231 = vld [vmem:[%s8 + $0x100] sm:$0xff]
  %v1233 = vsel %vm194, %v1166, 0
  %v1236 = vsel %vm194, %v1167, 0
  %1238 = vmatprep.subr.mxu0 0.0
  %1239 = vmatpush1.msra.mxu0 %v1224
  %1240 = vmatprep.subr.mxu0 0.0
  %1241 = vmatpush1.msra.mxu0 %v1225
  %1242 = vmatprep.subr.mxu0 0.0
  %1243 = vmatpush1.msra.mxu0 %v1226
  %1244 = vmatprep.subr.mxu0 0.0
  %1245 = vmatpush1.msra.mxu0 %v1227
  %1246 = vmatprep.subr.mxu0 0.0
  %1247 = vmatpush1.msra.mxu0 %v1228
  %1248 = vmatprep.subr.mxu0 0.0
  %1249 = vmatpush1.msra.mxu0 %v1229
  %1250 = vmatprep.subr.mxu0 0.0
  %1251 = vmatpush1.msra.mxu0 %v1230
  %1252 = vmatprep.subr.mxu0 0.0
  %1253 = vmatpush1.msra.mxu0 %v1231
  %1254 = vmatprep.subr.mxu0 0.0
  %1255 = vmatpush1.msra.mxu0 0.0
  %1256 = vmatprep.subr.mxu0 0.0
  %1257 = vmatpush1.msra.mxu0 0.0
  %1258 = vmatprep.subr.mxu0 0.0
  %1259 = vmatpush1.msra.mxu0 0.0
  %1260 = vmatprep.subr.mxu0 0.0
  %1261 = vmatpush1.msra.mxu0 0.0
  %1262 = vmatprep.subr.mxu0 0.0
  %1263 = vmatpush1.msra.mxu0 0.0
  %1264 = vmatprep.subr.mxu0 0.0
  %1265 = vmatpush1.msra.mxu0 0.0
  %1266 = vmatprep.subr.mxu0 0.0
  %1267 = vmatpush1.msra.mxu0 0.0
  %1268 = vmatprep.subr.mxu0 0.0
  %1269 = vmatpush1.msra.mxu0 0.0
  %1270 = vmatprep.subr.mxu0 0.0
  %1271 = vmatpush1.msra.mxu0 0.0
  %1272 = vmatprep.subr.mxu0 0.0
  %1273 = vmatpush1.msra.mxu0 0.0
  %1274 = vmatprep.subr.mxu0 0.0
  %1275 = vmatpush1.msra.mxu0 0.0
  %1276 = vmatprep.subr.mxu0 0.0
  %1277 = vmatpush1.msra.mxu0 0.0
  %1278 = vmatprep.subr.mxu0 0.0
  %1279 = vmatpush1.msra.mxu0 0.0
  %1280 = vmatprep.subr.mxu0 0.0
  %1281 = vmatpush1.msra.mxu0 0.0
  %1282 = vmatprep.subr.mxu0 0.0
  %1283 = vmatpush1.msra.mxu0 0.0
  %1284 = vmatprep.subr.mxu0 0.0
  %1285 = vmatpush1.msra.mxu0 0.0
  %1286 = vmatprep.subr.mxu0 0.0
  %1287 = vmatpush1.msra.mxu0 0.0
  %1288 = vmatprep.subr.mxu0 0.0
  %1289 = vmatpush1.msra.mxu0 0.0
  %1290 = vmatprep.subr.mxu0 0.0
  %1291 = vmatpush1.msra.mxu0 0.0
  %1292 = vmatprep.subr.mxu0 0.0
  %1293 = vmatpush1.msra.mxu0 0.0
  %1294 = vmatprep.subr.mxu0 0.0
  %1295 = vmatpush1.msra.mxu0 0.0
  %1296 = vmatprep.subr.mxu0 0.0
  %1297 = vmatpush1.msra.mxu0 0.0
  %1298 = vmatprep.subr.mxu0 0.0
  %1299 = vmatpush1.msra.mxu0 0.0
  %1300 = vmatprep.subr.mxu0 0.0
  %1301 = vmatpush1.msra.mxu0 0.0
  %1302 = vmatprep.mubr.f32.mxu0 0.0
  %1303 = vmatmul.mubr.f32.gmra.mrb[0].mxu0 %v1233
  %v1304 = vpop.f32.mrb[0].mxu0
  %v1305 = vadd.f32 0.0, %v1304
  %v1306 = vpop.f32.mrb[0].mxu0
  %1307 = vmatprep.mubr.f32.mxu0 0.0
  %1308 = vmatmul.mubr.f32.gmra.mrb[0].mxu0 %v1236
  %v1309 = vpop.f32.mrb[0].mxu0
  %v1310 = vadd.f32 0.0, %v1309
  %v1311 = vpop.f32.mrb[0].mxu0
  %1312 = vdwg.mxu0
  %v1314 = vsel %vm194, %v70, 0
  %v1317 = vsel %vm194, %v71, 0
  %1319 = vmatprep.subr.mxu0 0.0
  %1320 = vmatpush1.msra.mxu0 %v1216
  %1321 = vmatprep.subr.mxu0 0.0
  %1322 = vmatpush1.msra.mxu0 %v1217
  %1323 = vmatprep.subr.mxu0 0.0
  %1324 = vmatpush1.msra.mxu0 %v1218
  %1325 = vmatprep.subr.mxu0 0.0
  %1326 = vmatpush1.msra.mxu0 %v1219
  %1327 = vmatprep.subr.mxu0 0.0
  %1328 = vmatpush1.msra.mxu0 %v1220
  %1329 = vmatprep.subr.mxu0 0.0
  %1330 = vmatpush1.msra.mxu0 %v1221
  %1331 = vmatprep.subr.mxu0 0.0
  %1332 = vmatpush1.msra.mxu0 %v1222
  %1333 = vmatprep.subr.mxu0 0.0
  %1334 = vmatpush1.msra.mxu0 %v1223
  %1335 = vmatprep.subr.mxu0 0.0
  %1336 = vmatpush1.msra.mxu0 0.0
  %1337 = vmatprep.subr.mxu0 0.0
  %1338 = vmatpush1.msra.mxu0 0.0
  %1339 = vmatprep.subr.mxu0 0.0
  %1340 = vmatpush1.msra.mxu0 0.0
  %1341 = vmatprep.subr.mxu0 0.0
  %1342 = vmatpush1.msra.mxu0 0.0
  %1343 = vmatprep.subr.mxu0 0.0
  %1344 = vmatpush1.msra.mxu0 0.0
  %1345 = vmatprep.subr.mxu0 0.0
  %1346 = vmatpush1.msra.mxu0 0.0
  %1347 = vmatprep.subr.mxu0 0.0
  %1348 = vmatpush1.msra.mxu0 0.0
  %1349 = vmatprep.subr.mxu0 0.0
  %1350 = vmatpush1.msra.mxu0 0.0
  %1351 = vmatprep.subr.mxu0 0.0
  %1352 = vmatpush1.msra.mxu0 0.0
  %1353 = vmatprep.subr.mxu0 0.0
  %1354 = vmatpush1.msra.mxu0 0.0
  %1355 = vmatprep.subr.mxu0 0.0
  %1356 = vmatpush1.msra.mxu0 0.0
  %1357 = vmatprep.subr.mxu0 0.0
  %1358 = vmatpush1.msra.mxu0 0.0
  %1359 = vmatprep.subr.mxu0 0.0
  %1360 = vmatpush1.msra.mxu0 0.0
  %1361 = vmatprep.subr.mxu0 0.0
  %1362 = vmatpush1.msra.mxu0 0.0
  %1363 = vmatprep.subr.mxu0 0.0
  %1364 = vmatpush1.msra.mxu0 0.0
  %1365 = vmatprep.subr.mxu0 0.0
  %1366 = vmatpush1.msra.mxu0 0.0
  %1367 = vmatprep.subr.mxu0 0.0
  %1368 = vmatpush1.msra.mxu0 0.0
  %1369 = vmatprep.subr.mxu0 0.0
  %1370 = vmatpush1.msra.mxu0 0.0
  %1371 = vmatprep.subr.mxu0 0.0
  %1372 = vmatpush1.msra.mxu0 0.0
  %1373 = vmatprep.subr.mxu0 0.0
  %1374 = vmatpush1.msra.mxu0 0.0
  %1375 = vmatprep.subr.mxu0 0.0
  %1376 = vmatpush1.msra.mxu0 0.0
  %1377 = vmatprep.subr.mxu0 0.0
  %1378 = vmatpush1.msra.mxu0 0.0
  %1379 = vmatprep.subr.mxu0 0.0
  %1380 = vmatpush1.msra.mxu0 0.0
  %1381 = vmatprep.subr.mxu0 0.0
  %1382 = vmatpush1.msra.mxu0 0.0
  %1383 = vmatprep.mubr.f32.mxu0 0.0
  %1384 = vmatmul.mubr.f32.gmra.mrb[0].mxu0 %v1314
  %v1385 = vpop.f32.mrb[0].mxu0
  %v1386 = vadd.f32 %v1305, %v1385
  %v1387 = vpop.f32.mrb[0].mxu0
  %1388 = vmatprep.mubr.f32.mxu0 0.0
  %1389 = vmatmul.mubr.f32.gmra.mrb[0].mxu0 %v1317
  %v1390 = vpop.f32.mrb[0].mxu0
  %v1391 = vadd.f32 %v1310, %v1390
  %v1392 = vpop.f32.mrb[0].mxu0
  %1393 = vdwg.mxu0
  %v1394 = vld [vmem:[%s8 + $0x108] sm:$0xff]
  %v1395 = vld [vmem:[%s8 + $0x110] sm:$0xff]
  %v1396 = vld [vmem:[%s8 + $0x118] sm:$0xff]
  %v1397 = vld [vmem:[%s8 + $0x120] sm:$0xff]
  %v1398 = vld [vmem:[%s8 + $0x128] sm:$0xff]
  %v1399 = vld [vmem:[%s8 + $0x130] sm:$0xff]
  %v1400 = vld [vmem:[%s8 + $0x138] sm:$0xff]
  %v1401 = vld [vmem:[%s8 + $0x140] sm:$0xff]
  %v1418 = vrot.slane %v1197, 7
  %vm1419 = vcmask 1041409
  %v1420 = vsel %vm1419, %v1418, %v1196
  %v1421 = vrot.slane %v1198, 6
  %vm1422 = vcmask 1042434
  %v1423 = vsel %vm1422, %v1421, %v1420
  %v1424 = vrot.slane %v1199, 5
  %vm1425 = vcmask 1043459
  %v1426 = vsel %vm1425, %v1424, %v1423
  %v1427 = vrot.slane %v1200, 4
  %vm1428 = vcmask 1044484
  %v1429 = vsel %vm1428, %v1427, %v1426
  %v1430 = vrot.slane %v1201, 3
  %vm1431 = vcmask 1045509
  %v1432 = vsel %vm1431, %v1430, %v1429
  %v1433 = vrot.slane %v1202, 2
  %vm1434 = vcmask 1046534
  %v1435 = vsel %vm1434, %v1433, %v1432
  %v1436 = vrot.slane %v1203, 1
  %vm1437 = vcmask 1047559
  %v1438 = vsel %vm1437, %v1436, %v1435
  %v1439 = vrot.slane %v1205, 7
  %v1440 = vsel %vm1419, %v1439, %v1204
  %v1441 = vrot.slane %v1206, 6
  %v1442 = vsel %vm1422, %v1441, %v1440
  %v1443 = vrot.slane %v1207, 5
  %v1444 = vsel %vm1425, %v1443, %v1442
  %v1445 = vrot.slane %v1208, 4
  %v1446 = vsel %vm1428, %v1445, %v1444
  %v1447 = vrot.slane %v1209, 3
  %v1448 = vsel %vm1431, %v1447, %v1446
  %v1449 = vrot.slane %v1210, 2
  %v1450 = vsel %vm1434, %v1449, %v1448
  %v1451 = vrot.slane %v1211, 1
  %v1452 = vsel %vm1437, %v1451, %v1450
  %v1453 = vsel %vm194, %v1438, 0
  %v1455 = vsel %vm194, %v1452, 0
  %1457 = vmatprep.subr.mxu0 0.0
  %1458 = vmatpush1.msra.mxu0 %v1394
  %1459 = vmatprep.subr.mxu0 0.0
  %1460 = vmatpush1.msra.mxu0 %v1395
  %1461 = vmatprep.subr.mxu0 0.0
  %1462 = vmatpush1.msra.mxu0 %v1396
  %1463 = vmatprep.subr.mxu0 0.0
  %1464 = vmatpush1.msra.mxu0 %v1397
  %1465 = vmatprep.subr.mxu0 0.0
  %1466 = vmatpush1.msra.mxu0 %v1398
  %1467 = vmatprep.subr.mxu0 0.0
  %1468 = vmatpush1.msra.mxu0 %v1399
  %1469 = vmatprep.subr.mxu0 0.0
  %1470 = vmatpush1.msra.mxu0 %v1400
  %1471 = vmatprep.subr.mxu0 0.0
  %1472 = vmatpush1.msra.mxu0 %v1401
  %1473 = vmatprep.subr.mxu0 0.0
  %1474 = vmatpush1.msra.mxu0 0.0
  %1475 = vmatprep.subr.mxu0 0.0
  %1476 = vmatpush1.msra.mxu0 0.0
  %1477 = vmatprep.subr.mxu0 0.0
  %1478 = vmatpush1.msra.mxu0 0.0
  %1479 = vmatprep.subr.mxu0 0.0
  %1480 = vmatpush1.msra.mxu0 0.0
  %1481 = vmatprep.subr.mxu0 0.0
  %1482 = vmatpush1.msra.mxu0 0.0
  %1483 = vmatprep.subr.mxu0 0.0
  %1484 = vmatpush1.msra.mxu0 0.0
  %1485 = vmatprep.subr.mxu0 0.0
  %1486 = vmatpush1.msra.mxu0 0.0
  %1487 = vmatprep.subr.mxu0 0.0
  %1488 = vmatpush1.msra.mxu0 0.0
  %1489 = vmatprep.subr.mxu0 0.0
  %1490 = vmatpush1.msra.mxu0 0.0
  %1491 = vmatprep.subr.mxu0 0.0
  %1492 = vmatpush1.msra.mxu0 0.0
  %1493 = vmatprep.subr.mxu0 0.0
  %1494 = vmatpush1.msra.mxu0 0.0
  %1495 = vmatprep.subr.mxu0 0.0
  %1496 = vmatpush1.msra.mxu0 0.0
  %1497 = vmatprep.subr.mxu0 0.0
  %1498 = vmatpush1.msra.mxu0 0.0
  %1499 = vmatprep.subr.mxu0 0.0
  %1500 = vmatpush1.msra.mxu0 0.0
  %1501 = vmatprep.subr.mxu0 0.0
  %1502 = vmatpush1.msra.mxu0 0.0
  %1503 = vmatprep.subr.mxu0 0.0
  %1504 = vmatpush1.msra.mxu0 0.0
  %1505 = vmatprep.subr.mxu0 0.0
  %1506 = vmatpush1.msra.mxu0 0.0
  %1507 = vmatprep.subr.mxu0 0.0
  %1508 = vmatpush1.msra.mxu0 0.0
  %1509 = vmatprep.subr.mxu0 0.0
  %1510 = vmatpush1.msra.mxu0 0.0
  %1511 = vmatprep.subr.mxu0 0.0
  %1512 = vmatpush1.msra.mxu0 0.0
  %1513 = vmatprep.subr.mxu0 0.0
  %1514 = vmatpush1.msra.mxu0 0.0
  %1515 = vmatprep.subr.mxu0 0.0
  %1516 = vmatpush1.msra.mxu0 0.0
  %1517 = vmatprep.subr.mxu0 0.0
  %1518 = vmatpush1.msra.mxu0 0.0
  %1519 = vmatprep.subr.mxu0 0.0
  %1520 = vmatpush1.msra.mxu0 0.0
  %1521 = vmatprep.mubr.f32.mxu0 0.0
  %1522 = vmatmul.mubr.f32.gmra.mrb[0].mxu0 %v1453
  %v1523 = vpop.f32.mrb[0].mxu0
  %v1524 = vadd.f32 0.0, %v1523
  %v1525 = vpop.f32.mrb[0].mxu0
  %1526 = vmatprep.mubr.f32.mxu0 0.0
  %1527 = vmatmul.mubr.f32.gmra.mrb[0].mxu0 %v1455
  %v1528 = vpop.f32.mrb[0].mxu0
  %v1529 = vadd.f32 0.0, %v1528
  %v1530 = vpop.f32.mrb[0].mxu0
  %1531 = vdwg.mxu0
  %v1532 = vadd.f32 %v1386, %v1524
  %v1533 = vadd.f32 %v1391, %v1529
  %v1534 = vld [vmem:[%s8 + $0x148] sm:$0xff]
  %v1535 = vld [vmem:[%s8 + $0x150] sm:$0xff]
  %v1536 = vld [vmem:[%s8 + $0x158] sm:$0xff]
  %v1537 = vld [vmem:[%s8 + $0x160] sm:$0xff]
  %v1538 = vld [vmem:[%s8 + $0x168] sm:$0xff]
  %v1539 = vld [vmem:[%s8 + $0x170] sm:$0xff]
  %v1540 = vld [vmem:[%s8 + $0x178] sm:$0xff]
  %v1541 = vld [vmem:[%s8 + $0x180] sm:$0xff]
  %v1543 = vsel %vm194, %v1212, 0
  %v1546 = vsel %vm194, %v1213, 0
  %1548 = vmatprep.subr.mxu0 0.0
  %1549 = vmatpush1.msra.mxu0 %v1534
  %1550 = vmatprep.subr.mxu0 0.0
  %1551 = vmatpush1.msra.mxu0 %v1535
  %1552 = vmatprep.subr.mxu0 0.0
  %1553 = vmatpush1.msra.mxu0 %v1536
  %1554 = vmatprep.subr.mxu0 0.0
  %1555 = vmatpush1.msra.mxu0 %v1537
  %1556 = vmatprep.subr.mxu0 0.0
  %1557 = vmatpush1.msra.mxu0 %v1538
  %1558 = vmatprep.subr.mxu0 0.0
  %1559 = vmatpush1.msra.mxu0 %v1539
  %1560 = vmatprep.subr.mxu0 0.0
  %1561 = vmatpush1.msra.mxu0 %v1540
  %1562 = vmatprep.subr.mxu0 0.0
  %1563 = vmatpush1.msra.mxu0 %v1541
  %1564 = vmatprep.subr.mxu0 0.0
  %1565 = vmatpush1.msra.mxu0 0.0
  %1566 = vmatprep.subr.mxu0 0.0
  %1567 = vmatpush1.msra.mxu0 0.0
  %1568 = vmatprep.subr.mxu0 0.0
  %1569 = vmatpush1.msra.mxu0 0.0
  %1570 = vmatprep.subr.mxu0 0.0
  %1571 = vmatpush1.msra.mxu0 0.0
  %1572 = vmatprep.subr.mxu0 0.0
  %1573 = vmatpush1.msra.mxu0 0.0
  %1574 = vmatprep.subr.mxu0 0.0
  %1575 = vmatpush1.msra.mxu0 0.0
  %1576 = vmatprep.subr.mxu0 0.0
  %1577 = vmatpush1.msra.mxu0 0.0
  %1578 = vmatprep.subr.mxu0 0.0
  %1579 = vmatpush1.msra.mxu0 0.0
  %1580 = vmatprep.subr.mxu0 0.0
  %1581 = vmatpush1.msra.mxu0 0.0
  %1582 = vmatprep.subr.mxu0 0.0
  %1583 = vmatpush1.msra.mxu0 0.0
  %1584 = vmatprep.subr.mxu0 0.0
  %1585 = vmatpush1.msra.mxu0 0.0
  %1586 = vmatprep.subr.mxu0 0.0
  %1587 = vmatpush1.msra.mxu0 0.0
  %1588 = vmatprep.subr.mxu0 0.0
  %1589 = vmatpush1.msra.mxu0 0.0
  %1590 = vmatprep.subr.mxu0 0.0
  %1591 = vmatpush1.msra.mxu0 0.0
  %1592 = vmatprep.subr.mxu0 0.0
  %1593 = vmatpush1.msra.mxu0 0.0
  %1594 = vmatprep.subr.mxu0 0.0
  %1595 = vmatpush1.msra.mxu0 0.0
  %1596 = vmatprep.subr.mxu0 0.0
  %1597 = vmatpush1.msra.mxu0 0.0
  %1598 = vmatprep.subr.mxu0 0.0
  %1599 = vmatpush1.msra.mxu0 0.0
  %1600 = vmatprep.subr.mxu0 0.0
  %1601 = vmatpush1.msra.mxu0 0.0
  %1602 = vmatprep.subr.mxu0 0.0
  %1603 = vmatpush1.msra.mxu0 0.0
  %1604 = vmatprep.subr.mxu0 0.0
  %1605 = vmatpush1.msra.mxu0 0.0
  %1606 = vmatprep.subr.mxu0 0.0
  %1607 = vmatpush1.msra.mxu0 0.0
  %1608 = vmatprep.subr.mxu0 0.0
  %1609 = vmatpush1.msra.mxu0 0.0
  %1610 = vmatprep.subr.mxu0 0.0
  %1611 = vmatpush1.msra.mxu0 0.0
  %1612 = vmatprep.mubr.f32.mxu0 0.0
  %1613 = vmatmul.mubr.f32.gmra.mrb[0].mxu0 %v1543
  %v1614 = vpop.f32.mrb[0].mxu0
  %v1615 = vadd.f32 0.0, %v1614
  %v1616 = vpop.f32.mrb[0].mxu0
  %1617 = vmatprep.mubr.f32.mxu0 0.0
  %1618 = vmatmul.mubr.f32.gmra.mrb[0].mxu0 %v1546
  %v1619 = vpop.f32.mrb[0].mxu0
  %v1620 = vadd.f32 0.0, %v1619
  %v1621 = vpop.f32.mrb[0].mxu0
  %1622 = vdwg.mxu0
  %v1623 = vadd.f32 %v1532, %v1615
  %v1624 = vadd.f32 %v1533, %v1620
  %v1625 = vld [vmem:[%s8 + $0x188] sm:$0xff]
  %v1626 = vld [vmem:[%s8 + $0x190] sm:$0xff]
  %v1627 = vld [vmem:[%s8 + $0x198] sm:$0xff]
  %v1628 = vld [vmem:[%s8 + $0x1a0] sm:$0xff]
  %v1629 = vld [vmem:[%s8 + $0x1a8] sm:$0xff]
  %v1630 = vld [vmem:[%s8 + $0x1b0] sm:$0xff]
  %v1631 = vld [vmem:[%s8 + $0x1b8] sm:$0xff]
  %v1632 = vld [vmem:[%s8 + $0x1c0] sm:$0xff]
  %v1634 = vsel %vm194, %v1214, 0
  %v1637 = vsel %vm194, %v1215, 0
  %1639 = vmatprep.subr.mxu0 0.0
  %1640 = vmatpush1.msra.mxu0 %v1625
  %1641 = vmatprep.subr.mxu0 0.0
  %1642 = vmatpush1.msra.mxu0 %v1626
  %1643 = vmatprep.subr.mxu0 0.0
  %1644 = vmatpush1.msra.mxu0 %v1627
  %1645 = vmatprep.subr.mxu0 0.0
  %1646 = vmatpush1.msra.mxu0 %v1628
  %1647 = vmatprep.subr.mxu0 0.0
  %1648 = vmatpush1.msra.mxu0 %v1629
  %1649 = vmatprep.subr.mxu0 0.0
  %1650 = vmatpush1.msra.mxu0 %v1630
  %1651 = vmatprep.subr.mxu0 0.0
  %1652 = vmatpush1.msra.mxu0 %v1631
  %1653 = vmatprep.subr.mxu0 0.0
  %1654 = vmatpush1.msra.mxu0 %v1632
  %1655 = vmatprep.subr.mxu0 0.0
  %1656 = vmatpush1.msra.mxu0 0.0
  %1657 = vmatprep.subr.mxu0 0.0
  %1658 = vmatpush1.msra.mxu0 0.0
  %1659 = vmatprep.subr.mxu0 0.0
  %1660 = vmatpush1.msra.mxu0 0.0
  %1661 = vmatprep.subr.mxu0 0.0
  %1662 = vmatpush1.msra.mxu0 0.0
  %1663 = vmatprep.subr.mxu0 0.0
  %1664 = vmatpush1.msra.mxu0 0.0
  %1665 = vmatprep.subr.mxu0 0.0
  %1666 = vmatpush1.msra.mxu0 0.0
  %1667 = vmatprep.subr.mxu0 0.0
  %1668 = vmatpush1.msra.mxu0 0.0
  %1669 = vmatprep.subr.mxu0 0.0
  %1670 = vmatpush1.msra.mxu0 0.0
  %1671 = vmatprep.subr.mxu0 0.0
  %1672 = vmatpush1.msra.mxu0 0.0
  %1673 = vmatprep.subr.mxu0 0.0
  %1674 = vmatpush1.msra.mxu0 0.0
  %1675 = vmatprep.subr.mxu0 0.0
  %1676 = vmatpush1.msra.mxu0 0.0
  %1677 = vmatprep.subr.mxu0 0.0
  %1678 = vmatpush1.msra.mxu0 0.0
  %1679 = vmatprep.subr.mxu0 0.0
  %1680 = vmatpush1.msra.mxu0 0.0
  %1681 = vmatprep.subr.mxu0 0.0
  %1682 = vmatpush1.msra.mxu0 0.0
  %1683 = vmatprep.subr.mxu0 0.0
  %1684 = vmatpush1.msra.mxu0 0.0
  %1685 = vmatprep.subr.mxu0 0.0
  %1686 = vmatpush1.msra.mxu0 0.0
  %1687 = vmatprep.subr.mxu0 0.0
  %1688 = vmatpush1.msra.mxu0 0.0
  %1689 = vmatprep.subr.mxu0 0.0
  %1690 = vmatpush1.msra.mxu0 0.0
  %1691 = vmatprep.subr.mxu0 0.0
  %1692 = vmatpush1.msra.mxu0 0.0
  %1693 = vmatprep.subr.mxu0 0.0
  %1694 = vmatpush1.msra.mxu0 0.0
  %1695 = vmatprep.subr.mxu0 0.0
  %1696 = vmatpush1.msra.mxu0 0.0
  %1697 = vmatprep.subr.mxu0 0.0
  %1698 = vmatpush1.msra.mxu0 0.0
  %1699 = vmatprep.subr.mxu0 0.0
  %1700 = vmatpush1.msra.mxu0 0.0
  %1701 = vmatprep.subr.mxu0 0.0
  %1702 = vmatpush1.msra.mxu0 0.0
  %1703 = vmatprep.mubr.f32.mxu0 0.0
  %1704 = vmatmul.mubr.f32.gmra.mrb[0].mxu0 %v1634
  %v1705 = vpop.f32.mrb[0].mxu0
  %v1706 = vadd.f32 0.0, %v1705
  %v1707 = vpop.f32.mrb[0].mxu0
  %1708 = vmatprep.mubr.f32.mxu0 0.0
  %1709 = vmatmul.mubr.f32.gmra.mrb[0].mxu0 %v1637
  %v1710 = vpop.f32.mrb[0].mxu0
  %v1711 = vadd.f32 0.0, %v1710
  %v1712 = vpop.f32.mrb[0].mxu0
  %1713 = vdwg.mxu0
  %v1714 = vadd.f32 %v1623, %v1706
  %v1715 = vadd.f32 %v1624, %v1711
  %v1716 = vlaneseq
  %v1717 = vshrl.u32 %v1716, 7
  %v1718 = vsub.s32 1, %v1717
  %v1719 = vrot.slane %v68, %v1718
  %v1720 = vadd.f32 %v1714, %v1719
  %v1721 = vadd.f32 %v1715, %v1719
  %1723 = vset.pattern.permute.xlu0 0
  %1724 = vperm.xlu0 %1723, %v58
  %v1725 = vpop.permute.xlu0 %1724
  %1728 = vset.pattern.permute.xlu0 0
  %1729 = vperm.xlu0 %1728, %v59
  %v1730 = vpop.permute.xlu0 %1729
  %v1732 = vmul.f32 %v1720, %v1725
  %v1733 = vmul.f32 %v1721, %v1730
  %v1734 = vld [vmem:[%s8 + $0x1c8] sm:$0xff]
  %v1735 = vld [vmem:[%s8 + $0x1d0] sm:$0xff]
  %v1736 = vld [vmem:[%s8 + $0x1d8] sm:$0xff]
  %v1737 = vld [vmem:[%s8 + $0x1e0] sm:$0xff]
  %v1738 = vld [vmem:[%s8 + $0x1e8] sm:$0xff]
  %v1739 = vld [vmem:[%s8 + $0x1f0] sm:$0xff]
  %v1740 = vld [vmem:[%s8 + $0x1f8] sm:$0xff]
  %v1741 = vld [vmem:[%s8 + $0x200] sm:$0xff]
  %v1742 = vlaneseq
  %v1743 = vshrl.u32 %v1742, 7
  %v1744 = vsub.s32 2, %v1743
  %v1745 = vrot.slane %v68, %v1744
  %v1747 = vsel %vm194, %v1732, 0
  %v1750 = vsel %vm194, %v1733, 0
  %1752 = vmatprep.subr.mxu0 0.0
  %1753 = vmatpush1.msra.mxu0 %v1734
  %1754 = vmatprep.subr.mxu0 0.0
  %1755 = vmatpush1.msra.mxu0 %v1735
  %1756 = vmatprep.subr.mxu0 0.0
  %1757 = vmatpush1.msra.mxu0 %v1736
  %1758 = vmatprep.subr.mxu0 0.0
  %1759 = vmatpush1.msra.mxu0 %v1737
  %1760 = vmatprep.subr.mxu0 0.0
  %1761 = vmatpush1.msra.mxu0 %v1738
  %1762 = vmatprep.subr.mxu0 0.0
  %1763 = vmatpush1.msra.mxu0 %v1739
  %1764 = vmatprep.subr.mxu0 0.0
  %1765 = vmatpush1.msra.mxu0 %v1740
  %1766 = vmatprep.subr.mxu0 0.0
  %1767 = vmatpush1.msra.mxu0 %v1741
  %1768 = vmatprep.subr.mxu0 0.0
  %1769 = vmatpush1.msra.mxu0 0.0
  %1770 = vmatprep.subr.mxu0 0.0
  %1771 = vmatpush1.msra.mxu0 0.0
  %1772 = vmatprep.subr.mxu0 0.0
  %1773 = vmatpush1.msra.mxu0 0.0
  %1774 = vmatprep.subr.mxu0 0.0
  %1775 = vmatpush1.msra.mxu0 0.0
  %1776 = vmatprep.subr.mxu0 0.0
  %1777 = vmatpush1.msra.mxu0 0.0
  %1778 = vmatprep.subr.mxu0 0.0
  %1779 = vmatpush1.msra.mxu0 0.0
  %1780 = vmatprep.subr.mxu0 0.0
  %1781 = vmatpush1.msra.mxu0 0.0
  %1782 = vmatprep.subr.mxu0 0.0
  %1783 = vmatpush1.msra.mxu0 0.0
  %1784 = vmatprep.subr.mxu0 0.0
  %1785 = vmatpush1.msra.mxu0 0.0
  %1786 = vmatprep.subr.mxu0 0.0
  %1787 = vmatpush1.msra.mxu0 0.0
  %1788 = vmatprep.subr.mxu0 0.0
  %1789 = vmatpush1.msra.mxu0 0.0
  %1790 = vmatprep.subr.mxu0 0.0
  %1791 = vmatpush1.msra.mxu0 0.0
  %1792 = vmatprep.subr.mxu0 0.0
  %1793 = vmatpush1.msra.mxu0 0.0
  %1794 = vmatprep.subr.mxu0 0.0
  %1795 = vmatpush1.msra.mxu0 0.0
  %1796 = vmatprep.subr.mxu0 0.0
  %1797 = vmatpush1.msra.mxu0 0.0
  %1798 = vmatprep.subr.mxu0 0.0
  %1799 = vmatpush1.msra.mxu0 0.0
  %1800 = vmatprep.subr.mxu0 0.0
  %1801 = vmatpush1.msra.mxu0 0.0
  %1802 = vmatprep.subr.mxu0 0.0
  %1803 = vmatpush1.msra.mxu0 0.0
  %1804 = vmatprep.subr.mxu0 0.0
  %1805 = vmatpush1.msra.mxu0 0.0
  %1806 = vmatprep.subr.mxu0 0.0
  %1807 = vmatpush1.msra.mxu0 0.0
  %1808 = vmatprep.subr.mxu0 0.0
  %1809 = vmatpush1.msra.mxu0 0.0
  %1810 = vmatprep.subr.mxu0 0.0
  %1811 = vmatpush1.msra.mxu0 0.0
  %1812 = vmatprep.subr.mxu0 0.0
  %1813 = vmatpush1.msra.mxu0 0.0
  %1814 = vmatprep.subr.mxu0 0.0
  %1815 = vmatpush1.msra.mxu0 0.0
  %1816 = vmatprep.mubr.f32.mxu0 0.0
  %1817 = vmatmul.mubr.f32.gmra.mrb[0].mxu0 %v1747
  %v1818 = vpop.f32.mrb[0].mxu0
  %v1819 = vadd.f32 %v1745, %v1818
  %v1820 = vpop.f32.mrb[0].mxu0
  %1821 = vmatprep.mubr.f32.mxu0 0.0
  %1822 = vmatmul.mubr.f32.gmra.mrb[0].mxu0 %v1750
  %v1823 = vpop.f32.mrb[0].mxu0
  %v1824 = vadd.f32 %v1745, %v1823
  %v1825 = vpop.f32.mrb[0].mxu0
  %1826 = vdwg.mxu0
  %vm1827 = vcmp.gt.f32.partialorder %v1819, 0.0
  %vm1828 = vcmp.gt.f32.partialorder %v1824, 0.0
  %v1829 = vmul.f32 %v1819, 0.01
  %v1830 = vmul.f32 %v1824, 0.01
  %v1831 = vsel %vm1827, %v1819, %v1829
  %v1832 = vsel %vm1828, %v1824, %v1830
  %v1833 = vmax.f32 %v1831, 0.0
  %v1834 = vmax.f32 %v1832, 0.0
  %v1835 = vpack.c.bf16 %v1834, %v1833
  %1836 = vmatprep.subr.bf16.mxu0 0
  %1837 = vmatpush1.bf16.msra.mxu0 %v1835
  %1838 = vmatprep.subr.bf16.mxu0 0
  %1839 = vmatpush1.bf16.msra.mxu0 0
  %1840 = vmatprep.subr.bf16.mxu0 0
  %1841 = vmatpush1.bf16.msra.mxu0 0
  %1842 = vmatprep.subr.bf16.mxu0 0
  %1843 = vmatpush1.bf16.msra.mxu0 0
  %1844 = vmatprep.subr.bf16.mxu0 0
  %1845 = vmatpush1.bf16.msra.mxu0 0
  %1846 = vmatprep.subr.bf16.mxu0 0
  %1847 = vmatpush1.bf16.msra.mxu0 0
  %1848 = vmatprep.subr.bf16.mxu0 0
  %1849 = vmatpush1.bf16.msra.mxu0 0
  %1850 = vmatprep.subr.bf16.mxu0 0
  %1851 = vmatpush1.bf16.msra.mxu0 0
  %1852 = vmatprep.subr.bf16.mxu0 0
  %1853 = vmatpush1.bf16.msra.mxu0 0
  %1854 = vmatprep.subr.bf16.mxu0 0
  %1855 = vmatpush1.bf16.msra.mxu0 0
  %1856 = vmatprep.subr.bf16.mxu0 0
  %1857 = vmatpush1.bf16.msra.mxu0 0
  %1858 = vmatprep.subr.bf16.mxu0 0
  %1859 = vmatpush1.bf16.msra.mxu0 0
  %1860 = vmatprep.subr.bf16.mxu0 0
  %1861 = vmatpush1.bf16.msra.mxu0 0
  %1862 = vmatprep.subr.bf16.mxu0 0
  %1863 = vmatpush1.bf16.msra.mxu0 0
  %1864 = vmatprep.subr.bf16.mxu0 0
  %1865 = vmatpush1.bf16.msra.mxu0 0
  %1866 = vmatprep.subr.bf16.mxu0 0
  %1867 = vmatpush1.bf16.msra.mxu0 0
  %1868 = vmatprep.mubr.bf16.mxu0 0
  %1869 = vmatmul.mubr.bf16.gmra.mrb[0].mxu0 %v102
  %v1870 = vpop.f32.mrb[0].mxu0
  %v1871 = vadd.f32 0.0, %v1870
  %v1872 = vpop.f32.mrb[0].mxu0
  %v1873 = vpop.f32.mrb[0].mxu0
  %v1874 = vadd.f32 0.0, %v1873
  %v1875 = vpop.f32.mrb[0].mxu0
  %1876 = vmatprep.mubr.bf16.mxu0 0
  %1877 = vmatmul.mubr.bf16.gmra.mrb[0].mxu0 %v105
  %v1878 = vpop.f32.mrb[0].mxu0
  %v1879 = vadd.f32 0.0, %v1878
  %v1880 = vpop.f32.mrb[0].mxu0
  %v1881 = vpop.f32.mrb[0].mxu0
  %v1882 = vadd.f32 0.0, %v1881
  %v1883 = vpop.f32.mrb[0].mxu0
  %1884 = vmatprep.mubr.bf16.mxu0 0
  %1885 = vmatmul.mubr.bf16.gmra.mrb[0].mxu0 %v108
  %v1886 = vpop.f32.mrb[0].mxu0
  %v1887 = vadd.f32 0.0, %v1886
  %v1888 = vpop.f32.mrb[0].mxu0
  %v1889 = vpop.f32.mrb[0].mxu0
  %v1890 = vadd.f32 0.0, %v1889
  %v1891 = vpop.f32.mrb[0].mxu0
  %1892 = vmatprep.mubr.bf16.mxu0 0
  %1893 = vmatmul.mubr.bf16.gmra.mrb[0].mxu0 %v111
  %v1894 = vpop.f32.mrb[0].mxu0
  %v1895 = vadd.f32 0.0, %v1894
  %v1896 = vpop.f32.mrb[0].mxu0
  %v1897 = vpop.f32.mrb[0].mxu0
  %v1898 = vadd.f32 0.0, %v1897
  %v1899 = vpop.f32.mrb[0].mxu0
  %1900 = vdwg.mxu0
  %v1901 = vld [vmem:[%s8 + $0x208] sm:$0xff]
  %v1902 = vld [vmem:[%s8 + $0x210] sm:$0xff]
  %v1903 = vld [vmem:[%s8 + $0x218] sm:$0xff]
  %v1904 = vld [vmem:[%s8 + $0x220] sm:$0xff]
  %v1905 = vld [vmem:[%s8 + $0x228] sm:$0xff]
  %v1906 = vld [vmem:[%s8 + $0x230] sm:$0xff]
  %v1907 = vld [vmem:[%s8 + $0x238] sm:$0xff]
  %v1908 = vld [vmem:[%s8 + $0x240] sm:$0xff]
  %v1909 = vld [vmem:[%s8 + $0x248] sm:$0xff]
  %v1910 = vld [vmem:[%s8 + $0x250] sm:$0xff]
  %v1911 = vld [vmem:[%s8 + $0x258] sm:$0xff]
  %v1912 = vld [vmem:[%s8 + $0x260] sm:$0xff]
  %v1913 = vld [vmem:[%s8 + $0x268] sm:$0xff]
  %v1914 = vld [vmem:[%s8 + $0x270] sm:$0xff]
  %v1915 = vld [vmem:[%s8 + $0x278] sm:$0xff]
  %v1916 = vld [vmem:[%s8 + $0x280] sm:$0xff]
  %v1918 = vsel %vm194, %v1887, 0
  %v1921 = vsel %vm194, %v1890, 0
  %v1924 = vsel %vm194, %v1895, 0
  %v1927 = vsel %vm194, %v1898, 0
  %1929 = vmatprep.subr.mxu0 0.0
  %1930 = vmatpush1.msra.mxu0 %v1909
  %1931 = vmatprep.subr.mxu0 0.0
  %1932 = vmatpush1.msra.mxu0 %v1910
  %1933 = vmatprep.subr.mxu0 0.0
  %1934 = vmatpush1.msra.mxu0 %v1911
  %1935 = vmatprep.subr.mxu0 0.0
  %1936 = vmatpush1.msra.mxu0 %v1912
  %1937 = vmatprep.subr.mxu0 0.0
  %1938 = vmatpush1.msra.mxu0 %v1913
  %1939 = vmatprep.subr.mxu0 0.0
  %1940 = vmatpush1.msra.mxu0 %v1914
  %1941 = vmatprep.subr.mxu0 0.0
  %1942 = vmatpush1.msra.mxu0 %v1915
  %1943 = vmatprep.subr.mxu0 0.0
  %1944 = vmatpush1.msra.mxu0 %v1916
  %1945 = vmatprep.subr.mxu0 0.0
  %1946 = vmatpush1.msra.mxu0 0.0
  %1947 = vmatprep.subr.mxu0 0.0
  %1948 = vmatpush1.msra.mxu0 0.0
  %1949 = vmatprep.subr.mxu0 0.0
  %1950 = vmatpush1.msra.mxu0 0.0
  %1951 = vmatprep.subr.mxu0 0.0
  %1952 = vmatpush1.msra.mxu0 0.0
  %1953 = vmatprep.subr.mxu0 0.0
  %1954 = vmatpush1.msra.mxu0 0.0
  %1955 = vmatprep.subr.mxu0 0.0
  %1956 = vmatpush1.msra.mxu0 0.0
  %1957 = vmatprep.subr.mxu0 0.0
  %1958 = vmatpush1.msra.mxu0 0.0
  %1959 = vmatprep.subr.mxu0 0.0
  %1960 = vmatpush1.msra.mxu0 0.0
  %1961 = vmatprep.subr.mxu0 0.0
  %1962 = vmatpush1.msra.mxu0 0.0
  %1963 = vmatprep.subr.mxu0 0.0
  %1964 = vmatpush1.msra.mxu0 0.0
  %1965 = vmatprep.subr.mxu0 0.0
  %1966 = vmatpush1.msra.mxu0 0.0
  %1967 = vmatprep.subr.mxu0 0.0
  %1968 = vmatpush1.msra.mxu0 0.0
  %1969 = vmatprep.subr.mxu0 0.0
  %1970 = vmatpush1.msra.mxu0 0.0
  %1971 = vmatprep.subr.mxu0 0.0
  %1972 = vmatpush1.msra.mxu0 0.0
  %1973 = vmatprep.subr.mxu0 0.0
  %1974 = vmatpush1.msra.mxu0 0.0
  %1975 = vmatprep.subr.mxu0 0.0
  %1976 = vmatpush1.msra.mxu0 0.0
  %1977 = vmatprep.subr.mxu0 0.0
  %1978 = vmatpush1.msra.mxu0 0.0
  %1979 = vmatprep.subr.mxu0 0.0
  %1980 = vmatpush1.msra.mxu0 0.0
  %1981 = vmatprep.subr.mxu0 0.0
  %1982 = vmatpush1.msra.mxu0 0.0
  %1983 = vmatprep.subr.mxu0 0.0
  %1984 = vmatpush1.msra.mxu0 0.0
  %1985 = vmatprep.subr.mxu0 0.0
  %1986 = vmatpush1.msra.mxu0 0.0
  %1987 = vmatprep.subr.mxu0 0.0
  %1988 = vmatpush1.msra.mxu0 0.0
  %1989 = vmatprep.subr.mxu0 0.0
  %1990 = vmatpush1.msra.mxu0 0.0
  %1991 = vmatprep.subr.mxu0 0.0
  %1992 = vmatpush1.msra.mxu0 0.0
  %1993 = vmatprep.mubr.f32.mxu0 0.0
  %1994 = vmatmul.mubr.f32.gmra.mrb[0].mxu0 %v1918
  %v1995 = vpop.f32.mrb[0].mxu0
  %v1996 = vadd.f32 0.0, %v1995
  %v1997 = vpop.f32.mrb[0].mxu0
  %1998 = vmatprep.mubr.f32.mxu0 0.0
  %1999 = vmatmul.mubr.f32.gmra.mrb[0].mxu0 %v1921
  %v2000 = vpop.f32.mrb[0].mxu0
  %v2001 = vadd.f32 0.0, %v2000
  %v2002 = vpop.f32.mrb[0].mxu0
  %2003 = vmatprep.mubr.f32.mxu0 0.0
  %2004 = vmatmul.mubr.f32.gmra.mrb[0].mxu0 %v1924
  %v2005 = vpop.f32.mrb[0].mxu0
  %v2006 = vadd.f32 0.0, %v2005
  %v2007 = vpop.f32.mrb[0].mxu0
  %2008 = vmatprep.mubr.f32.mxu0 0.0
  %2009 = vmatmul.mubr.f32.gmra.mrb[0].mxu0 %v1927
  %v2010 = vpop.f32.mrb[0].mxu0
  %v2011 = vadd.f32 0.0, %v2010
  %v2012 = vpop.f32.mrb[0].mxu0
  %2013 = vdwg.mxu0
  %v2015 = vsel %vm194, %v1871, 0
  %v2018 = vsel %vm194, %v1874, 0
  %v2021 = vsel %vm194, %v1879, 0
  %v2024 = vsel %vm194, %v1882, 0
  %2026 = vmatprep.subr.mxu0 0.0
  %2027 = vmatpush1.msra.mxu0 %v1901
  %2028 = vmatprep.subr.mxu0 0.0
  %2029 = vmatpush1.msra.mxu0 %v1902
  %2030 = vmatprep.subr.mxu0 0.0
  %2031 = vmatpush1.msra.mxu0 %v1903
  %2032 = vmatprep.subr.mxu0 0.0
  %2033 = vmatpush1.msra.mxu0 %v1904
  %2034 = vmatprep.subr.mxu0 0.0
  %2035 = vmatpush1.msra.mxu0 %v1905
  %2036 = vmatprep.subr.mxu0 0.0
  %2037 = vmatpush1.msra.mxu0 %v1906
  %2038 = vmatprep.subr.mxu0 0.0
  %2039 = vmatpush1.msra.mxu0 %v1907
  %2040 = vmatprep.subr.mxu0 0.0
  %2041 = vmatpush1.msra.mxu0 %v1908
  %2042 = vmatprep.subr.mxu0 0.0
  %2043 = vmatpush1.msra.mxu0 0.0
  %2044 = vmatprep.subr.mxu0 0.0
  %2045 = vmatpush1.msra.mxu0 0.0
  %2046 = vmatprep.subr.mxu0 0.0
  %2047 = vmatpush1.msra.mxu0 0.0
  %2048 = vmatprep.subr.mxu0 0.0
  %2049 = vmatpush1.msra.mxu0 0.0
  %2050 = vmatprep.subr.mxu0 0.0
  %2051 = vmatpush1.msra.mxu0 0.0
  %2052 = vmatprep.subr.mxu0 0.0
  %2053 = vmatpush1.msra.mxu0 0.0
  %2054 = vmatprep.subr.mxu0 0.0
  %2055 = vmatpush1.msra.mxu0 0.0
  %2056 = vmatprep.subr.mxu0 0.0
  %2057 = vmatpush1.msra.mxu0 0.0
  %2058 = vmatprep.subr.mxu0 0.0
  %2059 = vmatpush1.msra.mxu0 0.0
  %2060 = vmatprep.subr.mxu0 0.0
  %2061 = vmatpush1.msra.mxu0 0.0
  %2062 = vmatprep.subr.mxu0 0.0
  %2063 = vmatpush1.msra.mxu0 0.0
  %2064 = vmatprep.subr.mxu0 0.0
  %2065 = vmatpush1.msra.mxu0 0.0
  %2066 = vmatprep.subr.mxu0 0.0
  %2067 = vmatpush1.msra.mxu0 0.0
  %2068 = vmatprep.subr.mxu0 0.0
  %2069 = vmatpush1.msra.mxu0 0.0
  %2070 = vmatprep.subr.mxu0 0.0
  %2071 = vmatpush1.msra.mxu0 0.0
  %2072 = vmatprep.subr.mxu0 0.0
  %2073 = vmatpush1.msra.mxu0 0.0
  %2074 = vmatprep.subr.mxu0 0.0
  %2075 = vmatpush1.msra.mxu0 0.0
  %2076 = vmatprep.subr.mxu0 0.0
  %2077 = vmatpush1.msra.mxu0 0.0
  %2078 = vmatprep.subr.mxu0 0.0
  %2079 = vmatpush1.msra.mxu0 0.0
  %2080 = vmatprep.subr.mxu0 0.0
  %2081 = vmatpush1.msra.mxu0 0.0
  %2082 = vmatprep.subr.mxu0 0.0
  %2083 = vmatpush1.msra.mxu0 0.0
  %2084 = vmatprep.subr.mxu0 0.0
  %2085 = vmatpush1.msra.mxu0 0.0
  %2086 = vmatprep.subr.mxu0 0.0
  %2087 = vmatpush1.msra.mxu0 0.0
  %2088 = vmatprep.subr.mxu0 0.0
  %2089 = vmatpush1.msra.mxu0 0.0
  %2090 = vmatprep.mubr.f32.mxu0 0.0
  %2091 = vmatmul.mubr.f32.gmra.mrb[0].mxu0 %v2015
  %v2092 = vpop.f32.mrb[0].mxu0
  %v2093 = vadd.f32 %v1996, %v2092
  %v2094 = vpop.f32.mrb[0].mxu0
  %2095 = vmatprep.mubr.f32.mxu0 0.0
  %2096 = vmatmul.mubr.f32.gmra.mrb[0].mxu0 %v2018
  %v2097 = vpop.f32.mrb[0].mxu0
  %v2098 = vadd.f32 %v2001, %v2097
  %v2099 = vpop.f32.mrb[0].mxu0
  %2100 = vmatprep.mubr.f32.mxu0 0.0
  %2101 = vmatmul.mubr.f32.gmra.mrb[0].mxu0 %v2021
  %v2102 = vpop.f32.mrb[0].mxu0
  %v2103 = vadd.f32 %v2006, %v2102
  %v2104 = vpop.f32.mrb[0].mxu0
  %2105 = vmatprep.mubr.f32.mxu0 0.0
  %2106 = vmatmul.mubr.f32.gmra.mrb[0].mxu0 %v2024
  %v2107 = vpop.f32.mrb[0].mxu0
  %v2108 = vadd.f32 %v2011, %v2107
  %v2109 = vpop.f32.mrb[0].mxu0
  %2110 = vdwg.mxu0
  %v2111 = vld [vmem:[%s8 + $0x288] sm:$0xff]
  %2112 = vmatprep.subr.mxu0 0.0
  %2113 = vmatpush1.msra.mxu0 %v2111
  %2114 = vmatprep.subr.mxu0 0.0
  %2115 = vmatpush1.msra.mxu0 0.0
  %2116 = vmatprep.subr.mxu0 0.0
  %2117 = vmatpush1.msra.mxu0 0.0
  %2118 = vmatprep.subr.mxu0 0.0
  %2119 = vmatpush1.msra.mxu0 0.0
  %2120 = vmatprep.subr.mxu0 0.0
  %2121 = vmatpush1.msra.mxu0 0.0
  %2122 = vmatprep.subr.mxu0 0.0
  %2123 = vmatpush1.msra.mxu0 0.0
  %2124 = vmatprep.subr.mxu0 0.0
  %2125 = vmatpush1.msra.mxu0 0.0
  %2126 = vmatprep.subr.mxu0 0.0
  %2127 = vmatpush1.msra.mxu0 0.0
  %2128 = vmatprep.subr.mxu0 0.0
  %2129 = vmatpush1.msra.mxu0 0.0
  %2130 = vmatprep.subr.mxu0 0.0
  %2131 = vmatpush1.msra.mxu0 0.0
  %2132 = vmatprep.subr.mxu0 0.0
  %2133 = vmatpush1.msra.mxu0 0.0
  %2134 = vmatprep.subr.mxu0 0.0
  %2135 = vmatpush1.msra.mxu0 0.0
  %2136 = vmatprep.subr.mxu0 0.0
  %2137 = vmatpush1.msra.mxu0 0.0
  %2138 = vmatprep.subr.mxu0 0.0
  %2139 = vmatpush1.msra.mxu0 0.0
  %2140 = vmatprep.subr.mxu0 0.0
  %2141 = vmatpush1.msra.mxu0 0.0
  %2142 = vmatprep.subr.mxu0 0.0
  %2143 = vmatpush1.msra.mxu0 0.0
  %2144 = vmatprep.subr.mxu0 0.0
  %2145 = vmatpush1.msra.mxu0 0.0
  %2146 = vmatprep.subr.mxu0 0.0
  %2147 = vmatpush1.msra.mxu0 0.0
  %2148 = vmatprep.subr.mxu0 0.0
  %2149 = vmatpush1.msra.mxu0 0.0
  %2150 = vmatprep.subr.mxu0 0.0
  %2151 = vmatpush1.msra.mxu0 0.0
  %2152 = vmatprep.subr.mxu0 0.0
  %2153 = vmatpush1.msra.mxu0 0.0
  %2154 = vmatprep.subr.mxu0 0.0
  %2155 = vmatpush1.msra.mxu0 0.0
  %2156 = vmatprep.subr.mxu0 0.0
  %2157 = vmatpush1.msra.mxu0 0.0
  %2158 = vmatprep.subr.mxu0 0.0
  %2159 = vmatpush1.msra.mxu0 0.0
  %2160 = vmatprep.subr.mxu0 0.0
  %2161 = vmatpush1.msra.mxu0 0.0
  %2162 = vmatprep.subr.mxu0 0.0
  %2163 = vmatpush1.msra.mxu0 0.0
  %2164 = vmatprep.subr.mxu0 0.0
  %2165 = vmatpush1.msra.mxu0 0.0
  %2166 = vmatprep.subr.mxu0 0.0
  %2167 = vmatpush1.msra.mxu0 0.0
  %2168 = vmatprep.subr.mxu0 0.0
  %2169 = vmatpush1.msra.mxu0 0.0
  %2170 = vmatprep.subr.mxu0 0.0
  %2171 = vmatpush1.msra.mxu0 0.0
  %2172 = vmatprep.subr.mxu0 0.0
  %2173 = vmatpush1.msra.mxu0 0.0
  %2174 = vmatprep.subr.mxu0 0.0
  %2175 = vmatpush1.msra.mxu0 0.0
  %2176 = vmatprep.mubr.f32.mxu0 0.0
  %2177 = vmatmul.mubr.f32.gmra.mrb[0].mxu0 %v392
  %v2178 = vpop.f32.mrb[0].mxu0
  %v2179 = vadd.f32 0.0, %v2178
  %v2180 = vpop.f32.mrb[0].mxu0
  %2181 = vmatprep.mubr.f32.mxu0 0.0
  %2182 = vmatmul.mubr.f32.gmra.mrb[0].mxu0 %v395
  %v2183 = vpop.f32.mrb[0].mxu0
  %v2184 = vadd.f32 0.0, %v2183
  %v2185 = vpop.f32.mrb[0].mxu0
  %2186 = vmatprep.mubr.f32.mxu0 0.0
  %2187 = vmatmul.mubr.f32.gmra.mrb[0].mxu0 %v398
  %v2188 = vpop.f32.mrb[0].mxu0
  %v2189 = vadd.f32 0.0, %v2188
  %v2190 = vpop.f32.mrb[0].mxu0
  %2191 = vmatprep.mubr.f32.mxu0 0.0
  %2192 = vmatmul.mubr.f32.gmra.mrb[0].mxu0 %v401
  %v2193 = vpop.f32.mrb[0].mxu0
  %v2194 = vadd.f32 0.0, %v2193
  %v2195 = vpop.f32.mrb[0].mxu0
  %2196 = vdwg.mxu0
  %v2197 = vadd.f32 %v2093, %v2179
  %v2198 = vadd.f32 %v2098, %v2184
  %v2199 = vadd.f32 %v2103, %v2189
  %v2200 = vadd.f32 %v2108, %v2194
  %v2201 = vlaneseq
  %v2202 = vshrl.u32 %v2201, 7
  %v2203 = vsub.s32 3, %v2202
  %v2204 = vrot.slane %v68, %v2203
  %v2205 = vadd.f32 %v2197, %v2204
  %v2206 = vadd.f32 %v2198, %v2204
  %v2207 = vadd.f32 %v2199, %v2204
  %v2208 = vadd.f32 %v2200, %v2204
  %v2209 = vpack.c.bf16 %v2206, %v2205
  %v2210 = vpack.c.bf16 %v2208, %v2207
  %2211 = vmatprep.subr.bf16.mxu0 0
  %2212 = vmatpush1.bf16.msra.mxu0 %v2209
  %2213 = vmatprep.subr.bf16.mxu0 0
  %2214 = vmatpush1.bf16.msra.mxu0 %v2210
  %2215 = vmatprep.subr.bf16.mxu0 0
  %2216 = vmatpush1.bf16.msra.mxu0 0
  %2217 = vmatprep.subr.bf16.mxu0 0
  %2218 = vmatpush1.bf16.msra.mxu0 0
  %2219 = vmatprep.subr.bf16.mxu0 0
  %2220 = vmatpush1.bf16.msra.mxu0 0
  %2221 = vmatprep.subr.bf16.mxu0 0
  %2222 = vmatpush1.bf16.msra.mxu0 0
  %2223 = vmatprep.subr.bf16.mxu0 0
  %2224 = vmatpush1.bf16.msra.mxu0 0
  %2225 = vmatprep.subr.bf16.mxu0 0
  %2226 = vmatpush1.bf16.msra.mxu0 0
  %2227 = vmatprep.subr.bf16.mxu0 0
  %2228 = vmatpush1.bf16.msra.mxu0 0
  %2229 = vmatprep.subr.bf16.mxu0 0
  %2230 = vmatpush1.bf16.msra.mxu0 0
  %2231 = vmatprep.subr.bf16.mxu0 0
  %2232 = vmatpush1.bf16.msra.mxu0 0
  %2233 = vmatprep.subr.bf16.mxu0 0
  %2234 = vmatpush1.bf16.msra.mxu0 0
  %2235 = vmatprep.subr.bf16.mxu0 0
  %2236 = vmatpush1.bf16.msra.mxu0 0
  %2237 = vmatprep.subr.bf16.mxu0 0
  %2238 = vmatpush1.bf16.msra.mxu0 0
  %2239 = vmatprep.subr.bf16.mxu0 0
  %2240 = vmatpush1.bf16.msra.mxu0 0
  %2241 = vmatprep.subr.bf16.mxu0 0
  %2242 = vmatpush1.bf16.msra.mxu0 0
  %2243 = vmatprep.mubr.bf16.mxu0 0
  %2244 = vmatmul.mubr.bf16.gmra.mrb[0].mxu0 %v509
  %v2245 = vpop.f32.mrb[0].mxu0
  %v2246 = vadd.f32 0.0, %v2245
  %v2247 = vpop.f32.mrb[0].mxu0
  %v2248 = vpop.f32.mrb[0].mxu0
  %v2249 = vadd.f32 0.0, %v2248
  %v2250 = vpop.f32.mrb[0].mxu0
  %2251 = vdwg.mxu0
  %v2252 = vmul.bf16 %v2209, %v2209
  %v2253 = vmul.bf16 %v2210, %v2210
  %2254 = vmatprep.subr.bf16.mxu0 0
  %2255 = vmatpush1.bf16.msra.mxu0 %v2252
  %2256 = vmatprep.subr.bf16.mxu0 0
  %2257 = vmatpush1.bf16.msra.mxu0 %v2253
  %2258 = vmatprep.subr.bf16.mxu0 0
  %2259 = vmatpush1.bf16.msra.mxu0 0
  %2260 = vmatprep.subr.bf16.mxu0 0
  %2261 = vmatpush1.bf16.msra.mxu0 0
  %2262 = vmatprep.subr.bf16.mxu0 0
  %2263 = vmatpush1.bf16.msra.mxu0 0
  %2264 = vmatprep.subr.bf16.mxu0 0
  %2265 = vmatpush1.bf16.msra.mxu0 0
  %2266 = vmatprep.subr.bf16.mxu0 0
  %2267 = vmatpush1.bf16.msra.mxu0 0
  %2268 = vmatprep.subr.bf16.mxu0 0
  %2269 = vmatpush1.bf16.msra.mxu0 0
  %2270 = vmatprep.subr.bf16.mxu0 0
  %2271 = vmatpush1.bf16.msra.mxu0 0
  %2272 = vmatprep.subr.bf16.mxu0 0
  %2273 = vmatpush1.bf16.msra.mxu0 0
  %2274 = vmatprep.subr.bf16.mxu0 0
  %2275 = vmatpush1.bf16.msra.mxu0 0
  %2276 = vmatprep.subr.bf16.mxu0 0
  %2277 = vmatpush1.bf16.msra.mxu0 0
  %2278 = vmatprep.subr.bf16.mxu0 0
  %2279 = vmatpush1.bf16.msra.mxu0 0
  %2280 = vmatprep.subr.bf16.mxu0 0
  %2281 = vmatpush1.bf16.msra.mxu0 0
  %2282 = vmatprep.subr.bf16.mxu0 0
  %2283 = vmatpush1.bf16.msra.mxu0 0
  %2284 = vmatprep.subr.bf16.mxu0 0
  %2285 = vmatpush1.bf16.msra.mxu0 0
  %2286 = vmatprep.mubr.bf16.mxu0 0
  %2287 = vmatmul.mubr.bf16.gmra.mrb[0].mxu0 %v509
  %v2288 = vpop.f32.mrb[0].mxu0
  %v2289 = vadd.f32 0.0, %v2288
  %v2290 = vpop.f32.mrb[0].mxu0
  %v2291 = vpop.f32.mrb[0].mxu0
  %v2292 = vadd.f32 0.0, %v2291
  %v2293 = vpop.f32.mrb[0].mxu0
  %2294 = vdwg.mxu0
  %v2295 = vmul.f32 %v2246, %v605
  %v2296 = vmul.f32 %v2249, %v607
  %v2297 = vmul.f32 %v2289, %v605
  %v2298 = vmul.f32 %v2292, %v607
  %v2299 = vmul.f32 %v2295, %v2295
  %v2300 = vmul.f32 %v2296, %v2296
  %v2301 = vsub.f32 %v2297, %v2299
  %v2302 = vsub.f32 %v2298, %v2300
  %v2303 = vmax.f32 %v2301, 0.0
  %v2304 = vmax.f32 %v2302, 0.0
  %v2305 = vadd.f32 %v2303, 1e-30
  %v2306 = vadd.f32 %v2304, 1e-30
  %v2307 = vrsqrt.pop %v2305
  %v2308 = vmul.f32 %v2305, %v2307
  %vm2309 = vcmp.eq.f32.partialorder %v2305, inf
  %v2310 = vsel %vm2309, %v2305, %v2308
  %vm2311 = vcmp.eq.f32.partialorder %v2305, 0.0
  %v2312 = vand.u32 %v2305, 2147483648
  %v2313 = vsel %vm2311, %v2312, %v2310
  %v2314 = vrsqrt.pop %v2306
  %v2315 = vmul.f32 %v2306, %v2314
  %vm2316 = vcmp.eq.f32.partialorder %v2306, inf
  %v2317 = vsel %vm2316, %v2306, %v2315
  %vm2318 = vcmp.eq.f32.partialorder %v2306, 0.0
  %v2319 = vand.u32 %v2306, 2147483648
  %v2320 = vsel %vm2318, %v2319, %v2317
  %v2321 = vadd.f32 %v2205, %v820
  %v2322 = vadd.f32 %v2206, %v821
  %v2323 = vadd.f32 %v2207, %v822
  %v2324 = vadd.f32 %v2208, %v823
  %v2325 = vadd.f32 %v2205, %v824
  %v2326 = vadd.f32 %v2206, %v825
  %v2327 = vadd.f32 %v2207, %v826
  %v2328 = vadd.f32 %v2208, %v827
  %v2329 = vadd.f32 %v2205, %v828
  %v2330 = vadd.f32 %v2206, %v829
  %v2331 = vadd.f32 %v2207, %v830
  %v2332 = vadd.f32 %v2208, %v831
  %v2333 = vadd.f32 %v2205, %v832
  %v2334 = vadd.f32 %v2206, %v833
  %v2335 = vadd.f32 %v2207, %v834
  %v2336 = vadd.f32 %v2208, %v835
  %v2337 = vadd.f32 %v2205, %v836
  %v2338 = vadd.f32 %v2206, %v837
  %v2339 = vadd.f32 %v2207, %v838
  %v2340 = vadd.f32 %v2208, %v839
  %v2341 = vadd.f32 %v2205, %v840
  %v2342 = vadd.f32 %v2206, %v841
  %v2343 = vadd.f32 %v2207, %v842
  %v2344 = vadd.f32 %v2208, %v843
  %v2345 = vadd.f32 %v2205, %v844
  %v2346 = vadd.f32 %v2206, %v845
  %v2347 = vadd.f32 %v2207, %v846
  %v2348 = vadd.f32 %v2208, %v847
  %v2349 = vadd.f32 %v2205, %v848
  %v2350 = vadd.f32 %v2206, %v849
  %v2351 = vadd.f32 %v2207, %v850
  %v2352 = vadd.f32 %v2208, %v851
  %v2353 = vadd.f32 %v2205, %v852
  %v2354 = vadd.f32 %v2206, %v853
  %v2355 = vadd.f32 %v2207, %v854
  %v2356 = vadd.f32 %v2208, %v855
  %v2357 = vadd.f32 %v2205, %v856
  %v2358 = vadd.f32 %v2206, %v857
  %v2359 = vadd.f32 %v2207, %v858
  %v2360 = vadd.f32 %v2208, %v859
  %v2361 = vadd.f32 %v2205, %v860
  %v2362 = vadd.f32 %v2206, %v861
  %v2363 = vadd.f32 %v2207, %v862
  %v2364 = vadd.f32 %v2208, %v863
  %v2365 = vadd.f32 %v2205, %v864
  %v2366 = vadd.f32 %v2206, %v865
  %v2367 = vadd.f32 %v2207, %v866
  %v2368 = vadd.f32 %v2208, %v867
  %v2369 = vadd.f32 %v2205, %v868
  %v2370 = vadd.f32 %v2206, %v869
  %v2371 = vadd.f32 %v2207, %v870
  %v2372 = vadd.f32 %v2208, %v871
  %v2373 = vadd.f32 %v2205, %v872
  %v2374 = vadd.f32 %v2206, %v873
  %v2375 = vadd.f32 %v2207, %v874
  %v2376 = vadd.f32 %v2208, %v875
  %v2377 = vadd.f32 %v2205, %v876
  %v2378 = vadd.f32 %v2206, %v877
  %v2379 = vadd.f32 %v2207, %v878
  %v2380 = vadd.f32 %v2208, %v879
  %v2381 = vadd.f32 %v2205, %v880
  %v2382 = vadd.f32 %v2206, %v881
  %v2383 = vadd.f32 %v2207, %v882
  %v2384 = vadd.f32 %v2208, %v883
  %v2385 = vsel %vm194, %v2321, -inf
  %v2386 = vsel %vm194, %v2322, -inf
  %v2387 = vmax.f32 %v2385, %v2386
  %v2388 = vsel %vm194, %v2323, -inf
  %v2389 = vmax.f32 %v2387, %v2388
  %v2390 = vsel %vm194, %v2324, -inf
  %v2391 = vmax.f32 %v2389, %v2390
  %v2392 = vrot.slane %v2391, 4
  %v2393 = vmax.f32 %v2391, %v2392
  %v2394 = vrot.slane %v2393, 2
  %v2395 = vmax.f32 %v2393, %v2394
  %v2396 = vrot.slane %v2395, 1
  %v2397 = vmax.f32 %v2395, %v2396
  %v2398 = vsel %vm194, %v2325, -inf
  %v2399 = vsel %vm194, %v2326, -inf
  %v2400 = vmax.f32 %v2398, %v2399
  %v2401 = vsel %vm194, %v2327, -inf
  %v2402 = vmax.f32 %v2400, %v2401
  %v2403 = vsel %vm194, %v2328, -inf
  %v2404 = vmax.f32 %v2402, %v2403
  %v2405 = vrot.slane %v2404, 4
  %v2406 = vmax.f32 %v2404, %v2405
  %v2407 = vrot.slane %v2406, 2
  %v2408 = vmax.f32 %v2406, %v2407
  %v2409 = vrot.slane %v2408, 1
  %v2410 = vmax.f32 %v2408, %v2409
  %v2411 = vsel %vm194, %v2329, -inf
  %v2412 = vsel %vm194, %v2330, -inf
  %v2413 = vmax.f32 %v2411, %v2412
  %v2414 = vsel %vm194, %v2331, -inf
  %v2415 = vmax.f32 %v2413, %v2414
  %v2416 = vsel %vm194, %v2332, -inf
  %v2417 = vmax.f32 %v2415, %v2416
  %v2418 = vrot.slane %v2417, 4
  %v2419 = vmax.f32 %v2417, %v2418
  %v2420 = vrot.slane %v2419, 2
  %v2421 = vmax.f32 %v2419, %v2420
  %v2422 = vrot.slane %v2421, 1
  %v2423 = vmax.f32 %v2421, %v2422
  %v2424 = vsel %vm194, %v2333, -inf
  %v2425 = vsel %vm194, %v2334, -inf
  %v2426 = vmax.f32 %v2424, %v2425
  %v2427 = vsel %vm194, %v2335, -inf
  %v2428 = vmax.f32 %v2426, %v2427
  %v2429 = vsel %vm194, %v2336, -inf
  %v2430 = vmax.f32 %v2428, %v2429
  %v2431 = vrot.slane %v2430, 4
  %v2432 = vmax.f32 %v2430, %v2431
  %v2433 = vrot.slane %v2432, 2
  %v2434 = vmax.f32 %v2432, %v2433
  %v2435 = vrot.slane %v2434, 1
  %v2436 = vmax.f32 %v2434, %v2435
  %v2437 = vsel %vm194, %v2337, -inf
  %v2438 = vsel %vm194, %v2338, -inf
  %v2439 = vmax.f32 %v2437, %v2438
  %v2440 = vsel %vm194, %v2339, -inf
  %v2441 = vmax.f32 %v2439, %v2440
  %v2442 = vsel %vm194, %v2340, -inf
  %v2443 = vmax.f32 %v2441, %v2442
  %v2444 = vrot.slane %v2443, 4
  %v2445 = vmax.f32 %v2443, %v2444
  %v2446 = vrot.slane %v2445, 2
  %v2447 = vmax.f32 %v2445, %v2446
  %v2448 = vrot.slane %v2447, 1
  %v2449 = vmax.f32 %v2447, %v2448
  %v2450 = vsel %vm194, %v2341, -inf
  %v2451 = vsel %vm194, %v2342, -inf
  %v2452 = vmax.f32 %v2450, %v2451
  %v2453 = vsel %vm194, %v2343, -inf
  %v2454 = vmax.f32 %v2452, %v2453
  %v2455 = vsel %vm194, %v2344, -inf
  %v2456 = vmax.f32 %v2454, %v2455
  %v2457 = vrot.slane %v2456, 4
  %v2458 = vmax.f32 %v2456, %v2457
  %v2459 = vrot.slane %v2458, 2
  %v2460 = vmax.f32 %v2458, %v2459
  %v2461 = vrot.slane %v2460, 1
  %v2462 = vmax.f32 %v2460, %v2461
  %v2463 = vsel %vm194, %v2345, -inf
  %v2464 = vsel %vm194, %v2346, -inf
  %v2465 = vmax.f32 %v2463, %v2464
  %v2466 = vsel %vm194, %v2347, -inf
  %v2467 = vmax.f32 %v2465, %v2466
  %v2468 = vsel %vm194, %v2348, -inf
  %v2469 = vmax.f32 %v2467, %v2468
  %v2470 = vrot.slane %v2469, 4
  %v2471 = vmax.f32 %v2469, %v2470
  %v2472 = vrot.slane %v2471, 2
  %v2473 = vmax.f32 %v2471, %v2472
  %v2474 = vrot.slane %v2473, 1
  %v2475 = vmax.f32 %v2473, %v2474
  %v2476 = vsel %vm194, %v2349, -inf
  %v2477 = vsel %vm194, %v2350, -inf
  %v2478 = vmax.f32 %v2476, %v2477
  %v2479 = vsel %vm194, %v2351, -inf
  %v2480 = vmax.f32 %v2478, %v2479
  %v2481 = vsel %vm194, %v2352, -inf
  %v2482 = vmax.f32 %v2480, %v2481
  %v2483 = vrot.slane %v2482, 4
  %v2484 = vmax.f32 %v2482, %v2483
  %v2485 = vrot.slane %v2484, 2
  %v2486 = vmax.f32 %v2484, %v2485
  %v2487 = vrot.slane %v2486, 1
  %v2488 = vmax.f32 %v2486, %v2487
  %v2489 = vsel %vm194, %v2353, -inf
  %v2490 = vsel %vm194, %v2354, -inf
  %v2491 = vmax.f32 %v2489, %v2490
  %v2492 = vsel %vm194, %v2355, -inf
  %v2493 = vmax.f32 %v2491, %v2492
  %v2494 = vsel %vm194, %v2356, -inf
  %v2495 = vmax.f32 %v2493, %v2494
  %v2496 = vrot.slane %v2495, 4
  %v2497 = vmax.f32 %v2495, %v2496
  %v2498 = vrot.slane %v2497, 2
  %v2499 = vmax.f32 %v2497, %v2498
  %v2500 = vrot.slane %v2499, 1
  %v2501 = vmax.f32 %v2499, %v2500
  %v2502 = vsel %vm194, %v2357, -inf
  %v2503 = vsel %vm194, %v2358, -inf
  %v2504 = vmax.f32 %v2502, %v2503
  %v2505 = vsel %vm194, %v2359, -inf
  %v2506 = vmax.f32 %v2504, %v2505
  %v2507 = vsel %vm194, %v2360, -inf
  %v2508 = vmax.f32 %v2506, %v2507
  %v2509 = vrot.slane %v2508, 4
  %v2510 = vmax.f32 %v2508, %v2509
  %v2511 = vrot.slane %v2510, 2
  %v2512 = vmax.f32 %v2510, %v2511
  %v2513 = vrot.slane %v2512, 1
  %v2514 = vmax.f32 %v2512, %v2513
  %v2515 = vsel %vm194, %v2361, -inf
  %v2516 = vsel %vm194, %v2362, -inf
  %v2517 = vmax.f32 %v2515, %v2516
  %v2518 = vsel %vm194, %v2363, -inf
  %v2519 = vmax.f32 %v2517, %v2518
  %v2520 = vsel %vm194, %v2364, -inf
  %v2521 = vmax.f32 %v2519, %v2520
  %v2522 = vrot.slane %v2521, 4
  %v2523 = vmax.f32 %v2521, %v2522
  %v2524 = vrot.slane %v2523, 2
  %v2525 = vmax.f32 %v2523, %v2524
  %v2526 = vrot.slane %v2525, 1
  %v2527 = vmax.f32 %v2525, %v2526
  %v2528 = vsel %vm194, %v2365, -inf
  %v2529 = vsel %vm194, %v2366, -inf
  %v2530 = vmax.f32 %v2528, %v2529
  %v2531 = vsel %vm194, %v2367, -inf
  %v2532 = vmax.f32 %v2530, %v2531
  %v2533 = vsel %vm194, %v2368, -inf
  %v2534 = vmax.f32 %v2532, %v2533
  %v2535 = vrot.slane %v2534, 4
  %v2536 = vmax.f32 %v2534, %v2535
  %v2537 = vrot.slane %v2536, 2
  %v2538 = vmax.f32 %v2536, %v2537
  %v2539 = vrot.slane %v2538, 1
  %v2540 = vmax.f32 %v2538, %v2539
  %v2541 = vsel %vm194, %v2369, -inf
  %v2542 = vsel %vm194, %v2370, -inf
  %v2543 = vmax.f32 %v2541, %v2542
  %v2544 = vsel %vm194, %v2371, -inf
  %v2545 = vmax.f32 %v2543, %v2544
  %v2546 = vsel %vm194, %v2372, -inf
  %v2547 = vmax.f32 %v2545, %v2546
  %v2548 = vrot.slane %v2547, 4
  %v2549 = vmax.f32 %v2547, %v2548
  %v2550 = vrot.slane %v2549, 2
  %v2551 = vmax.f32 %v2549, %v2550
  %v2552 = vrot.slane %v2551, 1
  %v2553 = vmax.f32 %v2551, %v2552
  %v2554 = vsel %vm194, %v2373, -inf
  %v2555 = vsel %vm194, %v2374, -inf
  %v2556 = vmax.f32 %v2554, %v2555
  %v2557 = vsel %vm194, %v2375, -inf
  %v2558 = vmax.f32 %v2556, %v2557
  %v2559 = vsel %vm194, %v2376, -inf
  %v2560 = vmax.f32 %v2558, %v2559
  %v2561 = vrot.slane %v2560, 4
  %v2562 = vmax.f32 %v2560, %v2561
  %v2563 = vrot.slane %v2562, 2
  %v2564 = vmax.f32 %v2562, %v2563
  %v2565 = vrot.slane %v2564, 1
  %v2566 = vmax.f32 %v2564, %v2565
  %v2567 = vsel %vm194, %v2377, -inf
  %v2568 = vsel %vm194, %v2378, -inf
  %v2569 = vmax.f32 %v2567, %v2568
  %v2570 = vsel %vm194, %v2379, -inf
  %v2571 = vmax.f32 %v2569, %v2570
  %v2572 = vsel %vm194, %v2380, -inf
  %v2573 = vmax.f32 %v2571, %v2572
  %v2574 = vrot.slane %v2573, 4
  %v2575 = vmax.f32 %v2573, %v2574
  %v2576 = vrot.slane %v2575, 2
  %v2577 = vmax.f32 %v2575, %v2576
  %v2578 = vrot.slane %v2577, 1
  %v2579 = vmax.f32 %v2577, %v2578
  %v2580 = vsel %vm194, %v2381, -inf
  %v2581 = vsel %vm194, %v2382, -inf
  %v2582 = vmax.f32 %v2580, %v2581
  %v2583 = vsel %vm194, %v2383, -inf
  %v2584 = vmax.f32 %v2582, %v2583
  %v2585 = vsel %vm194, %v2384, -inf
  %v2586 = vmax.f32 %v2584, %v2585
  %v2587 = vrot.slane %v2586, 4
  %v2588 = vmax.f32 %v2586, %v2587
  %v2589 = vrot.slane %v2588, 2
  %v2590 = vmax.f32 %v2588, %v2589
  %v2591 = vrot.slane %v2590, 1
  %v2592 = vmax.f32 %v2590, %v2591
  %v2593 = vmul.f32 %v2295, %v1159
  %v2594 = vmul.f32 %v2296, %v1164
  %v2595 = vmul.f32 %v2397, %v1159
  %v2596 = vmul.f32 %v2410, %v1168
  %v2597 = vmul.f32 %v2423, %v1169
  %v2598 = vmul.f32 %v2436, %v1170
  %v2599 = vmul.f32 %v2449, %v1171
  %v2600 = vmul.f32 %v2462, %v1172
  %v2601 = vmul.f32 %v2475, %v1173
  %v2602 = vmul.f32 %v2488, %v1174
  %v2603 = vmul.f32 %v2501, %v1164
  %v2604 = vmul.f32 %v2514, %v1175
  %v2605 = vmul.f32 %v2527, %v1176
  %v2606 = vmul.f32 %v2540, %v1177
  %v2607 = vmul.f32 %v2553, %v1178
  %v2608 = vmul.f32 %v2566, %v1179
  %v2609 = vmul.f32 %v2579, %v1180
  %v2610 = vmul.f32 %v2592, %v1181
  %v2611 = vmul.f32 %v2246, %v1159
  %v2612 = vmul.f32 %v2249, %v1164
  %v2613 = vmul.f32 %v2313, %v1159
  %v2614 = vmul.f32 %v2320, %v1164
  %v2615 = vld [vmem:[%s8 + $0x290] sm:$0xff]
  %v2616 = vld [vmem:[%s8 + $0x298] sm:$0xff]
  %v2617 = vld [vmem:[%s8 + $0x2a0] sm:$0xff]
  %v2618 = vld [vmem:[%s8 + $0x2a8] sm:$0xff]
  %v2619 = vld [vmem:[%s8 + $0x2b0] sm:$0xff]
  %v2620 = vld [vmem:[%s8 + $0x2b8] sm:$0xff]
  %v2621 = vld [vmem:[%s8 + $0x2c0] sm:$0xff]
  %v2622 = vld [vmem:[%s8 + $0x2c8] sm:$0xff]
  %v2623 = vld [vmem:[%s8 + $0x2d0] sm:$0xff]
  %v2624 = vld [vmem:[%s8 + $0x2d8] sm:$0xff]
  %v2625 = vld [vmem:[%s8 + $0x2e0] sm:$0xff]
  %v2626 = vld [vmem:[%s8 + $0x2e8] sm:$0xff]
  %v2627 = vld [vmem:[%s8 + $0x2f0] sm:$0xff]
  %v2628 = vld [vmem:[%s8 + $0x2f8] sm:$0xff]
  %v2629 = vld [vmem:[%s8 + $0x300] sm:$0xff]
  %v2630 = vld [vmem:[%s8 + $0x308] sm:$0xff]
  %v2632 = vsel %vm194, %v2593, 0
  %v2635 = vsel %vm194, %v2594, 0
  %2637 = vmatprep.subr.mxu0 0.0
  %2638 = vmatpush1.msra.mxu0 %v2623
  %2639 = vmatprep.subr.mxu0 0.0
  %2640 = vmatpush1.msra.mxu0 %v2624
  %2641 = vmatprep.subr.mxu0 0.0
  %2642 = vmatpush1.msra.mxu0 %v2625
  %2643 = vmatprep.subr.mxu0 0.0
  %2644 = vmatpush1.msra.mxu0 %v2626
  %2645 = vmatprep.subr.mxu0 0.0
  %2646 = vmatpush1.msra.mxu0 %v2627
  %2647 = vmatprep.subr.mxu0 0.0
  %2648 = vmatpush1.msra.mxu0 %v2628
  %2649 = vmatprep.subr.mxu0 0.0
  %2650 = vmatpush1.msra.mxu0 %v2629
  %2651 = vmatprep.subr.mxu0 0.0
  %2652 = vmatpush1.msra.mxu0 %v2630
  %2653 = vmatprep.subr.mxu0 0.0
  %2654 = vmatpush1.msra.mxu0 0.0
  %2655 = vmatprep.subr.mxu0 0.0
  %2656 = vmatpush1.msra.mxu0 0.0
  %2657 = vmatprep.subr.mxu0 0.0
  %2658 = vmatpush1.msra.mxu0 0.0
  %2659 = vmatprep.subr.mxu0 0.0
  %2660 = vmatpush1.msra.mxu0 0.0
  %2661 = vmatprep.subr.mxu0 0.0
  %2662 = vmatpush1.msra.mxu0 0.0
  %2663 = vmatprep.subr.mxu0 0.0
  %2664 = vmatpush1.msra.mxu0 0.0
  %2665 = vmatprep.subr.mxu0 0.0
  %2666 = vmatpush1.msra.mxu0 0.0
  %2667 = vmatprep.subr.mxu0 0.0
  %2668 = vmatpush1.msra.mxu0 0.0
  %2669 = vmatprep.subr.mxu0 0.0
  %2670 = vmatpush1.msra.mxu0 0.0
  %2671 = vmatprep.subr.mxu0 0.0
  %2672 = vmatpush1.msra.mxu0 0.0
  %2673 = vmatprep.subr.mxu0 0.0
  %2674 = vmatpush1.msra.mxu0 0.0
  %2675 = vmatprep.subr.mxu0 0.0
  %2676 = vmatpush1.msra.mxu0 0.0
  %2677 = vmatprep.subr.mxu0 0.0
  %2678 = vmatpush1.msra.mxu0 0.0
  %2679 = vmatprep.subr.mxu0 0.0
  %2680 = vmatpush1.msra.mxu0 0.0
  %2681 = vmatprep.subr.mxu0 0.0
  %2682 = vmatpush1.msra.mxu0 0.0
  %2683 = vmatprep.subr.mxu0 0.0
  %2684 = vmatpush1.msra.mxu0 0.0
  %2685 = vmatprep.subr.mxu0 0.0
  %2686 = vmatpush1.msra.mxu0 0.0
  %2687 = vmatprep.subr.mxu0 0.0
  %2688 = vmatpush1.msra.mxu0 0.0
  %2689 = vmatprep.subr.mxu0 0.0
  %2690 = vmatpush1.msra.mxu0 0.0
  %2691 = vmatprep.subr.mxu0 0.0
  %2692 = vmatpush1.msra.mxu0 0.0
  %2693 = vmatprep.subr.mxu0 0.0
  %2694 = vmatpush1.msra.mxu0 0.0
  %2695 = vmatprep.subr.mxu0 0.0
  %2696 = vmatpush1.msra.mxu0 0.0
  %2697 = vmatprep.subr.mxu0 0.0
  %2698 = vmatpush1.msra.mxu0 0.0
  %2699 = vmatprep.subr.mxu0 0.0
  %2700 = vmatpush1.msra.mxu0 0.0
  %2701 = vmatprep.mubr.f32.mxu0 0.0
  %2702 = vmatmul.mubr.f32.gmra.mrb[0].mxu0 %v2632
  %v2703 = vpop.f32.mrb[0].mxu0
  %v2704 = vadd.f32 0.0, %v2703
  %v2705 = vpop.f32.mrb[0].mxu0
  %2706 = vmatprep.mubr.f32.mxu0 0.0
  %2707 = vmatmul.mubr.f32.gmra.mrb[0].mxu0 %v2635
  %v2708 = vpop.f32.mrb[0].mxu0
  %v2709 = vadd.f32 0.0, %v2708
  %v2710 = vpop.f32.mrb[0].mxu0
  %2711 = vdwg.mxu0
  %v2713 = vsel %vm194, %v1833, 0
  %v2716 = vsel %vm194, %v1834, 0
  %2718 = vmatprep.subr.mxu0 0.0
  %2719 = vmatpush1.msra.mxu0 %v2615
  %2720 = vmatprep.subr.mxu0 0.0
  %2721 = vmatpush1.msra.mxu0 %v2616
  %2722 = vmatprep.subr.mxu0 0.0
  %2723 = vmatpush1.msra.mxu0 %v2617
  %2724 = vmatprep.subr.mxu0 0.0
  %2725 = vmatpush1.msra.mxu0 %v2618
  %2726 = vmatprep.subr.mxu0 0.0
  %2727 = vmatpush1.msra.mxu0 %v2619
  %2728 = vmatprep.subr.mxu0 0.0
  %2729 = vmatpush1.msra.mxu0 %v2620
  %2730 = vmatprep.subr.mxu0 0.0
  %2731 = vmatpush1.msra.mxu0 %v2621
  %2732 = vmatprep.subr.mxu0 0.0
  %2733 = vmatpush1.msra.mxu0 %v2622
  %2734 = vmatprep.subr.mxu0 0.0
  %2735 = vmatpush1.msra.mxu0 0.0
  %2736 = vmatprep.subr.mxu0 0.0
  %2737 = vmatpush1.msra.mxu0 0.0
  %2738 = vmatprep.subr.mxu0 0.0
  %2739 = vmatpush1.msra.mxu0 0.0
  %2740 = vmatprep.subr.mxu0 0.0
  %2741 = vmatpush1.msra.mxu0 0.0
  %2742 = vmatprep.subr.mxu0 0.0
  %2743 = vmatpush1.msra.mxu0 0.0
  %2744 = vmatprep.subr.mxu0 0.0
  %2745 = vmatpush1.msra.mxu0 0.0
  %2746 = vmatprep.subr.mxu0 0.0
  %2747 = vmatpush1.msra.mxu0 0.0
  %2748 = vmatprep.subr.mxu0 0.0
  %2749 = vmatpush1.msra.mxu0 0.0
  %2750 = vmatprep.subr.mxu0 0.0
  %2751 = vmatpush1.msra.mxu0 0.0
  %2752 = vmatprep.subr.mxu0 0.0
  %2753 = vmatpush1.msra.mxu0 0.0
  %2754 = vmatprep.subr.mxu0 0.0
  %2755 = vmatpush1.msra.mxu0 0.0
  %2756 = vmatprep.subr.mxu0 0.0
  %2757 = vmatpush1.msra.mxu0 0.0
  %2758 = vmatprep.subr.mxu0 0.0
  %2759 = vmatpush1.msra.mxu0 0.0
  %2760 = vmatprep.subr.mxu0 0.0
  %2761 = vmatpush1.msra.mxu0 0.0
  %2762 = vmatprep.subr.mxu0 0.0
  %2763 = vmatpush1.msra.mxu0 0.0
  %2764 = vmatprep.subr.mxu0 0.0
  %2765 = vmatpush1.msra.mxu0 0.0
  %2766 = vmatprep.subr.mxu0 0.0
  %2767 = vmatpush1.msra.mxu0 0.0
  %2768 = vmatprep.subr.mxu0 0.0
  %2769 = vmatpush1.msra.mxu0 0.0
  %2770 = vmatprep.subr.mxu0 0.0
  %2771 = vmatpush1.msra.mxu0 0.0
  %2772 = vmatprep.subr.mxu0 0.0
  %2773 = vmatpush1.msra.mxu0 0.0
  %2774 = vmatprep.subr.mxu0 0.0
  %2775 = vmatpush1.msra.mxu0 0.0
  %2776 = vmatprep.subr.mxu0 0.0
  %2777 = vmatpush1.msra.mxu0 0.0
  %2778 = vmatprep.subr.mxu0 0.0
  %2779 = vmatpush1.msra.mxu0 0.0
  %2780 = vmatprep.subr.mxu0 0.0
  %2781 = vmatpush1.msra.mxu0 0.0
  %2782 = vmatprep.mubr.f32.mxu0 0.0
  %2783 = vmatmul.mubr.f32.gmra.mrb[0].mxu0 %v2713
  %v2784 = vpop.f32.mrb[0].mxu0
  %v2785 = vadd.f32 %v2704, %v2784
  %v2786 = vpop.f32.mrb[0].mxu0
  %2787 = vmatprep.mubr.f32.mxu0 0.0
  %2788 = vmatmul.mubr.f32.gmra.mrb[0].mxu0 %v2716
  %v2789 = vpop.f32.mrb[0].mxu0
  %v2790 = vadd.f32 %v2709, %v2789
  %v2791 = vpop.f32.mrb[0].mxu0
  %2792 = vdwg.mxu0
  %v2793 = vld [vmem:[%s8 + $0x310] sm:$0xff]
  %v2794 = vld [vmem:[%s8 + $0x318] sm:$0xff]
  %v2795 = vld [vmem:[%s8 + $0x320] sm:$0xff]
  %v2796 = vld [vmem:[%s8 + $0x328] sm:$0xff]
  %v2797 = vld [vmem:[%s8 + $0x330] sm:$0xff]
  %v2798 = vld [vmem:[%s8 + $0x338] sm:$0xff]
  %v2799 = vld [vmem:[%s8 + $0x340] sm:$0xff]
  %v2800 = vld [vmem:[%s8 + $0x348] sm:$0xff]
  %v2817 = vrot.slane %v2596, 7
  %v2818 = vsel %vm1419, %v2817, %v2595
  %v2819 = vrot.slane %v2597, 6
  %v2820 = vsel %vm1422, %v2819, %v2818
  %v2821 = vrot.slane %v2598, 5
  %v2822 = vsel %vm1425, %v2821, %v2820
  %v2823 = vrot.slane %v2599, 4
  %v2824 = vsel %vm1428, %v2823, %v2822
  %v2825 = vrot.slane %v2600, 3
  %v2826 = vsel %vm1431, %v2825, %v2824
  %v2827 = vrot.slane %v2601, 2
  %v2828 = vsel %vm1434, %v2827, %v2826
  %v2829 = vrot.slane %v2602, 1
  %v2830 = vsel %vm1437, %v2829, %v2828
  %v2831 = vrot.slane %v2604, 7
  %v2832 = vsel %vm1419, %v2831, %v2603
  %v2833 = vrot.slane %v2605, 6
  %v2834 = vsel %vm1422, %v2833, %v2832
  %v2835 = vrot.slane %v2606, 5
  %v2836 = vsel %vm1425, %v2835, %v2834
  %v2837 = vrot.slane %v2607, 4
  %v2838 = vsel %vm1428, %v2837, %v2836
  %v2839 = vrot.slane %v2608, 3
  %v2840 = vsel %vm1431, %v2839, %v2838
  %v2841 = vrot.slane %v2609, 2
  %v2842 = vsel %vm1434, %v2841, %v2840
  %v2843 = vrot.slane %v2610, 1
  %v2844 = vsel %vm1437, %v2843, %v2842
  %v2845 = vsel %vm194, %v2830, 0
  %v2847 = vsel %vm194, %v2844, 0
  %2849 = vmatprep.subr.mxu0 0.0
  %2850 = vmatpush1.msra.mxu0 %v2793
  %2851 = vmatprep.subr.mxu0 0.0
  %2852 = vmatpush1.msra.mxu0 %v2794
  %2853 = vmatprep.subr.mxu0 0.0
  %2854 = vmatpush1.msra.mxu0 %v2795
  %2855 = vmatprep.subr.mxu0 0.0
  %2856 = vmatpush1.msra.mxu0 %v2796
  %2857 = vmatprep.subr.mxu0 0.0
  %2858 = vmatpush1.msra.mxu0 %v2797
  %2859 = vmatprep.subr.mxu0 0.0
  %2860 = vmatpush1.msra.mxu0 %v2798
  %2861 = vmatprep.subr.mxu0 0.0
  %2862 = vmatpush1.msra.mxu0 %v2799
  %2863 = vmatprep.subr.mxu0 0.0
  %2864 = vmatpush1.msra.mxu0 %v2800
  %2865 = vmatprep.subr.mxu0 0.0
  %2866 = vmatpush1.msra.mxu0 0.0
  %2867 = vmatprep.subr.mxu0 0.0
  %2868 = vmatpush1.msra.mxu0 0.0
  %2869 = vmatprep.subr.mxu0 0.0
  %2870 = vmatpush1.msra.mxu0 0.0
  %2871 = vmatprep.subr.mxu0 0.0
  %2872 = vmatpush1.msra.mxu0 0.0
  %2873 = vmatprep.subr.mxu0 0.0
  %2874 = vmatpush1.msra.mxu0 0.0
  %2875 = vmatprep.subr.mxu0 0.0
  %2876 = vmatpush1.msra.mxu0 0.0
  %2877 = vmatprep.subr.mxu0 0.0
  %2878 = vmatpush1.msra.mxu0 0.0
  %2879 = vmatprep.subr.mxu0 0.0
  %2880 = vmatpush1.msra.mxu0 0.0
  %2881 = vmatprep.subr.mxu0 0.0
  %2882 = vmatpush1.msra.mxu0 0.0
  %2883 = vmatprep.subr.mxu0 0.0
  %2884 = vmatpush1.msra.mxu0 0.0
  %2885 = vmatprep.subr.mxu0 0.0
  %2886 = vmatpush1.msra.mxu0 0.0
  %2887 = vmatprep.subr.mxu0 0.0
  %2888 = vmatpush1.msra.mxu0 0.0
  %2889 = vmatprep.subr.mxu0 0.0
  %2890 = vmatpush1.msra.mxu0 0.0
  %2891 = vmatprep.subr.mxu0 0.0
  %2892 = vmatpush1.msra.mxu0 0.0
  %2893 = vmatprep.subr.mxu0 0.0
  %2894 = vmatpush1.msra.mxu0 0.0
  %2895 = vmatprep.subr.mxu0 0.0
  %2896 = vmatpush1.msra.mxu0 0.0
  %2897 = vmatprep.subr.mxu0 0.0
  %2898 = vmatpush1.msra.mxu0 0.0
  %2899 = vmatprep.subr.mxu0 0.0
  %2900 = vmatpush1.msra.mxu0 0.0
  %2901 = vmatprep.subr.mxu0 0.0
  %2902 = vmatpush1.msra.mxu0 0.0
  %2903 = vmatprep.subr.mxu0 0.0
  %2904 = vmatpush1.msra.mxu0 0.0
  %2905 = vmatprep.subr.mxu0 0.0
  %2906 = vmatpush1.msra.mxu0 0.0
  %2907 = vmatprep.subr.mxu0 0.0
  %2908 = vmatpush1.msra.mxu0 0.0
  %2909 = vmatprep.subr.mxu0 0.0
  %2910 = vmatpush1.msra.mxu0 0.0
  %2911 = vmatprep.subr.mxu0 0.0
  %2912 = vmatpush1.msra.mxu0 0.0
  %2913 = vmatprep.mubr.f32.mxu0 0.0
  %2914 = vmatmul.mubr.f32.gmra.mrb[0].mxu0 %v2845
  %v2915 = vpop.f32.mrb[0].mxu0
  %v2916 = vadd.f32 0.0, %v2915
  %v2917 = vpop.f32.mrb[0].mxu0
  %2918 = vmatprep.mubr.f32.mxu0 0.0
  %2919 = vmatmul.mubr.f32.gmra.mrb[0].mxu0 %v2847
  %v2920 = vpop.f32.mrb[0].mxu0
  %v2921 = vadd.f32 0.0, %v2920
  %v2922 = vpop.f32.mrb[0].mxu0
  %2923 = vdwg.mxu0
  %v2924 = vadd.f32 %v2785, %v2916
  %v2925 = vadd.f32 %v2790, %v2921
  %v2926 = vld [vmem:[%s8 + $0x350] sm:$0xff]
  %v2927 = vld [vmem:[%s8 + $0x358] sm:$0xff]
  %v2928 = vld [vmem:[%s8 + $0x360] sm:$0xff]
  %v2929 = vld [vmem:[%s8 + $0x368] sm:$0xff]
  %v2930 = vld [vmem:[%s8 + $0x370] sm:$0xff]
  %v2931 = vld [vmem:[%s8 + $0x378] sm:$0xff]
  %v2932 = vld [vmem:[%s8 + $0x380] sm:$0xff]
  %v2933 = vld [vmem:[%s8 + $0x388] sm:$0xff]
  %v2935 = vsel %vm194, %v2611, 0
  %v2938 = vsel %vm194, %v2612, 0
  %2940 = vmatprep.subr.mxu0 0.0
  %2941 = vmatpush1.msra.mxu0 %v2926
  %2942 = vmatprep.subr.mxu0 0.0
  %2943 = vmatpush1.msra.mxu0 %v2927
  %2944 = vmatprep.subr.mxu0 0.0
  %2945 = vmatpush1.msra.mxu0 %v2928
  %2946 = vmatprep.subr.mxu0 0.0
  %2947 = vmatpush1.msra.mxu0 %v2929
  %2948 = vmatprep.subr.mxu0 0.0
  %2949 = vmatpush1.msra.mxu0 %v2930
  %2950 = vmatprep.subr.mxu0 0.0
  %2951 = vmatpush1.msra.mxu0 %v2931
  %2952 = vmatprep.subr.mxu0 0.0
  %2953 = vmatpush1.msra.mxu0 %v2932
  %2954 = vmatprep.subr.mxu0 0.0
  %2955 = vmatpush1.msra.mxu0 %v2933
  %2956 = vmatprep.subr.mxu0 0.0
  %2957 = vmatpush1.msra.mxu0 0.0
  %2958 = vmatprep.subr.mxu0 0.0
  %2959 = vmatpush1.msra.mxu0 0.0
  %2960 = vmatprep.subr.mxu0 0.0
  %2961 = vmatpush1.msra.mxu0 0.0
  %2962 = vmatprep.subr.mxu0 0.0
  %2963 = vmatpush1.msra.mxu0 0.0
  %2964 = vmatprep.subr.mxu0 0.0
  %2965 = vmatpush1.msra.mxu0 0.0
  %2966 = vmatprep.subr.mxu0 0.0
  %2967 = vmatpush1.msra.mxu0 0.0
  %2968 = vmatprep.subr.mxu0 0.0
  %2969 = vmatpush1.msra.mxu0 0.0
  %2970 = vmatprep.subr.mxu0 0.0
  %2971 = vmatpush1.msra.mxu0 0.0
  %2972 = vmatprep.subr.mxu0 0.0
  %2973 = vmatpush1.msra.mxu0 0.0
  %2974 = vmatprep.subr.mxu0 0.0
  %2975 = vmatpush1.msra.mxu0 0.0
  %2976 = vmatprep.subr.mxu0 0.0
  %2977 = vmatpush1.msra.mxu0 0.0
  %2978 = vmatprep.subr.mxu0 0.0
  %2979 = vmatpush1.msra.mxu0 0.0
  %2980 = vmatprep.subr.mxu0 0.0
  %2981 = vmatpush1.msra.mxu0 0.0
  %2982 = vmatprep.subr.mxu0 0.0
  %2983 = vmatpush1.msra.mxu0 0.0
  %2984 = vmatprep.subr.mxu0 0.0
  %2985 = vmatpush1.msra.mxu0 0.0
  %2986 = vmatprep.subr.mxu0 0.0
  %2987 = vmatpush1.msra.mxu0 0.0
  %2988 = vmatprep.subr.mxu0 0.0
  %2989 = vmatpush1.msra.mxu0 0.0
  %2990 = vmatprep.subr.mxu0 0.0
  %2991 = vmatpush1.msra.mxu0 0.0
  %2992 = vmatprep.subr.mxu0 0.0
  %2993 = vmatpush1.msra.mxu0 0.0
  %2994 = vmatprep.subr.mxu0 0.0
  %2995 = vmatpush1.msra.mxu0 0.0
  %2996 = vmatprep.subr.mxu0 0.0
  %2997 = vmatpush1.msra.mxu0 0.0
  %2998 = vmatprep.subr.mxu0 0.0
  %2999 = vmatpush1.msra.mxu0 0.0
  %3000 = vmatprep.subr.mxu0 0.0
  %3001 = vmatpush1.msra.mxu0 0.0
  %3002 = vmatprep.subr.mxu0 0.0
  %3003 = vmatpush1.msra.mxu0 0.0
  %3004 = vmatprep.mubr.f32.mxu0 0.0
  %3005 = vmatmul.mubr.f32.gmra.mrb[0].mxu0 %v2935
  %v3006 = vpop.f32.mrb[0].mxu0
  %v3007 = vadd.f32 0.0, %v3006
  %v3008 = vpop.f32.mrb[0].mxu0
  %3009 = vmatprep.mubr.f32.mxu0 0.0
  %3010 = vmatmul.mubr.f32.gmra.mrb[0].mxu0 %v2938
  %v3011 = vpop.f32.mrb[0].mxu0
  %v3012 = vadd.f32 0.0, %v3011
  %v3013 = vpop.f32.mrb[0].mxu0
  %3014 = vdwg.mxu0
  %v3015 = vadd.f32 %v2924, %v3007
  %v3016 = vadd.f32 %v2925, %v3012
  %v3017 = vld [vmem:[%s8 + $0x390] sm:$0xff]
  %v3018 = vld [vmem:[%s8 + $0x398] sm:$0xff]
  %v3019 = vld [vmem:[%s8 + $0x3a0] sm:$0xff]
  %v3020 = vld [vmem:[%s8 + $0x3a8] sm:$0xff]
  %v3021 = vld [vmem:[%s8 + $0x3b0] sm:$0xff]
  %v3022 = vld [vmem:[%s8 + $0x3b8] sm:$0xff]
  %v3023 = vld [vmem:[%s8 + $0x3c0] sm:$0xff]
  %v3024 = vld [vmem:[%s8 + $0x3c8] sm:$0xff]
  %v3026 = vsel %vm194, %v2613, 0
  %v3029 = vsel %vm194, %v2614, 0
  %3031 = vmatprep.subr.mxu0 0.0
  %3032 = vmatpush1.msra.mxu0 %v3017
  %3033 = vmatprep.subr.mxu0 0.0
  %3034 = vmatpush1.msra.mxu0 %v3018
  %3035 = vmatprep.subr.mxu0 0.0
  %3036 = vmatpush1.msra.mxu0 %v3019
  %3037 = vmatprep.subr.mxu0 0.0
  %3038 = vmatpush1.msra.mxu0 %v3020
  %3039 = vmatprep.subr.mxu0 0.0
  %3040 = vmatpush1.msra.mxu0 %v3021
  %3041 = vmatprep.subr.mxu0 0.0
  %3042 = vmatpush1.msra.mxu0 %v3022
  %3043 = vmatprep.subr.mxu0 0.0
  %3044 = vmatpush1.msra.mxu0 %v3023
  %3045 = vmatprep.subr.mxu0 0.0
  %3046 = vmatpush1.msra.mxu0 %v3024
  %3047 = vmatprep.subr.mxu0 0.0
  %3048 = vmatpush1.msra.mxu0 0.0
  %3049 = vmatprep.subr.mxu0 0.0
  %3050 = vmatpush1.msra.mxu0 0.0
  %3051 = vmatprep.subr.mxu0 0.0
  %3052 = vmatpush1.msra.mxu0 0.0
  %3053 = vmatprep.subr.mxu0 0.0
  %3054 = vmatpush1.msra.mxu0 0.0
  %3055 = vmatprep.subr.mxu0 0.0
  %3056 = vmatpush1.msra.mxu0 0.0
  %3057 = vmatprep.subr.mxu0 0.0
  %3058 = vmatpush1.msra.mxu0 0.0
  %3059 = vmatprep.subr.mxu0 0.0
  %3060 = vmatpush1.msra.mxu0 0.0
  %3061 = vmatprep.subr.mxu0 0.0
  %3062 = vmatpush1.msra.mxu0 0.0
  %3063 = vmatprep.subr.mxu0 0.0
  %3064 = vmatpush1.msra.mxu0 0.0
  %3065 = vmatprep.subr.mxu0 0.0
  %3066 = vmatpush1.msra.mxu0 0.0
  %3067 = vmatprep.subr.mxu0 0.0
  %3068 = vmatpush1.msra.mxu0 0.0
  %3069 = vmatprep.subr.mxu0 0.0
  %3070 = vmatpush1.msra.mxu0 0.0
  %3071 = vmatprep.subr.mxu0 0.0
  %3072 = vmatpush1.msra.mxu0 0.0
  %3073 = vmatprep.subr.mxu0 0.0
  %3074 = vmatpush1.msra.mxu0 0.0
  %3075 = vmatprep.subr.mxu0 0.0
  %3076 = vmatpush1.msra.mxu0 0.0
  %3077 = vmatprep.subr.mxu0 0.0
  %3078 = vmatpush1.msra.mxu0 0.0
  %3079 = vmatprep.subr.mxu0 0.0
  %3080 = vmatpush1.msra.mxu0 0.0
  %3081 = vmatprep.subr.mxu0 0.0
  %3082 = vmatpush1.msra.mxu0 0.0
  %3083 = vmatprep.subr.mxu0 0.0
  %3084 = vmatpush1.msra.mxu0 0.0
  %3085 = vmatprep.subr.mxu0 0.0
  %3086 = vmatpush1.msra.mxu0 0.0
  %3087 = vmatprep.subr.mxu0 0.0
  %3088 = vmatpush1.msra.mxu0 0.0
  %3089 = vmatprep.subr.mxu0 0.0
  %3090 = vmatpush1.msra.mxu0 0.0
  %3091 = vmatprep.subr.mxu0 0.0
  %3092 = vmatpush1.msra.mxu0 0.0
  %3093 = vmatprep.subr.mxu0 0.0
  %3094 = vmatpush1.msra.mxu0 0.0
  %3095 = vmatprep.mubr.f32.mxu0 0.0
  %3096 = vmatmul.mubr.f32.gmra.mrb[0].mxu0 %v3026
  %v3097 = vpop.f32.mrb[0].mxu0
  %v3098 = vadd.f32 0.0, %v3097
  %v3099 = vpop.f32.mrb[0].mxu0
  %3100 = vmatprep.mubr.f32.mxu0 0.0
  %3101 = vmatmul.mubr.f32.gmra.mrb[0].mxu0 %v3029
  %v3102 = vpop.f32.mrb[0].mxu0
  %v3103 = vadd.f32 0.0, %v3102
  %v3104 = vpop.f32.mrb[0].mxu0
  %3105 = vdwg.mxu0
  %v3106 = vadd.f32 %v3015, %v3098
  %v3107 = vadd.f32 %v3016, %v3103
  %v3108 = vlaneseq
  %v3109 = vshrl.u32 %v3108, 7
  %v3110 = vsub.s32 4, %v3109
  %v3111 = vrot.slane %v68, %v3110
  %v3112 = vadd.f32 %v3106, %v3111
  %v3113 = vadd.f32 %v3107, %v3111
  %v3114 = vmul.f32 %v3112, %v1725
  %v3115 = vmul.f32 %v3113, %v1730
  %v3116 = vld [vmem:[%s8 + $0x3d0] sm:$0xff]
  %v3117 = vld [vmem:[%s8 + $0x3d8] sm:$0xff]
  %v3118 = vld [vmem:[%s8 + $0x3e0] sm:$0xff]
  %v3119 = vld [vmem:[%s8 + $0x3e8] sm:$0xff]
  %v3120 = vld [vmem:[%s8 + $0x3f0] sm:$0xff]
  %v3121 = vld [vmem:[%s8 + $0x3f8] sm:$0xff]
  %v3122 = vld [vmem:[%s8 + $0x400] sm:$0xff]
  %v3123 = vld [vmem:[%s8 + $0x408] sm:$0xff]
  %v3124 = vlaneseq
  %v3125 = vshrl.u32 %v3124, 7
  %v3126 = vsub.s32 5, %v3125
  %v3127 = vrot.slane %v68, %v3126
  %v3129 = vsel %vm194, %v3114, 0
  %v3132 = vsel %vm194, %v3115, 0
  %3134 = vmatprep.subr.mxu0 0.0
  %3135 = vmatpush1.msra.mxu0 %v3116
  %3136 = vmatprep.subr.mxu0 0.0
  %3137 = vmatpush1.msra.mxu0 %v3117
  %3138 = vmatprep.subr.mxu0 0.0
  %3139 = vmatpush1.msra.mxu0 %v3118
  %3140 = vmatprep.subr.mxu0 0.0
  %3141 = vmatpush1.msra.mxu0 %v3119
  %3142 = vmatprep.subr.mxu0 0.0
  %3143 = vmatpush1.msra.mxu0 %v3120
  %3144 = vmatprep.subr.mxu0 0.0
  %3145 = vmatpush1.msra.mxu0 %v3121
  %3146 = vmatprep.subr.mxu0 0.0
  %3147 = vmatpush1.msra.mxu0 %v3122
  %3148 = vmatprep.subr.mxu0 0.0
  %3149 = vmatpush1.msra.mxu0 %v3123
  %3150 = vmatprep.subr.mxu0 0.0
  %3151 = vmatpush1.msra.mxu0 0.0
  %3152 = vmatprep.subr.mxu0 0.0
  %3153 = vmatpush1.msra.mxu0 0.0
  %3154 = vmatprep.subr.mxu0 0.0
  %3155 = vmatpush1.msra.mxu0 0.0
  %3156 = vmatprep.subr.mxu0 0.0
  %3157 = vmatpush1.msra.mxu0 0.0
  %3158 = vmatprep.subr.mxu0 0.0
  %3159 = vmatpush1.msra.mxu0 0.0
  %3160 = vmatprep.subr.mxu0 0.0
  %3161 = vmatpush1.msra.mxu0 0.0
  %3162 = vmatprep.subr.mxu0 0.0
  %3163 = vmatpush1.msra.mxu0 0.0
  %3164 = vmatprep.subr.mxu0 0.0
  %3165 = vmatpush1.msra.mxu0 0.0
  %3166 = vmatprep.subr.mxu0 0.0
  %3167 = vmatpush1.msra.mxu0 0.0
  %3168 = vmatprep.subr.mxu0 0.0
  %3169 = vmatpush1.msra.mxu0 0.0
  %3170 = vmatprep.subr.mxu0 0.0
  %3171 = vmatpush1.msra.mxu0 0.0
  %3172 = vmatprep.subr.mxu0 0.0
  %3173 = vmatpush1.msra.mxu0 0.0
  %3174 = vmatprep.subr.mxu0 0.0
  %3175 = vmatpush1.msra.mxu0 0.0
  %3176 = vmatprep.subr.mxu0 0.0
  %3177 = vmatpush1.msra.mxu0 0.0
  %3178 = vmatprep.subr.mxu0 0.0
  %3179 = vmatpush1.msra.mxu0 0.0
  %3180 = vmatprep.subr.mxu0 0.0
  %3181 = vmatpush1.msra.mxu0 0.0
  %3182 = vmatprep.subr.mxu0 0.0
  %3183 = vmatpush1.msra.mxu0 0.0
  %3184 = vmatprep.subr.mxu0 0.0
  %3185 = vmatpush1.msra.mxu0 0.0
  %3186 = vmatprep.subr.mxu0 0.0
  %3187 = vmatpush1.msra.mxu0 0.0
  %3188 = vmatprep.subr.mxu0 0.0
  %3189 = vmatpush1.msra.mxu0 0.0
  %3190 = vmatprep.subr.mxu0 0.0
  %3191 = vmatpush1.msra.mxu0 0.0
  %3192 = vmatprep.subr.mxu0 0.0
  %3193 = vmatpush1.msra.mxu0 0.0
  %3194 = vmatprep.subr.mxu0 0.0
  %3195 = vmatpush1.msra.mxu0 0.0
  %3196 = vmatprep.subr.mxu0 0.0
  %3197 = vmatpush1.msra.mxu0 0.0
  %3198 = vmatprep.mubr.f32.mxu0 0.0
  %3199 = vmatmul.mubr.f32.gmra.mrb[0].mxu0 %v3129
  %v3200 = vpop.f32.mrb[0].mxu0
  %v3201 = vadd.f32 %v3127, %v3200
  %v3202 = vpop.f32.mrb[0].mxu0
  %3203 = vmatprep.mubr.f32.mxu0 0.0
  %3204 = vmatmul.mubr.f32.gmra.mrb[0].mxu0 %v3132
  %v3205 = vpop.f32.mrb[0].mxu0
  %v3206 = vadd.f32 %v3127, %v3205
  %v3207 = vpop.f32.mrb[0].mxu0
  %3208 = vdwg.mxu0
  %vm3209 = vcmp.gt.f32.partialorder %v3201, 0.0
  %vm3210 = vcmp.gt.f32.partialorder %v3206, 0.0
  %v3211 = vmul.f32 %v3201, 0.01
  %v3212 = vmul.f32 %v3206, 0.01
  %v3213 = vsel %vm3209, %v3201, %v3211
  %v3214 = vsel %vm3210, %v3206, %v3212
  %v3215 = vadd.f32 %v3213, %v1833
  %v3216 = vadd.f32 %v3214, %v1834
  %v3217 = vmax.f32 %v3215, 0.0
  %v3218 = vmax.f32 %v3216, 0.0
  %v3219 = vpack.c.bf16 %v3218, %v3217
  %3220 = vmatprep.subr.bf16.mxu0 0
  %3221 = vmatpush1.bf16.msra.mxu0 %v3219
  %3222 = vmatprep.subr.bf16.mxu0 0
  %3223 = vmatpush1.bf16.msra.mxu0 0
  %3224 = vmatprep.subr.bf16.mxu0 0
  %3225 = vmatpush1.bf16.msra.mxu0 0
  %3226 = vmatprep.subr.bf16.mxu0 0
  %3227 = vmatpush1.bf16.msra.mxu0 0
  %3228 = vmatprep.subr.bf16.mxu0 0
  %3229 = vmatpush1.bf16.msra.mxu0 0
  %3230 = vmatprep.subr.bf16.mxu0 0
  %3231 = vmatpush1.bf16.msra.mxu0 0
  %3232 = vmatprep.subr.bf16.mxu0 0
  %3233 = vmatpush1.bf16.msra.mxu0 0
  %3234 = vmatprep.subr.bf16.mxu0 0
  %3235 = vmatpush1.bf16.msra.mxu0 0
  %3236 = vmatprep.subr.bf16.mxu0 0
  %3237 = vmatpush1.bf16.msra.mxu0 0
  %3238 = vmatprep.subr.bf16.mxu0 0
  %3239 = vmatpush1.bf16.msra.mxu0 0
  %3240 = vmatprep.subr.bf16.mxu0 0
  %3241 = vmatpush1.bf16.msra.mxu0 0
  %3242 = vmatprep.subr.bf16.mxu0 0
  %3243 = vmatpush1.bf16.msra.mxu0 0
  %3244 = vmatprep.subr.bf16.mxu0 0
  %3245 = vmatpush1.bf16.msra.mxu0 0
  %3246 = vmatprep.subr.bf16.mxu0 0
  %3247 = vmatpush1.bf16.msra.mxu0 0
  %3248 = vmatprep.subr.bf16.mxu0 0
  %3249 = vmatpush1.bf16.msra.mxu0 0
  %3250 = vmatprep.subr.bf16.mxu0 0
  %3251 = vmatpush1.bf16.msra.mxu0 0
  %3252 = vmatprep.mubr.bf16.mxu0 0
  %3253 = vmatmul.mubr.bf16.gmra.mrb[0].mxu0 %v102
  %v3254 = vpop.f32.mrb[0].mxu0
  %v3255 = vadd.f32 0.0, %v3254
  %v3256 = vpop.f32.mrb[0].mxu0
  %v3257 = vpop.f32.mrb[0].mxu0
  %v3258 = vadd.f32 0.0, %v3257
  %v3259 = vpop.f32.mrb[0].mxu0
  %3260 = vmatprep.mubr.bf16.mxu0 0
  %3261 = vmatmul.mubr.bf16.gmra.mrb[0].mxu0 %v105
  %v3262 = vpop.f32.mrb[0].mxu0
  %v3263 = vadd.f32 0.0, %v3262
  %v3264 = vpop.f32.mrb[0].mxu0
  %v3265 = vpop.f32.mrb[0].mxu0
  %v3266 = vadd.f32 0.0, %v3265
  %v3267 = vpop.f32.mrb[0].mxu0
  %3268 = vmatprep.mubr.bf16.mxu0 0
  %3269 = vmatmul.mubr.bf16.gmra.mrb[0].mxu0 %v108
  %v3270 = vpop.f32.mrb[0].mxu0
  %v3271 = vadd.f32 0.0, %v3270
  %v3272 = vpop.f32.mrb[0].mxu0
  %v3273 = vpop.f32.mrb[0].mxu0
  %v3274 = vadd.f32 0.0, %v3273
  %v3275 = vpop.f32.mrb[0].mxu0
  %3276 = vmatprep.mubr.bf16.mxu0 0
  %3277 = vmatmul.mubr.bf16.gmra.mrb[0].mxu0 %v111
  %v3278 = vpop.f32.mrb[0].mxu0
  %v3279 = vadd.f32 0.0, %v3278
  %v3280 = vpop.f32.mrb[0].mxu0
  %v3281 = vpop.f32.mrb[0].mxu0
  %v3282 = vadd.f32 0.0, %v3281
  %v3283 = vpop.f32.mrb[0].mxu0
  %3284 = vdwg.mxu0
  %v3285 = vld [vmem:[%s8 + $0x410] sm:$0xff]
  %v3286 = vld [vmem:[%s8 + $0x418] sm:$0xff]
  %v3287 = vld [vmem:[%s8 + $0x420] sm:$0xff]
  %v3288 = vld [vmem:[%s8 + $0x428] sm:$0xff]
  %v3289 = vld [vmem:[%s8 + $0x430] sm:$0xff]
  %v3290 = vld [vmem:[%s8 + $0x438] sm:$0xff]
  %v3291 = vld [vmem:[%s8 + $0x440] sm:$0xff]
  %v3292 = vld [vmem:[%s8 + $0x448] sm:$0xff]
  %v3293 = vld [vmem:[%s8 + $0x450] sm:$0xff]
  %v3294 = vld [vmem:[%s8 + $0x458] sm:$0xff]
  %v3295 = vld [vmem:[%s8 + $0x460] sm:$0xff]
  %v3296 = vld [vmem:[%s8 + $0x468] sm:$0xff]
  %v3297 = vld [vmem:[%s8 + $0x470] sm:$0xff]
  %v3298 = vld [vmem:[%s8 + $0x478] sm:$0xff]
  %v3299 = vld [vmem:[%s8 + $0x480] sm:$0xff]
  %v3300 = vld [vmem:[%s8 + $0x488] sm:$0xff]
  %v3302 = vsel %vm194, %v3271, 0
  %v3305 = vsel %vm194, %v3274, 0
  %v3308 = vsel %vm194, %v3279, 0
  %v3311 = vsel %vm194, %v3282, 0
  %3313 = vmatprep.subr.mxu0 0.0
  %3314 = vmatpush1.msra.mxu0 %v3293
  %3315 = vmatprep.subr.mxu0 0.0
  %3316 = vmatpush1.msra.mxu0 %v3294
  %3317 = vmatprep.subr.mxu0 0.0
  %3318 = vmatpush1.msra.mxu0 %v3295
  %3319 = vmatprep.subr.mxu0 0.0
  %3320 = vmatpush1.msra.mxu0 %v3296
  %3321 = vmatprep.subr.mxu0 0.0
  %3322 = vmatpush1.msra.mxu0 %v3297
  %3323 = vmatprep.subr.mxu0 0.0
  %3324 = vmatpush1.msra.mxu0 %v3298
  %3325 = vmatprep.subr.mxu0 0.0
  %3326 = vmatpush1.msra.mxu0 %v3299
  %3327 = vmatprep.subr.mxu0 0.0
  %3328 = vmatpush1.msra.mxu0 %v3300
  %3329 = vmatprep.subr.mxu0 0.0
  %3330 = vmatpush1.msra.mxu0 0.0
  %3331 = vmatprep.subr.mxu0 0.0
  %3332 = vmatpush1.msra.mxu0 0.0
  %3333 = vmatprep.subr.mxu0 0.0
  %3334 = vmatpush1.msra.mxu0 0.0
  %3335 = vmatprep.subr.mxu0 0.0
  %3336 = vmatpush1.msra.mxu0 0.0
  %3337 = vmatprep.subr.mxu0 0.0
  %3338 = vmatpush1.msra.mxu0 0.0
  %3339 = vmatprep.subr.mxu0 0.0
  %3340 = vmatpush1.msra.mxu0 0.0
  %3341 = vmatprep.subr.mxu0 0.0
  %3342 = vmatpush1.msra.mxu0 0.0
  %3343 = vmatprep.subr.mxu0 0.0
  %3344 = vmatpush1.msra.mxu0 0.0
  %3345 = vmatprep.subr.mxu0 0.0
  %3346 = vmatpush1.msra.mxu0 0.0
  %3347 = vmatprep.subr.mxu0 0.0
  %3348 = vmatpush1.msra.mxu0 0.0
  %3349 = vmatprep.subr.mxu0 0.0
  %3350 = vmatpush1.msra.mxu0 0.0
  %3351 = vmatprep.subr.mxu0 0.0
  %3352 = vmatpush1.msra.mxu0 0.0
  %3353 = vmatprep.subr.mxu0 0.0
  %3354 = vmatpush1.msra.mxu0 0.0
  %3355 = vmatprep.subr.mxu0 0.0
  %3356 = vmatpush1.msra.mxu0 0.0
  %3357 = vmatprep.subr.mxu0 0.0
  %3358 = vmatpush1.msra.mxu0 0.0
  %3359 = vmatprep.subr.mxu0 0.0
  %3360 = vmatpush1.msra.mxu0 0.0
  %3361 = vmatprep.subr.mxu0 0.0
  %3362 = vmatpush1.msra.mxu0 0.0
  %3363 = vmatprep.subr.mxu0 0.0
  %3364 = vmatpush1.msra.mxu0 0.0
  %3365 = vmatprep.subr.mxu0 0.0
  %3366 = vmatpush1.msra.mxu0 0.0
  %3367 = vmatprep.subr.mxu0 0.0
  %3368 = vmatpush1.msra.mxu0 0.0
  %3369 = vmatprep.subr.mxu0 0.0
  %3370 = vmatpush1.msra.mxu0 0.0
  %3371 = vmatprep.subr.mxu0 0.0
  %3372 = vmatpush1.msra.mxu0 0.0
  %3373 = vmatprep.subr.mxu0 0.0
  %3374 = vmatpush1.msra.mxu0 0.0
  %3375 = vmatprep.subr.mxu0 0.0
  %3376 = vmatpush1.msra.mxu0 0.0
  %3377 = vmatprep.mubr.f32.mxu0 0.0
  %3378 = vmatmul.mubr.f32.gmra.mrb[0].mxu0 %v3302
  %v3379 = vpop.f32.mrb[0].mxu0
  %v3380 = vadd.f32 0.0, %v3379
  %v3381 = vpop.f32.mrb[0].mxu0
  %3382 = vmatprep.mubr.f32.mxu0 0.0
  %3383 = vmatmul.mubr.f32.gmra.mrb[0].mxu0 %v3305
  %v3384 = vpop.f32.mrb[0].mxu0
  %v3385 = vadd.f32 0.0, %v3384
  %v3386 = vpop.f32.mrb[0].mxu0
  %3387 = vmatprep.mubr.f32.mxu0 0.0
  %3388 = vmatmul.mubr.f32.gmra.mrb[0].mxu0 %v3308
  %v3389 = vpop.f32.mrb[0].mxu0
  %v3390 = vadd.f32 0.0, %v3389
  %v3391 = vpop.f32.mrb[0].mxu0
  %3392 = vmatprep.mubr.f32.mxu0 0.0
  %3393 = vmatmul.mubr.f32.gmra.mrb[0].mxu0 %v3311
  %v3394 = vpop.f32.mrb[0].mxu0
  %v3395 = vadd.f32 0.0, %v3394
  %v3396 = vpop.f32.mrb[0].mxu0
  %3397 = vdwg.mxu0
  %v3399 = vsel %vm194, %v3255, 0
  %v3402 = vsel %vm194, %v3258, 0
  %v3405 = vsel %vm194, %v3263, 0
  %v3408 = vsel %vm194, %v3266, 0
  %3410 = vmatprep.subr.mxu0 0.0
  %3411 = vmatpush1.msra.mxu0 %v3285
  %3412 = vmatprep.subr.mxu0 0.0
  %3413 = vmatpush1.msra.mxu0 %v3286
  %3414 = vmatprep.subr.mxu0 0.0
  %3415 = vmatpush1.msra.mxu0 %v3287
  %3416 = vmatprep.subr.mxu0 0.0
  %3417 = vmatpush1.msra.mxu0 %v3288
  %3418 = vmatprep.subr.mxu0 0.0
  %3419 = vmatpush1.msra.mxu0 %v3289
  %3420 = vmatprep.subr.mxu0 0.0
  %3421 = vmatpush1.msra.mxu0 %v3290
  %3422 = vmatprep.subr.mxu0 0.0
  %3423 = vmatpush1.msra.mxu0 %v3291
  %3424 = vmatprep.subr.mxu0 0.0
  %3425 = vmatpush1.msra.mxu0 %v3292
  %3426 = vmatprep.subr.mxu0 0.0
  %3427 = vmatpush1.msra.mxu0 0.0
  %3428 = vmatprep.subr.mxu0 0.0
  %3429 = vmatpush1.msra.mxu0 0.0
  %3430 = vmatprep.subr.mxu0 0.0
  %3431 = vmatpush1.msra.mxu0 0.0
  %3432 = vmatprep.subr.mxu0 0.0
  %3433 = vmatpush1.msra.mxu0 0.0
  %3434 = vmatprep.subr.mxu0 0.0
  %3435 = vmatpush1.msra.mxu0 0.0
  %3436 = vmatprep.subr.mxu0 0.0
  %3437 = vmatpush1.msra.mxu0 0.0
  %3438 = vmatprep.subr.mxu0 0.0
  %3439 = vmatpush1.msra.mxu0 0.0
  %3440 = vmatprep.subr.mxu0 0.0
  %3441 = vmatpush1.msra.mxu0 0.0
  %3442 = vmatprep.subr.mxu0 0.0
  %3443 = vmatpush1.msra.mxu0 0.0
  %3444 = vmatprep.subr.mxu0 0.0
  %3445 = vmatpush1.msra.mxu0 0.0
  %3446 = vmatprep.subr.mxu0 0.0
  %3447 = vmatpush1.msra.mxu0 0.0
  %3448 = vmatprep.subr.mxu0 0.0
  %3449 = vmatpush1.msra.mxu0 0.0
  %3450 = vmatprep.subr.mxu0 0.0
  %3451 = vmatpush1.msra.mxu0 0.0
  %3452 = vmatprep.subr.mxu0 0.0
  %3453 = vmatpush1.msra.mxu0 0.0
  %3454 = vmatprep.subr.mxu0 0.0
  %3455 = vmatpush1.msra.mxu0 0.0
  %3456 = vmatprep.subr.mxu0 0.0
  %3457 = vmatpush1.msra.mxu0 0.0
  %3458 = vmatprep.subr.mxu0 0.0
  %3459 = vmatpush1.msra.mxu0 0.0
  %3460 = vmatprep.subr.mxu0 0.0
  %3461 = vmatpush1.msra.mxu0 0.0
  %3462 = vmatprep.subr.mxu0 0.0
  %3463 = vmatpush1.msra.mxu0 0.0
  %3464 = vmatprep.subr.mxu0 0.0
  %3465 = vmatpush1.msra.mxu0 0.0
  %3466 = vmatprep.subr.mxu0 0.0
  %3467 = vmatpush1.msra.mxu0 0.0
  %3468 = vmatprep.subr.mxu0 0.0
  %3469 = vmatpush1.msra.mxu0 0.0
  %3470 = vmatprep.subr.mxu0 0.0
  %3471 = vmatpush1.msra.mxu0 0.0
  %3472 = vmatprep.subr.mxu0 0.0
  %3473 = vmatpush1.msra.mxu0 0.0
  %3474 = vmatprep.mubr.f32.mxu0 0.0
  %3475 = vmatmul.mubr.f32.gmra.mrb[0].mxu0 %v3399
  %v3476 = vpop.f32.mrb[0].mxu0
  %v3477 = vadd.f32 %v3380, %v3476
  %v3478 = vpop.f32.mrb[0].mxu0
  %3479 = vmatprep.mubr.f32.mxu0 0.0
  %3480 = vmatmul.mubr.f32.gmra.mrb[0].mxu0 %v3402
  %v3481 = vpop.f32.mrb[0].mxu0
  %v3482 = vadd.f32 %v3385, %v3481
  %v3483 = vpop.f32.mrb[0].mxu0
  %3484 = vmatprep.mubr.f32.mxu0 0.0
  %3485 = vmatmul.mubr.f32.gmra.mrb[0].mxu0 %v3405
  %v3486 = vpop.f32.mrb[0].mxu0
  %v3487 = vadd.f32 %v3390, %v3486
  %v3488 = vpop.f32.mrb[0].mxu0
  %3489 = vmatprep.mubr.f32.mxu0 0.0
  %3490 = vmatmul.mubr.f32.gmra.mrb[0].mxu0 %v3408
  %v3491 = vpop.f32.mrb[0].mxu0
  %v3492 = vadd.f32 %v3395, %v3491
  %v3493 = vpop.f32.mrb[0].mxu0
  %3494 = vdwg.mxu0
  %v3495 = vld [vmem:[%s8 + $0x490] sm:$0xff]
  %3496 = vmatprep.subr.mxu0 0.0
  %3497 = vmatpush1.msra.mxu0 %v3495
  %3498 = vmatprep.subr.mxu0 0.0
  %3499 = vmatpush1.msra.mxu0 0.0
  %3500 = vmatprep.subr.mxu0 0.0
  %3501 = vmatpush1.msra.mxu0 0.0
  %3502 = vmatprep.subr.mxu0 0.0
  %3503 = vmatpush1.msra.mxu0 0.0
  %3504 = vmatprep.subr.mxu0 0.0
  %3505 = vmatpush1.msra.mxu0 0.0
  %3506 = vmatprep.subr.mxu0 0.0
  %3507 = vmatpush1.msra.mxu0 0.0
  %3508 = vmatprep.subr.mxu0 0.0
  %3509 = vmatpush1.msra.mxu0 0.0
  %3510 = vmatprep.subr.mxu0 0.0
  %3511 = vmatpush1.msra.mxu0 0.0
  %3512 = vmatprep.subr.mxu0 0.0
  %3513 = vmatpush1.msra.mxu0 0.0
  %3514 = vmatprep.subr.mxu0 0.0
  %3515 = vmatpush1.msra.mxu0 0.0
  %3516 = vmatprep.subr.mxu0 0.0
  %3517 = vmatpush1.msra.mxu0 0.0
  %3518 = vmatprep.subr.mxu0 0.0
  %3519 = vmatpush1.msra.mxu0 0.0
  %3520 = vmatprep.subr.mxu0 0.0
  %3521 = vmatpush1.msra.mxu0 0.0
  %3522 = vmatprep.subr.mxu0 0.0
  %3523 = vmatpush1.msra.mxu0 0.0
  %3524 = vmatprep.subr.mxu0 0.0
  %3525 = vmatpush1.msra.mxu0 0.0
  %3526 = vmatprep.subr.mxu0 0.0
  %3527 = vmatpush1.msra.mxu0 0.0
  %3528 = vmatprep.subr.mxu0 0.0
  %3529 = vmatpush1.msra.mxu0 0.0
  %3530 = vmatprep.subr.mxu0 0.0
  %3531 = vmatpush1.msra.mxu0 0.0
  %3532 = vmatprep.subr.mxu0 0.0
  %3533 = vmatpush1.msra.mxu0 0.0
  %3534 = vmatprep.subr.mxu0 0.0
  %3535 = vmatpush1.msra.mxu0 0.0
  %3536 = vmatprep.subr.mxu0 0.0
  %3537 = vmatpush1.msra.mxu0 0.0
  %3538 = vmatprep.subr.mxu0 0.0
  %3539 = vmatpush1.msra.mxu0 0.0
  %3540 = vmatprep.subr.mxu0 0.0
  %3541 = vmatpush1.msra.mxu0 0.0
  %3542 = vmatprep.subr.mxu0 0.0
  %3543 = vmatpush1.msra.mxu0 0.0
  %3544 = vmatprep.subr.mxu0 0.0
  %3545 = vmatpush1.msra.mxu0 0.0
  %3546 = vmatprep.subr.mxu0 0.0
  %3547 = vmatpush1.msra.mxu0 0.0
  %3548 = vmatprep.subr.mxu0 0.0
  %3549 = vmatpush1.msra.mxu0 0.0
  %3550 = vmatprep.subr.mxu0 0.0
  %3551 = vmatpush1.msra.mxu0 0.0
  %3552 = vmatprep.subr.mxu0 0.0
  %3553 = vmatpush1.msra.mxu0 0.0
  %3554 = vmatprep.subr.mxu0 0.0
  %3555 = vmatpush1.msra.mxu0 0.0
  %3556 = vmatprep.subr.mxu0 0.0
  %3557 = vmatpush1.msra.mxu0 0.0
  %3558 = vmatprep.subr.mxu0 0.0
  %3559 = vmatpush1.msra.mxu0 0.0
  %3560 = vmatprep.mubr.f32.mxu0 0.0
  %3561 = vmatmul.mubr.f32.gmra.mrb[0].mxu0 %v392
  %v3562 = vpop.f32.mrb[0].mxu0
  %v3563 = vadd.f32 0.0, %v3562
  %v3564 = vpop.f32.mrb[0].mxu0
  %3565 = vmatprep.mubr.f32.mxu0 0.0
  %3566 = vmatmul.mubr.f32.gmra.mrb[0].mxu0 %v395
  %v3567 = vpop.f32.mrb[0].mxu0
  %v3568 = vadd.f32 0.0, %v3567
  %v3569 = vpop.f32.mrb[0].mxu0
  %3570 = vmatprep.mubr.f32.mxu0 0.0
  %3571 = vmatmul.mubr.f32.gmra.mrb[0].mxu0 %v398
  %v3572 = vpop.f32.mrb[0].mxu0
  %v3573 = vadd.f32 0.0, %v3572
  %v3574 = vpop.f32.mrb[0].mxu0
  %3575 = vmatprep.mubr.f32.mxu0 0.0
  %3576 = vmatmul.mubr.f32.gmra.mrb[0].mxu0 %v401
  %v3577 = vpop.f32.mrb[0].mxu0
  %v3578 = vadd.f32 0.0, %v3577
  %v3579 = vpop.f32.mrb[0].mxu0
  %3580 = vdwg.mxu0
  %v3581 = vadd.f32 %v3477, %v3563
  %v3582 = vadd.f32 %v3482, %v3568
  %v3583 = vadd.f32 %v3487, %v3573
  %v3584 = vadd.f32 %v3492, %v3578
  %v3585 = vlaneseq
  %v3586 = vshrl.u32 %v3585, 7
  %v3587 = vsub.s32 6, %v3586
  %v3588 = vrot.slane %v68, %v3587
  %v3589 = vadd.f32 %v3581, %v3588
  %v3590 = vadd.f32 %v3582, %v3588
  %v3591 = vadd.f32 %v3583, %v3588
  %v3592 = vadd.f32 %v3584, %v3588
  %v3593 = vpack.c.bf16 %v3590, %v3589
  %v3594 = vpack.c.bf16 %v3592, %v3591
  %3595 = vmatprep.subr.bf16.mxu0 0
  %3596 = vmatpush1.bf16.msra.mxu0 %v3593
  %3597 = vmatprep.subr.bf16.mxu0 0
  %3598 = vmatpush1.bf16.msra.mxu0 %v3594
  %3599 = vmatprep.subr.bf16.mxu0 0
  %3600 = vmatpush1.bf16.msra.mxu0 0
  %3601 = vmatprep.subr.bf16.mxu0 0
  %3602 = vmatpush1.bf16.msra.mxu0 0
  %3603 = vmatprep.subr.bf16.mxu0 0
  %3604 = vmatpush1.bf16.msra.mxu0 0
  %3605 = vmatprep.subr.bf16.mxu0 0
  %3606 = vmatpush1.bf16.msra.mxu0 0
  %3607 = vmatprep.subr.bf16.mxu0 0
  %3608 = vmatpush1.bf16.msra.mxu0 0
  %3609 = vmatprep.subr.bf16.mxu0 0
  %3610 = vmatpush1.bf16.msra.mxu0 0
  %3611 = vmatprep.subr.bf16.mxu0 0
  %3612 = vmatpush1.bf16.msra.mxu0 0
  %3613 = vmatprep.subr.bf16.mxu0 0
  %3614 = vmatpush1.bf16.msra.mxu0 0
  %3615 = vmatprep.subr.bf16.mxu0 0
  %3616 = vmatpush1.bf16.msra.mxu0 0
  %3617 = vmatprep.subr.bf16.mxu0 0
  %3618 = vmatpush1.bf16.msra.mxu0 0
  %3619 = vmatprep.subr.bf16.mxu0 0
  %3620 = vmatpush1.bf16.msra.mxu0 0
  %3621 = vmatprep.subr.bf16.mxu0 0
  %3622 = vmatpush1.bf16.msra.mxu0 0
  %3623 = vmatprep.subr.bf16.mxu0 0
  %3624 = vmatpush1.bf16.msra.mxu0 0
  %3625 = vmatprep.subr.bf16.mxu0 0
  %3626 = vmatpush1.bf16.msra.mxu0 0
  %3627 = vmatprep.mubr.bf16.mxu0 0
  %3628 = vmatmul.mubr.bf16.gmra.mrb[0].mxu0 %v509
  %v3629 = vpop.f32.mrb[0].mxu0
  %v3630 = vadd.f32 0.0, %v3629
  %v3631 = vpop.f32.mrb[0].mxu0
  %v3632 = vpop.f32.mrb[0].mxu0
  %v3633 = vadd.f32 0.0, %v3632
  %v3634 = vpop.f32.mrb[0].mxu0
  %3635 = vdwg.mxu0
  %v3636 = vmul.bf16 %v3593, %v3593
  %v3637 = vmul.bf16 %v3594, %v3594
  %3638 = vmatprep.subr.bf16.mxu0 0
  %3639 = vmatpush1.bf16.msra.mxu0 %v3636
  %3640 = vmatprep.subr.bf16.mxu0 0
  %3641 = vmatpush1.bf16.msra.mxu0 %v3637
  %3642 = vmatprep.subr.bf16.mxu0 0
  %3643 = vmatpush1.bf16.msra.mxu0 0
  %3644 = vmatprep.subr.bf16.mxu0 0
  %3645 = vmatpush1.bf16.msra.mxu0 0
  %3646 = vmatprep.subr.bf16.mxu0 0
  %3647 = vmatpush1.bf16.msra.mxu0 0
  %3648 = vmatprep.subr.bf16.mxu0 0
  %3649 = vmatpush1.bf16.msra.mxu0 0
  %3650 = vmatprep.subr.bf16.mxu0 0
  %3651 = vmatpush1.bf16.msra.mxu0 0
  %3652 = vmatprep.subr.bf16.mxu0 0
  %3653 = vmatpush1.bf16.msra.mxu0 0
  %3654 = vmatprep.subr.bf16.mxu0 0
  %3655 = vmatpush1.bf16.msra.mxu0 0
  %3656 = vmatprep.subr.bf16.mxu0 0
  %3657 = vmatpush1.bf16.msra.mxu0 0
  %3658 = vmatprep.subr.bf16.mxu0 0
  %3659 = vmatpush1.bf16.msra.mxu0 0
  %3660 = vmatprep.subr.bf16.mxu0 0
  %3661 = vmatpush1.bf16.msra.mxu0 0
  %3662 = vmatprep.subr.bf16.mxu0 0
  %3663 = vmatpush1.bf16.msra.mxu0 0
  %3664 = vmatprep.subr.bf16.mxu0 0
  %3665 = vmatpush1.bf16.msra.mxu0 0
  %3666 = vmatprep.subr.bf16.mxu0 0
  %3667 = vmatpush1.bf16.msra.mxu0 0
  %3668 = vmatprep.subr.bf16.mxu0 0
  %3669 = vmatpush1.bf16.msra.mxu0 0
  %3670 = vmatprep.mubr.bf16.mxu0 0
  %3671 = vmatmul.mubr.bf16.gmra.mrb[0].mxu0 %v509
  %v3672 = vpop.f32.mrb[0].mxu0
  %v3673 = vadd.f32 0.0, %v3672
  %v3674 = vpop.f32.mrb[0].mxu0
  %v3675 = vpop.f32.mrb[0].mxu0
  %v3676 = vadd.f32 0.0, %v3675
  %v3677 = vpop.f32.mrb[0].mxu0
  %3678 = vdwg.mxu0
  %v3679 = vmul.f32 %v3630, %v605
  %v3680 = vmul.f32 %v3633, %v607
  %v3681 = vmul.f32 %v3673, %v605
  %v3682 = vmul.f32 %v3676, %v607
  %v3683 = vmul.f32 %v3679, %v3679
  %v3684 = vmul.f32 %v3680, %v3680
  %v3685 = vsub.f32 %v3681, %v3683
  %v3686 = vsub.f32 %v3682, %v3684
  %v3687 = vmax.f32 %v3685, 0.0
  %v3688 = vmax.f32 %v3686, 0.0
  %v3689 = vadd.f32 %v3687, 1e-30
  %v3690 = vadd.f32 %v3688, 1e-30
  %v3691 = vrsqrt.pop %v3689
  %v3692 = vmul.f32 %v3689, %v3691
  %vm3693 = vcmp.eq.f32.partialorder %v3689, inf
  %v3694 = vsel %vm3693, %v3689, %v3692
  %vm3695 = vcmp.eq.f32.partialorder %v3689, 0.0
  %v3696 = vand.u32 %v3689, 2147483648
  %v3697 = vsel %vm3695, %v3696, %v3694
  %v3698 = vrsqrt.pop %v3690
  %v3699 = vmul.f32 %v3690, %v3698
  %vm3700 = vcmp.eq.f32.partialorder %v3690, inf
  %v3701 = vsel %vm3700, %v3690, %v3699
  %vm3702 = vcmp.eq.f32.partialorder %v3690, 0.0
  %v3703 = vand.u32 %v3690, 2147483648
  %v3704 = vsel %vm3702, %v3703, %v3701
  %v3705 = vadd.f32 %v3589, %v820
  %v3706 = vadd.f32 %v3590, %v821
  %v3707 = vadd.f32 %v3591, %v822
  %v3708 = vadd.f32 %v3592, %v823
  %v3709 = vadd.f32 %v3589, %v824
  %v3710 = vadd.f32 %v3590, %v825
  %v3711 = vadd.f32 %v3591, %v826
  %v3712 = vadd.f32 %v3592, %v827
  %v3713 = vadd.f32 %v3589, %v828
  %v3714 = vadd.f32 %v3590, %v829
  %v3715 = vadd.f32 %v3591, %v830
  %v3716 = vadd.f32 %v3592, %v831
  %v3717 = vadd.f32 %v3589, %v832
  %v3718 = vadd.f32 %v3590, %v833
  %v3719 = vadd.f32 %v3591, %v834
  %v3720 = vadd.f32 %v3592, %v835
  %v3721 = vadd.f32 %v3589, %v836
  %v3722 = vadd.f32 %v3590, %v837
  %v3723 = vadd.f32 %v3591, %v838
  %v3724 = vadd.f32 %v3592, %v839
  %v3725 = vadd.f32 %v3589, %v840
  %v3726 = vadd.f32 %v3590, %v841
  %v3727 = vadd.f32 %v3591, %v842
  %v3728 = vadd.f32 %v3592, %v843
  %v3729 = vadd.f32 %v3589, %v844
  %v3730 = vadd.f32 %v3590, %v845
  %v3731 = vadd.f32 %v3591, %v846
  %v3732 = vadd.f32 %v3592, %v847
  %v3733 = vadd.f32 %v3589, %v848
  %v3734 = vadd.f32 %v3590, %v849
  %v3735 = vadd.f32 %v3591, %v850
  %v3736 = vadd.f32 %v3592, %v851
  %v3737 = vadd.f32 %v3589, %v852
  %v3738 = vadd.f32 %v3590, %v853
  %v3739 = vadd.f32 %v3591, %v854
  %v3740 = vadd.f32 %v3592, %v855
  %v3741 = vadd.f32 %v3589, %v856
  %v3742 = vadd.f32 %v3590, %v857
  %v3743 = vadd.f32 %v3591, %v858
  %v3744 = vadd.f32 %v3592, %v859
  %v3745 = vadd.f32 %v3589, %v860
  %v3746 = vadd.f32 %v3590, %v861
  %v3747 = vadd.f32 %v3591, %v862
  %v3748 = vadd.f32 %v3592, %v863
  %v3749 = vadd.f32 %v3589, %v864
  %v3750 = vadd.f32 %v3590, %v865
  %v3751 = vadd.f32 %v3591, %v866
  %v3752 = vadd.f32 %v3592, %v867
  %v3753 = vadd.f32 %v3589, %v868
  %v3754 = vadd.f32 %v3590, %v869
  %v3755 = vadd.f32 %v3591, %v870
  %v3756 = vadd.f32 %v3592, %v871
  %v3757 = vadd.f32 %v3589, %v872
  %v3758 = vadd.f32 %v3590, %v873
  %v3759 = vadd.f32 %v3591, %v874
  %v3760 = vadd.f32 %v3592, %v875
  %v3761 = vadd.f32 %v3589, %v876
  %v3762 = vadd.f32 %v3590, %v877
  %v3763 = vadd.f32 %v3591, %v878
  %v3764 = vadd.f32 %v3592, %v879
  %v3765 = vadd.f32 %v3589, %v880
  %v3766 = vadd.f32 %v3590, %v881
  %v3767 = vadd.f32 %v3591, %v882
  %v3768 = vadd.f32 %v3592, %v883
  %v3769 = vsel %vm194, %v3705, -inf
  %v3770 = vsel %vm194, %v3706, -inf
  %v3771 = vmax.f32 %v3769, %v3770
  %v3772 = vsel %vm194, %v3707, -inf
  %v3773 = vmax.f32 %v3771, %v3772
  %v3774 = vsel %vm194, %v3708, -inf
  %v3775 = vmax.f32 %v3773, %v3774
  %v3776 = vrot.slane %v3775, 4
  %v3777 = vmax.f32 %v3775, %v3776
  %v3778 = vrot.slane %v3777, 2
  %v3779 = vmax.f32 %v3777, %v3778
  %v3780 = vrot.slane %v3779, 1
  %v3781 = vmax.f32 %v3779, %v3780
  %v3782 = vsel %vm194, %v3709, -inf
  %v3783 = vsel %vm194, %v3710, -inf
  %v3784 = vmax.f32 %v3782, %v3783
  %v3785 = vsel %vm194, %v3711, -inf
  %v3786 = vmax.f32 %v3784, %v3785
  %v3787 = vsel %vm194, %v3712, -inf
  %v3788 = vmax.f32 %v3786, %v3787
  %v3789 = vrot.slane %v3788, 4
  %v3790 = vmax.f32 %v3788, %v3789
  %v3791 = vrot.slane %v3790, 2
  %v3792 = vmax.f32 %v3790, %v3791
  %v3793 = vrot.slane %v3792, 1
  %v3794 = vmax.f32 %v3792, %v3793
  %v3795 = vsel %vm194, %v3713, -inf
  %v3796 = vsel %vm194, %v3714, -inf
  %v3797 = vmax.f32 %v3795, %v3796
  %v3798 = vsel %vm194, %v3715, -inf
  %v3799 = vmax.f32 %v3797, %v3798
  %v3800 = vsel %vm194, %v3716, -inf
  %v3801 = vmax.f32 %v3799, %v3800
  %v3802 = vrot.slane %v3801, 4
  %v3803 = vmax.f32 %v3801, %v3802
  %v3804 = vrot.slane %v3803, 2
  %v3805 = vmax.f32 %v3803, %v3804
  %v3806 = vrot.slane %v3805, 1
  %v3807 = vmax.f32 %v3805, %v3806
  %v3808 = vsel %vm194, %v3717, -inf
  %v3809 = vsel %vm194, %v3718, -inf
  %v3810 = vmax.f32 %v3808, %v3809
  %v3811 = vsel %vm194, %v3719, -inf
  %v3812 = vmax.f32 %v3810, %v3811
  %v3813 = vsel %vm194, %v3720, -inf
  %v3814 = vmax.f32 %v3812, %v3813
  %v3815 = vrot.slane %v3814, 4
  %v3816 = vmax.f32 %v3814, %v3815
  %v3817 = vrot.slane %v3816, 2
  %v3818 = vmax.f32 %v3816, %v3817
  %v3819 = vrot.slane %v3818, 1
  %v3820 = vmax.f32 %v3818, %v3819
  %v3821 = vsel %vm194, %v3721, -inf
  %v3822 = vsel %vm194, %v3722, -inf
  %v3823 = vmax.f32 %v3821, %v3822
  %v3824 = vsel %vm194, %v3723, -inf
  %v3825 = vmax.f32 %v3823, %v3824
  %v3826 = vsel %vm194, %v3724, -inf
  %v3827 = vmax.f32 %v3825, %v3826
  %v3828 = vrot.slane %v3827, 4
  %v3829 = vmax.f32 %v3827, %v3828
  %v3830 = vrot.slane %v3829, 2
  %v3831 = vmax.f32 %v3829, %v3830
  %v3832 = vrot.slane %v3831, 1
  %v3833 = vmax.f32 %v3831, %v3832
  %v3834 = vsel %vm194, %v3725, -inf
  %v3835 = vsel %vm194, %v3726, -inf
  %v3836 = vmax.f32 %v3834, %v3835
  %v3837 = vsel %vm194, %v3727, -inf
  %v3838 = vmax.f32 %v3836, %v3837
  %v3839 = vsel %vm194, %v3728, -inf
  %v3840 = vmax.f32 %v3838, %v3839
  %v3841 = vrot.slane %v3840, 4
  %v3842 = vmax.f32 %v3840, %v3841
  %v3843 = vrot.slane %v3842, 2
  %v3844 = vmax.f32 %v3842, %v3843
  %v3845 = vrot.slane %v3844, 1
  %v3846 = vmax.f32 %v3844, %v3845
  %v3847 = vsel %vm194, %v3729, -inf
  %v3848 = vsel %vm194, %v3730, -inf
  %v3849 = vmax.f32 %v3847, %v3848
  %v3850 = vsel %vm194, %v3731, -inf
  %v3851 = vmax.f32 %v3849, %v3850
  %v3852 = vsel %vm194, %v3732, -inf
  %v3853 = vmax.f32 %v3851, %v3852
  %v3854 = vrot.slane %v3853, 4
  %v3855 = vmax.f32 %v3853, %v3854
  %v3856 = vrot.slane %v3855, 2
  %v3857 = vmax.f32 %v3855, %v3856
  %v3858 = vrot.slane %v3857, 1
  %v3859 = vmax.f32 %v3857, %v3858
  %v3860 = vsel %vm194, %v3733, -inf
  %v3861 = vsel %vm194, %v3734, -inf
  %v3862 = vmax.f32 %v3860, %v3861
  %v3863 = vsel %vm194, %v3735, -inf
  %v3864 = vmax.f32 %v3862, %v3863
  %v3865 = vsel %vm194, %v3736, -inf
  %v3866 = vmax.f32 %v3864, %v3865
  %v3867 = vrot.slane %v3866, 4
  %v3868 = vmax.f32 %v3866, %v3867
  %v3869 = vrot.slane %v3868, 2
  %v3870 = vmax.f32 %v3868, %v3869
  %v3871 = vrot.slane %v3870, 1
  %v3872 = vmax.f32 %v3870, %v3871
  %v3873 = vsel %vm194, %v3737, -inf
  %v3874 = vsel %vm194, %v3738, -inf
  %v3875 = vmax.f32 %v3873, %v3874
  %v3876 = vsel %vm194, %v3739, -inf
  %v3877 = vmax.f32 %v3875, %v3876
  %v3878 = vsel %vm194, %v3740, -inf
  %v3879 = vmax.f32 %v3877, %v3878
  %v3880 = vrot.slane %v3879, 4
  %v3881 = vmax.f32 %v3879, %v3880
  %v3882 = vrot.slane %v3881, 2
  %v3883 = vmax.f32 %v3881, %v3882
  %v3884 = vrot.slane %v3883, 1
  %v3885 = vmax.f32 %v3883, %v3884
  %v3886 = vsel %vm194, %v3741, -inf
  %v3887 = vsel %vm194, %v3742, -inf
  %v3888 = vmax.f32 %v3886, %v3887
  %v3889 = vsel %vm194, %v3743, -inf
  %v3890 = vmax.f32 %v3888, %v3889
  %v3891 = vsel %vm194, %v3744, -inf
  %v3892 = vmax.f32 %v3890, %v3891
  %v3893 = vrot.slane %v3892, 4
  %v3894 = vmax.f32 %v3892, %v3893
  %v3895 = vrot.slane %v3894, 2
  %v3896 = vmax.f32 %v3894, %v3895
  %v3897 = vrot.slane %v3896, 1
  %v3898 = vmax.f32 %v3896, %v3897
  %v3899 = vsel %vm194, %v3745, -inf
  %v3900 = vsel %vm194, %v3746, -inf
  %v3901 = vmax.f32 %v3899, %v3900
  %v3902 = vsel %vm194, %v3747, -inf
  %v3903 = vmax.f32 %v3901, %v3902
  %v3904 = vsel %vm194, %v3748, -inf
  %v3905 = vmax.f32 %v3903, %v3904
  %v3906 = vrot.slane %v3905, 4
  %v3907 = vmax.f32 %v3905, %v3906
  %v3908 = vrot.slane %v3907, 2
  %v3909 = vmax.f32 %v3907, %v3908
  %v3910 = vrot.slane %v3909, 1
  %v3911 = vmax.f32 %v3909, %v3910
  %v3912 = vsel %vm194, %v3749, -inf
  %v3913 = vsel %vm194, %v3750, -inf
  %v3914 = vmax.f32 %v3912, %v3913
  %v3915 = vsel %vm194, %v3751, -inf
  %v3916 = vmax.f32 %v3914, %v3915
  %v3917 = vsel %vm194, %v3752, -inf
  %v3918 = vmax.f32 %v3916, %v3917
  %v3919 = vrot.slane %v3918, 4
  %v3920 = vmax.f32 %v3918, %v3919
  %v3921 = vrot.slane %v3920, 2
  %v3922 = vmax.f32 %v3920, %v3921
  %v3923 = vrot.slane %v3922, 1
  %v3924 = vmax.f32 %v3922, %v3923
  %v3925 = vsel %vm194, %v3753, -inf
  %v3926 = vsel %vm194, %v3754, -inf
  %v3927 = vmax.f32 %v3925, %v3926
  %v3928 = vsel %vm194, %v3755, -inf
  %v3929 = vmax.f32 %v3927, %v3928
  %v3930 = vsel %vm194, %v3756, -inf
  %v3931 = vmax.f32 %v3929, %v3930
  %v3932 = vrot.slane %v3931, 4
  %v3933 = vmax.f32 %v3931, %v3932
  %v3934 = vrot.slane %v3933, 2
  %v3935 = vmax.f32 %v3933, %v3934
  %v3936 = vrot.slane %v3935, 1
  %v3937 = vmax.f32 %v3935, %v3936
  %v3938 = vsel %vm194, %v3757, -inf
  %v3939 = vsel %vm194, %v3758, -inf
  %v3940 = vmax.f32 %v3938, %v3939
  %v3941 = vsel %vm194, %v3759, -inf
  %v3942 = vmax.f32 %v3940, %v3941
  %v3943 = vsel %vm194, %v3760, -inf
  %v3944 = vmax.f32 %v3942, %v3943
  %v3945 = vrot.slane %v3944, 4
  %v3946 = vmax.f32 %v3944, %v3945
  %v3947 = vrot.slane %v3946, 2
  %v3948 = vmax.f32 %v3946, %v3947
  %v3949 = vrot.slane %v3948, 1
  %v3950 = vmax.f32 %v3948, %v3949
  %v3951 = vsel %vm194, %v3761, -inf
  %v3952 = vsel %vm194, %v3762, -inf
  %v3953 = vmax.f32 %v3951, %v3952
  %v3954 = vsel %vm194, %v3763, -inf
  %v3955 = vmax.f32 %v3953, %v3954
  %v3956 = vsel %vm194, %v3764, -inf
  %v3957 = vmax.f32 %v3955, %v3956
  %v3958 = vrot.slane %v3957, 4
  %v3959 = vmax.f32 %v3957, %v3958
  %v3960 = vrot.slane %v3959, 2
  %v3961 = vmax.f32 %v3959, %v3960
  %v3962 = vrot.slane %v3961, 1
  %v3963 = vmax.f32 %v3961, %v3962
  %v3964 = vsel %vm194, %v3765, -inf
  %v3965 = vsel %vm194, %v3766, -inf
  %v3966 = vmax.f32 %v3964, %v3965
  %v3967 = vsel %vm194, %v3767, -inf
  %v3968 = vmax.f32 %v3966, %v3967
  %v3969 = vsel %vm194, %v3768, -inf
  %v3970 = vmax.f32 %v3968, %v3969
  %v3971 = vrot.slane %v3970, 4
  %v3972 = vmax.f32 %v3970, %v3971
  %v3973 = vrot.slane %v3972, 2
  %v3974 = vmax.f32 %v3972, %v3973
  %v3975 = vrot.slane %v3974, 1
  %v3976 = vmax.f32 %v3974, %v3975
  %v3977 = vmul.f32 %v3679, %v1159
  %v3978 = vmul.f32 %v3680, %v1164
  %v3979 = vmul.f32 %v3781, %v1159
  %v3980 = vmul.f32 %v3794, %v1168
  %v3981 = vmul.f32 %v3807, %v1169
  %v3982 = vmul.f32 %v3820, %v1170
  %v3983 = vmul.f32 %v3833, %v1171
  %v3984 = vmul.f32 %v3846, %v1172
  %v3985 = vmul.f32 %v3859, %v1173
  %v3986 = vmul.f32 %v3872, %v1174
  %v3987 = vmul.f32 %v3885, %v1164
  %v3988 = vmul.f32 %v3898, %v1175
  %v3989 = vmul.f32 %v3911, %v1176
  %v3990 = vmul.f32 %v3924, %v1177
  %v3991 = vmul.f32 %v3937, %v1178
  %v3992 = vmul.f32 %v3950, %v1179
  %v3993 = vmul.f32 %v3963, %v1180
  %v3994 = vmul.f32 %v3976, %v1181
  %v3995 = vmul.f32 %v3630, %v1159
  %v3996 = vmul.f32 %v3633, %v1164
  %v3997 = vmul.f32 %v3697, %v1159
  %v3998 = vmul.f32 %v3704, %v1164
  %v3999 = vld [vmem:[%s8 + $0x498] sm:$0xff]
  %v4000 = vld [vmem:[%s8 + $0x4a0] sm:$0xff]
  %v4001 = vld [vmem:[%s8 + $0x4a8] sm:$0xff]
  %v4002 = vld [vmem:[%s8 + $0x4b0] sm:$0xff]
  %v4003 = vld [vmem:[%s8 + $0x4b8] sm:$0xff]
  %v4004 = vld [vmem:[%s8 + $0x4c0] sm:$0xff]
  %v4005 = vld [vmem:[%s8 + $0x4c8] sm:$0xff]
  %v4006 = vld [vmem:[%s8 + $0x4d0] sm:$0xff]
  %v4007 = vld [vmem:[%s8 + $0x4d8] sm:$0xff]
  %v4008 = vld [vmem:[%s8 + $0x4e0] sm:$0xff]
  %v4009 = vld [vmem:[%s8 + $0x4e8] sm:$0xff]
  %v4010 = vld [vmem:[%s8 + $0x4f0] sm:$0xff]
  %v4011 = vld [vmem:[%s8 + $0x4f8] sm:$0xff]
  %v4012 = vld [vmem:[%s8 + $0x500] sm:$0xff]
  %v4013 = vld [vmem:[%s8 + $0x508] sm:$0xff]
  %v4014 = vld [vmem:[%s8 + $0x510] sm:$0xff]
  %v4016 = vsel %vm194, %v3977, 0
  %v4019 = vsel %vm194, %v3978, 0
  %4021 = vmatprep.subr.mxu0 0.0
  %4022 = vmatpush1.msra.mxu0 %v4007
  %4023 = vmatprep.subr.mxu0 0.0
  %4024 = vmatpush1.msra.mxu0 %v4008
  %4025 = vmatprep.subr.mxu0 0.0
  %4026 = vmatpush1.msra.mxu0 %v4009
  %4027 = vmatprep.subr.mxu0 0.0
  %4028 = vmatpush1.msra.mxu0 %v4010
  %4029 = vmatprep.subr.mxu0 0.0
  %4030 = vmatpush1.msra.mxu0 %v4011
  %4031 = vmatprep.subr.mxu0 0.0
  %4032 = vmatpush1.msra.mxu0 %v4012
  %4033 = vmatprep.subr.mxu0 0.0
  %4034 = vmatpush1.msra.mxu0 %v4013
  %4035 = vmatprep.subr.mxu0 0.0
  %4036 = vmatpush1.msra.mxu0 %v4014
  %4037 = vmatprep.subr.mxu0 0.0
  %4038 = vmatpush1.msra.mxu0 0.0
  %4039 = vmatprep.subr.mxu0 0.0
  %4040 = vmatpush1.msra.mxu0 0.0
  %4041 = vmatprep.subr.mxu0 0.0
  %4042 = vmatpush1.msra.mxu0 0.0
  %4043 = vmatprep.subr.mxu0 0.0
  %4044 = vmatpush1.msra.mxu0 0.0
  %4045 = vmatprep.subr.mxu0 0.0
  %4046 = vmatpush1.msra.mxu0 0.0
  %4047 = vmatprep.subr.mxu0 0.0
  %4048 = vmatpush1.msra.mxu0 0.0
  %4049 = vmatprep.subr.mxu0 0.0
  %4050 = vmatpush1.msra.mxu0 0.0
  %4051 = vmatprep.subr.mxu0 0.0
  %4052 = vmatpush1.msra.mxu0 0.0
  %4053 = vmatprep.subr.mxu0 0.0
  %4054 = vmatpush1.msra.mxu0 0.0
  %4055 = vmatprep.subr.mxu0 0.0
  %4056 = vmatpush1.msra.mxu0 0.0
  %4057 = vmatprep.subr.mxu0 0.0
  %4058 = vmatpush1.msra.mxu0 0.0
  %4059 = vmatprep.subr.mxu0 0.0
  %4060 = vmatpush1.msra.mxu0 0.0
  %4061 = vmatprep.subr.mxu0 0.0
  %4062 = vmatpush1.msra.mxu0 0.0
  %4063 = vmatprep.subr.mxu0 0.0
  %4064 = vmatpush1.msra.mxu0 0.0
  %4065 = vmatprep.subr.mxu0 0.0
  %4066 = vmatpush1.msra.mxu0 0.0
  %4067 = vmatprep.subr.mxu0 0.0
  %4068 = vmatpush1.msra.mxu0 0.0
  %4069 = vmatprep.subr.mxu0 0.0
  %4070 = vmatpush1.msra.mxu0 0.0
  %4071 = vmatprep.subr.mxu0 0.0
  %4072 = vmatpush1.msra.mxu0 0.0
  %4073 = vmatprep.subr.mxu0 0.0
  %4074 = vmatpush1.msra.mxu0 0.0
  %4075 = vmatprep.subr.mxu0 0.0
  %4076 = vmatpush1.msra.mxu0 0.0
  %4077 = vmatprep.subr.mxu0 0.0
  %4078 = vmatpush1.msra.mxu0 0.0
  %4079 = vmatprep.subr.mxu0 0.0
  %4080 = vmatpush1.msra.mxu0 0.0
  %4081 = vmatprep.subr.mxu0 0.0
  %4082 = vmatpush1.msra.mxu0 0.0
  %4083 = vmatprep.subr.mxu0 0.0
  %4084 = vmatpush1.msra.mxu0 0.0
  %4085 = vmatprep.mubr.f32.mxu0 0.0
  %4086 = vmatmul.mubr.f32.gmra.mrb[0].mxu0 %v4016
  %v4087 = vpop.f32.mrb[0].mxu0
  %v4088 = vadd.f32 0.0, %v4087
  %v4089 = vpop.f32.mrb[0].mxu0
  %4090 = vmatprep.mubr.f32.mxu0 0.0
  %4091 = vmatmul.mubr.f32.gmra.mrb[0].mxu0 %v4019
  %v4092 = vpop.f32.mrb[0].mxu0
  %v4093 = vadd.f32 0.0, %v4092
  %v4094 = vpop.f32.mrb[0].mxu0
  %4095 = vdwg.mxu0
  %v4097 = vsel %vm194, %v3217, 0
  %v4100 = vsel %vm194, %v3218, 0
  %4102 = vmatprep.subr.mxu0 0.0
  %4103 = vmatpush1.msra.mxu0 %v3999
  %4104 = vmatprep.subr.mxu0 0.0
  %4105 = vmatpush1.msra.mxu0 %v4000
  %4106 = vmatprep.subr.mxu0 0.0
  %4107 = vmatpush1.msra.mxu0 %v4001
  %4108 = vmatprep.subr.mxu0 0.0
  %4109 = vmatpush1.msra.mxu0 %v4002
  %4110 = vmatprep.subr.mxu0 0.0
  %4111 = vmatpush1.msra.mxu0 %v4003
  %4112 = vmatprep.subr.mxu0 0.0
  %4113 = vmatpush1.msra.mxu0 %v4004
  %4114 = vmatprep.subr.mxu0 0.0
  %4115 = vmatpush1.msra.mxu0 %v4005
  %4116 = vmatprep.subr.mxu0 0.0
  %4117 = vmatpush1.msra.mxu0 %v4006
  %4118 = vmatprep.subr.mxu0 0.0
  %4119 = vmatpush1.msra.mxu0 0.0
  %4120 = vmatprep.subr.mxu0 0.0
  %4121 = vmatpush1.msra.mxu0 0.0
  %4122 = vmatprep.subr.mxu0 0.0
  %4123 = vmatpush1.msra.mxu0 0.0
  %4124 = vmatprep.subr.mxu0 0.0
  %4125 = vmatpush1.msra.mxu0 0.0
  %4126 = vmatprep.subr.mxu0 0.0
  %4127 = vmatpush1.msra.mxu0 0.0
  %4128 = vmatprep.subr.mxu0 0.0
  %4129 = vmatpush1.msra.mxu0 0.0
  %4130 = vmatprep.subr.mxu0 0.0
  %4131 = vmatpush1.msra.mxu0 0.0
  %4132 = vmatprep.subr.mxu0 0.0
  %4133 = vmatpush1.msra.mxu0 0.0
  %4134 = vmatprep.subr.mxu0 0.0
  %4135 = vmatpush1.msra.mxu0 0.0
  %4136 = vmatprep.subr.mxu0 0.0
  %4137 = vmatpush1.msra.mxu0 0.0
  %4138 = vmatprep.subr.mxu0 0.0
  %4139 = vmatpush1.msra.mxu0 0.0
  %4140 = vmatprep.subr.mxu0 0.0
  %4141 = vmatpush1.msra.mxu0 0.0
  %4142 = vmatprep.subr.mxu0 0.0
  %4143 = vmatpush1.msra.mxu0 0.0
  %4144 = vmatprep.subr.mxu0 0.0
  %4145 = vmatpush1.msra.mxu0 0.0
  %4146 = vmatprep.subr.mxu0 0.0
  %4147 = vmatpush1.msra.mxu0 0.0
  %4148 = vmatprep.subr.mxu0 0.0
  %4149 = vmatpush1.msra.mxu0 0.0
  %4150 = vmatprep.subr.mxu0 0.0
  %4151 = vmatpush1.msra.mxu0 0.0
  %4152 = vmatprep.subr.mxu0 0.0
  %4153 = vmatpush1.msra.mxu0 0.0
  %4154 = vmatprep.subr.mxu0 0.0
  %4155 = vmatpush1.msra.mxu0 0.0
  %4156 = vmatprep.subr.mxu0 0.0
  %4157 = vmatpush1.msra.mxu0 0.0
  %4158 = vmatprep.subr.mxu0 0.0
  %4159 = vmatpush1.msra.mxu0 0.0
  %4160 = vmatprep.subr.mxu0 0.0
  %4161 = vmatpush1.msra.mxu0 0.0
  %4162 = vmatprep.subr.mxu0 0.0
  %4163 = vmatpush1.msra.mxu0 0.0
  %4164 = vmatprep.subr.mxu0 0.0
  %4165 = vmatpush1.msra.mxu0 0.0
  %4166 = vmatprep.mubr.f32.mxu0 0.0
  %4167 = vmatmul.mubr.f32.gmra.mrb[0].mxu0 %v4097
  %v4168 = vpop.f32.mrb[0].mxu0
  %v4169 = vadd.f32 %v4088, %v4168
  %v4170 = vpop.f32.mrb[0].mxu0
  %4171 = vmatprep.mubr.f32.mxu0 0.0
  %4172 = vmatmul.mubr.f32.gmra.mrb[0].mxu0 %v4100
  %v4173 = vpop.f32.mrb[0].mxu0
  %v4174 = vadd.f32 %v4093, %v4173
  %v4175 = vpop.f32.mrb[0].mxu0
  %4176 = vdwg.mxu0
  %v4177 = vld [vmem:[%s8 + $0x518] sm:$0xff]
  %v4178 = vld [vmem:[%s8 + $0x520] sm:$0xff]
  %v4179 = vld [vmem:[%s8 + $0x528] sm:$0xff]
  %v4180 = vld [vmem:[%s8 + $0x530] sm:$0xff]
  %v4181 = vld [vmem:[%s8 + $0x538] sm:$0xff]
  %v4182 = vld [vmem:[%s8 + $0x540] sm:$0xff]
  %v4183 = vld [vmem:[%s8 + $0x548] sm:$0xff]
  %v4184 = vld [vmem:[%s8 + $0x550] sm:$0xff]
  %v4201 = vrot.slane %v3980, 7
  %v4202 = vsel %vm1419, %v4201, %v3979
  %v4203 = vrot.slane %v3981, 6
  %v4204 = vsel %vm1422, %v4203, %v4202
  %v4205 = vrot.slane %v3982, 5
  %v4206 = vsel %vm1425, %v4205, %v4204
  %v4207 = vrot.slane %v3983, 4
  %v4208 = vsel %vm1428, %v4207, %v4206
  %v4209 = vrot.slane %v3984, 3
  %v4210 = vsel %vm1431, %v4209, %v4208
  %v4211 = vrot.slane %v3985, 2
  %v4212 = vsel %vm1434, %v4211, %v4210
  %v4213 = vrot.slane %v3986, 1
  %v4214 = vsel %vm1437, %v4213, %v4212
  %v4215 = vrot.slane %v3988, 7
  %v4216 = vsel %vm1419, %v4215, %v3987
  %v4217 = vrot.slane %v3989, 6
  %v4218 = vsel %vm1422, %v4217, %v4216
  %v4219 = vrot.slane %v3990, 5
  %v4220 = vsel %vm1425, %v4219, %v4218
  %v4221 = vrot.slane %v3991, 4
  %v4222 = vsel %vm1428, %v4221, %v4220
  %v4223 = vrot.slane %v3992, 3
  %v4224 = vsel %vm1431, %v4223, %v4222
  %v4225 = vrot.slane %v3993, 2
  %v4226 = vsel %vm1434, %v4225, %v4224
  %v4227 = vrot.slane %v3994, 1
  %v4228 = vsel %vm1437, %v4227, %v4226
  %v4229 = vsel %vm194, %v4214, 0
  %v4231 = vsel %vm194, %v4228, 0
  %4233 = vmatprep.subr.mxu0 0.0
  %4234 = vmatpush1.msra.mxu0 %v4177
  %4235 = vmatprep.subr.mxu0 0.0
  %4236 = vmatpush1.msra.mxu0 %v4178
  %4237 = vmatprep.subr.mxu0 0.0
  %4238 = vmatpush1.msra.mxu0 %v4179
  %4239 = vmatprep.subr.mxu0 0.0
  %4240 = vmatpush1.msra.mxu0 %v4180
  %4241 = vmatprep.subr.mxu0 0.0
  %4242 = vmatpush1.msra.mxu0 %v4181
  %4243 = vmatprep.subr.mxu0 0.0
  %4244 = vmatpush1.msra.mxu0 %v4182
  %4245 = vmatprep.subr.mxu0 0.0
  %4246 = vmatpush1.msra.mxu0 %v4183
  %4247 = vmatprep.subr.mxu0 0.0
  %4248 = vmatpush1.msra.mxu0 %v4184
  %4249 = vmatprep.subr.mxu0 0.0
  %4250 = vmatpush1.msra.mxu0 0.0
  %4251 = vmatprep.subr.mxu0 0.0
  %4252 = vmatpush1.msra.mxu0 0.0
  %4253 = vmatprep.subr.mxu0 0.0
  %4254 = vmatpush1.msra.mxu0 0.0
  %4255 = vmatprep.subr.mxu0 0.0
  %4256 = vmatpush1.msra.mxu0 0.0
  %4257 = vmatprep.subr.mxu0 0.0
  %4258 = vmatpush1.msra.mxu0 0.0
  %4259 = vmatprep.subr.mxu0 0.0
  %4260 = vmatpush1.msra.mxu0 0.0
  %4261 = vmatprep.subr.mxu0 0.0
  %4262 = vmatpush1.msra.mxu0 0.0
  %4263 = vmatprep.subr.mxu0 0.0
  %4264 = vmatpush1.msra.mxu0 0.0
  %4265 = vmatprep.subr.mxu0 0.0
  %4266 = vmatpush1.msra.mxu0 0.0
  %4267 = vmatprep.subr.mxu0 0.0
  %4268 = vmatpush1.msra.mxu0 0.0
  %4269 = vmatprep.subr.mxu0 0.0
  %4270 = vmatpush1.msra.mxu0 0.0
  %4271 = vmatprep.subr.mxu0 0.0
  %4272 = vmatpush1.msra.mxu0 0.0
  %4273 = vmatprep.subr.mxu0 0.0
  %4274 = vmatpush1.msra.mxu0 0.0
  %4275 = vmatprep.subr.mxu0 0.0
  %4276 = vmatpush1.msra.mxu0 0.0
  %4277 = vmatprep.subr.mxu0 0.0
  %4278 = vmatpush1.msra.mxu0 0.0
  %4279 = vmatprep.subr.mxu0 0.0
  %4280 = vmatpush1.msra.mxu0 0.0
  %4281 = vmatprep.subr.mxu0 0.0
  %4282 = vmatpush1.msra.mxu0 0.0
  %4283 = vmatprep.subr.mxu0 0.0
  %4284 = vmatpush1.msra.mxu0 0.0
  %4285 = vmatprep.subr.mxu0 0.0
  %4286 = vmatpush1.msra.mxu0 0.0
  %4287 = vmatprep.subr.mxu0 0.0
  %4288 = vmatpush1.msra.mxu0 0.0
  %4289 = vmatprep.subr.mxu0 0.0
  %4290 = vmatpush1.msra.mxu0 0.0
  %4291 = vmatprep.subr.mxu0 0.0
  %4292 = vmatpush1.msra.mxu0 0.0
  %4293 = vmatprep.subr.mxu0 0.0
  %4294 = vmatpush1.msra.mxu0 0.0
  %4295 = vmatprep.subr.mxu0 0.0
  %4296 = vmatpush1.msra.mxu0 0.0
  %4297 = vmatprep.mubr.f32.mxu0 0.0
  %4298 = vmatmul.mubr.f32.gmra.mrb[0].mxu0 %v4229
  %v4299 = vpop.f32.mrb[0].mxu0
  %v4300 = vadd.f32 0.0, %v4299
  %v4301 = vpop.f32.mrb[0].mxu0
  %4302 = vmatprep.mubr.f32.mxu0 0.0
  %4303 = vmatmul.mubr.f32.gmra.mrb[0].mxu0 %v4231
  %v4304 = vpop.f32.mrb[0].mxu0
  %v4305 = vadd.f32 0.0, %v4304
  %v4306 = vpop.f32.mrb[0].mxu0
  %4307 = vdwg.mxu0
  %v4308 = vadd.f32 %v4169, %v4300
  %v4309 = vadd.f32 %v4174, %v4305
  %v4310 = vld [vmem:[%s8 + $0x558] sm:$0xff]
  %v4311 = vld [vmem:[%s8 + $0x560] sm:$0xff]
  %v4312 = vld [vmem:[%s8 + $0x568] sm:$0xff]
  %v4313 = vld [vmem:[%s8 + $0x570] sm:$0xff]
  %v4314 = vld [vmem:[%s8 + $0x578] sm:$0xff]
  %v4315 = vld [vmem:[%s8 + $0x580] sm:$0xff]
  %v4316 = vld [vmem:[%s8 + $0x588] sm:$0xff]
  %v4317 = vld [vmem:[%s8 + $0x590] sm:$0xff]
  %v4319 = vsel %vm194, %v3995, 0
  %v4322 = vsel %vm194, %v3996, 0
  %4324 = vmatprep.subr.mxu0 0.0
  %4325 = vmatpush1.msra.mxu0 %v4310
  %4326 = vmatprep.subr.mxu0 0.0
  %4327 = vmatpush1.msra.mxu0 %v4311
  %4328 = vmatprep.subr.mxu0 0.0
  %4329 = vmatpush1.msra.mxu0 %v4312
  %4330 = vmatprep.subr.mxu0 0.0
  %4331 = vmatpush1.msra.mxu0 %v4313
  %4332 = vmatprep.subr.mxu0 0.0
  %4333 = vmatpush1.msra.mxu0 %v4314
  %4334 = vmatprep.subr.mxu0 0.0
  %4335 = vmatpush1.msra.mxu0 %v4315
  %4336 = vmatprep.subr.mxu0 0.0
  %4337 = vmatpush1.msra.mxu0 %v4316
  %4338 = vmatprep.subr.mxu0 0.0
  %4339 = vmatpush1.msra.mxu0 %v4317
  %4340 = vmatprep.subr.mxu0 0.0
  %4341 = vmatpush1.msra.mxu0 0.0
  %4342 = vmatprep.subr.mxu0 0.0
  %4343 = vmatpush1.msra.mxu0 0.0
  %4344 = vmatprep.subr.mxu0 0.0
  %4345 = vmatpush1.msra.mxu0 0.0
  %4346 = vmatprep.subr.mxu0 0.0
  %4347 = vmatpush1.msra.mxu0 0.0
  %4348 = vmatprep.subr.mxu0 0.0
  %4349 = vmatpush1.msra.mxu0 0.0
  %4350 = vmatprep.subr.mxu0 0.0
  %4351 = vmatpush1.msra.mxu0 0.0
  %4352 = vmatprep.subr.mxu0 0.0
  %4353 = vmatpush1.msra.mxu0 0.0
  %4354 = vmatprep.subr.mxu0 0.0
  %4355 = vmatpush1.msra.mxu0 0.0
  %4356 = vmatprep.subr.mxu0 0.0
  %4357 = vmatpush1.msra.mxu0 0.0
  %4358 = vmatprep.subr.mxu0 0.0
  %4359 = vmatpush1.msra.mxu0 0.0
  %4360 = vmatprep.subr.mxu0 0.0
  %4361 = vmatpush1.msra.mxu0 0.0
  %4362 = vmatprep.subr.mxu0 0.0
  %4363 = vmatpush1.msra.mxu0 0.0
  %4364 = vmatprep.subr.mxu0 0.0
  %4365 = vmatpush1.msra.mxu0 0.0
  %4366 = vmatprep.subr.mxu0 0.0
  %4367 = vmatpush1.msra.mxu0 0.0
  %4368 = vmatprep.subr.mxu0 0.0
  %4369 = vmatpush1.msra.mxu0 0.0
  %4370 = vmatprep.subr.mxu0 0.0
  %4371 = vmatpush1.msra.mxu0 0.0
  %4372 = vmatprep.subr.mxu0 0.0
  %4373 = vmatpush1.msra.mxu0 0.0
  %4374 = vmatprep.subr.mxu0 0.0
  %4375 = vmatpush1.msra.mxu0 0.0
  %4376 = vmatprep.subr.mxu0 0.0
  %4377 = vmatpush1.msra.mxu0 0.0
  %4378 = vmatprep.subr.mxu0 0.0
  %4379 = vmatpush1.msra.mxu0 0.0
  %4380 = vmatprep.subr.mxu0 0.0
  %4381 = vmatpush1.msra.mxu0 0.0
  %4382 = vmatprep.subr.mxu0 0.0
  %4383 = vmatpush1.msra.mxu0 0.0
  %4384 = vmatprep.subr.mxu0 0.0
  %4385 = vmatpush1.msra.mxu0 0.0
  %4386 = vmatprep.subr.mxu0 0.0
  %4387 = vmatpush1.msra.mxu0 0.0
  %4388 = vmatprep.mubr.f32.mxu0 0.0
  %4389 = vmatmul.mubr.f32.gmra.mrb[0].mxu0 %v4319
  %v4390 = vpop.f32.mrb[0].mxu0
  %v4391 = vadd.f32 0.0, %v4390
  %v4392 = vpop.f32.mrb[0].mxu0
  %4393 = vmatprep.mubr.f32.mxu0 0.0
  %4394 = vmatmul.mubr.f32.gmra.mrb[0].mxu0 %v4322
  %v4395 = vpop.f32.mrb[0].mxu0
  %v4396 = vadd.f32 0.0, %v4395
  %v4397 = vpop.f32.mrb[0].mxu0
  %4398 = vdwg.mxu0
  %v4399 = vadd.f32 %v4308, %v4391
  %v4400 = vadd.f32 %v4309, %v4396
  %v4401 = vld [vmem:[%s8 + $0x598] sm:$0xff]
  %v4402 = vld [vmem:[%s8 + $0x5a0] sm:$0xff]
  %v4403 = vld [vmem:[%s8 + $0x5a8] sm:$0xff]
  %v4404 = vld [vmem:[%s8 + $0x5b0] sm:$0xff]
  %v4405 = vld [vmem:[%s8 + $0x5b8] sm:$0xff]
  %v4406 = vld [vmem:[%s8 + $0x5c0] sm:$0xff]
  %v4407 = vld [vmem:[%s8 + $0x5c8] sm:$0xff]
  %v4408 = vld [vmem:[%s8 + $0x5d0] sm:$0xff]
  %v4410 = vsel %vm194, %v3997, 0
  %v4413 = vsel %vm194, %v3998, 0
  %4415 = vmatprep.subr.mxu0 0.0
  %4416 = vmatpush1.msra.mxu0 %v4401
  %4417 = vmatprep.subr.mxu0 0.0
  %4418 = vmatpush1.msra.mxu0 %v4402
  %4419 = vmatprep.subr.mxu0 0.0
  %4420 = vmatpush1.msra.mxu0 %v4403
  %4421 = vmatprep.subr.mxu0 0.0
  %4422 = vmatpush1.msra.mxu0 %v4404
  %4423 = vmatprep.subr.mxu0 0.0
  %4424 = vmatpush1.msra.mxu0 %v4405
  %4425 = vmatprep.subr.mxu0 0.0
  %4426 = vmatpush1.msra.mxu0 %v4406
  %4427 = vmatprep.subr.mxu0 0.0
  %4428 = vmatpush1.msra.mxu0 %v4407
  %4429 = vmatprep.subr.mxu0 0.0
  %4430 = vmatpush1.msra.mxu0 %v4408
  %4431 = vmatprep.subr.mxu0 0.0
  %4432 = vmatpush1.msra.mxu0 0.0
  %4433 = vmatprep.subr.mxu0 0.0
  %4434 = vmatpush1.msra.mxu0 0.0
  %4435 = vmatprep.subr.mxu0 0.0
  %4436 = vmatpush1.msra.mxu0 0.0
  %4437 = vmatprep.subr.mxu0 0.0
  %4438 = vmatpush1.msra.mxu0 0.0
  %4439 = vmatprep.subr.mxu0 0.0
  %4440 = vmatpush1.msra.mxu0 0.0
  %4441 = vmatprep.subr.mxu0 0.0
  %4442 = vmatpush1.msra.mxu0 0.0
  %4443 = vmatprep.subr.mxu0 0.0
  %4444 = vmatpush1.msra.mxu0 0.0
  %4445 = vmatprep.subr.mxu0 0.0
  %4446 = vmatpush1.msra.mxu0 0.0
  %4447 = vmatprep.subr.mxu0 0.0
  %4448 = vmatpush1.msra.mxu0 0.0
  %4449 = vmatprep.subr.mxu0 0.0
  %4450 = vmatpush1.msra.mxu0 0.0
  %4451 = vmatprep.subr.mxu0 0.0
  %4452 = vmatpush1.msra.mxu0 0.0
  %4453 = vmatprep.subr.mxu0 0.0
  %4454 = vmatpush1.msra.mxu0 0.0
  %4455 = vmatprep.subr.mxu0 0.0
  %4456 = vmatpush1.msra.mxu0 0.0
  %4457 = vmatprep.subr.mxu0 0.0
  %4458 = vmatpush1.msra.mxu0 0.0
  %4459 = vmatprep.subr.mxu0 0.0
  %4460 = vmatpush1.msra.mxu0 0.0
  %4461 = vmatprep.subr.mxu0 0.0
  %4462 = vmatpush1.msra.mxu0 0.0
  %4463 = vmatprep.subr.mxu0 0.0
  %4464 = vmatpush1.msra.mxu0 0.0
  %4465 = vmatprep.subr.mxu0 0.0
  %4466 = vmatpush1.msra.mxu0 0.0
  %4467 = vmatprep.subr.mxu0 0.0
  %4468 = vmatpush1.msra.mxu0 0.0
  %4469 = vmatprep.subr.mxu0 0.0
  %4470 = vmatpush1.msra.mxu0 0.0
  %4471 = vmatprep.subr.mxu0 0.0
  %4472 = vmatpush1.msra.mxu0 0.0
  %4473 = vmatprep.subr.mxu0 0.0
  %4474 = vmatpush1.msra.mxu0 0.0
  %4475 = vmatprep.subr.mxu0 0.0
  %4476 = vmatpush1.msra.mxu0 0.0
  %4477 = vmatprep.subr.mxu0 0.0
  %4478 = vmatpush1.msra.mxu0 0.0
  %4479 = vmatprep.mubr.f32.mxu0 0.0
  %4480 = vmatmul.mubr.f32.gmra.mrb[0].mxu0 %v4410
  %v4481 = vpop.f32.mrb[0].mxu0
  %v4482 = vadd.f32 0.0, %v4481
  %v4483 = vpop.f32.mrb[0].mxu0
  %4484 = vmatprep.mubr.f32.mxu0 0.0
  %4485 = vmatmul.mubr.f32.gmra.mrb[0].mxu0 %v4413
  %v4486 = vpop.f32.mrb[0].mxu0
  %v4487 = vadd.f32 0.0, %v4486
  %v4488 = vpop.f32.mrb[0].mxu0
  %4489 = vdwg.mxu0
  %v4490 = vadd.f32 %v4399, %v4482
  %v4491 = vadd.f32 %v4400, %v4487
  %v4492 = vlaneseq
  %v4493 = vshrl.u32 %v4492, 7
  %v4494 = vsub.s32 7, %v4493
  %v4495 = vrot.slane %v68, %v4494
  %v4496 = vadd.f32 %v4490, %v4495
  %v4497 = vadd.f32 %v4491, %v4495
  %v4498 = vmul.f32 %v4496, %v1725
  %v4499 = vmul.f32 %v4497, %v1730
  %v4500 = vld [vmem:[%s8 + $0x5d8] sm:$0xff]
  %v4501 = vld [vmem:[%s8 + $0x5e0] sm:$0xff]
  %v4502 = vld [vmem:[%s8 + $0x5e8] sm:$0xff]
  %v4503 = vld [vmem:[%s8 + $0x5f0] sm:$0xff]
  %v4504 = vld [vmem:[%s8 + $0x5f8] sm:$0xff]
  %v4505 = vld [vmem:[%s8 + $0x600] sm:$0xff]
  %v4506 = vld [vmem:[%s8 + $0x608] sm:$0xff]
  %v4507 = vld [vmem:[%s8 + $0x610] sm:$0xff]
  %v4508 = vlaneseq
  %v4509 = vshrl.u32 %v4508, 7
  %v4510 = vsub.s32 0, %v4509
  %v4511 = vrot.slane %v69, %v4510
  %v4513 = vsel %vm194, %v4498, 0
  %v4516 = vsel %vm194, %v4499, 0
  %4518 = vmatprep.subr.mxu0 0.0
  %4519 = vmatpush1.msra.mxu0 %v4500
  %4520 = vmatprep.subr.mxu0 0.0
  %4521 = vmatpush1.msra.mxu0 %v4501
  %4522 = vmatprep.subr.mxu0 0.0
  %4523 = vmatpush1.msra.mxu0 %v4502
  %4524 = vmatprep.subr.mxu0 0.0
  %4525 = vmatpush1.msra.mxu0 %v4503
  %4526 = vmatprep.subr.mxu0 0.0
  %4527 = vmatpush1.msra.mxu0 %v4504
  %4528 = vmatprep.subr.mxu0 0.0
  %4529 = vmatpush1.msra.mxu0 %v4505
  %4530 = vmatprep.subr.mxu0 0.0
  %4531 = vmatpush1.msra.mxu0 %v4506
  %4532 = vmatprep.subr.mxu0 0.0
  %4533 = vmatpush1.msra.mxu0 %v4507
  %4534 = vmatprep.subr.mxu0 0.0
  %4535 = vmatpush1.msra.mxu0 0.0
  %4536 = vmatprep.subr.mxu0 0.0
  %4537 = vmatpush1.msra.mxu0 0.0
  %4538 = vmatprep.subr.mxu0 0.0
  %4539 = vmatpush1.msra.mxu0 0.0
  %4540 = vmatprep.subr.mxu0 0.0
  %4541 = vmatpush1.msra.mxu0 0.0
  %4542 = vmatprep.subr.mxu0 0.0
  %4543 = vmatpush1.msra.mxu0 0.0
  %4544 = vmatprep.subr.mxu0 0.0
  %4545 = vmatpush1.msra.mxu0 0.0
  %4546 = vmatprep.subr.mxu0 0.0
  %4547 = vmatpush1.msra.mxu0 0.0
  %4548 = vmatprep.subr.mxu0 0.0
  %4549 = vmatpush1.msra.mxu0 0.0
  %4550 = vmatprep.subr.mxu0 0.0
  %4551 = vmatpush1.msra.mxu0 0.0
  %4552 = vmatprep.subr.mxu0 0.0
  %4553 = vmatpush1.msra.mxu0 0.0
  %4554 = vmatprep.subr.mxu0 0.0
  %4555 = vmatpush1.msra.mxu0 0.0
  %4556 = vmatprep.subr.mxu0 0.0
  %4557 = vmatpush1.msra.mxu0 0.0
  %4558 = vmatprep.subr.mxu0 0.0
  %4559 = vmatpush1.msra.mxu0 0.0
  %4560 = vmatprep.subr.mxu0 0.0
  %4561 = vmatpush1.msra.mxu0 0.0
  %4562 = vmatprep.subr.mxu0 0.0
  %4563 = vmatpush1.msra.mxu0 0.0
  %4564 = vmatprep.subr.mxu0 0.0
  %4565 = vmatpush1.msra.mxu0 0.0
  %4566 = vmatprep.subr.mxu0 0.0
  %4567 = vmatpush1.msra.mxu0 0.0
  %4568 = vmatprep.subr.mxu0 0.0
  %4569 = vmatpush1.msra.mxu0 0.0
  %4570 = vmatprep.subr.mxu0 0.0
  %4571 = vmatpush1.msra.mxu0 0.0
  %4572 = vmatprep.subr.mxu0 0.0
  %4573 = vmatpush1.msra.mxu0 0.0
  %4574 = vmatprep.subr.mxu0 0.0
  %4575 = vmatpush1.msra.mxu0 0.0
  %4576 = vmatprep.subr.mxu0 0.0
  %4577 = vmatpush1.msra.mxu0 0.0
  %4578 = vmatprep.subr.mxu0 0.0
  %4579 = vmatpush1.msra.mxu0 0.0
  %4580 = vmatprep.subr.mxu0 0.0
  %4581 = vmatpush1.msra.mxu0 0.0
  %4582 = vmatprep.mubr.f32.mxu0 0.0
  %4583 = vmatmul.mubr.f32.gmra.mrb[0].mxu0 %v4513
  %v4584 = vpop.f32.mrb[0].mxu0
  %v4585 = vadd.f32 %v4511, %v4584
  %v4586 = vpop.f32.mrb[0].mxu0
  %4587 = vmatprep.mubr.f32.mxu0 0.0
  %4588 = vmatmul.mubr.f32.gmra.mrb[0].mxu0 %v4516
  %v4589 = vpop.f32.mrb[0].mxu0
  %v4590 = vadd.f32 %v4511, %v4589
  %v4591 = vpop.f32.mrb[0].mxu0
  %4592 = vdwg.mxu0
  %vm4593 = vcmp.gt.f32.partialorder %v4585, 0.0
  %vm4594 = vcmp.gt.f32.partialorder %v4590, 0.0
  %v4595 = vmul.f32 %v4585, 0.01
  %v4596 = vmul.f32 %v4590, 0.01
  %v4597 = vsel %vm4593, %v4585, %v4595
  %v4598 = vsel %vm4594, %v4590, %v4596
  %v4599 = vmax.f32 %v4597, 0.0
  %v4600 = vmax.f32 %v4598, 0.0
  %v4601 = vld [vmem:[%s1] sm:$0xff]
  %v4602 = vld [vmem:[%s1 + $0x8] sm:$0xff]
  %4604 = vset.pattern.permute.xlu0 0
  %4605 = vperm.xlu0 %4604, %v4601
  %v4606 = vpop.permute.xlu0 %4605
  %4609 = vset.pattern.permute.xlu0 0
  %4610 = vperm.xlu0 %4609, %v4602
  %v4611 = vpop.permute.xlu0 %4610
  %v4613 = vmul.f32 %v4606, %v78
  %v4614 = vmul.f32 %v4611, %v78
  %v4615 = vadd.f32 %v4599, %v4613
  %v4616 = vadd.f32 %v4600, %v4614
  %v4617 = vpack.c.bf16 %v4616, %v4615
  %4618 = vmatprep.subr.bf16.mxu0 0
  %4619 = vmatpush1.bf16.msra.mxu0 %v4617
  %4620 = vmatprep.subr.bf16.mxu0 0
  %4621 = vmatpush1.bf16.msra.mxu0 0
  %4622 = vmatprep.subr.bf16.mxu0 0
  %4623 = vmatpush1.bf16.msra.mxu0 0
  %4624 = vmatprep.subr.bf16.mxu0 0
  %4625 = vmatpush1.bf16.msra.mxu0 0
  %4626 = vmatprep.subr.bf16.mxu0 0
  %4627 = vmatpush1.bf16.msra.mxu0 0
  %4628 = vmatprep.subr.bf16.mxu0 0
  %4629 = vmatpush1.bf16.msra.mxu0 0
  %4630 = vmatprep.subr.bf16.mxu0 0
  %4631 = vmatpush1.bf16.msra.mxu0 0
  %4632 = vmatprep.subr.bf16.mxu0 0
  %4633 = vmatpush1.bf16.msra.mxu0 0
  %4634 = vmatprep.subr.bf16.mxu0 0
  %4635 = vmatpush1.bf16.msra.mxu0 0
  %4636 = vmatprep.subr.bf16.mxu0 0
  %4637 = vmatpush1.bf16.msra.mxu0 0
  %4638 = vmatprep.subr.bf16.mxu0 0
  %4639 = vmatpush1.bf16.msra.mxu0 0
  %4640 = vmatprep.subr.bf16.mxu0 0
  %4641 = vmatpush1.bf16.msra.mxu0 0
  %4642 = vmatprep.subr.bf16.mxu0 0
  %4643 = vmatpush1.bf16.msra.mxu0 0
  %4644 = vmatprep.subr.bf16.mxu0 0
  %4645 = vmatpush1.bf16.msra.mxu0 0
  %4646 = vmatprep.subr.bf16.mxu0 0
  %4647 = vmatpush1.bf16.msra.mxu0 0
  %4648 = vmatprep.subr.bf16.mxu0 0
  %4649 = vmatpush1.bf16.msra.mxu0 0
  %4650 = vmatprep.mubr.bf16.mxu0 0
  %4651 = vmatmul.mubr.bf16.gmra.mrb[0].mxu0 %v102
  %v4652 = vpop.f32.mrb[0].mxu0
  %v4653 = vadd.f32 0.0, %v4652
  %v4654 = vpop.f32.mrb[0].mxu0
  %v4655 = vpop.f32.mrb[0].mxu0
  %v4656 = vadd.f32 0.0, %v4655
  %v4657 = vpop.f32.mrb[0].mxu0
  %4658 = vmatprep.mubr.bf16.mxu0 0
  %4659 = vmatmul.mubr.bf16.gmra.mrb[0].mxu0 %v105
  %v4660 = vpop.f32.mrb[0].mxu0
  %v4661 = vadd.f32 0.0, %v4660
  %v4662 = vpop.f32.mrb[0].mxu0
  %v4663 = vpop.f32.mrb[0].mxu0
  %v4664 = vadd.f32 0.0, %v4663
  %v4665 = vpop.f32.mrb[0].mxu0
  %4666 = vmatprep.mubr.bf16.mxu0 0
  %4667 = vmatmul.mubr.bf16.gmra.mrb[0].mxu0 %v108
  %v4668 = vpop.f32.mrb[0].mxu0
  %v4669 = vadd.f32 0.0, %v4668
  %v4670 = vpop.f32.mrb[0].mxu0
  %v4671 = vpop.f32.mrb[0].mxu0
  %v4672 = vadd.f32 0.0, %v4671
  %v4673 = vpop.f32.mrb[0].mxu0
  %4674 = vmatprep.mubr.bf16.mxu0 0
  %4675 = vmatmul.mubr.bf16.gmra.mrb[0].mxu0 %v111
  %v4676 = vpop.f32.mrb[0].mxu0
  %v4677 = vadd.f32 0.0, %v4676
  %v4678 = vpop.f32.mrb[0].mxu0
  %v4679 = vpop.f32.mrb[0].mxu0
  %v4680 = vadd.f32 0.0, %v4679
  %v4681 = vpop.f32.mrb[0].mxu0
  %4682 = vdwg.mxu0
  %v4683 = vld [vmem:[%s8 + $0x618] sm:$0xff]
  %v4684 = vld [vmem:[%s8 + $0x620] sm:$0xff]
  %v4685 = vld [vmem:[%s8 + $0x628] sm:$0xff]
  %v4686 = vld [vmem:[%s8 + $0x630] sm:$0xff]
  %v4687 = vld [vmem:[%s8 + $0x638] sm:$0xff]
  %v4688 = vld [vmem:[%s8 + $0x640] sm:$0xff]
  %v4689 = vld [vmem:[%s8 + $0x648] sm:$0xff]
  %v4690 = vld [vmem:[%s8 + $0x650] sm:$0xff]
  %v4691 = vld [vmem:[%s8 + $0x658] sm:$0xff]
  %v4692 = vld [vmem:[%s8 + $0x660] sm:$0xff]
  %v4693 = vld [vmem:[%s8 + $0x668] sm:$0xff]
  %v4694 = vld [vmem:[%s8 + $0x670] sm:$0xff]
  %v4695 = vld [vmem:[%s8 + $0x678] sm:$0xff]
  %v4696 = vld [vmem:[%s8 + $0x680] sm:$0xff]
  %v4697 = vld [vmem:[%s8 + $0x688] sm:$0xff]
  %v4698 = vld [vmem:[%s8 + $0x690] sm:$0xff]
  %v4700 = vsel %vm194, %v4669, 0
  %v4703 = vsel %vm194, %v4672, 0
  %v4706 = vsel %vm194, %v4677, 0
  %v4709 = vsel %vm194, %v4680, 0
  %4711 = vmatprep.subr.mxu0 0.0
  %4712 = vmatpush1.msra.mxu0 %v4691
  %4713 = vmatprep.subr.mxu0 0.0
  %4714 = vmatpush1.msra.mxu0 %v4692
  %4715 = vmatprep.subr.mxu0 0.0
  %4716 = vmatpush1.msra.mxu0 %v4693
  %4717 = vmatprep.subr.mxu0 0.0
  %4718 = vmatpush1.msra.mxu0 %v4694
  %4719 = vmatprep.subr.mxu0 0.0
  %4720 = vmatpush1.msra.mxu0 %v4695
  %4721 = vmatprep.subr.mxu0 0.0
  %4722 = vmatpush1.msra.mxu0 %v4696
  %4723 = vmatprep.subr.mxu0 0.0
  %4724 = vmatpush1.msra.mxu0 %v4697
  %4725 = vmatprep.subr.mxu0 0.0
  %4726 = vmatpush1.msra.mxu0 %v4698
  %4727 = vmatprep.subr.mxu0 0.0
  %4728 = vmatpush1.msra.mxu0 0.0
  %4729 = vmatprep.subr.mxu0 0.0
  %4730 = vmatpush1.msra.mxu0 0.0
  %4731 = vmatprep.subr.mxu0 0.0
  %4732 = vmatpush1.msra.mxu0 0.0
  %4733 = vmatprep.subr.mxu0 0.0
  %4734 = vmatpush1.msra.mxu0 0.0
  %4735 = vmatprep.subr.mxu0 0.0
  %4736 = vmatpush1.msra.mxu0 0.0
  %4737 = vmatprep.subr.mxu0 0.0
  %4738 = vmatpush1.msra.mxu0 0.0
  %4739 = vmatprep.subr.mxu0 0.0
  %4740 = vmatpush1.msra.mxu0 0.0
  %4741 = vmatprep.subr.mxu0 0.0
  %4742 = vmatpush1.msra.mxu0 0.0
  %4743 = vmatprep.subr.mxu0 0.0
  %4744 = vmatpush1.msra.mxu0 0.0
  %4745 = vmatprep.subr.mxu0 0.0
  %4746 = vmatpush1.msra.mxu0 0.0
  %4747 = vmatprep.subr.mxu0 0.0
  %4748 = vmatpush1.msra.mxu0 0.0
  %4749 = vmatprep.subr.mxu0 0.0
  %4750 = vmatpush1.msra.mxu0 0.0
  %4751 = vmatprep.subr.mxu0 0.0
  %4752 = vmatpush1.msra.mxu0 0.0
  %4753 = vmatprep.subr.mxu0 0.0
  %4754 = vmatpush1.msra.mxu0 0.0
  %4755 = vmatprep.subr.mxu0 0.0
  %4756 = vmatpush1.msra.mxu0 0.0
  %4757 = vmatprep.subr.mxu0 0.0
  %4758 = vmatpush1.msra.mxu0 0.0
  %4759 = vmatprep.subr.mxu0 0.0
  %4760 = vmatpush1.msra.mxu0 0.0
  %4761 = vmatprep.subr.mxu0 0.0
  %4762 = vmatpush1.msra.mxu0 0.0
  %4763 = vmatprep.subr.mxu0 0.0
  %4764 = vmatpush1.msra.mxu0 0.0
  %4765 = vmatprep.subr.mxu0 0.0
  %4766 = vmatpush1.msra.mxu0 0.0
  %4767 = vmatprep.subr.mxu0 0.0
  %4768 = vmatpush1.msra.mxu0 0.0
  %4769 = vmatprep.subr.mxu0 0.0
  %4770 = vmatpush1.msra.mxu0 0.0
  %4771 = vmatprep.subr.mxu0 0.0
  %4772 = vmatpush1.msra.mxu0 0.0
  %4773 = vmatprep.subr.mxu0 0.0
  %4774 = vmatpush1.msra.mxu0 0.0
  %4775 = vmatprep.mubr.f32.mxu0 0.0
  %4776 = vmatmul.mubr.f32.gmra.mrb[0].mxu0 %v4700
  %v4777 = vpop.f32.mrb[0].mxu0
  %v4778 = vadd.f32 0.0, %v4777
  %v4779 = vpop.f32.mrb[0].mxu0
  %4780 = vmatprep.mubr.f32.mxu0 0.0
  %4781 = vmatmul.mubr.f32.gmra.mrb[0].mxu0 %v4703
  %v4782 = vpop.f32.mrb[0].mxu0
  %v4783 = vadd.f32 0.0, %v4782
  %v4784 = vpop.f32.mrb[0].mxu0
  %4785 = vmatprep.mubr.f32.mxu0 0.0
  %4786 = vmatmul.mubr.f32.gmra.mrb[0].mxu0 %v4706
  %v4787 = vpop.f32.mrb[0].mxu0
  %v4788 = vadd.f32 0.0, %v4787
  %v4789 = vpop.f32.mrb[0].mxu0
  %4790 = vmatprep.mubr.f32.mxu0 0.0
  %4791 = vmatmul.mubr.f32.gmra.mrb[0].mxu0 %v4709
  %v4792 = vpop.f32.mrb[0].mxu0
  %v4793 = vadd.f32 0.0, %v4792
  %v4794 = vpop.f32.mrb[0].mxu0
  %4795 = vdwg.mxu0
  %v4797 = vsel %vm194, %v4653, 0
  %v4800 = vsel %vm194, %v4656, 0
  %v4803 = vsel %vm194, %v4661, 0
  %v4806 = vsel %vm194, %v4664, 0
  %4808 = vmatprep.subr.mxu0 0.0
  %4809 = vmatpush1.msra.mxu0 %v4683
  %4810 = vmatprep.subr.mxu0 0.0
  %4811 = vmatpush1.msra.mxu0 %v4684
  %4812 = vmatprep.subr.mxu0 0.0
  %4813 = vmatpush1.msra.mxu0 %v4685
  %4814 = vmatprep.subr.mxu0 0.0
  %4815 = vmatpush1.msra.mxu0 %v4686
  %4816 = vmatprep.subr.mxu0 0.0
  %4817 = vmatpush1.msra.mxu0 %v4687
  %4818 = vmatprep.subr.mxu0 0.0
  %4819 = vmatpush1.msra.mxu0 %v4688
  %4820 = vmatprep.subr.mxu0 0.0
  %4821 = vmatpush1.msra.mxu0 %v4689
  %4822 = vmatprep.subr.mxu0 0.0
  %4823 = vmatpush1.msra.mxu0 %v4690
  %4824 = vmatprep.subr.mxu0 0.0
  %4825 = vmatpush1.msra.mxu0 0.0
  %4826 = vmatprep.subr.mxu0 0.0
  %4827 = vmatpush1.msra.mxu0 0.0
  %4828 = vmatprep.subr.mxu0 0.0
  %4829 = vmatpush1.msra.mxu0 0.0
  %4830 = vmatprep.subr.mxu0 0.0
  %4831 = vmatpush1.msra.mxu0 0.0
  %4832 = vmatprep.subr.mxu0 0.0
  %4833 = vmatpush1.msra.mxu0 0.0
  %4834 = vmatprep.subr.mxu0 0.0
  %4835 = vmatpush1.msra.mxu0 0.0
  %4836 = vmatprep.subr.mxu0 0.0
  %4837 = vmatpush1.msra.mxu0 0.0
  %4838 = vmatprep.subr.mxu0 0.0
  %4839 = vmatpush1.msra.mxu0 0.0
  %4840 = vmatprep.subr.mxu0 0.0
  %4841 = vmatpush1.msra.mxu0 0.0
  %4842 = vmatprep.subr.mxu0 0.0
  %4843 = vmatpush1.msra.mxu0 0.0
  %4844 = vmatprep.subr.mxu0 0.0
  %4845 = vmatpush1.msra.mxu0 0.0
  %4846 = vmatprep.subr.mxu0 0.0
  %4847 = vmatpush1.msra.mxu0 0.0
  %4848 = vmatprep.subr.mxu0 0.0
  %4849 = vmatpush1.msra.mxu0 0.0
  %4850 = vmatprep.subr.mxu0 0.0
  %4851 = vmatpush1.msra.mxu0 0.0
  %4852 = vmatprep.subr.mxu0 0.0
  %4853 = vmatpush1.msra.mxu0 0.0
  %4854 = vmatprep.subr.mxu0 0.0
  %4855 = vmatpush1.msra.mxu0 0.0
  %4856 = vmatprep.subr.mxu0 0.0
  %4857 = vmatpush1.msra.mxu0 0.0
  %4858 = vmatprep.subr.mxu0 0.0
  %4859 = vmatpush1.msra.mxu0 0.0
  %4860 = vmatprep.subr.mxu0 0.0
  %4861 = vmatpush1.msra.mxu0 0.0
  %4862 = vmatprep.subr.mxu0 0.0
  %4863 = vmatpush1.msra.mxu0 0.0
  %4864 = vmatprep.subr.mxu0 0.0
  %4865 = vmatpush1.msra.mxu0 0.0
  %4866 = vmatprep.subr.mxu0 0.0
  %4867 = vmatpush1.msra.mxu0 0.0
  %4868 = vmatprep.subr.mxu0 0.0
  %4869 = vmatpush1.msra.mxu0 0.0
  %4870 = vmatprep.subr.mxu0 0.0
  %4871 = vmatpush1.msra.mxu0 0.0
  %4872 = vmatprep.mubr.f32.mxu0 0.0
  %4873 = vmatmul.mubr.f32.gmra.mrb[0].mxu0 %v4797
  %v4874 = vpop.f32.mrb[0].mxu0
  %v4875 = vadd.f32 %v4778, %v4874
  %v4876 = vpop.f32.mrb[0].mxu0
  %4877 = vmatprep.mubr.f32.mxu0 0.0
  %4878 = vmatmul.mubr.f32.gmra.mrb[0].mxu0 %v4800
  %v4879 = vpop.f32.mrb[0].mxu0
  %v4880 = vadd.f32 %v4783, %v4879
  %v4881 = vpop.f32.mrb[0].mxu0
  %4882 = vmatprep.mubr.f32.mxu0 0.0
  %4883 = vmatmul.mubr.f32.gmra.mrb[0].mxu0 %v4803
  %v4884 = vpop.f32.mrb[0].mxu0
  %v4885 = vadd.f32 %v4788, %v4884
  %v4886 = vpop.f32.mrb[0].mxu0
  %4887 = vmatprep.mubr.f32.mxu0 0.0
  %4888 = vmatmul.mubr.f32.gmra.mrb[0].mxu0 %v4806
  %v4889 = vpop.f32.mrb[0].mxu0
  %v4890 = vadd.f32 %v4793, %v4889
  %v4891 = vpop.f32.mrb[0].mxu0
  %4892 = vdwg.mxu0
  %v4893 = vld [vmem:[%s8 + $0x698] sm:$0xff]
  %4894 = vmatprep.subr.mxu0 0.0
  %4895 = vmatpush1.msra.mxu0 %v4893
  %4896 = vmatprep.subr.mxu0 0.0
  %4897 = vmatpush1.msra.mxu0 0.0
  %4898 = vmatprep.subr.mxu0 0.0
  %4899 = vmatpush1.msra.mxu0 0.0
  %4900 = vmatprep.subr.mxu0 0.0
  %4901 = vmatpush1.msra.mxu0 0.0
  %4902 = vmatprep.subr.mxu0 0.0
  %4903 = vmatpush1.msra.mxu0 0.0
  %4904 = vmatprep.subr.mxu0 0.0
  %4905 = vmatpush1.msra.mxu0 0.0
  %4906 = vmatprep.subr.mxu0 0.0
  %4907 = vmatpush1.msra.mxu0 0.0
  %4908 = vmatprep.subr.mxu0 0.0
  %4909 = vmatpush1.msra.mxu0 0.0
  %4910 = vmatprep.subr.mxu0 0.0
  %4911 = vmatpush1.msra.mxu0 0.0
  %4912 = vmatprep.subr.mxu0 0.0
  %4913 = vmatpush1.msra.mxu0 0.0
  %4914 = vmatprep.subr.mxu0 0.0
  %4915 = vmatpush1.msra.mxu0 0.0
  %4916 = vmatprep.subr.mxu0 0.0
  %4917 = vmatpush1.msra.mxu0 0.0
  %4918 = vmatprep.subr.mxu0 0.0
  %4919 = vmatpush1.msra.mxu0 0.0
  %4920 = vmatprep.subr.mxu0 0.0
  %4921 = vmatpush1.msra.mxu0 0.0
  %4922 = vmatprep.subr.mxu0 0.0
  %4923 = vmatpush1.msra.mxu0 0.0
  %4924 = vmatprep.subr.mxu0 0.0
  %4925 = vmatpush1.msra.mxu0 0.0
  %4926 = vmatprep.subr.mxu0 0.0
  %4927 = vmatpush1.msra.mxu0 0.0
  %4928 = vmatprep.subr.mxu0 0.0
  %4929 = vmatpush1.msra.mxu0 0.0
  %4930 = vmatprep.subr.mxu0 0.0
  %4931 = vmatpush1.msra.mxu0 0.0
  %4932 = vmatprep.subr.mxu0 0.0
  %4933 = vmatpush1.msra.mxu0 0.0
  %4934 = vmatprep.subr.mxu0 0.0
  %4935 = vmatpush1.msra.mxu0 0.0
  %4936 = vmatprep.subr.mxu0 0.0
  %4937 = vmatpush1.msra.mxu0 0.0
  %4938 = vmatprep.subr.mxu0 0.0
  %4939 = vmatpush1.msra.mxu0 0.0
  %4940 = vmatprep.subr.mxu0 0.0
  %4941 = vmatpush1.msra.mxu0 0.0
  %4942 = vmatprep.subr.mxu0 0.0
  %4943 = vmatpush1.msra.mxu0 0.0
  %4944 = vmatprep.subr.mxu0 0.0
  %4945 = vmatpush1.msra.mxu0 0.0
  %4946 = vmatprep.subr.mxu0 0.0
  %4947 = vmatpush1.msra.mxu0 0.0
  %4948 = vmatprep.subr.mxu0 0.0
  %4949 = vmatpush1.msra.mxu0 0.0
  %4950 = vmatprep.subr.mxu0 0.0
  %4951 = vmatpush1.msra.mxu0 0.0
  %4952 = vmatprep.subr.mxu0 0.0
  %4953 = vmatpush1.msra.mxu0 0.0
  %4954 = vmatprep.subr.mxu0 0.0
  %4955 = vmatpush1.msra.mxu0 0.0
  %4956 = vmatprep.subr.mxu0 0.0
  %4957 = vmatpush1.msra.mxu0 0.0
  %4958 = vmatprep.mubr.f32.mxu0 0.0
  %4959 = vmatmul.mubr.f32.gmra.mrb[0].mxu0 %v392
  %v4960 = vpop.f32.mrb[0].mxu0
  %v4961 = vadd.f32 0.0, %v4960
  %v4962 = vpop.f32.mrb[0].mxu0
  %4963 = vmatprep.mubr.f32.mxu0 0.0
  %4964 = vmatmul.mubr.f32.gmra.mrb[0].mxu0 %v395
  %v4965 = vpop.f32.mrb[0].mxu0
  %v4966 = vadd.f32 0.0, %v4965
  %v4967 = vpop.f32.mrb[0].mxu0
  %4968 = vmatprep.mubr.f32.mxu0 0.0
  %4969 = vmatmul.mubr.f32.gmra.mrb[0].mxu0 %v398
  %v4970 = vpop.f32.mrb[0].mxu0
  %v4971 = vadd.f32 0.0, %v4970
  %v4972 = vpop.f32.mrb[0].mxu0
  %4973 = vmatprep.mubr.f32.mxu0 0.0
  %4974 = vmatmul.mubr.f32.gmra.mrb[0].mxu0 %v401
  %v4975 = vpop.f32.mrb[0].mxu0
  %v4976 = vadd.f32 0.0, %v4975
  %v4977 = vpop.f32.mrb[0].mxu0
  %4978 = vdwg.mxu0
  %v4979 = vadd.f32 %v4875, %v4961
  %v4980 = vadd.f32 %v4880, %v4966
  %v4981 = vadd.f32 %v4885, %v4971
  %v4982 = vadd.f32 %v4890, %v4976
  %v4983 = vlaneseq
  %v4984 = vshrl.u32 %v4983, 7
  %v4985 = vsub.s32 1, %v4984
  %v4986 = vrot.slane %v69, %v4985
  %v4987 = vadd.f32 %v4979, %v4986
  %v4988 = vadd.f32 %v4980, %v4986
  %v4989 = vadd.f32 %v4981, %v4986
  %v4990 = vadd.f32 %v4982, %v4986
  %v4991 = vpack.c.bf16 %v4988, %v4987
  %v4992 = vpack.c.bf16 %v4990, %v4989
  %4993 = vmatprep.subr.bf16.mxu0 0
  %4994 = vmatpush1.bf16.msra.mxu0 %v4991
  %4995 = vmatprep.subr.bf16.mxu0 0
  %4996 = vmatpush1.bf16.msra.mxu0 %v4992
  %4997 = vmatprep.subr.bf16.mxu0 0
  %4998 = vmatpush1.bf16.msra.mxu0 0
  %4999 = vmatprep.subr.bf16.mxu0 0
  %5000 = vmatpush1.bf16.msra.mxu0 0
  %5001 = vmatprep.subr.bf16.mxu0 0
  %5002 = vmatpush1.bf16.msra.mxu0 0
  %5003 = vmatprep.subr.bf16.mxu0 0
  %5004 = vmatpush1.bf16.msra.mxu0 0
  %5005 = vmatprep.subr.bf16.mxu0 0
  %5006 = vmatpush1.bf16.msra.mxu0 0
  %5007 = vmatprep.subr.bf16.mxu0 0
  %5008 = vmatpush1.bf16.msra.mxu0 0
  %5009 = vmatprep.subr.bf16.mxu0 0
  %5010 = vmatpush1.bf16.msra.mxu0 0
  %5011 = vmatprep.subr.bf16.mxu0 0
  %5012 = vmatpush1.bf16.msra.mxu0 0
  %5013 = vmatprep.subr.bf16.mxu0 0
  %5014 = vmatpush1.bf16.msra.mxu0 0
  %5015 = vmatprep.subr.bf16.mxu0 0
  %5016 = vmatpush1.bf16.msra.mxu0 0
  %5017 = vmatprep.subr.bf16.mxu0 0
  %5018 = vmatpush1.bf16.msra.mxu0 0
  %5019 = vmatprep.subr.bf16.mxu0 0
  %5020 = vmatpush1.bf16.msra.mxu0 0
  %5021 = vmatprep.subr.bf16.mxu0 0
  %5022 = vmatpush1.bf16.msra.mxu0 0
  %5023 = vmatprep.subr.bf16.mxu0 0
  %5024 = vmatpush1.bf16.msra.mxu0 0
  %5025 = vmatprep.mubr.bf16.mxu0 0
  %5026 = vmatmul.mubr.bf16.gmra.mrb[0].mxu0 %v509
  %v5027 = vpop.f32.mrb[0].mxu0
  %v5028 = vadd.f32 0.0, %v5027
  %v5029 = vpop.f32.mrb[0].mxu0
  %v5030 = vpop.f32.mrb[0].mxu0
  %v5031 = vadd.f32 0.0, %v5030
  %v5032 = vpop.f32.mrb[0].mxu0
  %5033 = vdwg.mxu0
  %v5034 = vmul.bf16 %v4991, %v4991
  %v5035 = vmul.bf16 %v4992, %v4992
  %5036 = vmatprep.subr.bf16.mxu0 0
  %5037 = vmatpush1.bf16.msra.mxu0 %v5034
  %5038 = vmatprep.subr.bf16.mxu0 0
  %5039 = vmatpush1.bf16.msra.mxu0 %v5035
  %5040 = vmatprep.subr.bf16.mxu0 0
  %5041 = vmatpush1.bf16.msra.mxu0 0
  %5042 = vmatprep.subr.bf16.mxu0 0
  %5043 = vmatpush1.bf16.msra.mxu0 0
  %5044 = vmatprep.subr.bf16.mxu0 0
  %5045 = vmatpush1.bf16.msra.mxu0 0
  %5046 = vmatprep.subr.bf16.mxu0 0
  %5047 = vmatpush1.bf16.msra.mxu0 0
  %5048 = vmatprep.subr.bf16.mxu0 0
  %5049 = vmatpush1.bf16.msra.mxu0 0
  %5050 = vmatprep.subr.bf16.mxu0 0
  %5051 = vmatpush1.bf16.msra.mxu0 0
  %5052 = vmatprep.subr.bf16.mxu0 0
  %5053 = vmatpush1.bf16.msra.mxu0 0
  %5054 = vmatprep.subr.bf16.mxu0 0
  %5055 = vmatpush1.bf16.msra.mxu0 0
  %5056 = vmatprep.subr.bf16.mxu0 0
  %5057 = vmatpush1.bf16.msra.mxu0 0
  %5058 = vmatprep.subr.bf16.mxu0 0
  %5059 = vmatpush1.bf16.msra.mxu0 0
  %5060 = vmatprep.subr.bf16.mxu0 0
  %5061 = vmatpush1.bf16.msra.mxu0 0
  %5062 = vmatprep.subr.bf16.mxu0 0
  %5063 = vmatpush1.bf16.msra.mxu0 0
  %5064 = vmatprep.subr.bf16.mxu0 0
  %5065 = vmatpush1.bf16.msra.mxu0 0
  %5066 = vmatprep.subr.bf16.mxu0 0
  %5067 = vmatpush1.bf16.msra.mxu0 0
  %5068 = vmatprep.mubr.bf16.mxu0 0
  %5069 = vmatmul.mubr.bf16.gmra.mrb[0].mxu0 %v509
  %v5070 = vpop.f32.mrb[0].mxu0
  %v5071 = vadd.f32 0.0, %v5070
  %v5072 = vpop.f32.mrb[0].mxu0
  %v5073 = vpop.f32.mrb[0].mxu0
  %v5074 = vadd.f32 0.0, %v5073
  %v5075 = vpop.f32.mrb[0].mxu0
  %5076 = vdwg.mxu0
  %v5077 = vmul.f32 %v5028, %v605
  %v5078 = vmul.f32 %v5031, %v607
  %v5079 = vmul.f32 %v5071, %v605
  %v5080 = vmul.f32 %v5074, %v607
  %v5081 = vmul.f32 %v5077, %v5077
  %v5082 = vmul.f32 %v5078, %v5078
  %v5083 = vsub.f32 %v5079, %v5081
  %v5084 = vsub.f32 %v5080, %v5082
  %v5085 = vmax.f32 %v5083, 0.0
  %v5086 = vmax.f32 %v5084, 0.0
  %v5087 = vadd.f32 %v5085, 1e-30
  %v5088 = vadd.f32 %v5086, 1e-30
  %v5089 = vrsqrt.pop %v5087
  %v5090 = vmul.f32 %v5087, %v5089
  %vm5091 = vcmp.eq.f32.partialorder %v5087, inf
  %v5092 = vsel %vm5091, %v5087, %v5090
  %vm5093 = vcmp.eq.f32.partialorder %v5087, 0.0
  %v5094 = vand.u32 %v5087, 2147483648
  %v5095 = vsel %vm5093, %v5094, %v5092
  %v5096 = vrsqrt.pop %v5088
  %v5097 = vmul.f32 %v5088, %v5096
  %vm5098 = vcmp.eq.f32.partialorder %v5088, inf
  %v5099 = vsel %vm5098, %v5088, %v5097
  %vm5100 = vcmp.eq.f32.partialorder %v5088, 0.0
  %v5101 = vand.u32 %v5088, 2147483648
  %v5102 = vsel %vm5100, %v5101, %v5099
  %v5103 = vadd.f32 %v4987, %v820
  %v5104 = vadd.f32 %v4988, %v821
  %v5105 = vadd.f32 %v4989, %v822
  %v5106 = vadd.f32 %v4990, %v823
  %v5107 = vadd.f32 %v4987, %v824
  %v5108 = vadd.f32 %v4988, %v825
  %v5109 = vadd.f32 %v4989, %v826
  %v5110 = vadd.f32 %v4990, %v827
  %v5111 = vadd.f32 %v4987, %v828
  %v5112 = vadd.f32 %v4988, %v829
  %v5113 = vadd.f32 %v4989, %v830
  %v5114 = vadd.f32 %v4990, %v831
  %v5115 = vadd.f32 %v4987, %v832
  %v5116 = vadd.f32 %v4988, %v833
  %v5117 = vadd.f32 %v4989, %v834
  %v5118 = vadd.f32 %v4990, %v835
  %v5119 = vadd.f32 %v4987, %v836
  %v5120 = vadd.f32 %v4988, %v837
  %v5121 = vadd.f32 %v4989, %v838
  %v5122 = vadd.f32 %v4990, %v839
  %v5123 = vadd.f32 %v4987, %v840
  %v5124 = vadd.f32 %v4988, %v841
  %v5125 = vadd.f32 %v4989, %v842
  %v5126 = vadd.f32 %v4990, %v843
  %v5127 = vadd.f32 %v4987, %v844
  %v5128 = vadd.f32 %v4988, %v845
  %v5129 = vadd.f32 %v4989, %v846
  %v5130 = vadd.f32 %v4990, %v847
  %v5131 = vadd.f32 %v4987, %v848
  %v5132 = vadd.f32 %v4988, %v849
  %v5133 = vadd.f32 %v4989, %v850
  %v5134 = vadd.f32 %v4990, %v851
  %v5135 = vadd.f32 %v4987, %v852
  %v5136 = vadd.f32 %v4988, %v853
  %v5137 = vadd.f32 %v4989, %v854
  %v5138 = vadd.f32 %v4990, %v855
  %v5139 = vadd.f32 %v4987, %v856
  %v5140 = vadd.f32 %v4988, %v857
  %v5141 = vadd.f32 %v4989, %v858
  %v5142 = vadd.f32 %v4990, %v859
  %v5143 = vadd.f32 %v4987, %v860
  %v5144 = vadd.f32 %v4988, %v861
  %v5145 = vadd.f32 %v4989, %v862
  %v5146 = vadd.f32 %v4990, %v863
  %v5147 = vadd.f32 %v4987, %v864
  %v5148 = vadd.f32 %v4988, %v865
  %v5149 = vadd.f32 %v4989, %v866
  %v5150 = vadd.f32 %v4990, %v867
  %v5151 = vadd.f32 %v4987, %v868
  %v5152 = vadd.f32 %v4988, %v869
  %v5153 = vadd.f32 %v4989, %v870
  %v5154 = vadd.f32 %v4990, %v871
  %v5155 = vadd.f32 %v4987, %v872
  %v5156 = vadd.f32 %v4988, %v873
  %v5157 = vadd.f32 %v4989, %v874
  %v5158 = vadd.f32 %v4990, %v875
  %v5159 = vadd.f32 %v4987, %v876
  %v5160 = vadd.f32 %v4988, %v877
  %v5161 = vadd.f32 %v4989, %v878
  %v5162 = vadd.f32 %v4990, %v879
  %v5163 = vadd.f32 %v4987, %v880
  %v5164 = vadd.f32 %v4988, %v881
  %v5165 = vadd.f32 %v4989, %v882
  %v5166 = vadd.f32 %v4990, %v883
  %v5167 = vsel %vm194, %v5103, -inf
  %v5168 = vsel %vm194, %v5104, -inf
  %v5169 = vmax.f32 %v5167, %v5168
  %v5170 = vsel %vm194, %v5105, -inf
  %v5171 = vmax.f32 %v5169, %v5170
  %v5172 = vsel %vm194, %v5106, -inf
  %v5173 = vmax.f32 %v5171, %v5172
  %v5174 = vrot.slane %v5173, 4
  %v5175 = vmax.f32 %v5173, %v5174
  %v5176 = vrot.slane %v5175, 2
  %v5177 = vmax.f32 %v5175, %v5176
  %v5178 = vrot.slane %v5177, 1
  %v5179 = vmax.f32 %v5177, %v5178
  %v5180 = vsel %vm194, %v5107, -inf
  %v5181 = vsel %vm194, %v5108, -inf
  %v5182 = vmax.f32 %v5180, %v5181
  %v5183 = vsel %vm194, %v5109, -inf
  %v5184 = vmax.f32 %v5182, %v5183
  %v5185 = vsel %vm194, %v5110, -inf
  %v5186 = vmax.f32 %v5184, %v5185
  %v5187 = vrot.slane %v5186, 4
  %v5188 = vmax.f32 %v5186, %v5187
  %v5189 = vrot.slane %v5188, 2
  %v5190 = vmax.f32 %v5188, %v5189
  %v5191 = vrot.slane %v5190, 1
  %v5192 = vmax.f32 %v5190, %v5191
  %v5193 = vsel %vm194, %v5111, -inf
  %v5194 = vsel %vm194, %v5112, -inf
  %v5195 = vmax.f32 %v5193, %v5194
  %v5196 = vsel %vm194, %v5113, -inf
  %v5197 = vmax.f32 %v5195, %v5196
  %v5198 = vsel %vm194, %v5114, -inf
  %v5199 = vmax.f32 %v5197, %v5198
  %v5200 = vrot.slane %v5199, 4
  %v5201 = vmax.f32 %v5199, %v5200
  %v5202 = vrot.slane %v5201, 2
  %v5203 = vmax.f32 %v5201, %v5202
  %v5204 = vrot.slane %v5203, 1
  %v5205 = vmax.f32 %v5203, %v5204
  %v5206 = vsel %vm194, %v5115, -inf
  %v5207 = vsel %vm194, %v5116, -inf
  %v5208 = vmax.f32 %v5206, %v5207
  %v5209 = vsel %vm194, %v5117, -inf
  %v5210 = vmax.f32 %v5208, %v5209
  %v5211 = vsel %vm194, %v5118, -inf
  %v5212 = vmax.f32 %v5210, %v5211
  %v5213 = vrot.slane %v5212, 4
  %v5214 = vmax.f32 %v5212, %v5213
  %v5215 = vrot.slane %v5214, 2
  %v5216 = vmax.f32 %v5214, %v5215
  %v5217 = vrot.slane %v5216, 1
  %v5218 = vmax.f32 %v5216, %v5217
  %v5219 = vsel %vm194, %v5119, -inf
  %v5220 = vsel %vm194, %v5120, -inf
  %v5221 = vmax.f32 %v5219, %v5220
  %v5222 = vsel %vm194, %v5121, -inf
  %v5223 = vmax.f32 %v5221, %v5222
  %v5224 = vsel %vm194, %v5122, -inf
  %v5225 = vmax.f32 %v5223, %v5224
  %v5226 = vrot.slane %v5225, 4
  %v5227 = vmax.f32 %v5225, %v5226
  %v5228 = vrot.slane %v5227, 2
  %v5229 = vmax.f32 %v5227, %v5228
  %v5230 = vrot.slane %v5229, 1
  %v5231 = vmax.f32 %v5229, %v5230
  %v5232 = vsel %vm194, %v5123, -inf
  %v5233 = vsel %vm194, %v5124, -inf
  %v5234 = vmax.f32 %v5232, %v5233
  %v5235 = vsel %vm194, %v5125, -inf
  %v5236 = vmax.f32 %v5234, %v5235
  %v5237 = vsel %vm194, %v5126, -inf
  %v5238 = vmax.f32 %v5236, %v5237
  %v5239 = vrot.slane %v5238, 4
  %v5240 = vmax.f32 %v5238, %v5239
  %v5241 = vrot.slane %v5240, 2
  %v5242 = vmax.f32 %v5240, %v5241
  %v5243 = vrot.slane %v5242, 1
  %v5244 = vmax.f32 %v5242, %v5243
  %v5245 = vsel %vm194, %v5127, -inf
  %v5246 = vsel %vm194, %v5128, -inf
  %v5247 = vmax.f32 %v5245, %v5246
  %v5248 = vsel %vm194, %v5129, -inf
  %v5249 = vmax.f32 %v5247, %v5248
  %v5250 = vsel %vm194, %v5130, -inf
  %v5251 = vmax.f32 %v5249, %v5250
  %v5252 = vrot.slane %v5251, 4
  %v5253 = vmax.f32 %v5251, %v5252
  %v5254 = vrot.slane %v5253, 2
  %v5255 = vmax.f32 %v5253, %v5254
  %v5256 = vrot.slane %v5255, 1
  %v5257 = vmax.f32 %v5255, %v5256
  %v5258 = vsel %vm194, %v5131, -inf
  %v5259 = vsel %vm194, %v5132, -inf
  %v5260 = vmax.f32 %v5258, %v5259
  %v5261 = vsel %vm194, %v5133, -inf
  %v5262 = vmax.f32 %v5260, %v5261
  %v5263 = vsel %vm194, %v5134, -inf
  %v5264 = vmax.f32 %v5262, %v5263
  %v5265 = vrot.slane %v5264, 4
  %v5266 = vmax.f32 %v5264, %v5265
  %v5267 = vrot.slane %v5266, 2
  %v5268 = vmax.f32 %v5266, %v5267
  %v5269 = vrot.slane %v5268, 1
  %v5270 = vmax.f32 %v5268, %v5269
  %v5271 = vsel %vm194, %v5135, -inf
  %v5272 = vsel %vm194, %v5136, -inf
  %v5273 = vmax.f32 %v5271, %v5272
  %v5274 = vsel %vm194, %v5137, -inf
  %v5275 = vmax.f32 %v5273, %v5274
  %v5276 = vsel %vm194, %v5138, -inf
  %v5277 = vmax.f32 %v5275, %v5276
  %v5278 = vrot.slane %v5277, 4
  %v5279 = vmax.f32 %v5277, %v5278
  %v5280 = vrot.slane %v5279, 2
  %v5281 = vmax.f32 %v5279, %v5280
  %v5282 = vrot.slane %v5281, 1
  %v5283 = vmax.f32 %v5281, %v5282
  %v5284 = vsel %vm194, %v5139, -inf
  %v5285 = vsel %vm194, %v5140, -inf
  %v5286 = vmax.f32 %v5284, %v5285
  %v5287 = vsel %vm194, %v5141, -inf
  %v5288 = vmax.f32 %v5286, %v5287
  %v5289 = vsel %vm194, %v5142, -inf
  %v5290 = vmax.f32 %v5288, %v5289
  %v5291 = vrot.slane %v5290, 4
  %v5292 = vmax.f32 %v5290, %v5291
  %v5293 = vrot.slane %v5292, 2
  %v5294 = vmax.f32 %v5292, %v5293
  %v5295 = vrot.slane %v5294, 1
  %v5296 = vmax.f32 %v5294, %v5295
  %v5297 = vsel %vm194, %v5143, -inf
  %v5298 = vsel %vm194, %v5144, -inf
  %v5299 = vmax.f32 %v5297, %v5298
  %v5300 = vsel %vm194, %v5145, -inf
  %v5301 = vmax.f32 %v5299, %v5300
  %v5302 = vsel %vm194, %v5146, -inf
  %v5303 = vmax.f32 %v5301, %v5302
  %v5304 = vrot.slane %v5303, 4
  %v5305 = vmax.f32 %v5303, %v5304
  %v5306 = vrot.slane %v5305, 2
  %v5307 = vmax.f32 %v5305, %v5306
  %v5308 = vrot.slane %v5307, 1
  %v5309 = vmax.f32 %v5307, %v5308
  %v5310 = vsel %vm194, %v5147, -inf
  %v5311 = vsel %vm194, %v5148, -inf
  %v5312 = vmax.f32 %v5310, %v5311
  %v5313 = vsel %vm194, %v5149, -inf
  %v5314 = vmax.f32 %v5312, %v5313
  %v5315 = vsel %vm194, %v5150, -inf
  %v5316 = vmax.f32 %v5314, %v5315
  %v5317 = vrot.slane %v5316, 4
  %v5318 = vmax.f32 %v5316, %v5317
  %v5319 = vrot.slane %v5318, 2
  %v5320 = vmax.f32 %v5318, %v5319
  %v5321 = vrot.slane %v5320, 1
  %v5322 = vmax.f32 %v5320, %v5321
  %v5323 = vsel %vm194, %v5151, -inf
  %v5324 = vsel %vm194, %v5152, -inf
  %v5325 = vmax.f32 %v5323, %v5324
  %v5326 = vsel %vm194, %v5153, -inf
  %v5327 = vmax.f32 %v5325, %v5326
  %v5328 = vsel %vm194, %v5154, -inf
  %v5329 = vmax.f32 %v5327, %v5328
  %v5330 = vrot.slane %v5329, 4
  %v5331 = vmax.f32 %v5329, %v5330
  %v5332 = vrot.slane %v5331, 2
  %v5333 = vmax.f32 %v5331, %v5332
  %v5334 = vrot.slane %v5333, 1
  %v5335 = vmax.f32 %v5333, %v5334
  %v5336 = vsel %vm194, %v5155, -inf
  %v5337 = vsel %vm194, %v5156, -inf
  %v5338 = vmax.f32 %v5336, %v5337
  %v5339 = vsel %vm194, %v5157, -inf
  %v5340 = vmax.f32 %v5338, %v5339
  %v5341 = vsel %vm194, %v5158, -inf
  %v5342 = vmax.f32 %v5340, %v5341
  %v5343 = vrot.slane %v5342, 4
  %v5344 = vmax.f32 %v5342, %v5343
  %v5345 = vrot.slane %v5344, 2
  %v5346 = vmax.f32 %v5344, %v5345
  %v5347 = vrot.slane %v5346, 1
  %v5348 = vmax.f32 %v5346, %v5347
  %v5349 = vsel %vm194, %v5159, -inf
  %v5350 = vsel %vm194, %v5160, -inf
  %v5351 = vmax.f32 %v5349, %v5350
  %v5352 = vsel %vm194, %v5161, -inf
  %v5353 = vmax.f32 %v5351, %v5352
  %v5354 = vsel %vm194, %v5162, -inf
  %v5355 = vmax.f32 %v5353, %v5354
  %v5356 = vrot.slane %v5355, 4
  %v5357 = vmax.f32 %v5355, %v5356
  %v5358 = vrot.slane %v5357, 2
  %v5359 = vmax.f32 %v5357, %v5358
  %v5360 = vrot.slane %v5359, 1
  %v5361 = vmax.f32 %v5359, %v5360
  %v5362 = vsel %vm194, %v5163, -inf
  %v5363 = vsel %vm194, %v5164, -inf
  %v5364 = vmax.f32 %v5362, %v5363
  %v5365 = vsel %vm194, %v5165, -inf
  %v5366 = vmax.f32 %v5364, %v5365
  %v5367 = vsel %vm194, %v5166, -inf
  %v5368 = vmax.f32 %v5366, %v5367
  %v5369 = vrot.slane %v5368, 4
  %v5370 = vmax.f32 %v5368, %v5369
  %v5371 = vrot.slane %v5370, 2
  %v5372 = vmax.f32 %v5370, %v5371
  %v5373 = vrot.slane %v5372, 1
  %v5374 = vmax.f32 %v5372, %v5373
  %v5375 = vmul.f32 %v5077, %v1159
  %v5376 = vmul.f32 %v5078, %v1164
  %v5377 = vmul.f32 %v5179, %v1159
  %v5378 = vmul.f32 %v5192, %v1168
  %v5379 = vmul.f32 %v5205, %v1169
  %v5380 = vmul.f32 %v5218, %v1170
  %v5381 = vmul.f32 %v5231, %v1171
  %v5382 = vmul.f32 %v5244, %v1172
  %v5383 = vmul.f32 %v5257, %v1173
  %v5384 = vmul.f32 %v5270, %v1174
  %v5385 = vmul.f32 %v5283, %v1164
  %v5386 = vmul.f32 %v5296, %v1175
  %v5387 = vmul.f32 %v5309, %v1176
  %v5388 = vmul.f32 %v5322, %v1177
  %v5389 = vmul.f32 %v5335, %v1178
  %v5390 = vmul.f32 %v5348, %v1179
  %v5391 = vmul.f32 %v5361, %v1180
  %v5392 = vmul.f32 %v5374, %v1181
  %v5393 = vmul.f32 %v5028, %v1159
  %v5394 = vmul.f32 %v5031, %v1164
  %v5395 = vmul.f32 %v5095, %v1159
  %v5396 = vmul.f32 %v5102, %v1164
  %v5397 = vld [vmem:[%s8 + $0x6a0] sm:$0xff]
  %v5398 = vld [vmem:[%s8 + $0x6a8] sm:$0xff]
  %v5399 = vld [vmem:[%s8 + $0x6b0] sm:$0xff]
  %v5400 = vld [vmem:[%s8 + $0x6b8] sm:$0xff]
  %v5401 = vld [vmem:[%s8 + $0x6c0] sm:$0xff]
  %v5402 = vld [vmem:[%s8 + $0x6c8] sm:$0xff]
  %v5403 = vld [vmem:[%s8 + $0x6d0] sm:$0xff]
  %v5404 = vld [vmem:[%s8 + $0x6d8] sm:$0xff]
  %v5405 = vld [vmem:[%s8 + $0x6e0] sm:$0xff]
  %v5406 = vld [vmem:[%s8 + $0x6e8] sm:$0xff]
  %v5407 = vld [vmem:[%s8 + $0x6f0] sm:$0xff]
  %v5408 = vld [vmem:[%s8 + $0x6f8] sm:$0xff]
  %v5409 = vld [vmem:[%s8 + $0x700] sm:$0xff]
  %v5410 = vld [vmem:[%s8 + $0x708] sm:$0xff]
  %v5411 = vld [vmem:[%s8 + $0x710] sm:$0xff]
  %v5412 = vld [vmem:[%s8 + $0x718] sm:$0xff]
  %v5414 = vsel %vm194, %v5375, 0
  %v5417 = vsel %vm194, %v5376, 0
  %5419 = vmatprep.subr.mxu0 0.0
  %5420 = vmatpush1.msra.mxu0 %v5405
  %5421 = vmatprep.subr.mxu0 0.0
  %5422 = vmatpush1.msra.mxu0 %v5406
  %5423 = vmatprep.subr.mxu0 0.0
  %5424 = vmatpush1.msra.mxu0 %v5407
  %5425 = vmatprep.subr.mxu0 0.0
  %5426 = vmatpush1.msra.mxu0 %v5408
  %5427 = vmatprep.subr.mxu0 0.0
  %5428 = vmatpush1.msra.mxu0 %v5409
  %5429 = vmatprep.subr.mxu0 0.0
  %5430 = vmatpush1.msra.mxu0 %v5410
  %5431 = vmatprep.subr.mxu0 0.0
  %5432 = vmatpush1.msra.mxu0 %v5411
  %5433 = vmatprep.subr.mxu0 0.0
  %5434 = vmatpush1.msra.mxu0 %v5412
  %5435 = vmatprep.subr.mxu0 0.0
  %5436 = vmatpush1.msra.mxu0 0.0
  %5437 = vmatprep.subr.mxu0 0.0
  %5438 = vmatpush1.msra.mxu0 0.0
  %5439 = vmatprep.subr.mxu0 0.0
  %5440 = vmatpush1.msra.mxu0 0.0
  %5441 = vmatprep.subr.mxu0 0.0
  %5442 = vmatpush1.msra.mxu0 0.0
  %5443 = vmatprep.subr.mxu0 0.0
  %5444 = vmatpush1.msra.mxu0 0.0
  %5445 = vmatprep.subr.mxu0 0.0
  %5446 = vmatpush1.msra.mxu0 0.0
  %5447 = vmatprep.subr.mxu0 0.0
  %5448 = vmatpush1.msra.mxu0 0.0
  %5449 = vmatprep.subr.mxu0 0.0
  %5450 = vmatpush1.msra.mxu0 0.0
  %5451 = vmatprep.subr.mxu0 0.0
  %5452 = vmatpush1.msra.mxu0 0.0
  %5453 = vmatprep.subr.mxu0 0.0
  %5454 = vmatpush1.msra.mxu0 0.0
  %5455 = vmatprep.subr.mxu0 0.0
  %5456 = vmatpush1.msra.mxu0 0.0
  %5457 = vmatprep.subr.mxu0 0.0
  %5458 = vmatpush1.msra.mxu0 0.0
  %5459 = vmatprep.subr.mxu0 0.0
  %5460 = vmatpush1.msra.mxu0 0.0
  %5461 = vmatprep.subr.mxu0 0.0
  %5462 = vmatpush1.msra.mxu0 0.0
  %5463 = vmatprep.subr.mxu0 0.0
  %5464 = vmatpush1.msra.mxu0 0.0
  %5465 = vmatprep.subr.mxu0 0.0
  %5466 = vmatpush1.msra.mxu0 0.0
  %5467 = vmatprep.subr.mxu0 0.0
  %5468 = vmatpush1.msra.mxu0 0.0
  %5469 = vmatprep.subr.mxu0 0.0
  %5470 = vmatpush1.msra.mxu0 0.0
  %5471 = vmatprep.subr.mxu0 0.0
  %5472 = vmatpush1.msra.mxu0 0.0
  %5473 = vmatprep.subr.mxu0 0.0
  %5474 = vmatpush1.msra.mxu0 0.0
  %5475 = vmatprep.subr.mxu0 0.0
  %5476 = vmatpush1.msra.mxu0 0.0
  %5477 = vmatprep.subr.mxu0 0.0
  %5478 = vmatpush1.msra.mxu0 0.0
  %5479 = vmatprep.subr.mxu0 0.0
  %5480 = vmatpush1.msra.mxu0 0.0
  %5481 = vmatprep.subr.mxu0 0.0
  %5482 = vmatpush1.msra.mxu0 0.0
  %5483 = vmatprep.mubr.f32.mxu0 0.0
  %5484 = vmatmul.mubr.f32.gmra.mrb[0].mxu0 %v5414
  %v5485 = vpop.f32.mrb[0].mxu0
  %v5486 = vadd.f32 0.0, %v5485
  %v5487 = vpop.f32.mrb[0].mxu0
  %5488 = vmatprep.mubr.f32.mxu0 0.0
  %5489 = vmatmul.mubr.f32.gmra.mrb[0].mxu0 %v5417
  %v5490 = vpop.f32.mrb[0].mxu0
  %v5491 = vadd.f32 0.0, %v5490
  %v5492 = vpop.f32.mrb[0].mxu0
  %5493 = vdwg.mxu0
  %v5495 = vsel %vm194, %v4615, 0
  %v5498 = vsel %vm194, %v4616, 0
  %5500 = vmatprep.subr.mxu0 0.0
  %5501 = vmatpush1.msra.mxu0 %v5397
  %5502 = vmatprep.subr.mxu0 0.0
  %5503 = vmatpush1.msra.mxu0 %v5398
  %5504 = vmatprep.subr.mxu0 0.0
  %5505 = vmatpush1.msra.mxu0 %v5399
  %5506 = vmatprep.subr.mxu0 0.0
  %5507 = vmatpush1.msra.mxu0 %v5400
  %5508 = vmatprep.subr.mxu0 0.0
  %5509 = vmatpush1.msra.mxu0 %v5401
  %5510 = vmatprep.subr.mxu0 0.0
  %5511 = vmatpush1.msra.mxu0 %v5402
  %5512 = vmatprep.subr.mxu0 0.0
  %5513 = vmatpush1.msra.mxu0 %v5403
  %5514 = vmatprep.subr.mxu0 0.0
  %5515 = vmatpush1.msra.mxu0 %v5404
  %5516 = vmatprep.subr.mxu0 0.0
  %5517 = vmatpush1.msra.mxu0 0.0
  %5518 = vmatprep.subr.mxu0 0.0
  %5519 = vmatpush1.msra.mxu0 0.0
  %5520 = vmatprep.subr.mxu0 0.0
  %5521 = vmatpush1.msra.mxu0 0.0
  %5522 = vmatprep.subr.mxu0 0.0
  %5523 = vmatpush1.msra.mxu0 0.0
  %5524 = vmatprep.subr.mxu0 0.0
  %5525 = vmatpush1.msra.mxu0 0.0
  %5526 = vmatprep.subr.mxu0 0.0
  %5527 = vmatpush1.msra.mxu0 0.0
  %5528 = vmatprep.subr.mxu0 0.0
  %5529 = vmatpush1.msra.mxu0 0.0
  %5530 = vmatprep.subr.mxu0 0.0
  %5531 = vmatpush1.msra.mxu0 0.0
  %5532 = vmatprep.subr.mxu0 0.0
  %5533 = vmatpush1.msra.mxu0 0.0
  %5534 = vmatprep.subr.mxu0 0.0
  %5535 = vmatpush1.msra.mxu0 0.0
  %5536 = vmatprep.subr.mxu0 0.0
  %5537 = vmatpush1.msra.mxu0 0.0
  %5538 = vmatprep.subr.mxu0 0.0
  %5539 = vmatpush1.msra.mxu0 0.0
  %5540 = vmatprep.subr.mxu0 0.0
  %5541 = vmatpush1.msra.mxu0 0.0
  %5542 = vmatprep.subr.mxu0 0.0
  %5543 = vmatpush1.msra.mxu0 0.0
  %5544 = vmatprep.subr.mxu0 0.0
  %5545 = vmatpush1.msra.mxu0 0.0
  %5546 = vmatprep.subr.mxu0 0.0
  %5547 = vmatpush1.msra.mxu0 0.0
  %5548 = vmatprep.subr.mxu0 0.0
  %5549 = vmatpush1.msra.mxu0 0.0
  %5550 = vmatprep.subr.mxu0 0.0
  %5551 = vmatpush1.msra.mxu0 0.0
  %5552 = vmatprep.subr.mxu0 0.0
  %5553 = vmatpush1.msra.mxu0 0.0
  %5554 = vmatprep.subr.mxu0 0.0
  %5555 = vmatpush1.msra.mxu0 0.0
  %5556 = vmatprep.subr.mxu0 0.0
  %5557 = vmatpush1.msra.mxu0 0.0
  %5558 = vmatprep.subr.mxu0 0.0
  %5559 = vmatpush1.msra.mxu0 0.0
  %5560 = vmatprep.subr.mxu0 0.0
  %5561 = vmatpush1.msra.mxu0 0.0
  %5562 = vmatprep.subr.mxu0 0.0
  %5563 = vmatpush1.msra.mxu0 0.0
  %5564 = vmatprep.mubr.f32.mxu0 0.0
  %5565 = vmatmul.mubr.f32.gmra.mrb[0].mxu0 %v5495
  %v5566 = vpop.f32.mrb[0].mxu0
  %v5567 = vadd.f32 %v5486, %v5566
  %v5568 = vpop.f32.mrb[0].mxu0
  %5569 = vmatprep.mubr.f32.mxu0 0.0
  %5570 = vmatmul.mubr.f32.gmra.mrb[0].mxu0 %v5498
  %v5571 = vpop.f32.mrb[0].mxu0
  %v5572 = vadd.f32 %v5491, %v5571
  %v5573 = vpop.f32.mrb[0].mxu0
  %5574 = vdwg.mxu0
  %v5575 = vld [vmem:[%s8 + $0x720] sm:$0xff]
  %v5576 = vld [vmem:[%s8 + $0x728] sm:$0xff]
  %v5577 = vld [vmem:[%s8 + $0x730] sm:$0xff]
  %v5578 = vld [vmem:[%s8 + $0x738] sm:$0xff]
  %v5579 = vld [vmem:[%s8 + $0x740] sm:$0xff]
  %v5580 = vld [vmem:[%s8 + $0x748] sm:$0xff]
  %v5581 = vld [vmem:[%s8 + $0x750] sm:$0xff]
  %v5582 = vld [vmem:[%s8 + $0x758] sm:$0xff]
  %v5599 = vrot.slane %v5378, 7
  %v5600 = vsel %vm1419, %v5599, %v5377
  %v5601 = vrot.slane %v5379, 6
  %v5602 = vsel %vm1422, %v5601, %v5600
  %v5603 = vrot.slane %v5380, 5
  %v5604 = vsel %vm1425, %v5603, %v5602
  %v5605 = vrot.slane %v5381, 4
  %v5606 = vsel %vm1428, %v5605, %v5604
  %v5607 = vrot.slane %v5382, 3
  %v5608 = vsel %vm1431, %v5607, %v5606
  %v5609 = vrot.slane %v5383, 2
  %v5610 = vsel %vm1434, %v5609, %v5608
  %v5611 = vrot.slane %v5384, 1
  %v5612 = vsel %vm1437, %v5611, %v5610
  %v5613 = vrot.slane %v5386, 7
  %v5614 = vsel %vm1419, %v5613, %v5385
  %v5615 = vrot.slane %v5387, 6
  %v5616 = vsel %vm1422, %v5615, %v5614
  %v5617 = vrot.slane %v5388, 5
  %v5618 = vsel %vm1425, %v5617, %v5616
  %v5619 = vrot.slane %v5389, 4
  %v5620 = vsel %vm1428, %v5619, %v5618
  %v5621 = vrot.slane %v5390, 3
  %v5622 = vsel %vm1431, %v5621, %v5620
  %v5623 = vrot.slane %v5391, 2
  %v5624 = vsel %vm1434, %v5623, %v5622
  %v5625 = vrot.slane %v5392, 1
  %v5626 = vsel %vm1437, %v5625, %v5624
  %v5627 = vsel %vm194, %v5612, 0
  %v5629 = vsel %vm194, %v5626, 0
  %5631 = vmatprep.subr.mxu0 0.0
  %5632 = vmatpush1.msra.mxu0 %v5575
  %5633 = vmatprep.subr.mxu0 0.0
  %5634 = vmatpush1.msra.mxu0 %v5576
  %5635 = vmatprep.subr.mxu0 0.0
  %5636 = vmatpush1.msra.mxu0 %v5577
  %5637 = vmatprep.subr.mxu0 0.0
  %5638 = vmatpush1.msra.mxu0 %v5578
  %5639 = vmatprep.subr.mxu0 0.0
  %5640 = vmatpush1.msra.mxu0 %v5579
  %5641 = vmatprep.subr.mxu0 0.0
  %5642 = vmatpush1.msra.mxu0 %v5580
  %5643 = vmatprep.subr.mxu0 0.0
  %5644 = vmatpush1.msra.mxu0 %v5581
  %5645 = vmatprep.subr.mxu0 0.0
  %5646 = vmatpush1.msra.mxu0 %v5582
  %5647 = vmatprep.subr.mxu0 0.0
  %5648 = vmatpush1.msra.mxu0 0.0
  %5649 = vmatprep.subr.mxu0 0.0
  %5650 = vmatpush1.msra.mxu0 0.0
  %5651 = vmatprep.subr.mxu0 0.0
  %5652 = vmatpush1.msra.mxu0 0.0
  %5653 = vmatprep.subr.mxu0 0.0
  %5654 = vmatpush1.msra.mxu0 0.0
  %5655 = vmatprep.subr.mxu0 0.0
  %5656 = vmatpush1.msra.mxu0 0.0
  %5657 = vmatprep.subr.mxu0 0.0
  %5658 = vmatpush1.msra.mxu0 0.0
  %5659 = vmatprep.subr.mxu0 0.0
  %5660 = vmatpush1.msra.mxu0 0.0
  %5661 = vmatprep.subr.mxu0 0.0
  %5662 = vmatpush1.msra.mxu0 0.0
  %5663 = vmatprep.subr.mxu0 0.0
  %5664 = vmatpush1.msra.mxu0 0.0
  %5665 = vmatprep.subr.mxu0 0.0
  %5666 = vmatpush1.msra.mxu0 0.0
  %5667 = vmatprep.subr.mxu0 0.0
  %5668 = vmatpush1.msra.mxu0 0.0
  %5669 = vmatprep.subr.mxu0 0.0
  %5670 = vmatpush1.msra.mxu0 0.0
  %5671 = vmatprep.subr.mxu0 0.0
  %5672 = vmatpush1.msra.mxu0 0.0
  %5673 = vmatprep.subr.mxu0 0.0
  %5674 = vmatpush1.msra.mxu0 0.0
  %5675 = vmatprep.subr.mxu0 0.0
  %5676 = vmatpush1.msra.mxu0 0.0
  %5677 = vmatprep.subr.mxu0 0.0
  %5678 = vmatpush1.msra.mxu0 0.0
  %5679 = vmatprep.subr.mxu0 0.0
  %5680 = vmatpush1.msra.mxu0 0.0
  %5681 = vmatprep.subr.mxu0 0.0
  %5682 = vmatpush1.msra.mxu0 0.0
  %5683 = vmatprep.subr.mxu0 0.0
  %5684 = vmatpush1.msra.mxu0 0.0
  %5685 = vmatprep.subr.mxu0 0.0
  %5686 = vmatpush1.msra.mxu0 0.0
  %5687 = vmatprep.subr.mxu0 0.0
  %5688 = vmatpush1.msra.mxu0 0.0
  %5689 = vmatprep.subr.mxu0 0.0
  %5690 = vmatpush1.msra.mxu0 0.0
  %5691 = vmatprep.subr.mxu0 0.0
  %5692 = vmatpush1.msra.mxu0 0.0
  %5693 = vmatprep.subr.mxu0 0.0
  %5694 = vmatpush1.msra.mxu0 0.0
  %5695 = vmatprep.mubr.f32.mxu0 0.0
  %5696 = vmatmul.mubr.f32.gmra.mrb[0].mxu0 %v5627
  %v5697 = vpop.f32.mrb[0].mxu0
  %v5698 = vadd.f32 0.0, %v5697
  %v5699 = vpop.f32.mrb[0].mxu0
  %5700 = vmatprep.mubr.f32.mxu0 0.0
  %5701 = vmatmul.mubr.f32.gmra.mrb[0].mxu0 %v5629
  %v5702 = vpop.f32.mrb[0].mxu0
  %v5703 = vadd.f32 0.0, %v5702
  %v5704 = vpop.f32.mrb[0].mxu0
  %5705 = vdwg.mxu0
  %v5706 = vadd.f32 %v5567, %v5698
  %v5707 = vadd.f32 %v5572, %v5703
  %v5708 = vld [vmem:[%s8 + $0x760] sm:$0xff]
  %v5709 = vld [vmem:[%s8 + $0x768] sm:$0xff]
  %v5710 = vld [vmem:[%s8 + $0x770] sm:$0xff]
  %v5711 = vld [vmem:[%s8 + $0x778] sm:$0xff]
  %v5712 = vld [vmem:[%s8 + $0x780] sm:$0xff]
  %v5713 = vld [vmem:[%s8 + $0x788] sm:$0xff]
  %v5714 = vld [vmem:[%s8 + $0x790] sm:$0xff]
  %v5715 = vld [vmem:[%s8 + $0x798] sm:$0xff]
  %v5717 = vsel %vm194, %v5393, 0
  %v5720 = vsel %vm194, %v5394, 0
  %5722 = vmatprep.subr.mxu0 0.0
  %5723 = vmatpush1.msra.mxu0 %v5708
  %5724 = vmatprep.subr.mxu0 0.0
  %5725 = vmatpush1.msra.mxu0 %v5709
  %5726 = vmatprep.subr.mxu0 0.0
  %5727 = vmatpush1.msra.mxu0 %v5710
  %5728 = vmatprep.subr.mxu0 0.0
  %5729 = vmatpush1.msra.mxu0 %v5711
  %5730 = vmatprep.subr.mxu0 0.0
  %5731 = vmatpush1.msra.mxu0 %v5712
  %5732 = vmatprep.subr.mxu0 0.0
  %5733 = vmatpush1.msra.mxu0 %v5713
  %5734 = vmatprep.subr.mxu0 0.0
  %5735 = vmatpush1.msra.mxu0 %v5714
  %5736 = vmatprep.subr.mxu0 0.0
  %5737 = vmatpush1.msra.mxu0 %v5715
  %5738 = vmatprep.subr.mxu0 0.0
  %5739 = vmatpush1.msra.mxu0 0.0
  %5740 = vmatprep.subr.mxu0 0.0
  %5741 = vmatpush1.msra.mxu0 0.0
  %5742 = vmatprep.subr.mxu0 0.0
  %5743 = vmatpush1.msra.mxu0 0.0
  %5744 = vmatprep.subr.mxu0 0.0
  %5745 = vmatpush1.msra.mxu0 0.0
  %5746 = vmatprep.subr.mxu0 0.0
  %5747 = vmatpush1.msra.mxu0 0.0
  %5748 = vmatprep.subr.mxu0 0.0
  %5749 = vmatpush1.msra.mxu0 0.0
  %5750 = vmatprep.subr.mxu0 0.0
  %5751 = vmatpush1.msra.mxu0 0.0
  %5752 = vmatprep.subr.mxu0 0.0
  %5753 = vmatpush1.msra.mxu0 0.0
  %5754 = vmatprep.subr.mxu0 0.0
  %5755 = vmatpush1.msra.mxu0 0.0
  %5756 = vmatprep.subr.mxu0 0.0
  %5757 = vmatpush1.msra.mxu0 0.0
  %5758 = vmatprep.subr.mxu0 0.0
  %5759 = vmatpush1.msra.mxu0 0.0
  %5760 = vmatprep.subr.mxu0 0.0
  %5761 = vmatpush1.msra.mxu0 0.0
  %5762 = vmatprep.subr.mxu0 0.0
  %5763 = vmatpush1.msra.mxu0 0.0
  %5764 = vmatprep.subr.mxu0 0.0
  %5765 = vmatpush1.msra.mxu0 0.0
  %5766 = vmatprep.subr.mxu0 0.0
  %5767 = vmatpush1.msra.mxu0 0.0
  %5768 = vmatprep.subr.mxu0 0.0
  %5769 = vmatpush1.msra.mxu0 0.0
  %5770 = vmatprep.subr.mxu0 0.0
  %5771 = vmatpush1.msra.mxu0 0.0
  %5772 = vmatprep.subr.mxu0 0.0
  %5773 = vmatpush1.msra.mxu0 0.0
  %5774 = vmatprep.subr.mxu0 0.0
  %5775 = vmatpush1.msra.mxu0 0.0
  %5776 = vmatprep.subr.mxu0 0.0
  %5777 = vmatpush1.msra.mxu0 0.0
  %5778 = vmatprep.subr.mxu0 0.0
  %5779 = vmatpush1.msra.mxu0 0.0
  %5780 = vmatprep.subr.mxu0 0.0
  %5781 = vmatpush1.msra.mxu0 0.0
  %5782 = vmatprep.subr.mxu0 0.0
  %5783 = vmatpush1.msra.mxu0 0.0
  %5784 = vmatprep.subr.mxu0 0.0
  %5785 = vmatpush1.msra.mxu0 0.0
  %5786 = vmatprep.mubr.f32.mxu0 0.0
  %5787 = vmatmul.mubr.f32.gmra.mrb[0].mxu0 %v5717
  %v5788 = vpop.f32.mrb[0].mxu0
  %v5789 = vadd.f32 0.0, %v5788
  %v5790 = vpop.f32.mrb[0].mxu0
  %5791 = vmatprep.mubr.f32.mxu0 0.0
  %5792 = vmatmul.mubr.f32.gmra.mrb[0].mxu0 %v5720
  %v5793 = vpop.f32.mrb[0].mxu0
  %v5794 = vadd.f32 0.0, %v5793
  %v5795 = vpop.f32.mrb[0].mxu0
  %5796 = vdwg.mxu0
  %v5797 = vadd.f32 %v5706, %v5789
  %v5798 = vadd.f32 %v5707, %v5794
  %v5799 = vld [vmem:[%s8 + $0x7a0] sm:$0xff]
  %v5800 = vld [vmem:[%s8 + $0x7a8] sm:$0xff]
  %v5801 = vld [vmem:[%s8 + $0x7b0] sm:$0xff]
  %v5802 = vld [vmem:[%s8 + $0x7b8] sm:$0xff]
  %v5803 = vld [vmem:[%s8 + $0x7c0] sm:$0xff]
  %v5804 = vld [vmem:[%s8 + $0x7c8] sm:$0xff]
  %v5805 = vld [vmem:[%s8 + $0x7d0] sm:$0xff]
  %v5806 = vld [vmem:[%s8 + $0x7d8] sm:$0xff]
  %v5808 = vsel %vm194, %v5395, 0
  %v5811 = vsel %vm194, %v5396, 0
  %5813 = vmatprep.subr.mxu0 0.0
  %5814 = vmatpush1.msra.mxu0 %v5799
  %5815 = vmatprep.subr.mxu0 0.0
  %5816 = vmatpush1.msra.mxu0 %v5800
  %5817 = vmatprep.subr.mxu0 0.0
  %5818 = vmatpush1.msra.mxu0 %v5801
  %5819 = vmatprep.subr.mxu0 0.0
  %5820 = vmatpush1.msra.mxu0 %v5802
  %5821 = vmatprep.subr.mxu0 0.0
  %5822 = vmatpush1.msra.mxu0 %v5803
  %5823 = vmatprep.subr.mxu0 0.0
  %5824 = vmatpush1.msra.mxu0 %v5804
  %5825 = vmatprep.subr.mxu0 0.0
  %5826 = vmatpush1.msra.mxu0 %v5805
  %5827 = vmatprep.subr.mxu0 0.0
  %5828 = vmatpush1.msra.mxu0 %v5806
  %5829 = vmatprep.subr.mxu0 0.0
  %5830 = vmatpush1.msra.mxu0 0.0
  %5831 = vmatprep.subr.mxu0 0.0
  %5832 = vmatpush1.msra.mxu0 0.0
  %5833 = vmatprep.subr.mxu0 0.0
  %5834 = vmatpush1.msra.mxu0 0.0
  %5835 = vmatprep.subr.mxu0 0.0
  %5836 = vmatpush1.msra.mxu0 0.0
  %5837 = vmatprep.subr.mxu0 0.0
  %5838 = vmatpush1.msra.mxu0 0.0
  %5839 = vmatprep.subr.mxu0 0.0
  %5840 = vmatpush1.msra.mxu0 0.0
  %5841 = vmatprep.subr.mxu0 0.0
  %5842 = vmatpush1.msra.mxu0 0.0
  %5843 = vmatprep.subr.mxu0 0.0
  %5844 = vmatpush1.msra.mxu0 0.0
  %5845 = vmatprep.subr.mxu0 0.0
  %5846 = vmatpush1.msra.mxu0 0.0
  %5847 = vmatprep.subr.mxu0 0.0
  %5848 = vmatpush1.msra.mxu0 0.0
  %5849 = vmatprep.subr.mxu0 0.0
  %5850 = vmatpush1.msra.mxu0 0.0
  %5851 = vmatprep.subr.mxu0 0.0
  %5852 = vmatpush1.msra.mxu0 0.0
  %5853 = vmatprep.subr.mxu0 0.0
  %5854 = vmatpush1.msra.mxu0 0.0
  %5855 = vmatprep.subr.mxu0 0.0
  %5856 = vmatpush1.msra.mxu0 0.0
  %5857 = vmatprep.subr.mxu0 0.0
  %5858 = vmatpush1.msra.mxu0 0.0
  %5859 = vmatprep.subr.mxu0 0.0
  %5860 = vmatpush1.msra.mxu0 0.0
  %5861 = vmatprep.subr.mxu0 0.0
  %5862 = vmatpush1.msra.mxu0 0.0
  %5863 = vmatprep.subr.mxu0 0.0
  %5864 = vmatpush1.msra.mxu0 0.0
  %5865 = vmatprep.subr.mxu0 0.0
  %5866 = vmatpush1.msra.mxu0 0.0
  %5867 = vmatprep.subr.mxu0 0.0
  %5868 = vmatpush1.msra.mxu0 0.0
  %5869 = vmatprep.subr.mxu0 0.0
  %5870 = vmatpush1.msra.mxu0 0.0
  %5871 = vmatprep.subr.mxu0 0.0
  %5872 = vmatpush1.msra.mxu0 0.0
  %5873 = vmatprep.subr.mxu0 0.0
  %5874 = vmatpush1.msra.mxu0 0.0
  %5875 = vmatprep.subr.mxu0 0.0
  %5876 = vmatpush1.msra.mxu0 0.0
  %5877 = vmatprep.mubr.f32.mxu0 0.0
  %5878 = vmatmul.mubr.f32.gmra.mrb[0].mxu0 %v5808
  %v5879 = vpop.f32.mrb[0].mxu0
  %v5880 = vadd.f32 0.0, %v5879
  %v5881 = vpop.f32.mrb[0].mxu0
  %5882 = vmatprep.mubr.f32.mxu0 0.0
  %5883 = vmatmul.mubr.f32.gmra.mrb[0].mxu0 %v5811
  %v5884 = vpop.f32.mrb[0].mxu0
  %v5885 = vadd.f32 0.0, %v5884
  %v5886 = vpop.f32.mrb[0].mxu0
  %5887 = vdwg.mxu0
  %v5888 = vadd.f32 %v5797, %v5880
  %v5889 = vadd.f32 %v5798, %v5885
  %v5890 = vlaneseq
  %v5891 = vshrl.u32 %v5890, 7
  %v5892 = vsub.s32 2, %v5891
  %v5893 = vrot.slane %v69, %v5892
  %v5894 = vadd.f32 %v5888, %v5893
  %v5895 = vadd.f32 %v5889, %v5893
  %v5896 = vmul.f32 %v5894, %v1725
  %v5897 = vmul.f32 %v5895, %v1730
  %v5898 = vld [vmem:[%s8 + $0x7e0] sm:$0xff]
  %v5899 = vld [vmem:[%s8 + $0x7e8] sm:$0xff]
  %v5900 = vld [vmem:[%s8 + $0x7f0] sm:$0xff]
  %v5901 = vld [vmem:[%s8 + $0x7f8] sm:$0xff]
  %v5902 = vld [vmem:[%s8 + $0x800] sm:$0xff]
  %v5903 = vld [vmem:[%s8 + $0x808] sm:$0xff]
  %v5904 = vld [vmem:[%s8 + $0x810] sm:$0xff]
  %v5905 = vld [vmem:[%s8 + $0x818] sm:$0xff]
  %v5906 = vlaneseq
  %v5907 = vshrl.u32 %v5906, 7
  %v5908 = vsub.s32 3, %v5907
  %v5909 = vrot.slane %v69, %v5908
  %v5911 = vsel %vm194, %v5896, 0
  %v5914 = vsel %vm194, %v5897, 0
  %5916 = vmatprep.subr.mxu0 0.0
  %5917 = vmatpush1.msra.mxu0 %v5898
  %5918 = vmatprep.subr.mxu0 0.0
  %5919 = vmatpush1.msra.mxu0 %v5899
  %5920 = vmatprep.subr.mxu0 0.0
  %5921 = vmatpush1.msra.mxu0 %v5900
  %5922 = vmatprep.subr.mxu0 0.0
  %5923 = vmatpush1.msra.mxu0 %v5901
  %5924 = vmatprep.subr.mxu0 0.0
  %5925 = vmatpush1.msra.mxu0 %v5902
  %5926 = vmatprep.subr.mxu0 0.0
  %5927 = vmatpush1.msra.mxu0 %v5903
  %5928 = vmatprep.subr.mxu0 0.0
  %5929 = vmatpush1.msra.mxu0 %v5904
  %5930 = vmatprep.subr.mxu0 0.0
  %5931 = vmatpush1.msra.mxu0 %v5905
  %5932 = vmatprep.subr.mxu0 0.0
  %5933 = vmatpush1.msra.mxu0 0.0
  %5934 = vmatprep.subr.mxu0 0.0
  %5935 = vmatpush1.msra.mxu0 0.0
  %5936 = vmatprep.subr.mxu0 0.0
  %5937 = vmatpush1.msra.mxu0 0.0
  %5938 = vmatprep.subr.mxu0 0.0
  %5939 = vmatpush1.msra.mxu0 0.0
  %5940 = vmatprep.subr.mxu0 0.0
  %5941 = vmatpush1.msra.mxu0 0.0
  %5942 = vmatprep.subr.mxu0 0.0
  %5943 = vmatpush1.msra.mxu0 0.0
  %5944 = vmatprep.subr.mxu0 0.0
  %5945 = vmatpush1.msra.mxu0 0.0
  %5946 = vmatprep.subr.mxu0 0.0
  %5947 = vmatpush1.msra.mxu0 0.0
  %5948 = vmatprep.subr.mxu0 0.0
  %5949 = vmatpush1.msra.mxu0 0.0
  %5950 = vmatprep.subr.mxu0 0.0
  %5951 = vmatpush1.msra.mxu0 0.0
  %5952 = vmatprep.subr.mxu0 0.0
  %5953 = vmatpush1.msra.mxu0 0.0
  %5954 = vmatprep.subr.mxu0 0.0
  %5955 = vmatpush1.msra.mxu0 0.0
  %5956 = vmatprep.subr.mxu0 0.0
  %5957 = vmatpush1.msra.mxu0 0.0
  %5958 = vmatprep.subr.mxu0 0.0
  %5959 = vmatpush1.msra.mxu0 0.0
  %5960 = vmatprep.subr.mxu0 0.0
  %5961 = vmatpush1.msra.mxu0 0.0
  %5962 = vmatprep.subr.mxu0 0.0
  %5963 = vmatpush1.msra.mxu0 0.0
  %5964 = vmatprep.subr.mxu0 0.0
  %5965 = vmatpush1.msra.mxu0 0.0
  %5966 = vmatprep.subr.mxu0 0.0
  %5967 = vmatpush1.msra.mxu0 0.0
  %5968 = vmatprep.subr.mxu0 0.0
  %5969 = vmatpush1.msra.mxu0 0.0
  %5970 = vmatprep.subr.mxu0 0.0
  %5971 = vmatpush1.msra.mxu0 0.0
  %5972 = vmatprep.subr.mxu0 0.0
  %5973 = vmatpush1.msra.mxu0 0.0
  %5974 = vmatprep.subr.mxu0 0.0
  %5975 = vmatpush1.msra.mxu0 0.0
  %5976 = vmatprep.subr.mxu0 0.0
  %5977 = vmatpush1.msra.mxu0 0.0
  %5978 = vmatprep.subr.mxu0 0.0
  %5979 = vmatpush1.msra.mxu0 0.0
  %5980 = vmatprep.mubr.f32.mxu0 0.0
  %5981 = vmatmul.mubr.f32.gmra.mrb[0].mxu0 %v5911
  %v5982 = vpop.f32.mrb[0].mxu0
  %v5983 = vadd.f32 %v5909, %v5982
  %v5984 = vpop.f32.mrb[0].mxu0
  %5985 = vmatprep.mubr.f32.mxu0 0.0
  %5986 = vmatmul.mubr.f32.gmra.mrb[0].mxu0 %v5914
  %v5987 = vpop.f32.mrb[0].mxu0
  %v5988 = vadd.f32 %v5909, %v5987
  %v5989 = vpop.f32.mrb[0].mxu0
  %5990 = vdwg.mxu0
  %vm5991 = vcmp.gt.f32.partialorder %v5983, 0.0
  %vm5992 = vcmp.gt.f32.partialorder %v5988, 0.0
  %v5993 = vmul.f32 %v5983, 0.01
  %v5994 = vmul.f32 %v5988, 0.01
  %v5995 = vsel %vm5991, %v5983, %v5993
  %v5996 = vsel %vm5992, %v5988, %v5994
  %v5997 = vmax.f32 %v5995, 0.0
  %v5998 = vmax.f32 %v5996, 0.0
  %v5999 = vpack.c.bf16 %v5998, %v5997
  %6000 = vmatprep.subr.bf16.mxu0 0
  %6001 = vmatpush1.bf16.msra.mxu0 %v5999
  %6002 = vmatprep.subr.bf16.mxu0 0
  %6003 = vmatpush1.bf16.msra.mxu0 0
  %6004 = vmatprep.subr.bf16.mxu0 0
  %6005 = vmatpush1.bf16.msra.mxu0 0
  %6006 = vmatprep.subr.bf16.mxu0 0
  %6007 = vmatpush1.bf16.msra.mxu0 0
  %6008 = vmatprep.subr.bf16.mxu0 0
  %6009 = vmatpush1.bf16.msra.mxu0 0
  %6010 = vmatprep.subr.bf16.mxu0 0
  %6011 = vmatpush1.bf16.msra.mxu0 0
  %6012 = vmatprep.subr.bf16.mxu0 0
  %6013 = vmatpush1.bf16.msra.mxu0 0
  %6014 = vmatprep.subr.bf16.mxu0 0
  %6015 = vmatpush1.bf16.msra.mxu0 0
  %6016 = vmatprep.subr.bf16.mxu0 0
  %6017 = vmatpush1.bf16.msra.mxu0 0
  %6018 = vmatprep.subr.bf16.mxu0 0
  %6019 = vmatpush1.bf16.msra.mxu0 0
  %6020 = vmatprep.subr.bf16.mxu0 0
  %6021 = vmatpush1.bf16.msra.mxu0 0
  %6022 = vmatprep.subr.bf16.mxu0 0
  %6023 = vmatpush1.bf16.msra.mxu0 0
  %6024 = vmatprep.subr.bf16.mxu0 0
  %6025 = vmatpush1.bf16.msra.mxu0 0
  %6026 = vmatprep.subr.bf16.mxu0 0
  %6027 = vmatpush1.bf16.msra.mxu0 0
  %6028 = vmatprep.subr.bf16.mxu0 0
  %6029 = vmatpush1.bf16.msra.mxu0 0
  %6030 = vmatprep.subr.bf16.mxu0 0
  %6031 = vmatpush1.bf16.msra.mxu0 0
  %6032 = vmatprep.mubr.bf16.mxu0 0
  %6033 = vmatmul.mubr.bf16.gmra.mrb[0].mxu0 %v102
  %v6034 = vpop.f32.mrb[0].mxu0
  %v6035 = vadd.f32 0.0, %v6034
  %v6036 = vpop.f32.mrb[0].mxu0
  %v6037 = vpop.f32.mrb[0].mxu0
  %v6038 = vadd.f32 0.0, %v6037
  %v6039 = vpop.f32.mrb[0].mxu0
  %6040 = vmatprep.mubr.bf16.mxu0 0
  %6041 = vmatmul.mubr.bf16.gmra.mrb[0].mxu0 %v105
  %v6042 = vpop.f32.mrb[0].mxu0
  %v6043 = vadd.f32 0.0, %v6042
  %v6044 = vpop.f32.mrb[0].mxu0
  %v6045 = vpop.f32.mrb[0].mxu0
  %v6046 = vadd.f32 0.0, %v6045
  %v6047 = vpop.f32.mrb[0].mxu0
  %6048 = vmatprep.mubr.bf16.mxu0 0
  %6049 = vmatmul.mubr.bf16.gmra.mrb[0].mxu0 %v108
  %v6050 = vpop.f32.mrb[0].mxu0
  %v6051 = vadd.f32 0.0, %v6050
  %v6052 = vpop.f32.mrb[0].mxu0
  %v6053 = vpop.f32.mrb[0].mxu0
  %v6054 = vadd.f32 0.0, %v6053
  %v6055 = vpop.f32.mrb[0].mxu0
  %6056 = vmatprep.mubr.bf16.mxu0 0
  %6057 = vmatmul.mubr.bf16.gmra.mrb[0].mxu0 %v111
  %v6058 = vpop.f32.mrb[0].mxu0
  %v6059 = vadd.f32 0.0, %v6058
  %v6060 = vpop.f32.mrb[0].mxu0
  %v6061 = vpop.f32.mrb[0].mxu0
  %v6062 = vadd.f32 0.0, %v6061
  %v6063 = vpop.f32.mrb[0].mxu0
  %6064 = vdwg.mxu0
  %v6065 = vld [vmem:[%s8 + $0x820] sm:$0xff]
  %v6066 = vld [vmem:[%s8 + $0x828] sm:$0xff]
  %v6067 = vld [vmem:[%s8 + $0x830] sm:$0xff]
  %v6068 = vld [vmem:[%s8 + $0x838] sm:$0xff]
  %v6069 = vld [vmem:[%s8 + $0x840] sm:$0xff]
  %v6070 = vld [vmem:[%s8 + $0x848] sm:$0xff]
  %v6071 = vld [vmem:[%s8 + $0x850] sm:$0xff]
  %v6072 = vld [vmem:[%s8 + $0x858] sm:$0xff]
  %v6073 = vld [vmem:[%s8 + $0x860] sm:$0xff]
  %v6074 = vld [vmem:[%s8 + $0x868] sm:$0xff]
  %v6075 = vld [vmem:[%s8 + $0x870] sm:$0xff]
  %v6076 = vld [vmem:[%s8 + $0x878] sm:$0xff]
  %v6077 = vld [vmem:[%s8 + $0x880] sm:$0xff]
  %v6078 = vld [vmem:[%s8 + $0x888] sm:$0xff]
  %v6079 = vld [vmem:[%s8 + $0x890] sm:$0xff]
  %v6080 = vld [vmem:[%s8 + $0x898] sm:$0xff]
  %v6082 = vsel %vm194, %v6051, 0
  %v6085 = vsel %vm194, %v6054, 0
  %v6088 = vsel %vm194, %v6059, 0
  %v6091 = vsel %vm194, %v6062, 0
  %6093 = vmatprep.subr.mxu0 0.0
  %6094 = vmatpush1.msra.mxu0 %v6073
  %6095 = vmatprep.subr.mxu0 0.0
  %6096 = vmatpush1.msra.mxu0 %v6074
  %6097 = vmatprep.subr.mxu0 0.0
  %6098 = vmatpush1.msra.mxu0 %v6075
  %6099 = vmatprep.subr.mxu0 0.0
  %6100 = vmatpush1.msra.mxu0 %v6076
  %6101 = vmatprep.subr.mxu0 0.0
  %6102 = vmatpush1.msra.mxu0 %v6077
  %6103 = vmatprep.subr.mxu0 0.0
  %6104 = vmatpush1.msra.mxu0 %v6078
  %6105 = vmatprep.subr.mxu0 0.0
  %6106 = vmatpush1.msra.mxu0 %v6079
  %6107 = vmatprep.subr.mxu0 0.0
  %6108 = vmatpush1.msra.mxu0 %v6080
  %6109 = vmatprep.subr.mxu0 0.0
  %6110 = vmatpush1.msra.mxu0 0.0
  %6111 = vmatprep.subr.mxu0 0.0
  %6112 = vmatpush1.msra.mxu0 0.0
  %6113 = vmatprep.subr.mxu0 0.0
  %6114 = vmatpush1.msra.mxu0 0.0
  %6115 = vmatprep.subr.mxu0 0.0
  %6116 = vmatpush1.msra.mxu0 0.0
  %6117 = vmatprep.subr.mxu0 0.0
  %6118 = vmatpush1.msra.mxu0 0.0
  %6119 = vmatprep.subr.mxu0 0.0
  %6120 = vmatpush1.msra.mxu0 0.0
  %6121 = vmatprep.subr.mxu0 0.0
  %6122 = vmatpush1.msra.mxu0 0.0
  %6123 = vmatprep.subr.mxu0 0.0
  %6124 = vmatpush1.msra.mxu0 0.0
  %6125 = vmatprep.subr.mxu0 0.0
  %6126 = vmatpush1.msra.mxu0 0.0
  %6127 = vmatprep.subr.mxu0 0.0
  %6128 = vmatpush1.msra.mxu0 0.0
  %6129 = vmatprep.subr.mxu0 0.0
  %6130 = vmatpush1.msra.mxu0 0.0
  %6131 = vmatprep.subr.mxu0 0.0
  %6132 = vmatpush1.msra.mxu0 0.0
  %6133 = vmatprep.subr.mxu0 0.0
  %6134 = vmatpush1.msra.mxu0 0.0
  %6135 = vmatprep.subr.mxu0 0.0
  %6136 = vmatpush1.msra.mxu0 0.0
  %6137 = vmatprep.subr.mxu0 0.0
  %6138 = vmatpush1.msra.mxu0 0.0
  %6139 = vmatprep.subr.mxu0 0.0
  %6140 = vmatpush1.msra.mxu0 0.0
  %6141 = vmatprep.subr.mxu0 0.0
  %6142 = vmatpush1.msra.mxu0 0.0
  %6143 = vmatprep.subr.mxu0 0.0
  %6144 = vmatpush1.msra.mxu0 0.0
  %6145 = vmatprep.subr.mxu0 0.0
  %6146 = vmatpush1.msra.mxu0 0.0
  %6147 = vmatprep.subr.mxu0 0.0
  %6148 = vmatpush1.msra.mxu0 0.0
  %6149 = vmatprep.subr.mxu0 0.0
  %6150 = vmatpush1.msra.mxu0 0.0
  %6151 = vmatprep.subr.mxu0 0.0
  %6152 = vmatpush1.msra.mxu0 0.0
  %6153 = vmatprep.subr.mxu0 0.0
  %6154 = vmatpush1.msra.mxu0 0.0
  %6155 = vmatprep.subr.mxu0 0.0
  %6156 = vmatpush1.msra.mxu0 0.0
  %6157 = vmatprep.mubr.f32.mxu0 0.0
  %6158 = vmatmul.mubr.f32.gmra.mrb[0].mxu0 %v6082
  %v6159 = vpop.f32.mrb[0].mxu0
  %v6160 = vadd.f32 0.0, %v6159
  %v6161 = vpop.f32.mrb[0].mxu0
  %6162 = vmatprep.mubr.f32.mxu0 0.0
  %6163 = vmatmul.mubr.f32.gmra.mrb[0].mxu0 %v6085
  %v6164 = vpop.f32.mrb[0].mxu0
  %v6165 = vadd.f32 0.0, %v6164
  %v6166 = vpop.f32.mrb[0].mxu0
  %6167 = vmatprep.mubr.f32.mxu0 0.0
  %6168 = vmatmul.mubr.f32.gmra.mrb[0].mxu0 %v6088
  %v6169 = vpop.f32.mrb[0].mxu0
  %v6170 = vadd.f32 0.0, %v6169
  %v6171 = vpop.f32.mrb[0].mxu0
  %6172 = vmatprep.mubr.f32.mxu0 0.0
  %6173 = vmatmul.mubr.f32.gmra.mrb[0].mxu0 %v6091
  %v6174 = vpop.f32.mrb[0].mxu0
  %v6175 = vadd.f32 0.0, %v6174
  %v6176 = vpop.f32.mrb[0].mxu0
  %6177 = vdwg.mxu0
  %v6179 = vsel %vm194, %v6035, 0
  %v6182 = vsel %vm194, %v6038, 0
  %v6185 = vsel %vm194, %v6043, 0
  %v6188 = vsel %vm194, %v6046, 0
  %6190 = vmatprep.subr.mxu0 0.0
  %6191 = vmatpush1.msra.mxu0 %v6065
  %6192 = vmatprep.subr.mxu0 0.0
  %6193 = vmatpush1.msra.mxu0 %v6066
  %6194 = vmatprep.subr.mxu0 0.0
  %6195 = vmatpush1.msra.mxu0 %v6067
  %6196 = vmatprep.subr.mxu0 0.0
  %6197 = vmatpush1.msra.mxu0 %v6068
  %6198 = vmatprep.subr.mxu0 0.0
  %6199 = vmatpush1.msra.mxu0 %v6069
  %6200 = vmatprep.subr.mxu0 0.0
  %6201 = vmatpush1.msra.mxu0 %v6070
  %6202 = vmatprep.subr.mxu0 0.0
  %6203 = vmatpush1.msra.mxu0 %v6071
  %6204 = vmatprep.subr.mxu0 0.0
  %6205 = vmatpush1.msra.mxu0 %v6072
  %6206 = vmatprep.subr.mxu0 0.0
  %6207 = vmatpush1.msra.mxu0 0.0
  %6208 = vmatprep.subr.mxu0 0.0
  %6209 = vmatpush1.msra.mxu0 0.0
  %6210 = vmatprep.subr.mxu0 0.0
  %6211 = vmatpush1.msra.mxu0 0.0
  %6212 = vmatprep.subr.mxu0 0.0
  %6213 = vmatpush1.msra.mxu0 0.0
  %6214 = vmatprep.subr.mxu0 0.0
  %6215 = vmatpush1.msra.mxu0 0.0
  %6216 = vmatprep.subr.mxu0 0.0
  %6217 = vmatpush1.msra.mxu0 0.0
  %6218 = vmatprep.subr.mxu0 0.0
  %6219 = vmatpush1.msra.mxu0 0.0
  %6220 = vmatprep.subr.mxu0 0.0
  %6221 = vmatpush1.msra.mxu0 0.0
  %6222 = vmatprep.subr.mxu0 0.0
  %6223 = vmatpush1.msra.mxu0 0.0
  %6224 = vmatprep.subr.mxu0 0.0
  %6225 = vmatpush1.msra.mxu0 0.0
  %6226 = vmatprep.subr.mxu0 0.0
  %6227 = vmatpush1.msra.mxu0 0.0
  %6228 = vmatprep.subr.mxu0 0.0
  %6229 = vmatpush1.msra.mxu0 0.0
  %6230 = vmatprep.subr.mxu0 0.0
  %6231 = vmatpush1.msra.mxu0 0.0
  %6232 = vmatprep.subr.mxu0 0.0
  %6233 = vmatpush1.msra.mxu0 0.0
  %6234 = vmatprep.subr.mxu0 0.0
  %6235 = vmatpush1.msra.mxu0 0.0
  %6236 = vmatprep.subr.mxu0 0.0
  %6237 = vmatpush1.msra.mxu0 0.0
  %6238 = vmatprep.subr.mxu0 0.0
  %6239 = vmatpush1.msra.mxu0 0.0
  %6240 = vmatprep.subr.mxu0 0.0
  %6241 = vmatpush1.msra.mxu0 0.0
  %6242 = vmatprep.subr.mxu0 0.0
  %6243 = vmatpush1.msra.mxu0 0.0
  %6244 = vmatprep.subr.mxu0 0.0
  %6245 = vmatpush1.msra.mxu0 0.0
  %6246 = vmatprep.subr.mxu0 0.0
  %6247 = vmatpush1.msra.mxu0 0.0
  %6248 = vmatprep.subr.mxu0 0.0
  %6249 = vmatpush1.msra.mxu0 0.0
  %6250 = vmatprep.subr.mxu0 0.0
  %6251 = vmatpush1.msra.mxu0 0.0
  %6252 = vmatprep.subr.mxu0 0.0
  %6253 = vmatpush1.msra.mxu0 0.0
  %6254 = vmatprep.mubr.f32.mxu0 0.0
  %6255 = vmatmul.mubr.f32.gmra.mrb[0].mxu0 %v6179
  %v6256 = vpop.f32.mrb[0].mxu0
  %v6257 = vadd.f32 %v6160, %v6256
  %v6258 = vpop.f32.mrb[0].mxu0
  %6259 = vmatprep.mubr.f32.mxu0 0.0
  %6260 = vmatmul.mubr.f32.gmra.mrb[0].mxu0 %v6182
  %v6261 = vpop.f32.mrb[0].mxu0
  %v6262 = vadd.f32 %v6165, %v6261
  %v6263 = vpop.f32.mrb[0].mxu0
  %6264 = vmatprep.mubr.f32.mxu0 0.0
  %6265 = vmatmul.mubr.f32.gmra.mrb[0].mxu0 %v6185
  %v6266 = vpop.f32.mrb[0].mxu0
  %v6267 = vadd.f32 %v6170, %v6266
  %v6268 = vpop.f32.mrb[0].mxu0
  %6269 = vmatprep.mubr.f32.mxu0 0.0
  %6270 = vmatmul.mubr.f32.gmra.mrb[0].mxu0 %v6188
  %v6271 = vpop.f32.mrb[0].mxu0
  %v6272 = vadd.f32 %v6175, %v6271
  %v6273 = vpop.f32.mrb[0].mxu0
  %6274 = vdwg.mxu0
  %v6275 = vld [vmem:[%s8 + $0x8a0] sm:$0xff]
  %6276 = vmatprep.subr.mxu0 0.0
  %6277 = vmatpush1.msra.mxu0 %v6275
  %6278 = vmatprep.subr.mxu0 0.0
  %6279 = vmatpush1.msra.mxu0 0.0
  %6280 = vmatprep.subr.mxu0 0.0
  %6281 = vmatpush1.msra.mxu0 0.0
  %6282 = vmatprep.subr.mxu0 0.0
  %6283 = vmatpush1.msra.mxu0 0.0
  %6284 = vmatprep.subr.mxu0 0.0
  %6285 = vmatpush1.msra.mxu0 0.0
  %6286 = vmatprep.subr.mxu0 0.0
  %6287 = vmatpush1.msra.mxu0 0.0
  %6288 = vmatprep.subr.mxu0 0.0
  %6289 = vmatpush1.msra.mxu0 0.0
  %6290 = vmatprep.subr.mxu0 0.0
  %6291 = vmatpush1.msra.mxu0 0.0
  %6292 = vmatprep.subr.mxu0 0.0
  %6293 = vmatpush1.msra.mxu0 0.0
  %6294 = vmatprep.subr.mxu0 0.0
  %6295 = vmatpush1.msra.mxu0 0.0
  %6296 = vmatprep.subr.mxu0 0.0
  %6297 = vmatpush1.msra.mxu0 0.0
  %6298 = vmatprep.subr.mxu0 0.0
  %6299 = vmatpush1.msra.mxu0 0.0
  %6300 = vmatprep.subr.mxu0 0.0
  %6301 = vmatpush1.msra.mxu0 0.0
  %6302 = vmatprep.subr.mxu0 0.0
  %6303 = vmatpush1.msra.mxu0 0.0
  %6304 = vmatprep.subr.mxu0 0.0
  %6305 = vmatpush1.msra.mxu0 0.0
  %6306 = vmatprep.subr.mxu0 0.0
  %6307 = vmatpush1.msra.mxu0 0.0
  %6308 = vmatprep.subr.mxu0 0.0
  %6309 = vmatpush1.msra.mxu0 0.0
  %6310 = vmatprep.subr.mxu0 0.0
  %6311 = vmatpush1.msra.mxu0 0.0
  %6312 = vmatprep.subr.mxu0 0.0
  %6313 = vmatpush1.msra.mxu0 0.0
  %6314 = vmatprep.subr.mxu0 0.0
  %6315 = vmatpush1.msra.mxu0 0.0
  %6316 = vmatprep.subr.mxu0 0.0
  %6317 = vmatpush1.msra.mxu0 0.0
  %6318 = vmatprep.subr.mxu0 0.0
  %6319 = vmatpush1.msra.mxu0 0.0
  %6320 = vmatprep.subr.mxu0 0.0
  %6321 = vmatpush1.msra.mxu0 0.0
  %6322 = vmatprep.subr.mxu0 0.0
  %6323 = vmatpush1.msra.mxu0 0.0
  %6324 = vmatprep.subr.mxu0 0.0
  %6325 = vmatpush1.msra.mxu0 0.0
  %6326 = vmatprep.subr.mxu0 0.0
  %6327 = vmatpush1.msra.mxu0 0.0
  %6328 = vmatprep.subr.mxu0 0.0
  %6329 = vmatpush1.msra.mxu0 0.0
  %6330 = vmatprep.subr.mxu0 0.0
  %6331 = vmatpush1.msra.mxu0 0.0
  %6332 = vmatprep.subr.mxu0 0.0
  %6333 = vmatpush1.msra.mxu0 0.0
  %6334 = vmatprep.subr.mxu0 0.0
  %6335 = vmatpush1.msra.mxu0 0.0
  %6336 = vmatprep.subr.mxu0 0.0
  %6337 = vmatpush1.msra.mxu0 0.0
  %6338 = vmatprep.subr.mxu0 0.0
  %6339 = vmatpush1.msra.mxu0 0.0
  %6340 = vmatprep.mubr.f32.mxu0 0.0
  %6341 = vmatmul.mubr.f32.gmra.mrb[0].mxu0 %v392
  %v6342 = vpop.f32.mrb[0].mxu0
  %v6343 = vadd.f32 0.0, %v6342
  %v6344 = vpop.f32.mrb[0].mxu0
  %6345 = vmatprep.mubr.f32.mxu0 0.0
  %6346 = vmatmul.mubr.f32.gmra.mrb[0].mxu0 %v395
  %v6347 = vpop.f32.mrb[0].mxu0
  %v6348 = vadd.f32 0.0, %v6347
  %v6349 = vpop.f32.mrb[0].mxu0
  %6350 = vmatprep.mubr.f32.mxu0 0.0
  %6351 = vmatmul.mubr.f32.gmra.mrb[0].mxu0 %v398
  %v6352 = vpop.f32.mrb[0].mxu0
  %v6353 = vadd.f32 0.0, %v6352
  %v6354 = vpop.f32.mrb[0].mxu0
  %6355 = vmatprep.mubr.f32.mxu0 0.0
  %6356 = vmatmul.mubr.f32.gmra.mrb[0].mxu0 %v401
  %v6357 = vpop.f32.mrb[0].mxu0
  %v6358 = vadd.f32 0.0, %v6357
  %v6359 = vpop.f32.mrb[0].mxu0
  %6360 = vdwg.mxu0
  %v6361 = vadd.f32 %v6257, %v6343
  %v6362 = vadd.f32 %v6262, %v6348
  %v6363 = vadd.f32 %v6267, %v6353
  %v6364 = vadd.f32 %v6272, %v6358
  %v6365 = vlaneseq
  %v6366 = vshrl.u32 %v6365, 7
  %v6367 = vsub.s32 4, %v6366
  %v6368 = vrot.slane %v69, %v6367
  %v6369 = vadd.f32 %v6361, %v6368
  %v6370 = vadd.f32 %v6362, %v6368
  %v6371 = vadd.f32 %v6363, %v6368
  %v6372 = vadd.f32 %v6364, %v6368
  %v6373 = vpack.c.bf16 %v6370, %v6369
  %v6374 = vpack.c.bf16 %v6372, %v6371
  %6375 = vmatprep.subr.bf16.mxu0 0
  %6376 = vmatpush1.bf16.msra.mxu0 %v6373
  %6377 = vmatprep.subr.bf16.mxu0 0
  %6378 = vmatpush1.bf16.msra.mxu0 %v6374
  %6379 = vmatprep.subr.bf16.mxu0 0
  %6380 = vmatpush1.bf16.msra.mxu0 0
  %6381 = vmatprep.subr.bf16.mxu0 0
  %6382 = vmatpush1.bf16.msra.mxu0 0
  %6383 = vmatprep.subr.bf16.mxu0 0
  %6384 = vmatpush1.bf16.msra.mxu0 0
  %6385 = vmatprep.subr.bf16.mxu0 0
  %6386 = vmatpush1.bf16.msra.mxu0 0
  %6387 = vmatprep.subr.bf16.mxu0 0
  %6388 = vmatpush1.bf16.msra.mxu0 0
  %6389 = vmatprep.subr.bf16.mxu0 0
  %6390 = vmatpush1.bf16.msra.mxu0 0
  %6391 = vmatprep.subr.bf16.mxu0 0
  %6392 = vmatpush1.bf16.msra.mxu0 0
  %6393 = vmatprep.subr.bf16.mxu0 0
  %6394 = vmatpush1.bf16.msra.mxu0 0
  %6395 = vmatprep.subr.bf16.mxu0 0
  %6396 = vmatpush1.bf16.msra.mxu0 0
  %6397 = vmatprep.subr.bf16.mxu0 0
  %6398 = vmatpush1.bf16.msra.mxu0 0
  %6399 = vmatprep.subr.bf16.mxu0 0
  %6400 = vmatpush1.bf16.msra.mxu0 0
  %6401 = vmatprep.subr.bf16.mxu0 0
  %6402 = vmatpush1.bf16.msra.mxu0 0
  %6403 = vmatprep.subr.bf16.mxu0 0
  %6404 = vmatpush1.bf16.msra.mxu0 0
  %6405 = vmatprep.subr.bf16.mxu0 0
  %6406 = vmatpush1.bf16.msra.mxu0 0
  %6407 = vmatprep.mubr.bf16.mxu0 0
  %6408 = vmatmul.mubr.bf16.gmra.mrb[0].mxu0 %v509
  %v6409 = vpop.f32.mrb[0].mxu0
  %v6410 = vadd.f32 0.0, %v6409
  %v6411 = vpop.f32.mrb[0].mxu0
  %v6412 = vpop.f32.mrb[0].mxu0
  %v6413 = vadd.f32 0.0, %v6412
  %v6414 = vpop.f32.mrb[0].mxu0
  %6415 = vdwg.mxu0
  %v6416 = vmul.bf16 %v6373, %v6373
  %v6417 = vmul.bf16 %v6374, %v6374
  %6418 = vmatprep.subr.bf16.mxu0 0
  %6419 = vmatpush1.bf16.msra.mxu0 %v6416
  %6420 = vmatprep.subr.bf16.mxu0 0
  %6421 = vmatpush1.bf16.msra.mxu0 %v6417
  %6422 = vmatprep.subr.bf16.mxu0 0
  %6423 = vmatpush1.bf16.msra.mxu0 0
  %6424 = vmatprep.subr.bf16.mxu0 0
  %6425 = vmatpush1.bf16.msra.mxu0 0
  %6426 = vmatprep.subr.bf16.mxu0 0
  %6427 = vmatpush1.bf16.msra.mxu0 0
  %6428 = vmatprep.subr.bf16.mxu0 0
  %6429 = vmatpush1.bf16.msra.mxu0 0
  %6430 = vmatprep.subr.bf16.mxu0 0
  %6431 = vmatpush1.bf16.msra.mxu0 0
  %6432 = vmatprep.subr.bf16.mxu0 0
  %6433 = vmatpush1.bf16.msra.mxu0 0
  %6434 = vmatprep.subr.bf16.mxu0 0
  %6435 = vmatpush1.bf16.msra.mxu0 0
  %6436 = vmatprep.subr.bf16.mxu0 0
  %6437 = vmatpush1.bf16.msra.mxu0 0
  %6438 = vmatprep.subr.bf16.mxu0 0
  %6439 = vmatpush1.bf16.msra.mxu0 0
  %6440 = vmatprep.subr.bf16.mxu0 0
  %6441 = vmatpush1.bf16.msra.mxu0 0
  %6442 = vmatprep.subr.bf16.mxu0 0
  %6443 = vmatpush1.bf16.msra.mxu0 0
  %6444 = vmatprep.subr.bf16.mxu0 0
  %6445 = vmatpush1.bf16.msra.mxu0 0
  %6446 = vmatprep.subr.bf16.mxu0 0
  %6447 = vmatpush1.bf16.msra.mxu0 0
  %6448 = vmatprep.subr.bf16.mxu0 0
  %6449 = vmatpush1.bf16.msra.mxu0 0
  %6450 = vmatprep.mubr.bf16.mxu0 0
  %6451 = vmatmul.mubr.bf16.gmra.mrb[0].mxu0 %v509
  %v6452 = vpop.f32.mrb[0].mxu0
  %v6453 = vadd.f32 0.0, %v6452
  %v6454 = vpop.f32.mrb[0].mxu0
  %v6455 = vpop.f32.mrb[0].mxu0
  %v6456 = vadd.f32 0.0, %v6455
  %v6457 = vpop.f32.mrb[0].mxu0
  %6458 = vdwg.mxu0
  %v6459 = vmul.f32 %v6410, %v605
  %v6460 = vmul.f32 %v6413, %v607
  %v6461 = vmul.f32 %v6453, %v605
  %v6462 = vmul.f32 %v6456, %v607
  %v6463 = vmul.f32 %v6459, %v6459
  %v6464 = vmul.f32 %v6460, %v6460
  %v6465 = vsub.f32 %v6461, %v6463
  %v6466 = vsub.f32 %v6462, %v6464
  %v6467 = vmax.f32 %v6465, 0.0
  %v6468 = vmax.f32 %v6466, 0.0
  %v6469 = vadd.f32 %v6467, 1e-30
  %v6470 = vadd.f32 %v6468, 1e-30
  %v6471 = vrsqrt.pop %v6469
  %v6472 = vmul.f32 %v6469, %v6471
  %vm6473 = vcmp.eq.f32.partialorder %v6469, inf
  %v6474 = vsel %vm6473, %v6469, %v6472
  %vm6475 = vcmp.eq.f32.partialorder %v6469, 0.0
  %v6476 = vand.u32 %v6469, 2147483648
  %v6477 = vsel %vm6475, %v6476, %v6474
  %v6478 = vrsqrt.pop %v6470
  %v6479 = vmul.f32 %v6470, %v6478
  %vm6480 = vcmp.eq.f32.partialorder %v6470, inf
  %v6481 = vsel %vm6480, %v6470, %v6479
  %vm6482 = vcmp.eq.f32.partialorder %v6470, 0.0
  %v6483 = vand.u32 %v6470, 2147483648
  %v6484 = vsel %vm6482, %v6483, %v6481
  %v6485 = vadd.f32 %v6369, %v820
  %v6486 = vadd.f32 %v6370, %v821
  %v6487 = vadd.f32 %v6371, %v822
  %v6488 = vadd.f32 %v6372, %v823
  %v6489 = vadd.f32 %v6369, %v824
  %v6490 = vadd.f32 %v6370, %v825
  %v6491 = vadd.f32 %v6371, %v826
  %v6492 = vadd.f32 %v6372, %v827
  %v6493 = vadd.f32 %v6369, %v828
  %v6494 = vadd.f32 %v6370, %v829
  %v6495 = vadd.f32 %v6371, %v830
  %v6496 = vadd.f32 %v6372, %v831
  %v6497 = vadd.f32 %v6369, %v832
  %v6498 = vadd.f32 %v6370, %v833
  %v6499 = vadd.f32 %v6371, %v834
  %v6500 = vadd.f32 %v6372, %v835
  %v6501 = vadd.f32 %v6369, %v836
  %v6502 = vadd.f32 %v6370, %v837
  %v6503 = vadd.f32 %v6371, %v838
  %v6504 = vadd.f32 %v6372, %v839
  %v6505 = vadd.f32 %v6369, %v840
  %v6506 = vadd.f32 %v6370, %v841
  %v6507 = vadd.f32 %v6371, %v842
  %v6508 = vadd.f32 %v6372, %v843
  %v6509 = vadd.f32 %v6369, %v844
  %v6510 = vadd.f32 %v6370, %v845
  %v6511 = vadd.f32 %v6371, %v846
  %v6512 = vadd.f32 %v6372, %v847
  %v6513 = vadd.f32 %v6369, %v848
  %v6514 = vadd.f32 %v6370, %v849
  %v6515 = vadd.f32 %v6371, %v850
  %v6516 = vadd.f32 %v6372, %v851
  %v6517 = vadd.f32 %v6369, %v852
  %v6518 = vadd.f32 %v6370, %v853
  %v6519 = vadd.f32 %v6371, %v854
  %v6520 = vadd.f32 %v6372, %v855
  %v6521 = vadd.f32 %v6369, %v856
  %v6522 = vadd.f32 %v6370, %v857
  %v6523 = vadd.f32 %v6371, %v858
  %v6524 = vadd.f32 %v6372, %v859
  %v6525 = vadd.f32 %v6369, %v860
  %v6526 = vadd.f32 %v6370, %v861
  %v6527 = vadd.f32 %v6371, %v862
  %v6528 = vadd.f32 %v6372, %v863
  %v6529 = vadd.f32 %v6369, %v864
  %v6530 = vadd.f32 %v6370, %v865
  %v6531 = vadd.f32 %v6371, %v866
  %v6532 = vadd.f32 %v6372, %v867
  %v6533 = vadd.f32 %v6369, %v868
  %v6534 = vadd.f32 %v6370, %v869
  %v6535 = vadd.f32 %v6371, %v870
  %v6536 = vadd.f32 %v6372, %v871
  %v6537 = vadd.f32 %v6369, %v872
  %v6538 = vadd.f32 %v6370, %v873
  %v6539 = vadd.f32 %v6371, %v874
  %v6540 = vadd.f32 %v6372, %v875
  %v6541 = vadd.f32 %v6369, %v876
  %v6542 = vadd.f32 %v6370, %v877
  %v6543 = vadd.f32 %v6371, %v878
  %v6544 = vadd.f32 %v6372, %v879
  %v6545 = vadd.f32 %v6369, %v880
  %v6546 = vadd.f32 %v6370, %v881
  %v6547 = vadd.f32 %v6371, %v882
  %v6548 = vadd.f32 %v6372, %v883
  %v6549 = vsel %vm194, %v6485, -inf
  %v6550 = vsel %vm194, %v6486, -inf
  %v6551 = vmax.f32 %v6549, %v6550
  %v6552 = vsel %vm194, %v6487, -inf
  %v6553 = vmax.f32 %v6551, %v6552
  %v6554 = vsel %vm194, %v6488, -inf
  %v6555 = vmax.f32 %v6553, %v6554
  %v6556 = vrot.slane %v6555, 4
  %v6557 = vmax.f32 %v6555, %v6556
  %v6558 = vrot.slane %v6557, 2
  %v6559 = vmax.f32 %v6557, %v6558
  %v6560 = vrot.slane %v6559, 1
  %v6561 = vmax.f32 %v6559, %v6560
  %v6562 = vsel %vm194, %v6489, -inf
  %v6563 = vsel %vm194, %v6490, -inf
  %v6564 = vmax.f32 %v6562, %v6563
  %v6565 = vsel %vm194, %v6491, -inf
  %v6566 = vmax.f32 %v6564, %v6565
  %v6567 = vsel %vm194, %v6492, -inf
  %v6568 = vmax.f32 %v6566, %v6567
  %v6569 = vrot.slane %v6568, 4
  %v6570 = vmax.f32 %v6568, %v6569
  %v6571 = vrot.slane %v6570, 2
  %v6572 = vmax.f32 %v6570, %v6571
  %v6573 = vrot.slane %v6572, 1
  %v6574 = vmax.f32 %v6572, %v6573
  %v6575 = vsel %vm194, %v6493, -inf
  %v6576 = vsel %vm194, %v6494, -inf
  %v6577 = vmax.f32 %v6575, %v6576
  %v6578 = vsel %vm194, %v6495, -inf
  %v6579 = vmax.f32 %v6577, %v6578
  %v6580 = vsel %vm194, %v6496, -inf
  %v6581 = vmax.f32 %v6579, %v6580
  %v6582 = vrot.slane %v6581, 4
  %v6583 = vmax.f32 %v6581, %v6582
  %v6584 = vrot.slane %v6583, 2
  %v6585 = vmax.f32 %v6583, %v6584
  %v6586 = vrot.slane %v6585, 1
  %v6587 = vmax.f32 %v6585, %v6586
  %v6588 = vsel %vm194, %v6497, -inf
  %v6589 = vsel %vm194, %v6498, -inf
  %v6590 = vmax.f32 %v6588, %v6589
  %v6591 = vsel %vm194, %v6499, -inf
  %v6592 = vmax.f32 %v6590, %v6591
  %v6593 = vsel %vm194, %v6500, -inf
  %v6594 = vmax.f32 %v6592, %v6593
  %v6595 = vrot.slane %v6594, 4
  %v6596 = vmax.f32 %v6594, %v6595
  %v6597 = vrot.slane %v6596, 2
  %v6598 = vmax.f32 %v6596, %v6597
  %v6599 = vrot.slane %v6598, 1
  %v6600 = vmax.f32 %v6598, %v6599
  %v6601 = vsel %vm194, %v6501, -inf
  %v6602 = vsel %vm194, %v6502, -inf
  %v6603 = vmax.f32 %v6601, %v6602
  %v6604 = vsel %vm194, %v6503, -inf
  %v6605 = vmax.f32 %v6603, %v6604
  %v6606 = vsel %vm194, %v6504, -inf
  %v6607 = vmax.f32 %v6605, %v6606
  %v6608 = vrot.slane %v6607, 4
  %v6609 = vmax.f32 %v6607, %v6608
  %v6610 = vrot.slane %v6609, 2
  %v6611 = vmax.f32 %v6609, %v6610
  %v6612 = vrot.slane %v6611, 1
  %v6613 = vmax.f32 %v6611, %v6612
  %v6614 = vsel %vm194, %v6505, -inf
  %v6615 = vsel %vm194, %v6506, -inf
  %v6616 = vmax.f32 %v6614, %v6615
  %v6617 = vsel %vm194, %v6507, -inf
  %v6618 = vmax.f32 %v6616, %v6617
  %v6619 = vsel %vm194, %v6508, -inf
  %v6620 = vmax.f32 %v6618, %v6619
  %v6621 = vrot.slane %v6620, 4
  %v6622 = vmax.f32 %v6620, %v6621
  %v6623 = vrot.slane %v6622, 2
  %v6624 = vmax.f32 %v6622, %v6623
  %v6625 = vrot.slane %v6624, 1
  %v6626 = vmax.f32 %v6624, %v6625
  %v6627 = vsel %vm194, %v6509, -inf
  %v6628 = vsel %vm194, %v6510, -inf
  %v6629 = vmax.f32 %v6627, %v6628
  %v6630 = vsel %vm194, %v6511, -inf
  %v6631 = vmax.f32 %v6629, %v6630
  %v6632 = vsel %vm194, %v6512, -inf
  %v6633 = vmax.f32 %v6631, %v6632
  %v6634 = vrot.slane %v6633, 4
  %v6635 = vmax.f32 %v6633, %v6634
  %v6636 = vrot.slane %v6635, 2
  %v6637 = vmax.f32 %v6635, %v6636
  %v6638 = vrot.slane %v6637, 1
  %v6639 = vmax.f32 %v6637, %v6638
  %v6640 = vsel %vm194, %v6513, -inf
  %v6641 = vsel %vm194, %v6514, -inf
  %v6642 = vmax.f32 %v6640, %v6641
  %v6643 = vsel %vm194, %v6515, -inf
  %v6644 = vmax.f32 %v6642, %v6643
  %v6645 = vsel %vm194, %v6516, -inf
  %v6646 = vmax.f32 %v6644, %v6645
  %v6647 = vrot.slane %v6646, 4
  %v6648 = vmax.f32 %v6646, %v6647
  %v6649 = vrot.slane %v6648, 2
  %v6650 = vmax.f32 %v6648, %v6649
  %v6651 = vrot.slane %v6650, 1
  %v6652 = vmax.f32 %v6650, %v6651
  %v6653 = vsel %vm194, %v6517, -inf
  %v6654 = vsel %vm194, %v6518, -inf
  %v6655 = vmax.f32 %v6653, %v6654
  %v6656 = vsel %vm194, %v6519, -inf
  %v6657 = vmax.f32 %v6655, %v6656
  %v6658 = vsel %vm194, %v6520, -inf
  %v6659 = vmax.f32 %v6657, %v6658
  %v6660 = vrot.slane %v6659, 4
  %v6661 = vmax.f32 %v6659, %v6660
  %v6662 = vrot.slane %v6661, 2
  %v6663 = vmax.f32 %v6661, %v6662
  %v6664 = vrot.slane %v6663, 1
  %v6665 = vmax.f32 %v6663, %v6664
  %v6666 = vsel %vm194, %v6521, -inf
  %v6667 = vsel %vm194, %v6522, -inf
  %v6668 = vmax.f32 %v6666, %v6667
  %v6669 = vsel %vm194, %v6523, -inf
  %v6670 = vmax.f32 %v6668, %v6669
  %v6671 = vsel %vm194, %v6524, -inf
  %v6672 = vmax.f32 %v6670, %v6671
  %v6673 = vrot.slane %v6672, 4
  %v6674 = vmax.f32 %v6672, %v6673
  %v6675 = vrot.slane %v6674, 2
  %v6676 = vmax.f32 %v6674, %v6675
  %v6677 = vrot.slane %v6676, 1
  %v6678 = vmax.f32 %v6676, %v6677
  %v6679 = vsel %vm194, %v6525, -inf
  %v6680 = vsel %vm194, %v6526, -inf
  %v6681 = vmax.f32 %v6679, %v6680
  %v6682 = vsel %vm194, %v6527, -inf
  %v6683 = vmax.f32 %v6681, %v6682
  %v6684 = vsel %vm194, %v6528, -inf
  %v6685 = vmax.f32 %v6683, %v6684
  %v6686 = vrot.slane %v6685, 4
  %v6687 = vmax.f32 %v6685, %v6686
  %v6688 = vrot.slane %v6687, 2
  %v6689 = vmax.f32 %v6687, %v6688
  %v6690 = vrot.slane %v6689, 1
  %v6691 = vmax.f32 %v6689, %v6690
  %v6692 = vsel %vm194, %v6529, -inf
  %v6693 = vsel %vm194, %v6530, -inf
  %v6694 = vmax.f32 %v6692, %v6693
  %v6695 = vsel %vm194, %v6531, -inf
  %v6696 = vmax.f32 %v6694, %v6695
  %v6697 = vsel %vm194, %v6532, -inf
  %v6698 = vmax.f32 %v6696, %v6697
  %v6699 = vrot.slane %v6698, 4
  %v6700 = vmax.f32 %v6698, %v6699
  %v6701 = vrot.slane %v6700, 2
  %v6702 = vmax.f32 %v6700, %v6701
  %v6703 = vrot.slane %v6702, 1
  %v6704 = vmax.f32 %v6702, %v6703
  %v6705 = vsel %vm194, %v6533, -inf
  %v6706 = vsel %vm194, %v6534, -inf
  %v6707 = vmax.f32 %v6705, %v6706
  %v6708 = vsel %vm194, %v6535, -inf
  %v6709 = vmax.f32 %v6707, %v6708
  %v6710 = vsel %vm194, %v6536, -inf
  %v6711 = vmax.f32 %v6709, %v6710
  %v6712 = vrot.slane %v6711, 4
  %v6713 = vmax.f32 %v6711, %v6712
  %v6714 = vrot.slane %v6713, 2
  %v6715 = vmax.f32 %v6713, %v6714
  %v6716 = vrot.slane %v6715, 1
  %v6717 = vmax.f32 %v6715, %v6716
  %v6718 = vsel %vm194, %v6537, -inf
  %v6719 = vsel %vm194, %v6538, -inf
  %v6720 = vmax.f32 %v6718, %v6719
  %v6721 = vsel %vm194, %v6539, -inf
  %v6722 = vmax.f32 %v6720, %v6721
  %v6723 = vsel %vm194, %v6540, -inf
  %v6724 = vmax.f32 %v6722, %v6723
  %v6725 = vrot.slane %v6724, 4
  %v6726 = vmax.f32 %v6724, %v6725
  %v6727 = vrot.slane %v6726, 2
  %v6728 = vmax.f32 %v6726, %v6727
  %v6729 = vrot.slane %v6728, 1
  %v6730 = vmax.f32 %v6728, %v6729
  %v6731 = vsel %vm194, %v6541, -inf
  %v6732 = vsel %vm194, %v6542, -inf
  %v6733 = vmax.f32 %v6731, %v6732
  %v6734 = vsel %vm194, %v6543, -inf
  %v6735 = vmax.f32 %v6733, %v6734
  %v6736 = vsel %vm194, %v6544, -inf
  %v6737 = vmax.f32 %v6735, %v6736
  %v6738 = vrot.slane %v6737, 4
  %v6739 = vmax.f32 %v6737, %v6738
  %v6740 = vrot.slane %v6739, 2
  %v6741 = vmax.f32 %v6739, %v6740
  %v6742 = vrot.slane %v6741, 1
  %v6743 = vmax.f32 %v6741, %v6742
  %v6744 = vsel %vm194, %v6545, -inf
  %v6745 = vsel %vm194, %v6546, -inf
  %v6746 = vmax.f32 %v6744, %v6745
  %v6747 = vsel %vm194, %v6547, -inf
  %v6748 = vmax.f32 %v6746, %v6747
  %v6749 = vsel %vm194, %v6548, -inf
  %v6750 = vmax.f32 %v6748, %v6749
  %v6751 = vrot.slane %v6750, 4
  %v6752 = vmax.f32 %v6750, %v6751
  %v6753 = vrot.slane %v6752, 2
  %v6754 = vmax.f32 %v6752, %v6753
  %v6755 = vrot.slane %v6754, 1
  %v6756 = vmax.f32 %v6754, %v6755
  %v6757 = vmul.f32 %v6459, %v1159
  %v6758 = vmul.f32 %v6460, %v1164
  %v6759 = vmul.f32 %v6561, %v1159
  %v6760 = vmul.f32 %v6574, %v1168
  %v6761 = vmul.f32 %v6587, %v1169
  %v6762 = vmul.f32 %v6600, %v1170
  %v6763 = vmul.f32 %v6613, %v1171
  %v6764 = vmul.f32 %v6626, %v1172
  %v6765 = vmul.f32 %v6639, %v1173
  %v6766 = vmul.f32 %v6652, %v1174
  %v6767 = vmul.f32 %v6665, %v1164
  %v6768 = vmul.f32 %v6678, %v1175
  %v6769 = vmul.f32 %v6691, %v1176
  %v6770 = vmul.f32 %v6704, %v1177
  %v6771 = vmul.f32 %v6717, %v1178
  %v6772 = vmul.f32 %v6730, %v1179
  %v6773 = vmul.f32 %v6743, %v1180
  %v6774 = vmul.f32 %v6756, %v1181
  %v6775 = vmul.f32 %v6410, %v1159
  %v6776 = vmul.f32 %v6413, %v1164
  %v6777 = vmul.f32 %v6477, %v1159
  %v6778 = vmul.f32 %v6484, %v1164
  %v6779 = vld [vmem:[%s8 + $0x8a8] sm:$0xff]
  %v6780 = vld [vmem:[%s8 + $0x8b0] sm:$0xff]
  %v6781 = vld [vmem:[%s8 + $0x8b8] sm:$0xff]
  %v6782 = vld [vmem:[%s8 + $0x8c0] sm:$0xff]
  %v6783 = vld [vmem:[%s8 + $0x8c8] sm:$0xff]
  %v6784 = vld [vmem:[%s8 + $0x8d0] sm:$0xff]
  %v6785 = vld [vmem:[%s8 + $0x8d8] sm:$0xff]
  %v6786 = vld [vmem:[%s8 + $0x8e0] sm:$0xff]
  %v6787 = vld [vmem:[%s8 + $0x8e8] sm:$0xff]
  %v6788 = vld [vmem:[%s8 + $0x8f0] sm:$0xff]
  %v6789 = vld [vmem:[%s8 + $0x8f8] sm:$0xff]
  %v6790 = vld [vmem:[%s8 + $0x900] sm:$0xff]
  %v6791 = vld [vmem:[%s8 + $0x908] sm:$0xff]
  %v6792 = vld [vmem:[%s8 + $0x910] sm:$0xff]
  %v6793 = vld [vmem:[%s8 + $0x918] sm:$0xff]
  %v6794 = vld [vmem:[%s8 + $0x920] sm:$0xff]
  %v6796 = vsel %vm194, %v6757, 0
  %v6799 = vsel %vm194, %v6758, 0
  %6801 = vmatprep.subr.mxu0 0.0
  %6802 = vmatpush1.msra.mxu0 %v6787
  %6803 = vmatprep.subr.mxu0 0.0
  %6804 = vmatpush1.msra.mxu0 %v6788
  %6805 = vmatprep.subr.mxu0 0.0
  %6806 = vmatpush1.msra.mxu0 %v6789
  %6807 = vmatprep.subr.mxu0 0.0
  %6808 = vmatpush1.msra.mxu0 %v6790
  %6809 = vmatprep.subr.mxu0 0.0
  %6810 = vmatpush1.msra.mxu0 %v6791
  %6811 = vmatprep.subr.mxu0 0.0
  %6812 = vmatpush1.msra.mxu0 %v6792
  %6813 = vmatprep.subr.mxu0 0.0
  %6814 = vmatpush1.msra.mxu0 %v6793
  %6815 = vmatprep.subr.mxu0 0.0
  %6816 = vmatpush1.msra.mxu0 %v6794
  %6817 = vmatprep.subr.mxu0 0.0
  %6818 = vmatpush1.msra.mxu0 0.0
  %6819 = vmatprep.subr.mxu0 0.0
  %6820 = vmatpush1.msra.mxu0 0.0
  %6821 = vmatprep.subr.mxu0 0.0
  %6822 = vmatpush1.msra.mxu0 0.0
  %6823 = vmatprep.subr.mxu0 0.0
  %6824 = vmatpush1.msra.mxu0 0.0
  %6825 = vmatprep.subr.mxu0 0.0
  %6826 = vmatpush1.msra.mxu0 0.0
  %6827 = vmatprep.subr.mxu0 0.0
  %6828 = vmatpush1.msra.mxu0 0.0
  %6829 = vmatprep.subr.mxu0 0.0
  %6830 = vmatpush1.msra.mxu0 0.0
  %6831 = vmatprep.subr.mxu0 0.0
  %6832 = vmatpush1.msra.mxu0 0.0
  %6833 = vmatprep.subr.mxu0 0.0
  %6834 = vmatpush1.msra.mxu0 0.0
  %6835 = vmatprep.subr.mxu0 0.0
  %6836 = vmatpush1.msra.mxu0 0.0
  %6837 = vmatprep.subr.mxu0 0.0
  %6838 = vmatpush1.msra.mxu0 0.0
  %6839 = vmatprep.subr.mxu0 0.0
  %6840 = vmatpush1.msra.mxu0 0.0
  %6841 = vmatprep.subr.mxu0 0.0
  %6842 = vmatpush1.msra.mxu0 0.0
  %6843 = vmatprep.subr.mxu0 0.0
  %6844 = vmatpush1.msra.mxu0 0.0
  %6845 = vmatprep.subr.mxu0 0.0
  %6846 = vmatpush1.msra.mxu0 0.0
  %6847 = vmatprep.subr.mxu0 0.0
  %6848 = vmatpush1.msra.mxu0 0.0
  %6849 = vmatprep.subr.mxu0 0.0
  %6850 = vmatpush1.msra.mxu0 0.0
  %6851 = vmatprep.subr.mxu0 0.0
  %6852 = vmatpush1.msra.mxu0 0.0
  %6853 = vmatprep.subr.mxu0 0.0
  %6854 = vmatpush1.msra.mxu0 0.0
  %6855 = vmatprep.subr.mxu0 0.0
  %6856 = vmatpush1.msra.mxu0 0.0
  %6857 = vmatprep.subr.mxu0 0.0
  %6858 = vmatpush1.msra.mxu0 0.0
  %6859 = vmatprep.subr.mxu0 0.0
  %6860 = vmatpush1.msra.mxu0 0.0
  %6861 = vmatprep.subr.mxu0 0.0
  %6862 = vmatpush1.msra.mxu0 0.0
  %6863 = vmatprep.subr.mxu0 0.0
  %6864 = vmatpush1.msra.mxu0 0.0
  %6865 = vmatprep.mubr.f32.mxu0 0.0
  %6866 = vmatmul.mubr.f32.gmra.mrb[0].mxu0 %v6796
  %v6867 = vpop.f32.mrb[0].mxu0
  %v6868 = vadd.f32 0.0, %v6867
  %v6869 = vpop.f32.mrb[0].mxu0
  %6870 = vmatprep.mubr.f32.mxu0 0.0
  %6871 = vmatmul.mubr.f32.gmra.mrb[0].mxu0 %v6799
  %v6872 = vpop.f32.mrb[0].mxu0
  %v6873 = vadd.f32 0.0, %v6872
  %v6874 = vpop.f32.mrb[0].mxu0
  %6875 = vdwg.mxu0
  %v6877 = vsel %vm194, %v5997, 0
  %v6880 = vsel %vm194, %v5998, 0
  %6882 = vmatprep.subr.mxu0 0.0
  %6883 = vmatpush1.msra.mxu0 %v6779
  %6884 = vmatprep.subr.mxu0 0.0
  %6885 = vmatpush1.msra.mxu0 %v6780
  %6886 = vmatprep.subr.mxu0 0.0
  %6887 = vmatpush1.msra.mxu0 %v6781
  %6888 = vmatprep.subr.mxu0 0.0
  %6889 = vmatpush1.msra.mxu0 %v6782
  %6890 = vmatprep.subr.mxu0 0.0
  %6891 = vmatpush1.msra.mxu0 %v6783
  %6892 = vmatprep.subr.mxu0 0.0
  %6893 = vmatpush1.msra.mxu0 %v6784
  %6894 = vmatprep.subr.mxu0 0.0
  %6895 = vmatpush1.msra.mxu0 %v6785
  %6896 = vmatprep.subr.mxu0 0.0
  %6897 = vmatpush1.msra.mxu0 %v6786
  %6898 = vmatprep.subr.mxu0 0.0
  %6899 = vmatpush1.msra.mxu0 0.0
  %6900 = vmatprep.subr.mxu0 0.0
  %6901 = vmatpush1.msra.mxu0 0.0
  %6902 = vmatprep.subr.mxu0 0.0
  %6903 = vmatpush1.msra.mxu0 0.0
  %6904 = vmatprep.subr.mxu0 0.0
  %6905 = vmatpush1.msra.mxu0 0.0
  %6906 = vmatprep.subr.mxu0 0.0
  %6907 = vmatpush1.msra.mxu0 0.0
  %6908 = vmatprep.subr.mxu0 0.0
  %6909 = vmatpush1.msra.mxu0 0.0
  %6910 = vmatprep.subr.mxu0 0.0
  %6911 = vmatpush1.msra.mxu0 0.0
  %6912 = vmatprep.subr.mxu0 0.0
  %6913 = vmatpush1.msra.mxu0 0.0
  %6914 = vmatprep.subr.mxu0 0.0
  %6915 = vmatpush1.msra.mxu0 0.0
  %6916 = vmatprep.subr.mxu0 0.0
  %6917 = vmatpush1.msra.mxu0 0.0
  %6918 = vmatprep.subr.mxu0 0.0
  %6919 = vmatpush1.msra.mxu0 0.0
  %6920 = vmatprep.subr.mxu0 0.0
  %6921 = vmatpush1.msra.mxu0 0.0
  %6922 = vmatprep.subr.mxu0 0.0
  %6923 = vmatpush1.msra.mxu0 0.0
  %6924 = vmatprep.subr.mxu0 0.0
  %6925 = vmatpush1.msra.mxu0 0.0
  %6926 = vmatprep.subr.mxu0 0.0
  %6927 = vmatpush1.msra.mxu0 0.0
  %6928 = vmatprep.subr.mxu0 0.0
  %6929 = vmatpush1.msra.mxu0 0.0
  %6930 = vmatprep.subr.mxu0 0.0
  %6931 = vmatpush1.msra.mxu0 0.0
  %6932 = vmatprep.subr.mxu0 0.0
  %6933 = vmatpush1.msra.mxu0 0.0
  %6934 = vmatprep.subr.mxu0 0.0
  %6935 = vmatpush1.msra.mxu0 0.0
  %6936 = vmatprep.subr.mxu0 0.0
  %6937 = vmatpush1.msra.mxu0 0.0
  %6938 = vmatprep.subr.mxu0 0.0
  %6939 = vmatpush1.msra.mxu0 0.0
  %6940 = vmatprep.subr.mxu0 0.0
  %6941 = vmatpush1.msra.mxu0 0.0
  %6942 = vmatprep.subr.mxu0 0.0
  %6943 = vmatpush1.msra.mxu0 0.0
  %6944 = vmatprep.subr.mxu0 0.0
  %6945 = vmatpush1.msra.mxu0 0.0
  %6946 = vmatprep.mubr.f32.mxu0 0.0
  %6947 = vmatmul.mubr.f32.gmra.mrb[0].mxu0 %v6877
  %v6948 = vpop.f32.mrb[0].mxu0
  %v6949 = vadd.f32 %v6868, %v6948
  %v6950 = vpop.f32.mrb[0].mxu0
  %6951 = vmatprep.mubr.f32.mxu0 0.0
  %6952 = vmatmul.mubr.f32.gmra.mrb[0].mxu0 %v6880
  %v6953 = vpop.f32.mrb[0].mxu0
  %v6954 = vadd.f32 %v6873, %v6953
  %v6955 = vpop.f32.mrb[0].mxu0
  %6956 = vdwg.mxu0
  %v6957 = vld [vmem:[%s8 + $0x928] sm:$0xff]
  %v6958 = vld [vmem:[%s8 + $0x930] sm:$0xff]
  %v6959 = vld [vmem:[%s8 + $0x938] sm:$0xff]
  %v6960 = vld [vmem:[%s8 + $0x940] sm:$0xff]
  %v6961 = vld [vmem:[%s8 + $0x948] sm:$0xff]
  %v6962 = vld [vmem:[%s8 + $0x950] sm:$0xff]
  %v6963 = vld [vmem:[%s8 + $0x958] sm:$0xff]
  %v6964 = vld [vmem:[%s8 + $0x960] sm:$0xff]
  %v6981 = vrot.slane %v6760, 7
  %v6982 = vsel %vm1419, %v6981, %v6759
  %v6983 = vrot.slane %v6761, 6
  %v6984 = vsel %vm1422, %v6983, %v6982
  %v6985 = vrot.slane %v6762, 5
  %v6986 = vsel %vm1425, %v6985, %v6984
  %v6987 = vrot.slane %v6763, 4
  %v6988 = vsel %vm1428, %v6987, %v6986
  %v6989 = vrot.slane %v6764, 3
  %v6990 = vsel %vm1431, %v6989, %v6988
  %v6991 = vrot.slane %v6765, 2
  %v6992 = vsel %vm1434, %v6991, %v6990
  %v6993 = vrot.slane %v6766, 1
  %v6994 = vsel %vm1437, %v6993, %v6992
  %v6995 = vrot.slane %v6768, 7
  %v6996 = vsel %vm1419, %v6995, %v6767
  %v6997 = vrot.slane %v6769, 6
  %v6998 = vsel %vm1422, %v6997, %v6996
  %v6999 = vrot.slane %v6770, 5
  %v7000 = vsel %vm1425, %v6999, %v6998
  %v7001 = vrot.slane %v6771, 4
  %v7002 = vsel %vm1428, %v7001, %v7000
  %v7003 = vrot.slane %v6772, 3
  %v7004 = vsel %vm1431, %v7003, %v7002
  %v7005 = vrot.slane %v6773, 2
  %v7006 = vsel %vm1434, %v7005, %v7004
  %v7007 = vrot.slane %v6774, 1
  %v7008 = vsel %vm1437, %v7007, %v7006
  %v7009 = vsel %vm194, %v6994, 0
  %v7011 = vsel %vm194, %v7008, 0
  %7013 = vmatprep.subr.mxu0 0.0
  %7014 = vmatpush1.msra.mxu0 %v6957
  %7015 = vmatprep.subr.mxu0 0.0
  %7016 = vmatpush1.msra.mxu0 %v6958
  %7017 = vmatprep.subr.mxu0 0.0
  %7018 = vmatpush1.msra.mxu0 %v6959
  %7019 = vmatprep.subr.mxu0 0.0
  %7020 = vmatpush1.msra.mxu0 %v6960
  %7021 = vmatprep.subr.mxu0 0.0
  %7022 = vmatpush1.msra.mxu0 %v6961
  %7023 = vmatprep.subr.mxu0 0.0
  %7024 = vmatpush1.msra.mxu0 %v6962
  %7025 = vmatprep.subr.mxu0 0.0
  %7026 = vmatpush1.msra.mxu0 %v6963
  %7027 = vmatprep.subr.mxu0 0.0
  %7028 = vmatpush1.msra.mxu0 %v6964
  %7029 = vmatprep.subr.mxu0 0.0
  %7030 = vmatpush1.msra.mxu0 0.0
  %7031 = vmatprep.subr.mxu0 0.0
  %7032 = vmatpush1.msra.mxu0 0.0
  %7033 = vmatprep.subr.mxu0 0.0
  %7034 = vmatpush1.msra.mxu0 0.0
  %7035 = vmatprep.subr.mxu0 0.0
  %7036 = vmatpush1.msra.mxu0 0.0
  %7037 = vmatprep.subr.mxu0 0.0
  %7038 = vmatpush1.msra.mxu0 0.0
  %7039 = vmatprep.subr.mxu0 0.0
  %7040 = vmatpush1.msra.mxu0 0.0
  %7041 = vmatprep.subr.mxu0 0.0
  %7042 = vmatpush1.msra.mxu0 0.0
  %7043 = vmatprep.subr.mxu0 0.0
  %7044 = vmatpush1.msra.mxu0 0.0
  %7045 = vmatprep.subr.mxu0 0.0
  %7046 = vmatpush1.msra.mxu0 0.0
  %7047 = vmatprep.subr.mxu0 0.0
  %7048 = vmatpush1.msra.mxu0 0.0
  %7049 = vmatprep.subr.mxu0 0.0
  %7050 = vmatpush1.msra.mxu0 0.0
  %7051 = vmatprep.subr.mxu0 0.0
  %7052 = vmatpush1.msra.mxu0 0.0
  %7053 = vmatprep.subr.mxu0 0.0
  %7054 = vmatpush1.msra.mxu0 0.0
  %7055 = vmatprep.subr.mxu0 0.0
  %7056 = vmatpush1.msra.mxu0 0.0
  %7057 = vmatprep.subr.mxu0 0.0
  %7058 = vmatpush1.msra.mxu0 0.0
  %7059 = vmatprep.subr.mxu0 0.0
  %7060 = vmatpush1.msra.mxu0 0.0
  %7061 = vmatprep.subr.mxu0 0.0
  %7062 = vmatpush1.msra.mxu0 0.0
  %7063 = vmatprep.subr.mxu0 0.0
  %7064 = vmatpush1.msra.mxu0 0.0
  %7065 = vmatprep.subr.mxu0 0.0
  %7066 = vmatpush1.msra.mxu0 0.0
  %7067 = vmatprep.subr.mxu0 0.0
  %7068 = vmatpush1.msra.mxu0 0.0
  %7069 = vmatprep.subr.mxu0 0.0
  %7070 = vmatpush1.msra.mxu0 0.0
  %7071 = vmatprep.subr.mxu0 0.0
  %7072 = vmatpush1.msra.mxu0 0.0
  %7073 = vmatprep.subr.mxu0 0.0
  %7074 = vmatpush1.msra.mxu0 0.0
  %7075 = vmatprep.subr.mxu0 0.0
  %7076 = vmatpush1.msra.mxu0 0.0
  %7077 = vmatprep.mubr.f32.mxu0 0.0
  %7078 = vmatmul.mubr.f32.gmra.mrb[0].mxu0 %v7009
  %v7079 = vpop.f32.mrb[0].mxu0
  %v7080 = vadd.f32 0.0, %v7079
  %v7081 = vpop.f32.mrb[0].mxu0
  %7082 = vmatprep.mubr.f32.mxu0 0.0
  %7083 = vmatmul.mubr.f32.gmra.mrb[0].mxu0 %v7011
  %v7084 = vpop.f32.mrb[0].mxu0
  %v7085 = vadd.f32 0.0, %v7084
  %v7086 = vpop.f32.mrb[0].mxu0
  %7087 = vdwg.mxu0
  %v7088 = vadd.f32 %v6949, %v7080
  %v7089 = vadd.f32 %v6954, %v7085
  %v7090 = vld [vmem:[%s8 + $0x968] sm:$0xff]
  %v7091 = vld [vmem:[%s8 + $0x970] sm:$0xff]
  %v7092 = vld [vmem:[%s8 + $0x978] sm:$0xff]
  %v7093 = vld [vmem:[%s8 + $0x980] sm:$0xff]
  %v7094 = vld [vmem:[%s8 + $0x988] sm:$0xff]
  %v7095 = vld [vmem:[%s8 + $0x990] sm:$0xff]
  %v7096 = vld [vmem:[%s8 + $0x998] sm:$0xff]
  %v7097 = vld [vmem:[%s8 + $0x9a0] sm:$0xff]
  %v7099 = vsel %vm194, %v6775, 0
  %v7102 = vsel %vm194, %v6776, 0
  %7104 = vmatprep.subr.mxu0 0.0
  %7105 = vmatpush1.msra.mxu0 %v7090
  %7106 = vmatprep.subr.mxu0 0.0
  %7107 = vmatpush1.msra.mxu0 %v7091
  %7108 = vmatprep.subr.mxu0 0.0
  %7109 = vmatpush1.msra.mxu0 %v7092
  %7110 = vmatprep.subr.mxu0 0.0
  %7111 = vmatpush1.msra.mxu0 %v7093
  %7112 = vmatprep.subr.mxu0 0.0
  %7113 = vmatpush1.msra.mxu0 %v7094
  %7114 = vmatprep.subr.mxu0 0.0
  %7115 = vmatpush1.msra.mxu0 %v7095
  %7116 = vmatprep.subr.mxu0 0.0
  %7117 = vmatpush1.msra.mxu0 %v7096
  %7118 = vmatprep.subr.mxu0 0.0
  %7119 = vmatpush1.msra.mxu0 %v7097
  %7120 = vmatprep.subr.mxu0 0.0
  %7121 = vmatpush1.msra.mxu0 0.0
  %7122 = vmatprep.subr.mxu0 0.0
  %7123 = vmatpush1.msra.mxu0 0.0
  %7124 = vmatprep.subr.mxu0 0.0
  %7125 = vmatpush1.msra.mxu0 0.0
  %7126 = vmatprep.subr.mxu0 0.0
  %7127 = vmatpush1.msra.mxu0 0.0
  %7128 = vmatprep.subr.mxu0 0.0
  %7129 = vmatpush1.msra.mxu0 0.0
  %7130 = vmatprep.subr.mxu0 0.0
  %7131 = vmatpush1.msra.mxu0 0.0
  %7132 = vmatprep.subr.mxu0 0.0
  %7133 = vmatpush1.msra.mxu0 0.0
  %7134 = vmatprep.subr.mxu0 0.0
  %7135 = vmatpush1.msra.mxu0 0.0
  %7136 = vmatprep.subr.mxu0 0.0
  %7137 = vmatpush1.msra.mxu0 0.0
  %7138 = vmatprep.subr.mxu0 0.0
  %7139 = vmatpush1.msra.mxu0 0.0
  %7140 = vmatprep.subr.mxu0 0.0
  %7141 = vmatpush1.msra.mxu0 0.0
  %7142 = vmatprep.subr.mxu0 0.0
  %7143 = vmatpush1.msra.mxu0 0.0
  %7144 = vmatprep.subr.mxu0 0.0
  %7145 = vmatpush1.msra.mxu0 0.0
  %7146 = vmatprep.subr.mxu0 0.0
  %7147 = vmatpush1.msra.mxu0 0.0
  %7148 = vmatprep.subr.mxu0 0.0
  %7149 = vmatpush1.msra.mxu0 0.0
  %7150 = vmatprep.subr.mxu0 0.0
  %7151 = vmatpush1.msra.mxu0 0.0
  %7152 = vmatprep.subr.mxu0 0.0
  %7153 = vmatpush1.msra.mxu0 0.0
  %7154 = vmatprep.subr.mxu0 0.0
  %7155 = vmatpush1.msra.mxu0 0.0
  %7156 = vmatprep.subr.mxu0 0.0
  %7157 = vmatpush1.msra.mxu0 0.0
  %7158 = vmatprep.subr.mxu0 0.0
  %7159 = vmatpush1.msra.mxu0 0.0
  %7160 = vmatprep.subr.mxu0 0.0
  %7161 = vmatpush1.msra.mxu0 0.0
  %7162 = vmatprep.subr.mxu0 0.0
  %7163 = vmatpush1.msra.mxu0 0.0
  %7164 = vmatprep.subr.mxu0 0.0
  %7165 = vmatpush1.msra.mxu0 0.0
  %7166 = vmatprep.subr.mxu0 0.0
  %7167 = vmatpush1.msra.mxu0 0.0
  %7168 = vmatprep.mubr.f32.mxu0 0.0
  %7169 = vmatmul.mubr.f32.gmra.mrb[0].mxu0 %v7099
  %v7170 = vpop.f32.mrb[0].mxu0
  %v7171 = vadd.f32 0.0, %v7170
  %v7172 = vpop.f32.mrb[0].mxu0
  %7173 = vmatprep.mubr.f32.mxu0 0.0
  %7174 = vmatmul.mubr.f32.gmra.mrb[0].mxu0 %v7102
  %v7175 = vpop.f32.mrb[0].mxu0
  %v7176 = vadd.f32 0.0, %v7175
  %v7177 = vpop.f32.mrb[0].mxu0
  %7178 = vdwg.mxu0
  %v7179 = vadd.f32 %v7088, %v7171
  %v7180 = vadd.f32 %v7089, %v7176
  %v7181 = vld [vmem:[%s8 + $0x9a8] sm:$0xff]
  %v7182 = vld [vmem:[%s8 + $0x9b0] sm:$0xff]
  %v7183 = vld [vmem:[%s8 + $0x9b8] sm:$0xff]
  %v7184 = vld [vmem:[%s8 + $0x9c0] sm:$0xff]
  %v7185 = vld [vmem:[%s8 + $0x9c8] sm:$0xff]
  %v7186 = vld [vmem:[%s8 + $0x9d0] sm:$0xff]
  %v7187 = vld [vmem:[%s8 + $0x9d8] sm:$0xff]
  %v7188 = vld [vmem:[%s8 + $0x9e0] sm:$0xff]
  %v7190 = vsel %vm194, %v6777, 0
  %v7193 = vsel %vm194, %v6778, 0
  %7195 = vmatprep.subr.mxu0 0.0
  %7196 = vmatpush1.msra.mxu0 %v7181
  %7197 = vmatprep.subr.mxu0 0.0
  %7198 = vmatpush1.msra.mxu0 %v7182
  %7199 = vmatprep.subr.mxu0 0.0
  %7200 = vmatpush1.msra.mxu0 %v7183
  %7201 = vmatprep.subr.mxu0 0.0
  %7202 = vmatpush1.msra.mxu0 %v7184
  %7203 = vmatprep.subr.mxu0 0.0
  %7204 = vmatpush1.msra.mxu0 %v7185
  %7205 = vmatprep.subr.mxu0 0.0
  %7206 = vmatpush1.msra.mxu0 %v7186
  %7207 = vmatprep.subr.mxu0 0.0
  %7208 = vmatpush1.msra.mxu0 %v7187
  %7209 = vmatprep.subr.mxu0 0.0
  %7210 = vmatpush1.msra.mxu0 %v7188
  %7211 = vmatprep.subr.mxu0 0.0
  %7212 = vmatpush1.msra.mxu0 0.0
  %7213 = vmatprep.subr.mxu0 0.0
  %7214 = vmatpush1.msra.mxu0 0.0
  %7215 = vmatprep.subr.mxu0 0.0
  %7216 = vmatpush1.msra.mxu0 0.0
  %7217 = vmatprep.subr.mxu0 0.0
  %7218 = vmatpush1.msra.mxu0 0.0
  %7219 = vmatprep.subr.mxu0 0.0
  %7220 = vmatpush1.msra.mxu0 0.0
  %7221 = vmatprep.subr.mxu0 0.0
  %7222 = vmatpush1.msra.mxu0 0.0
  %7223 = vmatprep.subr.mxu0 0.0
  %7224 = vmatpush1.msra.mxu0 0.0
  %7225 = vmatprep.subr.mxu0 0.0
  %7226 = vmatpush1.msra.mxu0 0.0
  %7227 = vmatprep.subr.mxu0 0.0
  %7228 = vmatpush1.msra.mxu0 0.0
  %7229 = vmatprep.subr.mxu0 0.0
  %7230 = vmatpush1.msra.mxu0 0.0
  %7231 = vmatprep.subr.mxu0 0.0
  %7232 = vmatpush1.msra.mxu0 0.0
  %7233 = vmatprep.subr.mxu0 0.0
  %7234 = vmatpush1.msra.mxu0 0.0
  %7235 = vmatprep.subr.mxu0 0.0
  %7236 = vmatpush1.msra.mxu0 0.0
  %7237 = vmatprep.subr.mxu0 0.0
  %7238 = vmatpush1.msra.mxu0 0.0
  %7239 = vmatprep.subr.mxu0 0.0
  %7240 = vmatpush1.msra.mxu0 0.0
  %7241 = vmatprep.subr.mxu0 0.0
  %7242 = vmatpush1.msra.mxu0 0.0
  %7243 = vmatprep.subr.mxu0 0.0
  %7244 = vmatpush1.msra.mxu0 0.0
  %7245 = vmatprep.subr.mxu0 0.0
  %7246 = vmatpush1.msra.mxu0 0.0
  %7247 = vmatprep.subr.mxu0 0.0
  %7248 = vmatpush1.msra.mxu0 0.0
  %7249 = vmatprep.subr.mxu0 0.0
  %7250 = vmatpush1.msra.mxu0 0.0
  %7251 = vmatprep.subr.mxu0 0.0
  %7252 = vmatpush1.msra.mxu0 0.0
  %7253 = vmatprep.subr.mxu0 0.0
  %7254 = vmatpush1.msra.mxu0 0.0
  %7255 = vmatprep.subr.mxu0 0.0
  %7256 = vmatpush1.msra.mxu0 0.0
  %7257 = vmatprep.subr.mxu0 0.0
  %7258 = vmatpush1.msra.mxu0 0.0
  %7259 = vmatprep.mubr.f32.mxu0 0.0
  %7260 = vmatmul.mubr.f32.gmra.mrb[0].mxu0 %v7190
  %v7261 = vpop.f32.mrb[0].mxu0
  %v7262 = vadd.f32 0.0, %v7261
  %v7263 = vpop.f32.mrb[0].mxu0
  %7264 = vmatprep.mubr.f32.mxu0 0.0
  %7265 = vmatmul.mubr.f32.gmra.mrb[0].mxu0 %v7193
  %v7266 = vpop.f32.mrb[0].mxu0
  %v7267 = vadd.f32 0.0, %v7266
  %v7268 = vpop.f32.mrb[0].mxu0
  %7269 = vdwg.mxu0
  %v7270 = vadd.f32 %v7179, %v7262
  %v7271 = vadd.f32 %v7180, %v7267
  %v7272 = vlaneseq
  %v7273 = vshrl.u32 %v7272, 7
  %v7274 = vsub.s32 5, %v7273
  %v7275 = vrot.slane %v69, %v7274
  %v7276 = vadd.f32 %v7270, %v7275
  %v7277 = vadd.f32 %v7271, %v7275
  %v7278 = vmul.f32 %v7276, %v1725
  %v7279 = vmul.f32 %v7277, %v1730
  %v7280 = vld [vmem:[%s8 + $0x9e8] sm:$0xff]
  %v7281 = vld [vmem:[%s8 + $0x9f0] sm:$0xff]
  %v7282 = vld [vmem:[%s8 + $0x9f8] sm:$0xff]
  %v7283 = vld [vmem:[%s8 + $0xa00] sm:$0xff]
  %v7284 = vld [vmem:[%s8 + $0xa08] sm:$0xff]
  %v7285 = vld [vmem:[%s8 + $0xa10] sm:$0xff]
  %v7286 = vld [vmem:[%s8 + $0xa18] sm:$0xff]
  %v7287 = vld [vmem:[%s8 + $0xa20] sm:$0xff]
  %v7288 = vlaneseq
  %v7289 = vshrl.u32 %v7288, 7
  %v7290 = vsub.s32 6, %v7289
  %v7291 = vrot.slane %v69, %v7290
  %v7293 = vsel %vm194, %v7278, 0
  %v7296 = vsel %vm194, %v7279, 0
  %7298 = vmatprep.subr.mxu0 0.0
  %7299 = vmatpush1.msra.mxu0 %v7280
  %7300 = vmatprep.subr.mxu0 0.0
  %7301 = vmatpush1.msra.mxu0 %v7281
  %7302 = vmatprep.subr.mxu0 0.0
  %7303 = vmatpush1.msra.mxu0 %v7282
  %7304 = vmatprep.subr.mxu0 0.0
  %7305 = vmatpush1.msra.mxu0 %v7283
  %7306 = vmatprep.subr.mxu0 0.0
  %7307 = vmatpush1.msra.mxu0 %v7284
  %7308 = vmatprep.subr.mxu0 0.0
  %7309 = vmatpush1.msra.mxu0 %v7285
  %7310 = vmatprep.subr.mxu0 0.0
  %7311 = vmatpush1.msra.mxu0 %v7286
  %7312 = vmatprep.subr.mxu0 0.0
  %7313 = vmatpush1.msra.mxu0 %v7287
  %7314 = vmatprep.subr.mxu0 0.0
  %7315 = vmatpush1.msra.mxu0 0.0
  %7316 = vmatprep.subr.mxu0 0.0
  %7317 = vmatpush1.msra.mxu0 0.0
  %7318 = vmatprep.subr.mxu0 0.0
  %7319 = vmatpush1.msra.mxu0 0.0
  %7320 = vmatprep.subr.mxu0 0.0
  %7321 = vmatpush1.msra.mxu0 0.0
  %7322 = vmatprep.subr.mxu0 0.0
  %7323 = vmatpush1.msra.mxu0 0.0
  %7324 = vmatprep.subr.mxu0 0.0
  %7325 = vmatpush1.msra.mxu0 0.0
  %7326 = vmatprep.subr.mxu0 0.0
  %7327 = vmatpush1.msra.mxu0 0.0
  %7328 = vmatprep.subr.mxu0 0.0
  %7329 = vmatpush1.msra.mxu0 0.0
  %7330 = vmatprep.subr.mxu0 0.0
  %7331 = vmatpush1.msra.mxu0 0.0
  %7332 = vmatprep.subr.mxu0 0.0
  %7333 = vmatpush1.msra.mxu0 0.0
  %7334 = vmatprep.subr.mxu0 0.0
  %7335 = vmatpush1.msra.mxu0 0.0
  %7336 = vmatprep.subr.mxu0 0.0
  %7337 = vmatpush1.msra.mxu0 0.0
  %7338 = vmatprep.subr.mxu0 0.0
  %7339 = vmatpush1.msra.mxu0 0.0
  %7340 = vmatprep.subr.mxu0 0.0
  %7341 = vmatpush1.msra.mxu0 0.0
  %7342 = vmatprep.subr.mxu0 0.0
  %7343 = vmatpush1.msra.mxu0 0.0
  %7344 = vmatprep.subr.mxu0 0.0
  %7345 = vmatpush1.msra.mxu0 0.0
  %7346 = vmatprep.subr.mxu0 0.0
  %7347 = vmatpush1.msra.mxu0 0.0
  %7348 = vmatprep.subr.mxu0 0.0
  %7349 = vmatpush1.msra.mxu0 0.0
  %7350 = vmatprep.subr.mxu0 0.0
  %7351 = vmatpush1.msra.mxu0 0.0
  %7352 = vmatprep.subr.mxu0 0.0
  %7353 = vmatpush1.msra.mxu0 0.0
  %7354 = vmatprep.subr.mxu0 0.0
  %7355 = vmatpush1.msra.mxu0 0.0
  %7356 = vmatprep.subr.mxu0 0.0
  %7357 = vmatpush1.msra.mxu0 0.0
  %7358 = vmatprep.subr.mxu0 0.0
  %7359 = vmatpush1.msra.mxu0 0.0
  %7360 = vmatprep.subr.mxu0 0.0
  %7361 = vmatpush1.msra.mxu0 0.0
  %7362 = vmatprep.mubr.f32.mxu0 0.0
  %7363 = vmatmul.mubr.f32.gmra.mrb[0].mxu0 %v7293
  %v7364 = vpop.f32.mrb[0].mxu0
  %v7365 = vadd.f32 %v7291, %v7364
  %v7366 = vpop.f32.mrb[0].mxu0
  %7367 = vmatprep.mubr.f32.mxu0 0.0
  %7368 = vmatmul.mubr.f32.gmra.mrb[0].mxu0 %v7296
  %v7369 = vpop.f32.mrb[0].mxu0
  %v7370 = vadd.f32 %v7291, %v7369
  %v7371 = vpop.f32.mrb[0].mxu0
  %7372 = vdwg.mxu0
  %vm7373 = vcmp.gt.f32.partialorder %v7365, 0.0
  %vm7374 = vcmp.gt.f32.partialorder %v7370, 0.0
  %v7375 = vmul.f32 %v7365, 0.01
  %v7376 = vmul.f32 %v7370, 0.01
  %v7377 = vsel %vm7373, %v7365, %v7375
  %v7378 = vsel %vm7374, %v7370, %v7376
  %v7379 = vadd.f32 %v7377, %v5997
  %v7380 = vadd.f32 %v7378, %v5998
  %v7381 = vmax.f32 %v7379, 0.0
  %v7382 = vmax.f32 %v7380, 0.0
  %v7383 = vld [vmem:[%s7] sm:$0x3]
  %v7384 = vlaneseq
  %v7385 = vshrl.u32 %v7384, 7
  %v7386 = vsub.s32 0, %v7385
  %v7387 = vrot.slane %v7383, %v7386
  %7389 = vbcast.lane.b32.xlu0 %v7387, 256
  %v7390 = vpop.permute.xlu0 %7389
  %s7392 = sor.u32 256, 8
  %7393 = vbcast.lane.b32.xlu0 %v7387, %s7392
  %v7394 = vpop.permute.xlu0 %7393
  %v7395 = vlaneseq
  %v7396 = vshrl.u32 %v7395, 7
  %v7397 = vsub.s32 1, %v7396
  %v7398 = vrot.slane %v7383, %v7397
  %7400 = vbcast.lane.b32.xlu0 %v7398, 256
  %v7401 = vpop.permute.xlu0 %7400
  %s7403 = sor.u32 256, 8
  %7404 = vbcast.lane.b32.xlu0 %v7398, %s7403
  %v7405 = vpop.permute.xlu0 %7404
  %v7406 = vadd.f32 %v7381, %v7390
  %v7407 = vadd.f32 %v7382, %v7394
  %v7408 = vadd.f32 %v7381, %v7401
  %v7409 = vadd.f32 %v7382, %v7405
  %v7410 = vsel %vm194, %v7406, -inf
  %v7411 = vsel %vm194, %v7407, -inf
  %v7412 = vmax.f32 %v7410, %v7411
  %v7413 = vrot.slane %v7412, 4
  %v7414 = vmax.f32 %v7412, %v7413
  %v7415 = vrot.slane %v7414, 2
  %v7416 = vmax.f32 %v7414, %v7415
  %v7417 = vrot.slane %v7416, 1
  %v7418 = vmax.f32 %v7416, %v7417
  %v7419 = vsel %vm194, %v7408, -inf
  %v7420 = vsel %vm194, %v7409, -inf
  %v7421 = vmax.f32 %v7419, %v7420
  %v7422 = vrot.slane %v7421, 4
  %v7423 = vmax.f32 %v7421, %v7422
  %v7424 = vrot.slane %v7423, 2
  %v7425 = vmax.f32 %v7423, %v7424
  %v7426 = vrot.slane %v7425, 1
  %v7427 = vmax.f32 %v7425, %v7426
  %v7428 = vld [vmem:[%s8 + $0xa28] sm:$0xff]
  %v7429 = vld [vmem:[%s8 + $0xa30] sm:$0xff]
  %v7430 = vld [vmem:[%s8 + $0xa38] sm:$0xff]
  %v7431 = vld [vmem:[%s8 + $0xa40] sm:$0xff]
  %v7432 = vld [vmem:[%s8 + $0xa48] sm:$0xff]
  %v7433 = vld [vmem:[%s8 + $0xa50] sm:$0xff]
  %v7434 = vld [vmem:[%s8 + $0xa58] sm:$0xff]
  %v7435 = vld [vmem:[%s8 + $0xa60] sm:$0xff]
  %v7436 = vlaneseq
  %v7437 = vshrl.u32 %v7436, 7
  %v7438 = vsub.s32 7, %v7437
  %v7439 = vrot.slane %v69, %v7438
  %v7442 = vsel %vm1419, %v7427, %v7418
  %v7443 = vsel %vm194, %v7442, 0
  %7445 = vmatprep.subr.mxu0 0.0
  %7446 = vmatpush1.msra.mxu0 %v7428
  %7447 = vmatprep.subr.mxu0 0.0
  %7448 = vmatpush1.msra.mxu0 %v7429
  %7449 = vmatprep.subr.mxu0 0.0
  %7450 = vmatpush1.msra.mxu0 %v7430
  %7451 = vmatprep.subr.mxu0 0.0
  %7452 = vmatpush1.msra.mxu0 %v7431
  %7453 = vmatprep.subr.mxu0 0.0
  %7454 = vmatpush1.msra.mxu0 %v7432
  %7455 = vmatprep.subr.mxu0 0.0
  %7456 = vmatpush1.msra.mxu0 %v7433
  %7457 = vmatprep.subr.mxu0 0.0
  %7458 = vmatpush1.msra.mxu0 %v7434
  %7459 = vmatprep.subr.mxu0 0.0
  %7460 = vmatpush1.msra.mxu0 %v7435
  %7461 = vmatprep.subr.mxu0 0.0
  %7462 = vmatpush1.msra.mxu0 0.0
  %7463 = vmatprep.subr.mxu0 0.0
  %7464 = vmatpush1.msra.mxu0 0.0
  %7465 = vmatprep.subr.mxu0 0.0
  %7466 = vmatpush1.msra.mxu0 0.0
  %7467 = vmatprep.subr.mxu0 0.0
  %7468 = vmatpush1.msra.mxu0 0.0
  %7469 = vmatprep.subr.mxu0 0.0
  %7470 = vmatpush1.msra.mxu0 0.0
  %7471 = vmatprep.subr.mxu0 0.0
  %7472 = vmatpush1.msra.mxu0 0.0
  %7473 = vmatprep.subr.mxu0 0.0
  %7474 = vmatpush1.msra.mxu0 0.0
  %7475 = vmatprep.subr.mxu0 0.0
  %7476 = vmatpush1.msra.mxu0 0.0
  %7477 = vmatprep.subr.mxu0 0.0
  %7478 = vmatpush1.msra.mxu0 0.0
  %7479 = vmatprep.subr.mxu0 0.0
  %7480 = vmatpush1.msra.mxu0 0.0
  %7481 = vmatprep.subr.mxu0 0.0
  %7482 = vmatpush1.msra.mxu0 0.0
  %7483 = vmatprep.subr.mxu0 0.0
  %7484 = vmatpush1.msra.mxu0 0.0
  %7485 = vmatprep.subr.mxu0 0.0
  %7486 = vmatpush1.msra.mxu0 0.0
  %7487 = vmatprep.subr.mxu0 0.0
  %7488 = vmatpush1.msra.mxu0 0.0
  %7489 = vmatprep.subr.mxu0 0.0
  %7490 = vmatpush1.msra.mxu0 0.0
  %7491 = vmatprep.subr.mxu0 0.0
  %7492 = vmatpush1.msra.mxu0 0.0
  %7493 = vmatprep.subr.mxu0 0.0
  %7494 = vmatpush1.msra.mxu0 0.0
  %7495 = vmatprep.subr.mxu0 0.0
  %7496 = vmatpush1.msra.mxu0 0.0
  %7497 = vmatprep.subr.mxu0 0.0
  %7498 = vmatpush1.msra.mxu0 0.0
  %7499 = vmatprep.subr.mxu0 0.0
  %7500 = vmatpush1.msra.mxu0 0.0
  %7501 = vmatprep.subr.mxu0 0.0
  %7502 = vmatpush1.msra.mxu0 0.0
  %7503 = vmatprep.subr.mxu0 0.0
  %7504 = vmatpush1.msra.mxu0 0.0
  %7505 = vmatprep.subr.mxu0 0.0
  %7506 = vmatpush1.msra.mxu0 0.0
  %7507 = vmatprep.subr.mxu0 0.0
  %7508 = vmatpush1.msra.mxu0 0.0
  %7509 = vmatprep.mubr.f32.mxu0 0.0
  %7510 = vmatmul.mubr.f32.gmra.mrb[0].mxu0 %v7443
  %v7511 = vpop.f32.mrb[0].mxu0
  %v7512 = vadd.f32 %v7439, %v7511
  %v7513 = vpop.f32.mrb[0].mxu0
  %7514 = vdwg.mxu0
  %v7515 = vmax.f32 %v7512, 0.0
  %vm7516 = vcmask 1024
  %7517 = vst.msk [vmem:[%s10] sm:$0x3] %vm7516, %v7515
  // Predicated region
  $region42: #{tpu_custom_call.1} parent=0 // pred_check
    _
  $region43: #{tpu_custom_call.1} parent=0 // pred_check_branch
    %7519 = sbr.rel (0) target = $region45
  $region44: #{tpu_custom_call.1} parent=0 // pred_region
    _
  $region45: #{tpu_custom_call.1} parent=0 // pred_fallthru
    _
  // Predicated region
  $region46: #{tpu_custom_call.1} parent=0 // pred_check
    _
  $region47: #{tpu_custom_call.1} parent=0 // pred_check_branch
    %7521 = sbr.rel (0) target = $region49
  $region48: #{tpu_custom_call.1} parent=0 // pred_region
    _
  $region49: #{tpu_custom_call.1} parent=0 // pred_fallthru
    _

</llo_original>
